<compile_context>
chip_gen: v7x
topology: tpu7x:2x2x1
jax: 0.10.0
libtpu: 0.0.40
codegen_flags: <defaults>
</compile_context>

<pallas_src>
import numpy as np
import jax
import jax.numpy as jnp
from jax import lax
from jax.experimental import pallas as pl
from jax.experimental.pallas import tpu as pltpu


def _spectral_normalize_oihw(w_oihw):
    """Normalize a conv weight (OIHW) by its largest singular value.

    PyTorch's spectral_norm estimates sigma with power iteration on
    weight.reshape(O, -1); for deterministic synthetic init we fold the exact
    value (host-side SVD) into the weights.
    """
    w = np.asarray(w_oihw, dtype=np.float64)
    sigma = np.linalg.svd(w.reshape(w.shape[0], -1), compute_uv=False)[0]
    return (w / sigma).astype(np.float32)


def make_dblock_kernel(Bblk, Hh, Wh, Cin, Cout, first_relu):
    """Kernel operating on 2x2-parity-de-interleaved NHWC data.

    x_ref holds x_d[b, k, a, w, c] = x[b, 2a+pi, 2w+pj, c] with k = pi*2+pj.
    """
    Rq = Bblk * Hh * Wh          # rows at pooled (quarter) resolution
    Rfull = 4 * Rq               # rows at full resolution (conv1 im2col)
    f32 = jnp.float32

    def kernel(x_ref, w1_ref, b1_ref, w3a_ref, b3a_ref, weff_ref, b3b_ref,
               o_ref, xpad_ref, hpad_ref, col_a_ref, col_b_ref):
        # ---- zero ONLY the 1-wide halo of the padded de-interleaved scratches.
        # Interiors are fully overwritten every grid step.
        xpad_ref[:, :, 0:1, :, :] = jnp.zeros((Bblk, 4, 1, Wh + 2, Cin), f32)
        xpad_ref[:, :, Hh + 1:Hh + 2, :, :] = jnp.zeros((Bblk, 4, 1, Wh + 2, Cin), f32)
        xpad_ref[:, :, :, 0:1, :] = jnp.zeros((Bblk, 4, Hh + 2, 1, Cin), f32)
        xpad_ref[:, :, :, Wh + 1:Wh + 2, :] = jnp.zeros((Bblk, 4, Hh + 2, 1, Cin), f32)
        hpad_ref[:, :, 0:1, :, :] = jnp.zeros((4, Bblk, 1, Wh + 2, Cout), f32)
        hpad_ref[:, :, Hh + 1:Hh + 2, :, :] = jnp.zeros((4, Bblk, 1, Wh + 2, Cout), f32)
        hpad_ref[:, :, :, 0:1, :] = jnp.zeros((4, Bblk, Hh + 2, 1, Cout), f32)
        hpad_ref[:, :, :, Wh + 1:Wh + 2, :] = jnp.zeros((4, Bblk, Hh + 2, 1, Cout), f32)

        x = x_ref[...]                                   # (Bblk, 4, Hh, Wh, Cin)

        # ---- shortcut branch: pool(conv1x1(x)) == (pooled x) @ W1 + b1 --------
        xs = 0.25 * (x[:, 0] + x[:, 1] + x[:, 2] + x[:, 3])   # (Bblk,Hh,Wh,Cin)
        sc = jnp.dot(xs.reshape(Rq, Cin), w1_ref[...],
                     preferred_element_type=f32) + b1_ref[...]

        # ---- main branch: optional ReLU, zero-pad into de-interleaved scratch --
        xm = jnp.maximum(x, 0.0) if first_relu else x         # relu(0)=0 -> halo ok
        xpad_ref[:, :, 1:Hh + 1, 1:Wh + 1, :] = xm

        # conv 3x3 #1 (padding=1, full resolution) as ONE im2col matmul, K=9*Cin.
        # Output rows ordered (pi, pj, b, a, w).  Each gather is a contiguous
        # static slice of the padded parity plane (si>>1 / si&1 pick plane+offset).
        xslab_cache = {}

        def xslab(kq, oi, oj):
            key = (kq, oi, oj)
            if key not in xslab_cache:
                xslab_cache[key] = (xpad_ref[:, kq, oi:oi + Hh, oj:oj + Wh, :]
                                    .reshape(Rq, Cin))
            return xslab_cache[key]

        for pi in range(2):
            for pj in range(2):
                row0 = (pi * 2 + pj) * Rq
                for ky in range(3):
                    for kx in range(3):
                        si, sj = pi + ky - 1, pj + kx - 1
                        kq = (si & 1) * 2 + (sj & 1)
                        oi, oj = (si >> 1) + 1, (sj >> 1) + 1
                        t = ky * 3 + kx
                        col_a_ref[row0:row0 + Rq, t * Cin:(t + 1) * Cin] = \
                            xslab(kq, oi, oj)

        h = jnp.dot(col_a_ref[...], w3a_ref[...],
                    preferred_element_type=f32) + b3a_ref[...]
        h = jnp.maximum(h, 0.0)                               # ReLU

        # h rows are (pi, pj, b, a, w): store into the padded parity planes.
        hpad_ref[:, :, 1:Hh + 1, 1:Wh + 1, :] = h.reshape(4, Bblk, Hh, Wh, Cout)

        # conv 3x3 #2 fused with the 2x2 avg-pool: stride-2 4x4 conv with the
        # host-folded weights W_eff -> ONE im2col matmul at quarter resolution.
        for p in range(4):
            for q in range(4):
                si, sj = p - 1, q - 1
                kq = (si & 1) * 2 + (sj & 1)
                oi, oj = (si >> 1) + 1, (sj >> 1) + 1
                t = p * 4 + q
                col_b_ref[:, t * Cout:(t + 1) * Cout] = (
                    hpad_ref[kq, :, oi:oi + Hh, oj:oj + Wh, :].reshape(Rq, Cout))

        main = jnp.dot(col_b_ref[...], weff_ref[...],
                       preferred_element_type=f32) + b3b_ref[...]

        # residual add; rows are already in (b, a, w) order == output layout.
        o_ref[...] = (main + sc).reshape(Bblk, Hh, Wh, Cout).astype(o_ref.dtype)

    return kernel


def dblock_pallas(x_nchw, params, first_relu=True, batch_block=None):
    B, Cin, H, W = x_nchw.shape
    Cout = params["w1"].shape[1]
    assert H % 2 == 0 and W % 2 == 0
    Hh, Wh = H // 2, W // 2
    Bblk = B if batch_block is None else batch_block
    assert B % Bblk == 0

    # NCHW -> de-interleaved channels-last (B, 4, H/2, W/2, C); plane k = pi*2+pj
    # holds x[:, :, pi::2, pj::2].  Single fused XLA transpose (replaces the
    # plain NCHW->NHWC transpose; no extra HBM round trip).
    x_d = jnp.transpose(
        x_nchw.astype(jnp.float32).reshape(B, Cin, Hh, 2, Wh, 2),
        (0, 3, 5, 2, 4, 1)).reshape(B, 4, Hh, Wh, Cin)

    kernel = make_dblock_kernel(Bblk, Hh, Wh, Cin, Cout, first_relu)
    out_nhwc = pl.pallas_call(
        kernel,
        out_shape=jax.ShapeDtypeStruct((B, Hh, Wh, Cout), jnp.float32),
        grid_spec=pltpu.PrefetchScalarGridSpec(
            num_scalar_prefetch=0,
            grid=(B // Bblk,),
            in_specs=[
                pl.BlockSpec((Bblk, 4, Hh, Wh, Cin), lambda b: (b, 0, 0, 0, 0)),  # x_d
                pl.BlockSpec((Cin, Cout), lambda b: (0, 0)),            # w 1x1
                pl.BlockSpec((1, Cout), lambda b: (0, 0)),              # b 1x1
                pl.BlockSpec((9 * Cin, Cout), lambda b: (0, 0)),        # w 3x3 #1
                pl.BlockSpec((1, Cout), lambda b: (0, 0)),              # b 3x3 #1
                pl.BlockSpec((16 * Cout, Cout), lambda b: (0, 0)),      # w_eff (conv2+pool)
                pl.BlockSpec((1, Cout), lambda b: (0, 0)),              # b 3x3 #2
            ],
            out_specs=pl.BlockSpec((Bblk, Hh, Wh, Cout), lambda b: (b, 0, 0, 0)),
            scratch_shapes=[
                pltpu.VMEM((Bblk, 4, Hh + 2, Wh + 2, Cin), jnp.float32),   # padded x planes
                pltpu.VMEM((4, Bblk, Hh + 2, Wh + 2, Cout), jnp.float32),  # padded mid planes
                pltpu.VMEM((4 * Bblk * Hh * Wh, 9 * Cin), jnp.float32),    # im2col conv1
                pltpu.VMEM((Bblk * Hh * Wh, 16 * Cout), jnp.float32),      # im2col conv2+pool
            ],
        ),
        compiler_params=pltpu.CompilerParams(dimension_semantics=("parallel",)),
    )(x_d, params["w1"], params["b1"], params["w3a_flat"], params["b3a"],
      params["w_eff_flat"], params["b3b"])

    return jnp.transpose(out_nhwc, (0, 3, 1, 2))                # back to NCHW


def make_params(key, Cin, Cout):
    k1, k2, k3, kb1, kb2, kb3 = jax.random.split(key, 6)
    w1_oihw = _spectral_normalize_oihw(
        jax.random.normal(k1, (Cout, Cin, 1, 1), jnp.float32) * 0.2)
    w3a_oihw = _spectral_normalize_oihw(
        jax.random.normal(k2, (Cout, Cin, 3, 3), jnp.float32) * 0.2)
    w3b_oihw = _spectral_normalize_oihw(
        jax.random.normal(k3, (Cout, Cout, 3, 3), jnp.float32) * 0.2)
    b1 = np.asarray(jax.random.normal(kb1, (Cout,), jnp.float32)) * 0.1
    b3a = np.asarray(jax.random.normal(kb2, (Cout,), jnp.float32)) * 0.1
    b3b = np.asarray(jax.random.normal(kb3, (Cout,), jnp.float32)) * 0.1

    w1_hwio = np.transpose(w1_oihw, (2, 3, 1, 0))     # (1,1,Cin,Cout)
    w3a_hwio = np.transpose(w3a_oihw, (2, 3, 1, 0))   # (3,3,Cin,Cout)
    w3b_hwio = np.transpose(w3b_oihw, (2, 3, 1, 0))   # (3,3,Cout,Cout)

    # Fold (3x3 conv #2, pad=1) followed by 2x2 avg-pool into one stride-2 4x4
    # conv:  W_eff[p,q] = 0.25 * sum_{di,dj in {0,1}} W2[p-di, q-dj]  (valid taps).
    w_eff = np.zeros((4, 4, Cout, Cout), np.float32)
    for p in range(4):
        for q in range(4):
            for di in range(2):
                for dj in range(2):
                    ky, kx = p - di, q - dj
                    if 0 <= ky < 3 and 0 <= kx < 3:
                        w_eff[p, q] += w3b_hwio[ky, kx]
    w_eff *= 0.25

    return dict(
        w1=jnp.asarray(w1_hwio.reshape(Cin, Cout)),
        w3a_flat=jnp.asarray(w3a_hwio.reshape(9 * Cin, Cout)),    # (ky,kx,cin)-major
        w_eff_flat=jnp.asarray(w_eff.reshape(16 * Cout, Cout)),   # (p,q,cmid)-major
        b1=jnp.asarray(b1.reshape(1, Cout)),
        b3a=jnp.asarray(b3a.reshape(1, Cout)),
        b3b=jnp.asarray(b3b.reshape(1, Cout)),
        # original-layout weights for the pure-JAX reference
        w1_hwio=jnp.asarray(w1_hwio), w3a_hwio=jnp.asarray(w3a_hwio),
        w3b_hwio=jnp.asarray(w3b_hwio),
    )


def _avgpool2(x_nhwc):
    B, H, W, C = x_nhwc.shape
    return x_nhwc.reshape(B, H // 2, 2, W // 2, 2, C).mean(axis=(2, 4))


def dblock_ref(x_nchw, params, first_relu=True):
    """Pure-JAX reference matching the PyTorch forward semantics."""
    x = jnp.transpose(x_nchw, (0, 2, 3, 1)).astype(jnp.float32)
    conv = lambda v, w, pad: lax.conv_general_dilated(
        v, w, (1, 1), pad, dimension_numbers=("NHWC", "HWIO", "NHWC"),
        precision=lax.Precision.HIGHEST)
    x1 = conv(x, params["w1_hwio"], "VALID") + params["b1"][0]
    x1 = _avgpool2(x1)
    h = jax.nn.relu(x) if first_relu else x
    h = conv(h, params["w3a_hwio"], ((1, 1), (1, 1))) + params["b3a"][0]
    h = jax.nn.relu(h)
    h = conv(h, params["w3b_hwio"], ((1, 1), (1, 1))) + params["b3b"][0]
    h = _avgpool2(h)
    return jnp.transpose(x1 + h, (0, 3, 1, 2))


if __name__ == "__main__":
    B, Cin, Cout, H, W = 2, 4, 8, 16, 16
    key = jax.random.PRNGKey(0)
    kx, kp = jax.random.split(key)
    x = jax.random.normal(kx, (B, Cin, H, W), jnp.float32)          # NCHW like PyTorch
    params = make_params(kp, Cin, Cout)

    out = jax.block_until_ready(dblock_pallas(x, params))
    ref = jax.block_until_ready(dblock_ref(x, params))

    assert out.shape == (B, Cout, H // 2, W // 2), out.shape
    np.testing.assert_allclose(np.asarray(out), np.asarray(ref), rtol=5e-3, atol=5e-3)
    print("KERNEL_OK")
</pallas_src>

<mosaic_0001>
module attributes {stable_mosaic.version = 11 : i64} {
  func.func @kernel(%arg0: i32, %arg1: memref<2x4x8x8x4xf32, #tpu.memory_space<vmem>>, %arg2: memref<4x8xf32, #tpu.memory_space<vmem>>, %arg3: memref<1x8xf32, #tpu.memory_space<vmem>>, %arg4: memref<36x8xf32, #tpu.memory_space<vmem>>, %arg5: memref<1x8xf32, #tpu.memory_space<vmem>>, %arg6: memref<128x8xf32, #tpu.memory_space<vmem>>, %arg7: memref<1x8xf32, #tpu.memory_space<vmem>>, %arg8: memref<2x8x8x8xf32, #tpu.memory_space<vmem>>, %arg9: memref<2x4x10x10x4xf32, #tpu.memory_space<vmem>>, %arg10: memref<4x2x10x10x8xf32, #tpu.memory_space<vmem>>, %arg11: memref<512x36xf32, #tpu.memory_space<vmem>>, %arg12: memref<128x128xf32, #tpu.memory_space<vmem>>) attributes {dimension_semantics = [#tpu.dimension_semantics<parallel>], iteration_bounds = array<i64: 1>, scalar_prefetch = 0 : i64, scratch_operands = 4 : i64, tpu.core_type = #tpu.core_type<tc>, window_params = [{transform_indices = @transform_0, window_bounds = array<i64: 2, 4, 8, 8, 4>}, {pipeline_mode = #tpu.pipeline_mode<synchronous>, transform_indices = @transform_1, window_bounds = array<i64: 4, 8>}, {pipeline_mode = #tpu.pipeline_mode<synchronous>, transform_indices = @transform_2, window_bounds = array<i64: 1, 8>}, {pipeline_mode = #tpu.pipeline_mode<synchronous>, transform_indices = @transform_3, window_bounds = array<i64: 36, 8>}, {pipeline_mode = #tpu.pipeline_mode<synchronous>, transform_indices = @transform_4, window_bounds = array<i64: 1, 8>}, {pipeline_mode = #tpu.pipeline_mode<synchronous>, transform_indices = @transform_5, window_bounds = array<i64: 128, 8>}, {pipeline_mode = #tpu.pipeline_mode<synchronous>, transform_indices = @transform_6, window_bounds = array<i64: 1, 8>}, {transform_indices = @transform_7, window_bounds = array<i64: 2, 8, 8, 8>}]} {
    %cst = arith.constant 0.000000e+00 : f32
    %0 = vector.broadcast %cst : f32 to vector<2x4x1x10x4xf32>
    %c0 = arith.constant 0 : index
    %c0_0 = arith.constant 0 : index
    %c0_1 = arith.constant 0 : index
    %c0_2 = arith.constant 0 : index
    %c0_3 = arith.constant 0 : index
    %1 = vector.load %arg9[%c0, %c0_0, %c0_1, %c0_2, %c0_3] : memref<2x4x10x10x4xf32, #tpu.memory_space<vmem>>, vector<2x4x1x10x4xf32>
    tpu.vector_store %arg9[%c0, %c0_0, %c0_1, %c0_2, %c0_3], %0 {strides = array<i32>} : memref<2x4x10x10x4xf32, #tpu.memory_space<vmem>>, vector<2x4x1x10x4xf32>,
    %cst_4 = arith.constant 0.000000e+00 : f32
    %2 = vector.broadcast %cst_4 : f32 to vector<2x4x1x10x4xf32>
    %c0_5 = arith.constant 0 : index
    %c0_6 = arith.constant 0 : index
    %c9 = arith.constant 9 : index
    %c0_7 = arith.constant 0 : index
    %c0_8 = arith.constant 0 : index
    %3 = vector.load %arg9[%c0_5, %c0_6, %c9, %c0_7, %c0_8] : memref<2x4x10x10x4xf32, #tpu.memory_space<vmem>>, vector<2x4x1x10x4xf32>
    tpu.vector_store %arg9[%c0_5, %c0_6, %c9, %c0_7, %c0_8], %2 {strides = array<i32>} : memref<2x4x10x10x4xf32, #tpu.memory_space<vmem>>, vector<2x4x1x10x4xf32>,
    %cst_9 = arith.constant 0.000000e+00 : f32
    %4 = vector.broadcast %cst_9 : f32 to vector<2x4x10x1x4xf32>
    %c0_10 = arith.constant 0 : index
    %c0_11 = arith.constant 0 : index
    %c0_12 = arith.constant 0 : index
    %c0_13 = arith.constant 0 : index
    %c0_14 = arith.constant 0 : index
    %5 = vector.load %arg9[%c0_10, %c0_11, %c0_12, %c0_13, %c0_14] : memref<2x4x10x10x4xf32, #tpu.memory_space<vmem>>, vector<2x4x10x1x4xf32>
    tpu.vector_store %arg9[%c0_10, %c0_11, %c0_12, %c0_13, %c0_14], %4 {strides = array<i32>} : memref<2x4x10x10x4xf32, #tpu.memory_space<vmem>>, vector<2x4x10x1x4xf32>,
    %cst_15 = arith.constant 0.000000e+00 : f32
    %6 = vector.broadcast %cst_15 : f32 to vector<2x4x10x1x4xf32>
    %c0_16 = arith.constant 0 : index
    %c0_17 = arith.constant 0 : index
    %c0_18 = arith.constant 0 : index
    %c9_19 = arith.constant 9 : index
    %c0_20 = arith.constant 0 : index
    %7 = vector.load %arg9[%c0_16, %c0_17, %c0_18, %c9_19, %c0_20] : memref<2x4x10x10x4xf32, #tpu.memory_space<vmem>>, vector<2x4x10x1x4xf32>
    tpu.vector_store %arg9[%c0_16, %c0_17, %c0_18, %c9_19, %c0_20], %6 {strides = array<i32>} : memref<2x4x10x10x4xf32, #tpu.memory_space<vmem>>, vector<2x4x10x1x4xf32>,
    %cst_21 = arith.constant 0.000000e+00 : f32
    %8 = vector.broadcast %cst_21 : f32 to vector<4x2x1x10x8xf32>
    %c0_22 = arith.constant 0 : index
    %c0_23 = arith.constant 0 : index
    %c0_24 = arith.constant 0 : index
    %c0_25 = arith.constant 0 : index
    %c0_26 = arith.constant 0 : index
    %9 = vector.load %arg10[%c0_22, %c0_23, %c0_24, %c0_25, %c0_26] : memref<4x2x10x10x8xf32, #tpu.memory_space<vmem>>, vector<4x2x1x10x8xf32>
    tpu.vector_store %arg10[%c0_22, %c0_23, %c0_24, %c0_25, %c0_26], %8 {strides = array<i32>} : memref<4x2x10x10x8xf32, #tpu.memory_space<vmem>>, vector<4x2x1x10x8xf32>,
    %cst_27 = arith.constant 0.000000e+00 : f32
    %10 = vector.broadcast %cst_27 : f32 to vector<4x2x1x10x8xf32>
    %c0_28 = arith.constant 0 : index
    %c0_29 = arith.constant 0 : index
    %c9_30 = arith.constant 9 : index
    %c0_31 = arith.constant 0 : index
    %c0_32 = arith.constant 0 : index
    %11 = vector.load %arg10[%c0_28, %c0_29, %c9_30, %c0_31, %c0_32] : memref<4x2x10x10x8xf32, #tpu.memory_space<vmem>>, vector<4x2x1x10x8xf32>
    tpu.vector_store %arg10[%c0_28, %c0_29, %c9_30, %c0_31, %c0_32], %10 {strides = array<i32>} : memref<4x2x10x10x8xf32, #tpu.memory_space<vmem>>, vector<4x2x1x10x8xf32>,
    %cst_33 = arith.constant 0.000000e+00 : f32
    %12 = vector.broadcast %cst_33 : f32 to vector<4x2x10x1x8xf32>
    %c0_34 = arith.constant 0 : index
    %c0_35 = arith.constant 0 : index
    %c0_36 = arith.constant 0 : index
    %c0_37 = arith.constant 0 : index
    %c0_38 = arith.constant 0 : index
    %13 = vector.load %arg10[%c0_34, %c0_35, %c0_36, %c0_37, %c0_38] : memref<4x2x10x10x8xf32, #tpu.memory_space<vmem>>, vector<4x2x10x1x8xf32>
    tpu.vector_store %arg10[%c0_34, %c0_35, %c0_36, %c0_37, %c0_38], %12 {strides = array<i32>} : memref<4x2x10x10x8xf32, #tpu.memory_space<vmem>>, vector<4x2x10x1x8xf32>,
    %cst_39 = arith.constant 0.000000e+00 : f32
    %14 = vector.broadcast %cst_39 : f32 to vector<4x2x10x1x8xf32>
    %c0_40 = arith.constant 0 : index
    %c0_41 = arith.constant 0 : index
    %c0_42 = arith.constant 0 : index
    %c9_43 = arith.constant 9 : index
    %c0_44 = arith.constant 0 : index
    %15 = vector.load %arg10[%c0_40, %c0_41, %c0_42, %c9_43, %c0_44] : memref<4x2x10x10x8xf32, #tpu.memory_space<vmem>>, vector<4x2x10x1x8xf32>
    tpu.vector_store %arg10[%c0_40, %c0_41, %c0_42, %c9_43, %c0_44], %14 {strides = array<i32>} : memref<4x2x10x10x8xf32, #tpu.memory_space<vmem>>, vector<4x2x10x1x8xf32>,
    %c0_45 = arith.constant 0 : index
    %c0_46 = arith.constant 0 : index
    %c0_47 = arith.constant 0 : index
    %c0_48 = arith.constant 0 : index
    %c0_49 = arith.constant 0 : index
    %16 = vector.load %arg1[%c0_45, %c0_46, %c0_47, %c0_48, %c0_49] : memref<2x4x8x8x4xf32, #tpu.memory_space<vmem>>, vector<2x4x8x8x4xf32>
    %17 = vector.extract_strided_slice %16 {offsets = [0, 0, 0, 0, 0], sizes = [2, 1, 8, 8, 4], strides = [1, 1, 1, 1, 1]} : vector<2x4x8x8x4xf32> to vector<2x1x8x8x4xf32>
    %18 = vector.shape_cast %17 : vector<2x1x8x8x4xf32> to vector<2x8x8x4xf32>
    %19 = vector.extract_strided_slice %16 {offsets = [0, 1, 0, 0, 0], sizes = [2, 1, 8, 8, 4], strides = [1, 1, 1, 1, 1]} : vector<2x4x8x8x4xf32> to vector<2x1x8x8x4xf32>
    %20 = vector.shape_cast %19 : vector<2x1x8x8x4xf32> to vector<2x8x8x4xf32>
    %21 = arith.addf %18, %20 : vector<2x8x8x4xf32>
    %22 = vector.extract_strided_slice %16 {offsets = [0, 2, 0, 0, 0], sizes = [2, 1, 8, 8, 4], strides = [1, 1, 1, 1, 1]} : vector<2x4x8x8x4xf32> to vector<2x1x8x8x4xf32>
    %23 = vector.shape_cast %22 : vector<2x1x8x8x4xf32> to vector<2x8x8x4xf32>
    %24 = arith.addf %21, %23 : vector<2x8x8x4xf32>
    %25 = vector.extract_strided_slice %16 {offsets = [0, 3, 0, 0, 0], sizes = [2, 1, 8, 8, 4], strides = [1, 1, 1, 1, 1]} : vector<2x4x8x8x4xf32> to vector<2x1x8x8x4xf32>
    %26 = vector.shape_cast %25 : vector<2x1x8x8x4xf32> to vector<2x8x8x4xf32>
    %27 = arith.addf %24, %26 : vector<2x8x8x4xf32>
    %cst_50 = arith.constant 2.500000e-01 : f32
    %28 = vector.broadcast %cst_50 : f32 to vector<2x8x8x4xf32>
    %29 = arith.mulf %28, %27 : vector<2x8x8x4xf32>
    %30 = vector.shape_cast %29 : vector<2x8x8x4xf32> to vector<128x4xf32>
    %c0_51 = arith.constant 0 : index
    %c0_52 = arith.constant 0 : index
    %31 = vector.load %arg2[%c0_51, %c0_52] : memref<4x8xf32, #tpu.memory_space<vmem>>, vector<4x8xf32>
    %cst_53 = arith.constant dense<0.000000e+00> : vector<128x8xf32>
    %32 = tpu.matmul %30, %31, %cst_53 {dimension_numbers = #tpu.dot_dimension_numbers<[1], [0], [0], [1], [0, 0, 1, 1], [], []>} : vector<128x4xf32>, vector<4x8xf32>, vector<128x8xf32> -> vector<128x8xf32>
    %c0_54 = arith.constant 0 : index
    %c0_55 = arith.constant 0 : index
    %33 = vector.load %arg3[%c0_54, %c0_55] : memref<1x8xf32, #tpu.memory_space<vmem>>, vector<1x8xf32>
    %34 = vector.broadcast %33 : vector<1x8xf32> to vector<128x8xf32>
    %35 = arith.addf %32, %34 : vector<128x8xf32>
    %cst_56 = arith.constant 0.000000e+00 : f32
    %36 = vector.broadcast %cst_56 : f32 to vector<2x4x8x8x4xf32>
    %37 = arith.maximumf %16, %36 : vector<2x4x8x8x4xf32>
    %c0_57 = arith.constant 0 : index
    %c0_58 = arith.constant 0 : index
    %c1 = arith.constant 1 : index
    %c1_59 = arith.constant 1 : index
    %c0_60 = arith.constant 0 : index
    %38 = vector.load %arg9[%c0_57, %c0_58, %c1, %c1_59, %c0_60] : memref<2x4x10x10x4xf32, #tpu.memory_space<vmem>>, vector<2x4x8x8x4xf32>
    tpu.vector_store %arg9[%c0_57, %c0_58, %c1, %c1_59, %c0_60], %37 {strides = array<i32>} : memref<2x4x10x10x4xf32, #tpu.memory_space<vmem>>, vector<2x4x8x8x4xf32>,
    %c0_61 = arith.constant 0 : index
    %c3 = arith.constant 3 : index
    %c0_62 = arith.constant 0 : index
    %c0_63 = arith.constant 0 : index
    %c0_64 = arith.constant 0 : index
    %39 = vector.load %arg9[%c0_61, %c3, %c0_62, %c0_63, %c0_64] : memref<2x4x10x10x4xf32, #tpu.memory_space<vmem>>, vector<2x1x8x8x4xf32>
    %40 = vector.shape_cast %39 : vector<2x1x8x8x4xf32> to vector<2x8x8x4xf32>
    %41 = vector.shape_cast %40 : vector<2x8x8x4xf32> to vector<128x4xf32>
    %c0_65 = arith.constant 0 : index
    %c0_66 = arith.constant 0 : index
    %42 = vector.load %arg11[%c0_65, %c0_66] : memref<512x36xf32, #tpu.memory_space<vmem>>, vector<128x4xf32>
    tpu.vector_store %arg11[%c0_65, %c0_66], %41 {strides = array<i32>} : memref<512x36xf32, #tpu.memory_space<vmem>>, vector<128x4xf32>,
    %c0_67 = arith.constant 0 : index
    %c2 = arith.constant 2 : index
    %c0_68 = arith.constant 0 : index
    %c1_69 = arith.constant 1 : index
    %c0_70 = arith.constant 0 : index
    %43 = vector.load %arg9[%c0_67, %c2, %c0_68, %c1_69, %c0_70] : memref<2x4x10x10x4xf32, #tpu.memory_space<vmem>>, vector<2x1x8x8x4xf32>
    %44 = vector.shape_cast %43 : vector<2x1x8x8x4xf32> to vector<2x8x8x4xf32>
    %45 = vector.shape_cast %44 : vector<2x8x8x4xf32> to vector<128x4xf32>
    %c0_71 = arith.constant 0 : index
    %c4 = arith.constant 4 : index
    %46 = vector.load %arg11[%c0_71, %c4] : memref<512x36xf32, #tpu.memory_space<vmem>>, vector<128x4xf32>
    tpu.vector_store %arg11[%c0_71, %c4], %45 {strides = array<i32>} : memref<512x36xf32, #tpu.memory_space<vmem>>, vector<128x4xf32>,
    %c0_72 = arith.constant 0 : index
    %c3_73 = arith.constant 3 : index
    %c0_74 = arith.constant 0 : index
    %c1_75 = arith.constant 1 : index
    %c0_76 = arith.constant 0 : index
    %47 = vector.load %arg9[%c0_72, %c3_73, %c0_74, %c1_75, %c0_76] : memref<2x4x10x10x4xf32, #tpu.memory_space<vmem>>, vector<2x1x8x8x4xf32>
    %48 = vector.shape_cast %47 : vector<2x1x8x8x4xf32> to vector<2x8x8x4xf32>
    %49 = vector.shape_cast %48 : vector<2x8x8x4xf32> to vector<128x4xf32>
    %c0_77 = arith.constant 0 : index
    %c8 = arith.constant 8 : index
    %50 = vector.load %arg11[%c0_77, %c8] : memref<512x36xf32, #tpu.memory_space<vmem>>, vector<128x4xf32>
    tpu.vector_store %arg11[%c0_77, %c8], %49 {strides = array<i32>} : memref<512x36xf32, #tpu.memory_space<vmem>>, vector<128x4xf32>,
    %c0_78 = arith.constant 0 : index
    %c1_79 = arith.constant 1 : index
    %c1_80 = arith.constant 1 : index
    %c0_81 = arith.constant 0 : index
    %c0_82 = arith.constant 0 : index
    %51 = vector.load %arg9[%c0_78, %c1_79, %c1_80, %c0_81, %c0_82] : memref<2x4x10x10x4xf32, #tpu.memory_space<vmem>>, vector<2x1x8x8x4xf32>
    %52 = vector.shape_cast %51 : vector<2x1x8x8x4xf32> to vector<2x8x8x4xf32>
    %53 = vector.shape_cast %52 : vector<2x8x8x4xf32> to vector<128x4xf32>
    %c0_83 = arith.constant 0 : index
    %c12 = arith.constant 12 : index
    %54 = vector.load %arg11[%c0_83, %c12] : memref<512x36xf32, #tpu.memory_space<vmem>>, vector<128x4xf32>
    tpu.vector_store %arg11[%c0_83, %c12], %53 {strides = array<i32>} : memref<512x36xf32, #tpu.memory_space<vmem>>, vector<128x4xf32>,
    %c0_84 = arith.constant 0 : index
    %c0_85 = arith.constant 0 : index
    %c1_86 = arith.constant 1 : index
    %c1_87 = arith.constant 1 : index
    %c0_88 = arith.constant 0 : index
    %55 = vector.load %arg9[%c0_84, %c0_85, %c1_86, %c1_87, %c0_88] : memref<2x4x10x10x4xf32, #tpu.memory_space<vmem>>, vector<2x1x8x8x4xf32>
    %56 = vector.shape_cast %55 : vector<2x1x8x8x4xf32> to vector<2x8x8x4xf32>
    %57 = vector.shape_cast %56 : vector<2x8x8x4xf32> to vector<128x4xf32>
    %c0_89 = arith.constant 0 : index
    %c16 = arith.constant 16 : index
    %58 = vector.load %arg11[%c0_89, %c16] : memref<512x36xf32, #tpu.memory_space<vmem>>, vector<128x4xf32>
    tpu.vector_store %arg11[%c0_89, %c16], %57 {strides = array<i32>} : memref<512x36xf32, #tpu.memory_space<vmem>>, vector<128x4xf32>,
    %c0_90 = arith.constant 0 : index
    %c1_91 = arith.constant 1 : index
    %c1_92 = arith.constant 1 : index
    %c1_93 = arith.constant 1 : index
    %c0_94 = arith.constant 0 : index
    %59 = vector.load %arg9[%c0_90, %c1_91, %c1_92, %c1_93, %c0_94] : memref<2x4x10x10x4xf32, #tpu.memory_space<vmem>>, vector<2x1x8x8x4xf32>
    %60 = vector.shape_cast %59 : vector<2x1x8x8x4xf32> to vector<2x8x8x4xf32>
    %61 = vector.shape_cast %60 : vector<2x8x8x4xf32> to vector<128x4xf32>
    %c0_95 = arith.constant 0 : index
    %c20 = arith.constant 20 : index
    %62 = vector.load %arg11[%c0_95, %c20] : memref<512x36xf32, #tpu.memory_space<vmem>>, vector<128x4xf32>
    tpu.vector_store %arg11[%c0_95, %c20], %61 {strides = array<i32>} : memref<512x36xf32, #tpu.memory_space<vmem>>, vector<128x4xf32>,
    %c0_96 = arith.constant 0 : index
    %c3_97 = arith.constant 3 : index
    %c1_98 = arith.constant 1 : index
    %c0_99 = arith.constant 0 : index
    %c0_100 = arith.constant 0 : index
    %63 = vector.load %arg9[%c0_96, %c3_97, %c1_98, %c0_99, %c0_100] : memref<2x4x10x10x4xf32, #tpu.memory_space<vmem>>, vector<2x1x8x8x4xf32>
    %64 = vector.shape_cast %63 : vector<2x1x8x8x4xf32> to vector<2x8x8x4xf32>
    %65 = vector.shape_cast %64 : vector<2x8x8x4xf32> to vector<128x4xf32>
    %c0_101 = arith.constant 0 : index
    %c24 = arith.constant 24 : index
    %66 = vector.load %arg11[%c0_101, %c24] : memref<512x36xf32, #tpu.memory_space<vmem>>, vector<128x4xf32>
    tpu.vector_store %arg11[%c0_101, %c24], %65 {strides = array<i32>} : memref<512x36xf32, #tpu.memory_space<vmem>>, vector<128x4xf32>,
    %c0_102 = arith.constant 0 : index
    %c2_103 = arith.constant 2 : index
    %c1_104 = arith.constant 1 : index
    %c1_105 = arith.constant 1 : index
    %c0_106 = arith.constant 0 : index
    %67 = vector.load %arg9[%c0_102, %c2_103, %c1_104, %c1_105, %c0_106] : memref<2x4x10x10x4xf32, #tpu.memory_space<vmem>>, vector<2x1x8x8x4xf32>
    %68 = vector.shape_cast %67 : vector<2x1x8x8x4xf32> to vector<2x8x8x4xf32>
    %69 = vector.shape_cast %68 : vector<2x8x8x4xf32> to vector<128x4xf32>
    %c0_107 = arith.constant 0 : index
    %c28 = arith.constant 28 : index
    %70 = vector.load %arg11[%c0_107, %c28] : memref<512x36xf32, #tpu.memory_space<vmem>>, vector<128x4xf32>
    tpu.vector_store %arg11[%c0_107, %c28], %69 {strides = array<i32>} : memref<512x36xf32, #tpu.memory_space<vmem>>, vector<128x4xf32>,
    %c0_108 = arith.constant 0 : index
    %c3_109 = arith.constant 3 : index
    %c1_110 = arith.constant 1 : index
    %c1_111 = arith.constant 1 : index
    %c0_112 = arith.constant 0 : index
    %71 = vector.load %arg9[%c0_108, %c3_109, %c1_110, %c1_111, %c0_112] : memref<2x4x10x10x4xf32, #tpu.memory_space<vmem>>, vector<2x1x8x8x4xf32>
    %72 = vector.shape_cast %71 : vector<2x1x8x8x4xf32> to vector<2x8x8x4xf32>
    %73 = vector.shape_cast %72 : vector<2x8x8x4xf32> to vector<128x4xf32>
    %c0_113 = arith.constant 0 : index
    %c32 = arith.constant 32 : index
    %74 = vector.load %arg11[%c0_113, %c32] : memref<512x36xf32, #tpu.memory_space<vmem>>, vector<128x4xf32>
    tpu.vector_store %arg11[%c0_113, %c32], %73 {strides = array<i32>} : memref<512x36xf32, #tpu.memory_space<vmem>>, vector<128x4xf32>,
    %c128 = arith.constant 128 : index
    %c0_114 = arith.constant 0 : index
    %75 = vector.load %arg11[%c128, %c0_114] : memref<512x36xf32, #tpu.memory_space<vmem>>, vector<128x4xf32>
    tpu.vector_store %arg11[%c128, %c0_114], %45 {strides = array<i32>} : memref<512x36xf32, #tpu.memory_space<vmem>>, vector<128x4xf32>,
    %c128_115 = arith.constant 128 : index
    %c4_116 = arith.constant 4 : index
    %76 = vector.load %arg11[%c128_115, %c4_116] : memref<512x36xf32, #tpu.memory_space<vmem>>, vector<128x4xf32>
    tpu.vector_store %arg11[%c128_115, %c4_116], %49 {strides = array<i32>} : memref<512x36xf32, #tpu.memory_space<vmem>>, vector<128x4xf32>,
    %c0_117 = arith.constant 0 : index
    %c2_118 = arith.constant 2 : index
    %c0_119 = arith.constant 0 : index
    %c2_120 = arith.constant 2 : index
    %c0_121 = arith.constant 0 : index
    %77 = vector.load %arg9[%c0_117, %c2_118, %c0_119, %c2_120, %c0_121] : memref<2x4x10x10x4xf32, #tpu.memory_space<vmem>>, vector<2x1x8x8x4xf32>
    %78 = vector.shape_cast %77 : vector<2x1x8x8x4xf32> to vector<2x8x8x4xf32>
    %79 = vector.shape_cast %78 : vector<2x8x8x4xf32> to vector<128x4xf32>
    %c128_122 = arith.constant 128 : index
    %c8_123 = arith.constant 8 : index
    %80 = vector.load %arg11[%c128_122, %c8_123] : memref<512x36xf32, #tpu.memory_space<vmem>>, vector<128x4xf32>
    tpu.vector_store %arg11[%c128_122, %c8_123], %79 {strides = array<i32>} : memref<512x36xf32, #tpu.memory_space<vmem>>, vector<128x4xf32>,
    %c128_124 = arith.constant 128 : index
    %c12_125 = arith.constant 12 : index
    %81 = vector.load %arg11[%c128_124, %c12_125] : memref<512x36xf32, #tpu.memory_space<vmem>>, vector<128x4xf32>
    tpu.vector_store %arg11[%c128_124, %c12_125], %57 {strides = array<i32>} : memref<512x36xf32, #tpu.memory_space<vmem>>, vector<128x4xf32>,
    %c128_126 = arith.constant 128 : index
    %c16_127 = arith.constant 16 : index
    %82 = vector.load %arg11[%c128_126, %c16_127] : memref<512x36xf32, #tpu.memory_space<vmem>>, vector<128x4xf32>
    tpu.vector_store %arg11[%c128_126, %c16_127], %61 {strides = array<i32>} : memref<512x36xf32, #tpu.memory_space<vmem>>, vector<128x4xf32>,
    %c0_128 = arith.constant 0 : index
    %c0_129 = arith.constant 0 : index
    %c1_130 = arith.constant 1 : index
    %c2_131 = arith.constant 2 : index
    %c0_132 = arith.constant 0 : index
    %83 = vector.load %arg9[%c0_128, %c0_129, %c1_130, %c2_131, %c0_132] : memref<2x4x10x10x4xf32, #tpu.memory_space<vmem>>, vector<2x1x8x8x4xf32>
    %84 = vector.shape_cast %83 : vector<2x1x8x8x4xf32> to vector<2x8x8x4xf32>
    %85 = vector.shape_cast %84 : vector<2x8x8x4xf32> to vector<128x4xf32>
    %c128_133 = arith.constant 128 : index
    %c20_134 = arith.constant 20 : index
    %86 = vector.load %arg11[%c128_133, %c20_134] : memref<512x36xf32, #tpu.memory_space<vmem>>, vector<128x4xf32>
    tpu.vector_store %arg11[%c128_133, %c20_134], %85 {strides = array<i32>} : memref<512x36xf32, #tpu.memory_space<vmem>>, vector<128x4xf32>,
    %c128_135 = arith.constant 128 : index
    %c24_136 = arith.constant 24 : index
    %87 = vector.load %arg11[%c128_135, %c24_136] : memref<512x36xf32, #tpu.memory_space<vmem>>, vector<128x4xf32>
    tpu.vector_store %arg11[%c128_135, %c24_136], %69 {strides = array<i32>} : memref<512x36xf32, #tpu.memory_space<vmem>>, vector<128x4xf32>,
    %c128_137 = arith.constant 128 : index
    %c28_138 = arith.constant 28 : index
    %88 = vector.load %arg11[%c128_137, %c28_138] : memref<512x36xf32, #tpu.memory_space<vmem>>, vector<128x4xf32>
    tpu.vector_store %arg11[%c128_137, %c28_138], %73 {strides = array<i32>} : memref<512x36xf32, #tpu.memory_space<vmem>>, vector<128x4xf32>,
    %c0_139 = arith.constant 0 : index
    %c2_140 = arith.constant 2 : index
    %c1_141 = arith.constant 1 : index
    %c2_142 = arith.constant 2 : index
    %c0_143 = arith.constant 0 : index
    %89 = vector.load %arg9[%c0_139, %c2_140, %c1_141, %c2_142, %c0_143] : memref<2x4x10x10x4xf32, #tpu.memory_space<vmem>>, vector<2x1x8x8x4xf32>
    %90 = vector.shape_cast %89 : vector<2x1x8x8x4xf32> to vector<2x8x8x4xf32>
    %91 = vector.shape_cast %90 : vector<2x8x8x4xf32> to vector<128x4xf32>
    %c128_144 = arith.constant 128 : index
    %c32_145 = arith.constant 32 : index
    %92 = vector.load %arg11[%c128_144, %c32_145] : memref<512x36xf32, #tpu.memory_space<vmem>>, vector<128x4xf32>
    tpu.vector_store %arg11[%c128_144, %c32_145], %91 {strides = array<i32>} : memref<512x36xf32, #tpu.memory_space<vmem>>, vector<128x4xf32>,
    %c256 = arith.constant 256 : index
    %c0_146 = arith.constant 0 : index
    %93 = vector.load %arg11[%c256, %c0_146] : memref<512x36xf32, #tpu.memory_space<vmem>>, vector<128x4xf32>
    tpu.vector_store %arg11[%c256, %c0_146], %53 {strides = array<i32>} : memref<512x36xf32, #tpu.memory_space<vmem>>, vector<128x4xf32>,
    %c256_147 = arith.constant 256 : index
    %c4_148 = arith.constant 4 : index
    %94 = vector.load %arg11[%c256_147, %c4_148] : memref<512x36xf32, #tpu.memory_space<vmem>>, vector<128x4xf32>
    tpu.vector_store %arg11[%c256_147, %c4_148], %57 {strides = array<i32>} : memref<512x36xf32, #tpu.memory_space<vmem>>, vector<128x4xf32>,
    %c256_149 = arith.constant 256 : index
    %c8_150 = arith.constant 8 : index
    %95 = vector.load %arg11[%c256_149, %c8_150] : memref<512x36xf32, #tpu.memory_space<vmem>>, vector<128x4xf32>
    tpu.vector_store %arg11[%c256_149, %c8_150], %61 {strides = array<i32>} : memref<512x36xf32, #tpu.memory_space<vmem>>, vector<128x4xf32>,
    %c256_151 = arith.constant 256 : index
    %c12_152 = arith.constant 12 : index
    %96 = vector.load %arg11[%c256_151, %c12_152] : memref<512x36xf32, #tpu.memory_space<vmem>>, vector<128x4xf32>
    tpu.vector_store %arg11[%c256_151, %c12_152], %65 {strides = array<i32>} : memref<512x36xf32, #tpu.memory_space<vmem>>, vector<128x4xf32>,
    %c256_153 = arith.constant 256 : index
    %c16_154 = arith.constant 16 : index
    %97 = vector.load %arg11[%c256_153, %c16_154] : memref<512x36xf32, #tpu.memory_space<vmem>>, vector<128x4xf32>
    tpu.vector_store %arg11[%c256_153, %c16_154], %69 {strides = array<i32>} : memref<512x36xf32, #tpu.memory_space<vmem>>, vector<128x4xf32>,
    %c256_155 = arith.constant 256 : index
    %c20_156 = arith.constant 20 : index
    %98 = vector.load %arg11[%c256_155, %c20_156] : memref<512x36xf32, #tpu.memory_space<vmem>>, vector<128x4xf32>
    tpu.vector_store %arg11[%c256_155, %c20_156], %73 {strides = array<i32>} : memref<512x36xf32, #tpu.memory_space<vmem>>, vector<128x4xf32>,
    %c0_157 = arith.constant 0 : index
    %c1_158 = arith.constant 1 : index
    %c2_159 = arith.constant 2 : index
    %c0_160 = arith.constant 0 : index
    %c0_161 = arith.constant 0 : index
    %99 = vector.load %arg9[%c0_157, %c1_158, %c2_159, %c0_160, %c0_161] : memref<2x4x10x10x4xf32, #tpu.memory_space<vmem>>, vector<2x1x8x8x4xf32>
    %100 = vector.shape_cast %99 : vector<2x1x8x8x4xf32> to vector<2x8x8x4xf32>
    %101 = vector.shape_cast %100 : vector<2x8x8x4xf32> to vector<128x4xf32>
    %c256_162 = arith.constant 256 : index
    %c24_163 = arith.constant 24 : index
    %102 = vector.load %arg11[%c256_162, %c24_163] : memref<512x36xf32, #tpu.memory_space<vmem>>, vector<128x4xf32>
    tpu.vector_store %arg11[%c256_162, %c24_163], %101 {strides = array<i32>} : memref<512x36xf32, #tpu.memory_space<vmem>>, vector<128x4xf32>,
    %c0_164 = arith.constant 0 : index
    %c0_165 = arith.constant 0 : index
    %c2_166 = arith.constant 2 : index
    %c1_167 = arith.constant 1 : index
    %c0_168 = arith.constant 0 : index
    %103 = vector.load %arg9[%c0_164, %c0_165, %c2_166, %c1_167, %c0_168] : memref<2x4x10x10x4xf32, #tpu.memory_space<vmem>>, vector<2x1x8x8x4xf32>
    %104 = vector.shape_cast %103 : vector<2x1x8x8x4xf32> to vector<2x8x8x4xf32>
    %105 = vector.shape_cast %104 : vector<2x8x8x4xf32> to vector<128x4xf32>
    %c256_169 = arith.constant 256 : index
    %c28_170 = arith.constant 28 : index
    %106 = vector.load %arg11[%c256_169, %c28_170] : memref<512x36xf32, #tpu.memory_space<vmem>>, vector<128x4xf32>
    tpu.vector_store %arg11[%c256_169, %c28_170], %105 {strides = array<i32>} : memref<512x36xf32, #tpu.memory_space<vmem>>, vector<128x4xf32>,
    %c0_171 = arith.constant 0 : index
    %c1_172 = arith.constant 1 : index
    %c2_173 = arith.constant 2 : index
    %c1_174 = arith.constant 1 : index
    %c0_175 = arith.constant 0 : index
    %107 = vector.load %arg9[%c0_171, %c1_172, %c2_173, %c1_174, %c0_175] : memref<2x4x10x10x4xf32, #tpu.memory_space<vmem>>, vector<2x1x8x8x4xf32>
    %108 = vector.shape_cast %107 : vector<2x1x8x8x4xf32> to vector<2x8x8x4xf32>
    %109 = vector.shape_cast %108 : vector<2x8x8x4xf32> to vector<128x4xf32>
    %c256_176 = arith.constant 256 : index
    %c32_177 = arith.constant 32 : index
    %110 = vector.load %arg11[%c256_176, %c32_177] : memref<512x36xf32, #tpu.memory_space<vmem>>, vector<128x4xf32>
    tpu.vector_store %arg11[%c256_176, %c32_177], %109 {strides = array<i32>} : memref<512x36xf32, #tpu.memory_space<vmem>>, vector<128x4xf32>,
    %c384 = arith.constant 384 : index
    %c0_178 = arith.constant 0 : index
    %111 = vector.load %arg11[%c384, %c0_178] : memref<512x36xf32, #tpu.memory_space<vmem>>, vector<128x4xf32>
    tpu.vector_store %arg11[%c384, %c0_178], %57 {strides = array<i32>} : memref<512x36xf32, #tpu.memory_space<vmem>>, vector<128x4xf32>,
    %c384_179 = arith.constant 384 : index
    %c4_180 = arith.constant 4 : index
    %112 = vector.load %arg11[%c384_179, %c4_180] : memref<512x36xf32, #tpu.memory_space<vmem>>, vector<128x4xf32>
    tpu.vector_store %arg11[%c384_179, %c4_180], %61 {strides = array<i32>} : memref<512x36xf32, #tpu.memory_space<vmem>>, vector<128x4xf32>,
    %c384_181 = arith.constant 384 : index
    %c8_182 = arith.constant 8 : index
    %113 = vector.load %arg11[%c384_181, %c8_182] : memref<512x36xf32, #tpu.memory_space<vmem>>, vector<128x4xf32>
    tpu.vector_store %arg11[%c384_181, %c8_182], %85 {strides = array<i32>} : memref<512x36xf32, #tpu.memory_space<vmem>>, vector<128x4xf32>,
    %c384_183 = arith.constant 384 : index
    %c12_184 = arith.constant 12 : index
    %114 = vector.load %arg11[%c384_183, %c12_184] : memref<512x36xf32, #tpu.memory_space<vmem>>, vector<128x4xf32>
    tpu.vector_store %arg11[%c384_183, %c12_184], %69 {strides = array<i32>} : memref<512x36xf32, #tpu.memory_space<vmem>>, vector<128x4xf32>,
    %c384_185 = arith.constant 384 : index
    %c16_186 = arith.constant 16 : index
    %115 = vector.load %arg11[%c384_185, %c16_186] : memref<512x36xf32, #tpu.memory_space<vmem>>, vector<128x4xf32>
    tpu.vector_store %arg11[%c384_185, %c16_186], %73 {strides = array<i32>} : memref<512x36xf32, #tpu.memory_space<vmem>>, vector<128x4xf32>,
    %c384_187 = arith.constant 384 : index
    %c20_188 = arith.constant 20 : index
    %116 = vector.load %arg11[%c384_187, %c20_188] : memref<512x36xf32, #tpu.memory_space<vmem>>, vector<128x4xf32>
    tpu.vector_store %arg11[%c384_187, %c20_188], %91 {strides = array<i32>} : memref<512x36xf32, #tpu.memory_space<vmem>>, vector<128x4xf32>,
    %c384_189 = arith.constant 384 : index
    %c24_190 = arith.constant 24 : index
    %117 = vector.load %arg11[%c384_189, %c24_190] : memref<512x36xf32, #tpu.memory_space<vmem>>, vector<128x4xf32>
    tpu.vector_store %arg11[%c384_189, %c24_190], %105 {strides = array<i32>} : memref<512x36xf32, #tpu.memory_space<vmem>>, vector<128x4xf32>,
    %c384_191 = arith.constant 384 : index
    %c28_192 = arith.constant 28 : index
    %118 = vector.load %arg11[%c384_191, %c28_192] : memref<512x36xf32, #tpu.memory_space<vmem>>, vector<128x4xf32>
    tpu.vector_store %arg11[%c384_191, %c28_192], %109 {strides = array<i32>} : memref<512x36xf32, #tpu.memory_space<vmem>>, vector<128x4xf32>,
    %c0_193 = arith.constant 0 : index
    %c0_194 = arith.constant 0 : index
    %c2_195 = arith.constant 2 : index
    %c2_196 = arith.constant 2 : index
    %c0_197 = arith.constant 0 : index
    %119 = vector.load %arg9[%c0_193, %c0_194, %c2_195, %c2_196, %c0_197] : memref<2x4x10x10x4xf32, #tpu.memory_space<vmem>>, vector<2x1x8x8x4xf32>
    %120 = vector.shape_cast %119 : vector<2x1x8x8x4xf32> to vector<2x8x8x4xf32>
    %121 = vector.shape_cast %120 : vector<2x8x8x4xf32> to vector<128x4xf32>
    %c384_198 = arith.constant 384 : index
    %c32_199 = arith.constant 32 : index
    %122 = vector.load %arg11[%c384_198, %c32_199] : memref<512x36xf32, #tpu.memory_space<vmem>>, vector<128x4xf32>
    tpu.vector_store %arg11[%c384_198, %c32_199], %121 {strides = array<i32>} : memref<512x36xf32, #tpu.memory_space<vmem>>, vector<128x4xf32>,
    %c0_200 = arith.constant 0 : index
    %c0_201 = arith.constant 0 : index
    %123 = vector.load %arg11[%c0_200, %c0_201] : memref<512x36xf32, #tpu.memory_space<vmem>>, vector<512x36xf32>
    %c0_202 = arith.constant 0 : index
    %c0_203 = arith.constant 0 : index
    %124 = vector.load %arg4[%c0_202, %c0_203] : memref<36x8xf32, #tpu.memory_space<vmem>>, vector<36x8xf32>
    %cst_204 = arith.constant dense<0.000000e+00> : vector<512x8xf32>
    %125 = tpu.matmul %123, %124, %cst_204 {dimension_numbers = #tpu.dot_dimension_numbers<[1], [0], [0], [1], [0, 0, 1, 1], [], []>} : vector<512x36xf32>, vector<36x8xf32>, vector<512x8xf32> -> vector<512x8xf32>
    %c0_205 = arith.constant 0 : index
    %c0_206 = arith.constant 0 : index
    %126 = vector.load %arg5[%c0_205, %c0_206] : memref<1x8xf32, #tpu.memory_space<vmem>>, vector<1x8xf32>
    %127 = vector.broadcast %126 : vector<1x8xf32> to vector<512x8xf32>
    %128 = arith.addf %125, %127 : vector<512x8xf32>
    %cst_207 = arith.constant 0.000000e+00 : f32
    %129 = vector.broadcast %cst_207 : f32 to vector<512x8xf32>
    %130 = arith.maximumf %128, %129 : vector<512x8xf32>
    %131 = vector.shape_cast %130 : vector<512x8xf32> to vector<4x2x8x8x8xf32>
    %c0_208 = arith.constant 0 : index
    %c0_209 = arith.constant 0 : index
    %c1_210 = arith.constant 1 : index
    %c1_211 = arith.constant 1 : index
    %c0_212 = arith.constant 0 : index
    %132 = vector.load %arg10[%c0_208, %c0_209, %c1_210, %c1_211, %c0_212] : memref<4x2x10x10x8xf32, #tpu.memory_space<vmem>>, vector<4x2x8x8x8xf32>
    tpu.vector_store %arg10[%c0_208, %c0_209, %c1_210, %c1_211, %c0_212], %131 {strides = array<i32>} : memref<4x2x10x10x8xf32, #tpu.memory_space<vmem>>, vector<4x2x8x8x8xf32>,
    %c3_213 = arith.constant 3 : index
    %c0_214 = arith.constant 0 : index
    %c0_215 = arith.constant 0 : index
    %c0_216 = arith.constant 0 : index
    %c0_217 = arith.constant 0 : index
    %133 = vector.load %arg10[%c3_213, %c0_214, %c0_215, %c0_216, %c0_217] : memref<4x2x10x10x8xf32, #tpu.memory_space<vmem>>, vector<1x2x8x8x8xf32>
    %134 = vector.shape_cast %133 : vector<1x2x8x8x8xf32> to vector<2x8x8x8xf32>
    %135 = vector.shape_cast %134 : vector<2x8x8x8xf32> to vector<128x8xf32>
    %c0_218 = arith.constant 0 : index
    %c0_219 = arith.constant 0 : index
    %136 = vector.load %arg12[%c0_218, %c0_219] : memref<128x128xf32, #tpu.memory_space<vmem>>, vector<128x8xf32>
    tpu.vector_store %arg12[%c0_218, %c0_219], %135 {strides = array<i32>} : memref<128x128xf32, #tpu.memory_space<vmem>>, vector<128x8xf32>,
    %c2_220 = arith.constant 2 : index
    %c0_221 = arith.constant 0 : index
    %c0_222 = arith.constant 0 : index
    %c1_223 = arith.constant 1 : index
    %c0_224 = arith.constant 0 : index
    %137 = vector.load %arg10[%c2_220, %c0_221, %c0_222, %c1_223, %c0_224] : memref<4x2x10x10x8xf32, #tpu.memory_space<vmem>>, vector<1x2x8x8x8xf32>
    %138 = vector.shape_cast %137 : vector<1x2x8x8x8xf32> to vector<2x8x8x8xf32>
    %139 = vector.shape_cast %138 : vector<2x8x8x8xf32> to vector<128x8xf32>
    %c0_225 = arith.constant 0 : index
    %c8_226 = arith.constant 8 : index
    %140 = vector.load %arg12[%c0_225, %c8_226] : memref<128x128xf32, #tpu.memory_space<vmem>>, vector<128x8xf32>
    tpu.vector_store %arg12[%c0_225, %c8_226], %139 {strides = array<i32>} : memref<128x128xf32, #tpu.memory_space<vmem>>, vector<128x8xf32>,
    %c3_227 = arith.constant 3 : index
    %c0_228 = arith.constant 0 : index
    %c0_229 = arith.constant 0 : index
    %c1_230 = arith.constant 1 : index
    %c0_231 = arith.constant 0 : index
    %141 = vector.load %arg10[%c3_227, %c0_228, %c0_229, %c1_230, %c0_231] : memref<4x2x10x10x8xf32, #tpu.memory_space<vmem>>, vector<1x2x8x8x8xf32>
    %142 = vector.shape_cast %141 : vector<1x2x8x8x8xf32> to vector<2x8x8x8xf32>
    %143 = vector.shape_cast %142 : vector<2x8x8x8xf32> to vector<128x8xf32>
    %c0_232 = arith.constant 0 : index
    %c16_233 = arith.constant 16 : index
    %144 = vector.load %arg12[%c0_232, %c16_233] : memref<128x128xf32, #tpu.memory_space<vmem>>, vector<128x8xf32>
    tpu.vector_store %arg12[%c0_232, %c16_233], %143 {strides = array<i32>} : memref<128x128xf32, #tpu.memory_space<vmem>>, vector<128x8xf32>,
    %c2_234 = arith.constant 2 : index
    %c0_235 = arith.constant 0 : index
    %c0_236 = arith.constant 0 : index
    %c2_237 = arith.constant 2 : index
    %c0_238 = arith.constant 0 : index
    %145 = vector.load %arg10[%c2_234, %c0_235, %c0_236, %c2_237, %c0_238] : memref<4x2x10x10x8xf32, #tpu.memory_space<vmem>>, vector<1x2x8x8x8xf32>
    %146 = vector.shape_cast %145 : vector<1x2x8x8x8xf32> to vector<2x8x8x8xf32>
    %147 = vector.shape_cast %146 : vector<2x8x8x8xf32> to vector<128x8xf32>
    %c0_239 = arith.constant 0 : index
    %c24_240 = arith.constant 24 : index
    %148 = vector.load %arg12[%c0_239, %c24_240] : memref<128x128xf32, #tpu.memory_space<vmem>>, vector<128x8xf32>
    tpu.vector_store %arg12[%c0_239, %c24_240], %147 {strides = array<i32>} : memref<128x128xf32, #tpu.memory_space<vmem>>, vector<128x8xf32>,
    %c1_241 = arith.constant 1 : index
    %c0_242 = arith.constant 0 : index
    %c1_243 = arith.constant 1 : index
    %c0_244 = arith.constant 0 : index
    %c0_245 = arith.constant 0 : index
    %149 = vector.load %arg10[%c1_241, %c0_242, %c1_243, %c0_244, %c0_245] : memref<4x2x10x10x8xf32, #tpu.memory_space<vmem>>, vector<1x2x8x8x8xf32>
    %150 = vector.shape_cast %149 : vector<1x2x8x8x8xf32> to vector<2x8x8x8xf32>
    %151 = vector.shape_cast %150 : vector<2x8x8x8xf32> to vector<128x8xf32>
    %c0_246 = arith.constant 0 : index
    %c32_247 = arith.constant 32 : index
    %152 = vector.load %arg12[%c0_246, %c32_247] : memref<128x128xf32, #tpu.memory_space<vmem>>, vector<128x8xf32>
    tpu.vector_store %arg12[%c0_246, %c32_247], %151 {strides = array<i32>} : memref<128x128xf32, #tpu.memory_space<vmem>>, vector<128x8xf32>,
    %c0_248 = arith.constant 0 : index
    %c0_249 = arith.constant 0 : index
    %c1_250 = arith.constant 1 : index
    %c1_251 = arith.constant 1 : index
    %c0_252 = arith.constant 0 : index
    %153 = vector.load %arg10[%c0_248, %c0_249, %c1_250, %c1_251, %c0_252] : memref<4x2x10x10x8xf32, #tpu.memory_space<vmem>>, vector<1x2x8x8x8xf32>
    %154 = vector.shape_cast %153 : vector<1x2x8x8x8xf32> to vector<2x8x8x8xf32>
    %155 = vector.shape_cast %154 : vector<2x8x8x8xf32> to vector<128x8xf32>
    %c0_253 = arith.constant 0 : index
    %c40 = arith.constant 40 : index
    %156 = vector.load %arg12[%c0_253, %c40] : memref<128x128xf32, #tpu.memory_space<vmem>>, vector<128x8xf32>
    tpu.vector_store %arg12[%c0_253, %c40], %155 {strides = array<i32>} : memref<128x128xf32, #tpu.memory_space<vmem>>, vector<128x8xf32>,
    %c1_254 = arith.constant 1 : index
    %c0_255 = arith.constant 0 : index
    %c1_256 = arith.constant 1 : index
    %c1_257 = arith.constant 1 : index
    %c0_258 = arith.constant 0 : index
    %157 = vector.load %arg10[%c1_254, %c0_255, %c1_256, %c1_257, %c0_258] : memref<4x2x10x10x8xf32, #tpu.memory_space<vmem>>, vector<1x2x8x8x8xf32>
    %158 = vector.shape_cast %157 : vector<1x2x8x8x8xf32> to vector<2x8x8x8xf32>
    %159 = vector.shape_cast %158 : vector<2x8x8x8xf32> to vector<128x8xf32>
    %c0_259 = arith.constant 0 : index
    %c48 = arith.constant 48 : index
    %160 = vector.load %arg12[%c0_259, %c48] : memref<128x128xf32, #tpu.memory_space<vmem>>, vector<128x8xf32>
    tpu.vector_store %arg12[%c0_259, %c48], %159 {strides = array<i32>} : memref<128x128xf32, #tpu.memory_space<vmem>>, vector<128x8xf32>,
    %c0_260 = arith.constant 0 : index
    %c0_261 = arith.constant 0 : index
    %c1_262 = arith.constant 1 : index
    %c2_263 = arith.constant 2 : index
    %c0_264 = arith.constant 0 : index
    %161 = vector.load %arg10[%c0_260, %c0_261, %c1_262, %c2_263, %c0_264] : memref<4x2x10x10x8xf32, #tpu.memory_space<vmem>>, vector<1x2x8x8x8xf32>
    %162 = vector.shape_cast %161 : vector<1x2x8x8x8xf32> to vector<2x8x8x8xf32>
    %163 = vector.shape_cast %162 : vector<2x8x8x8xf32> to vector<128x8xf32>
    %c0_265 = arith.constant 0 : index
    %c56 = arith.constant 56 : index
    %164 = vector.load %arg12[%c0_265, %c56] : memref<128x128xf32, #tpu.memory_space<vmem>>, vector<128x8xf32>
    tpu.vector_store %arg12[%c0_265, %c56], %163 {strides = array<i32>} : memref<128x128xf32, #tpu.memory_space<vmem>>, vector<128x8xf32>,
    %c3_266 = arith.constant 3 : index
    %c0_267 = arith.constant 0 : index
    %c1_268 = arith.constant 1 : index
    %c0_269 = arith.constant 0 : index
    %c0_270 = arith.constant 0 : index
    %165 = vector.load %arg10[%c3_266, %c0_267, %c1_268, %c0_269, %c0_270] : memref<4x2x10x10x8xf32, #tpu.memory_space<vmem>>, vector<1x2x8x8x8xf32>
    %166 = vector.shape_cast %165 : vector<1x2x8x8x8xf32> to vector<2x8x8x8xf32>
    %167 = vector.shape_cast %166 : vector<2x8x8x8xf32> to vector<128x8xf32>
    %c0_271 = arith.constant 0 : index
    %c64 = arith.constant 64 : index
    %168 = vector.load %arg12[%c0_271, %c64] : memref<128x128xf32, #tpu.memory_space<vmem>>, vector<128x8xf32>
    tpu.vector_store %arg12[%c0_271, %c64], %167 {strides = array<i32>} : memref<128x128xf32, #tpu.memory_space<vmem>>, vector<128x8xf32>,
    %c2_272 = arith.constant 2 : index
    %c0_273 = arith.constant 0 : index
    %c1_274 = arith.constant 1 : index
    %c1_275 = arith.constant 1 : index
    %c0_276 = arith.constant 0 : index
    %169 = vector.load %arg10[%c2_272, %c0_273, %c1_274, %c1_275, %c0_276] : memref<4x2x10x10x8xf32, #tpu.memory_space<vmem>>, vector<1x2x8x8x8xf32>
    %170 = vector.shape_cast %169 : vector<1x2x8x8x8xf32> to vector<2x8x8x8xf32>
    %171 = vector.shape_cast %170 : vector<2x8x8x8xf32> to vector<128x8xf32>
    %c0_277 = arith.constant 0 : index
    %c72 = arith.constant 72 : index
    %172 = vector.load %arg12[%c0_277, %c72] : memref<128x128xf32, #tpu.memory_space<vmem>>, vector<128x8xf32>
    tpu.vector_store %arg12[%c0_277, %c72], %171 {strides = array<i32>} : memref<128x128xf32, #tpu.memory_space<vmem>>, vector<128x8xf32>,
    %c3_278 = arith.constant 3 : index
    %c0_279 = arith.constant 0 : index
    %c1_280 = arith.constant 1 : index
    %c1_281 = arith.constant 1 : index
    %c0_282 = arith.constant 0 : index
    %173 = vector.load %arg10[%c3_278, %c0_279, %c1_280, %c1_281, %c0_282] : memref<4x2x10x10x8xf32, #tpu.memory_space<vmem>>, vector<1x2x8x8x8xf32>
    %174 = vector.shape_cast %173 : vector<1x2x8x8x8xf32> to vector<2x8x8x8xf32>
    %175 = vector.shape_cast %174 : vector<2x8x8x8xf32> to vector<128x8xf32>
    %c0_283 = arith.constant 0 : index
    %c80 = arith.constant 80 : index
    %176 = vector.load %arg12[%c0_283, %c80] : memref<128x128xf32, #tpu.memory_space<vmem>>, vector<128x8xf32>
    tpu.vector_store %arg12[%c0_283, %c80], %175 {strides = array<i32>} : memref<128x128xf32, #tpu.memory_space<vmem>>, vector<128x8xf32>,
    %c2_284 = arith.constant 2 : index
    %c0_285 = arith.constant 0 : index
    %c1_286 = arith.constant 1 : index
    %c2_287 = arith.constant 2 : index
    %c0_288 = arith.constant 0 : index
    %177 = vector.load %arg10[%c2_284, %c0_285, %c1_286, %c2_287, %c0_288] : memref<4x2x10x10x8xf32, #tpu.memory_space<vmem>>, vector<1x2x8x8x8xf32>
    %178 = vector.shape_cast %177 : vector<1x2x8x8x8xf32> to vector<2x8x8x8xf32>
    %179 = vector.shape_cast %178 : vector<2x8x8x8xf32> to vector<128x8xf32>
    %c0_289 = arith.constant 0 : index
    %c88 = arith.constant 88 : index
    %180 = vector.load %arg12[%c0_289, %c88] : memref<128x128xf32, #tpu.memory_space<vmem>>, vector<128x8xf32>
    tpu.vector_store %arg12[%c0_289, %c88], %179 {strides = array<i32>} : memref<128x128xf32, #tpu.memory_space<vmem>>, vector<128x8xf32>,
    %c1_290 = arith.constant 1 : index
    %c0_291 = arith.constant 0 : index
    %c2_292 = arith.constant 2 : index
    %c0_293 = arith.constant 0 : index
    %c0_294 = arith.constant 0 : index
    %181 = vector.load %arg10[%c1_290, %c0_291, %c2_292, %c0_293, %c0_294] : memref<4x2x10x10x8xf32, #tpu.memory_space<vmem>>, vector<1x2x8x8x8xf32>
    %182 = vector.shape_cast %181 : vector<1x2x8x8x8xf32> to vector<2x8x8x8xf32>
    %183 = vector.shape_cast %182 : vector<2x8x8x8xf32> to vector<128x8xf32>
    %c0_295 = arith.constant 0 : index
    %c96 = arith.constant 96 : index
    %184 = vector.load %arg12[%c0_295, %c96] : memref<128x128xf32, #tpu.memory_space<vmem>>, vector<128x8xf32>
    tpu.vector_store %arg12[%c0_295, %c96], %183 {strides = array<i32>} : memref<128x128xf32, #tpu.memory_space<vmem>>, vector<128x8xf32>,
    %c0_296 = arith.constant 0 : index
    %c0_297 = arith.constant 0 : index
    %c2_298 = arith.constant 2 : index
    %c1_299 = arith.constant 1 : index
    %c0_300 = arith.constant 0 : index
    %185 = vector.load %arg10[%c0_296, %c0_297, %c2_298, %c1_299, %c0_300] : memref<4x2x10x10x8xf32, #tpu.memory_space<vmem>>, vector<1x2x8x8x8xf32>
    %186 = vector.shape_cast %185 : vector<1x2x8x8x8xf32> to vector<2x8x8x8xf32>
    %187 = vector.shape_cast %186 : vector<2x8x8x8xf32> to vector<128x8xf32>
    %c0_301 = arith.constant 0 : index
    %c104 = arith.constant 104 : index
    %188 = vector.load %arg12[%c0_301, %c104] : memref<128x128xf32, #tpu.memory_space<vmem>>, vector<128x8xf32>
    tpu.vector_store %arg12[%c0_301, %c104], %187 {strides = array<i32>} : memref<128x128xf32, #tpu.memory_space<vmem>>, vector<128x8xf32>,
    %c1_302 = arith.constant 1 : index
    %c0_303 = arith.constant 0 : index
    %c2_304 = arith.constant 2 : index
    %c1_305 = arith.constant 1 : index
    %c0_306 = arith.constant 0 : index
    %189 = vector.load %arg10[%c1_302, %c0_303, %c2_304, %c1_305, %c0_306] : memref<4x2x10x10x8xf32, #tpu.memory_space<vmem>>, vector<1x2x8x8x8xf32>
    %190 = vector.shape_cast %189 : vector<1x2x8x8x8xf32> to vector<2x8x8x8xf32>
    %191 = vector.shape_cast %190 : vector<2x8x8x8xf32> to vector<128x8xf32>
    %c0_307 = arith.constant 0 : index
    %c112 = arith.constant 112 : index
    %192 = vector.load %arg12[%c0_307, %c112] : memref<128x128xf32, #tpu.memory_space<vmem>>, vector<128x8xf32>
    tpu.vector_store %arg12[%c0_307, %c112], %191 {strides = array<i32>} : memref<128x128xf32, #tpu.memory_space<vmem>>, vector<128x8xf32>,
    %c0_308 = arith.constant 0 : index
    %c0_309 = arith.constant 0 : index
    %c2_310 = arith.constant 2 : index
    %c2_311 = arith.constant 2 : index
    %c0_312 = arith.constant 0 : index
    %193 = vector.load %arg10[%c0_308, %c0_309, %c2_310, %c2_311, %c0_312] : memref<4x2x10x10x8xf32, #tpu.memory_space<vmem>>, vector<1x2x8x8x8xf32>
    %194 = vector.shape_cast %193 : vector<1x2x8x8x8xf32> to vector<2x8x8x8xf32>
    %195 = vector.shape_cast %194 : vector<2x8x8x8xf32> to vector<128x8xf32>
    %c0_313 = arith.constant 0 : index
    %c120 = arith.constant 120 : index
    %196 = vector.load %arg12[%c0_313, %c120] : memref<128x128xf32, #tpu.memory_space<vmem>>, vector<128x8xf32>
    tpu.vector_store %arg12[%c0_313, %c120], %195 {strides = array<i32>} : memref<128x128xf32, #tpu.memory_space<vmem>>, vector<128x8xf32>,
    %c0_314 = arith.constant 0 : index
    %c0_315 = arith.constant 0 : index
    %197 = vector.load %arg12[%c0_314, %c0_315] : memref<128x128xf32, #tpu.memory_space<vmem>>, vector<128x128xf32>
    %c0_316 = arith.constant 0 : index
    %c0_317 = arith.constant 0 : index
    %198 = vector.load %arg6[%c0_316, %c0_317] : memref<128x8xf32, #tpu.memory_space<vmem>>, vector<128x8xf32>
    %cst_318 = arith.constant dense<0.000000e+00> : vector<128x8xf32>
    %199 = tpu.matmul %197, %198, %cst_318 {dimension_numbers = #tpu.dot_dimension_numbers<[1], [0], [0], [1], [0, 0, 1, 1], [], []>} : vector<128x128xf32>, vector<128x8xf32>, vector<128x8xf32> -> vector<128x8xf32>
    %c0_319 = arith.constant 0 : index
    %c0_320 = arith.constant 0 : index
    %200 = vector.load %arg7[%c0_319, %c0_320] : memref<1x8xf32, #tpu.memory_space<vmem>>, vector<1x8xf32>
    %201 = vector.broadcast %200 : vector<1x8xf32> to vector<128x8xf32>
    %202 = arith.addf %199, %201 : vector<128x8xf32>
    %203 = arith.addf %202, %35 : vector<128x8xf32>
    %204 = vector.shape_cast %203 : vector<128x8xf32> to vector<2x8x8x8xf32>
    %c0_321 = arith.constant 0 : index
    %c0_322 = arith.constant 0 : index
    %c0_323 = arith.constant 0 : index
    %c0_324 = arith.constant 0 : index
    %205 = vector.load %arg8[%c0_321, %c0_322, %c0_323, %c0_324] : memref<2x8x8x8xf32, #tpu.memory_space<vmem>>, vector<2x8x8x8xf32>
    tpu.vector_store %arg8[%c0_321, %c0_322, %c0_323, %c0_324], %204 {strides = array<i32>} : memref<2x8x8x8xf32, #tpu.memory_space<vmem>>, vector<2x8x8x8xf32>,
    return
  }
  func.func @transform_0(%arg0: i32) -> (i32, i32, i32, i32, i32) {
    %c0_i32 = arith.constant 0 : i32
    %c0_i32_0 = arith.constant 0 : i32
    %c0_i32_1 = arith.constant 0 : i32
    %c0_i32_2 = arith.constant 0 : i32
    %c0_i32_3 = arith.constant 0 : i32
    return %arg0, %c0_i32, %c0_i32_0, %c0_i32_1, %c0_i32_2 : i32, i32, i32, i32, i32
  }
  func.func @transform_1(%arg0: i32) -> (i32, i32) {
    %c0_i32 = arith.constant 0 : i32
    %c0_i32_0 = arith.constant 0 : i32
    %c0_i32_1 = arith.constant 0 : i32
    return %c0_i32, %c0_i32_0 : i32, i32
  }
  func.func @transform_2(%arg0: i32) -> (i32, i32) {
    %c0_i32 = arith.constant 0 : i32
    %c0_i32_0 = arith.constant 0 : i32
    %c0_i32_1 = arith.constant 0 : i32
    return %c0_i32, %c0_i32_0 : i32, i32
  }
  func.func @transform_3(%arg0: i32) -> (i32, i32) {
    %c0_i32 = arith.constant 0 : i32
    %c0_i32_0 = arith.constant 0 : i32
    %c0_i32_1 = arith.constant 0 : i32
    return %c0_i32, %c0_i32_0 : i32, i32
  }
  func.func @transform_4(%arg0: i32) -> (i32, i32) {
    %c0_i32 = arith.constant 0 : i32
    %c0_i32_0 = arith.constant 0 : i32
    %c0_i32_1 = arith.constant 0 : i32
    return %c0_i32, %c0_i32_0 : i32, i32
  }
  func.func @transform_5(%arg0: i32) -> (i32, i32) {
    %c0_i32 = arith.constant 0 : i32
    %c0_i32_0 = arith.constant 0 : i32
    %c0_i32_1 = arith.constant 0 : i32
    return %c0_i32, %c0_i32_0 : i32, i32
  }
  func.func @transform_6(%arg0: i32) -> (i32, i32) {
    %c0_i32 = arith.constant 0 : i32
    %c0_i32_0 = arith.constant 0 : i32
    %c0_i32_1 = arith.constant 0 : i32
    return %c0_i32, %c0_i32_0 : i32, i32
  }
  func.func @transform_7(%arg0: i32) -> (i32, i32, i32, i32) {
    %c0_i32 = arith.constant 0 : i32
    %c0_i32_0 = arith.constant 0 : i32
    %c0_i32_1 = arith.constant 0 : i32
    %c0_i32_2 = arith.constant 0 : i32
    return %arg0, %c0_i32, %c0_i32_0, %c0_i32_1 : i32, i32, i32, i32
  }
}

</mosaic_0001>

<llo_original>
// kernel: tpu_custom_call.1
$region0: #{tpu_custom_call.1}
  #allocation0 [shape = 'u32[]', space=smem, size = 0x4, offset = 0x4, fixed_abs, tag = 'smem constant byte address 0x4 - core index']
  #allocation1 [shape = 'u32[144,128]{1,0:T(1,128)}', space=vmem, size = 0x12000, scoped, tag = 'internal scratch']
  #allocation2 [shape = 'f32[2,4,10,10,4]{4,3,2,1,0:T(8,128)}', space=vmem, size = 0xa0000, scoped, tag = 'scratch operand']
  #allocation3 [shape = 'f32[4,2,10,10,8]{4,3,2,1,0:T(8,128)}', space=vmem, size = 0xa0000, scoped, tag = 'scratch operand']
  #allocation4 [shape = 'f32[512,36]{1,0:T(8,128)}', space=vmem, size = 0x40000, scoped, tag = 'scratch operand']
  #allocation5 [shape = 'f32[128,128]{1,0:T(8,128)}', space=vmem, size = 0x10000, scoped, tag = 'scratch operand']
  %s0 = inlined_call_operand.vmem [shape: f32[2,4,8,8,4], index: 0, kind: input, shape index: {}]
  %s1 = inlined_call_operand.vmem [shape: f32[4,8], index: 1, kind: input, shape index: {}]
  %s2 = inlined_call_operand.vmem [shape: f32[1,8], index: 2, kind: input, shape index: {}]
  %s3 = inlined_call_operand.vmem [shape: f32[36,8], index: 3, kind: input, shape index: {}]
  %s4 = inlined_call_operand.vmem [shape: f32[1,8], index: 4, kind: input, shape index: {}]
  %s5 = inlined_call_operand.vmem [shape: f32[128,8], index: 5, kind: input, shape index: {}]
  %s6 = inlined_call_operand.vmem [shape: f32[1,8], index: 6, kind: input, shape index: {}]
  %s7 = inlined_call_operand.hbm [shape: f32[2,8,8,8], index: 7, kind: output, shape index: {}]
  %s8 = sld [smem:[#allocation0]]
  $region38: #{tpu_custom_call.1} parent=0
    _
  %s10 = ssub.s32 1, %s8
  %s11 = scalar_select 0, %s10, %s8
  $region1: #{tpu_custom_call.1} parent=0
    #allocation6 [shape = 'u8[65536]{0}', space=vmem, size = 0x10000, scoped, tag = 'output window, operand 0, single buffered']
    #allocation7 [shape = 's32[1]{0}', space=sflag, size = 0x4, scoped, tag = 'scoped memory for tpu_custom_call.1']
    %12 = vsyncpa [#allocation7], 0
    // Predicated region
    $region2: #{tpu_custom_call.1} parent=1 // pred_check
      _
    $region3: #{tpu_custom_call.1} parent=1 // pred_check_branch
      %14 = sbr.rel (0) target = $region5
    $region4: #{tpu_custom_call.1} parent=1 // pred_region
      _
    $region5: #{tpu_custom_call.1} parent=1 // pred_fallthru
      _
    // Predicated region
    $region6: #{tpu_custom_call.1} parent=1 // pred_check
      _
    $region7: #{tpu_custom_call.1} parent=1 // pred_check_branch
      %16 = sbr.rel (0) target = $region9
    $region8: #{tpu_custom_call.1} parent=1 // pred_region
      _
    $region9: #{tpu_custom_call.1} parent=1 // pred_fallthru
      _
    // Predicated region
    $region10: #{tpu_custom_call.1} parent=1 // pred_check
      _
    $region11: #{tpu_custom_call.1} parent=1 // pred_check_branch
      %18 = sbr.rel (0) target = $region13
    $region12: #{tpu_custom_call.1} parent=1 // pred_region
      _
    $region13: #{tpu_custom_call.1} parent=1 // pred_fallthru
      _
    // Predicated region
    $region14: #{tpu_custom_call.1} parent=1 // pred_check
      _
    $region15: #{tpu_custom_call.1} parent=1 // pred_check_branch
      %20 = sbr.rel (0) target = $region17
    $region16: #{tpu_custom_call.1} parent=1 // pred_region
      _
    $region17: #{tpu_custom_call.1} parent=1 // pred_fallthru
      _
    // Predicated region
    $region18: #{tpu_custom_call.1} parent=1 // pred_check
      _
    $region19: #{tpu_custom_call.1} parent=1 // pred_check_branch
      %22 = sbr.rel (0) target = $region21
    $region20: #{tpu_custom_call.1} parent=1 // pred_region
      _
    $region21: #{tpu_custom_call.1} parent=1 // pred_fallthru
      _
    // Predicated region
    $region22: #{tpu_custom_call.1} parent=1 // pred_check
      _
    $region23: #{tpu_custom_call.1} parent=1 // pred_check_branch
      %24 = sbr.rel (0) target = $region25
    $region24: #{tpu_custom_call.1} parent=1 // pred_region
      _
    $region25: #{tpu_custom_call.1} parent=1 // pred_fallthru
      _
    // Predicated region
    $region26: #{tpu_custom_call.1} parent=1 // pred_check
      _
    $region27: #{tpu_custom_call.1} parent=1 // pred_check_branch
      %26 = sbr.rel (0) target = $region29
    $region28: #{tpu_custom_call.1} parent=1 // pred_region
      _
    $region29: #{tpu_custom_call.1} parent=1 // pred_fallthru
      _
    %vm27 = vcmask 31744
    %28 = vst.msk [vmem:[#allocation2] sm:$0xff] %vm27, 0.0
    %vm29 = vcmask 25600
    %30 = vst.msk [vmem:[#allocation2 + $0x8] sm:$0x3] %vm29, 0.0
    %31 = vst.msk [vmem:[#allocation2 + $0xa0] sm:$0xff] %vm27, 0.0
    %32 = vst.msk [vmem:[#allocation2 + $0xa8] sm:$0x3] %vm29, 0.0
    %33 = vst.msk [vmem:[#allocation2 + $0x140] sm:$0xff] %vm27, 0.0
    %34 = vst.msk [vmem:[#allocation2 + $0x148] sm:$0x3] %vm29, 0.0
    %35 = vst.msk [vmem:[#allocation2 + $0x1e0] sm:$0xff] %vm27, 0.0
    %36 = vst.msk [vmem:[#allocation2 + $0x1e8] sm:$0x3] %vm29, 0.0
    %37 = vst.msk [vmem:[#allocation2 + $0x280] sm:$0xff] %vm27, 0.0
    %38 = vst.msk [vmem:[#allocation2 + $0x288] sm:$0x3] %vm29, 0.0
    %39 = vst.msk [vmem:[#allocation2 + $0x320] sm:$0xff] %vm27, 0.0
    %40 = vst.msk [vmem:[#allocation2 + $0x328] sm:$0x3] %vm29, 0.0
    %41 = vst.msk [vmem:[#allocation2 + $0x3c0] sm:$0xff] %vm27, 0.0
    %42 = vst.msk [vmem:[#allocation2 + $0x3c8] sm:$0x3] %vm29, 0.0
    %43 = vst.msk [vmem:[#allocation2 + $0x460] sm:$0xff] %vm27, 0.0
    %44 = vst.msk [vmem:[#allocation2 + $0x468] sm:$0x3] %vm29, 0.0
    %s45 = scalar_lea.vmem [#allocation2], 144
    %46 = vst.msk [vmem:[%s45] sm:$0xff] %vm27, 0.0
    %47 = vst.msk [vmem:[%s45 + $0x8] sm:$0x3] %vm29, 0.0
    %48 = vst.msk [vmem:[%s45 + $0xa0] sm:$0xff] %vm27, 0.0
    %49 = vst.msk [vmem:[%s45 + $0xa8] sm:$0x3] %vm29, 0.0
    %50 = vst.msk [vmem:[%s45 + $0x140] sm:$0xff] %vm27, 0.0
    %51 = vst.msk [vmem:[%s45 + $0x148] sm:$0x3] %vm29, 0.0
    %52 = vst.msk [vmem:[%s45 + $0x1e0] sm:$0xff] %vm27, 0.0
    %53 = vst.msk [vmem:[%s45 + $0x1e8] sm:$0x3] %vm29, 0.0
    %54 = vst.msk [vmem:[%s45 + $0x280] sm:$0xff] %vm27, 0.0
    %55 = vst.msk [vmem:[%s45 + $0x288] sm:$0x3] %vm29, 0.0
    %56 = vst.msk [vmem:[%s45 + $0x320] sm:$0xff] %vm27, 0.0
    %57 = vst.msk [vmem:[%s45 + $0x328] sm:$0x3] %vm29, 0.0
    %58 = vst.msk [vmem:[%s45 + $0x3c0] sm:$0xff] %vm27, 0.0
    %59 = vst.msk [vmem:[%s45 + $0x3c8] sm:$0x3] %vm29, 0.0
    %60 = vst.msk [vmem:[%s45 + $0x460] sm:$0xff] %vm27, 0.0
    %61 = vst.msk [vmem:[%s45 + $0x468] sm:$0x3] %vm29, 0.0
    %vm62 = vcmask 24576
    %63 = vst.msk [vmem:[#allocation2] sm:$0x1] %vm62, 0.0
    %64 = vst.msk [vmem:[#allocation2 + $0x10] sm:$0x1] %vm62, 0.0
    %65 = vst.msk [vmem:[#allocation2 + $0x20] sm:$0x1] %vm62, 0.0
    %66 = vst.msk [vmem:[#allocation2 + $0x30] sm:$0x1] %vm62, 0.0
    %67 = vst.msk [vmem:[#allocation2 + $0x40] sm:$0x1] %vm62, 0.0
    %68 = vst.msk [vmem:[#allocation2 + $0x50] sm:$0x1] %vm62, 0.0
    %69 = vst.msk [vmem:[#allocation2 + $0x60] sm:$0x1] %vm62, 0.0
    %70 = vst.msk [vmem:[#allocation2 + $0x70] sm:$0x1] %vm62, 0.0
    %71 = vst.msk [vmem:[#allocation2 + $0x80] sm:$0x1] %vm62, 0.0
    %72 = vst.msk [vmem:[#allocation2 + $0x90] sm:$0x1] %vm62, 0.0
    %73 = vst.msk [vmem:[#allocation2 + $0xa0] sm:$0x1] %vm62, 0.0
    %74 = vst.msk [vmem:[#allocation2 + $0xb0] sm:$0x1] %vm62, 0.0
    %75 = vst.msk [vmem:[#allocation2 + $0xc0] sm:$0x1] %vm62, 0.0
    %76 = vst.msk [vmem:[#allocation2 + $0xd0] sm:$0x1] %vm62, 0.0
    %77 = vst.msk [vmem:[#allocation2 + $0xe0] sm:$0x1] %vm62, 0.0
    %78 = vst.msk [vmem:[#allocation2 + $0xf0] sm:$0x1] %vm62, 0.0
    %79 = vst.msk [vmem:[#allocation2 + $0x100] sm:$0x1] %vm62, 0.0
    %80 = vst.msk [vmem:[#allocation2 + $0x110] sm:$0x1] %vm62, 0.0
    %81 = vst.msk [vmem:[#allocation2 + $0x120] sm:$0x1] %vm62, 0.0
    %82 = vst.msk [vmem:[#allocation2 + $0x130] sm:$0x1] %vm62, 0.0
    %83 = vst.msk [vmem:[#allocation2 + $0x140] sm:$0x1] %vm62, 0.0
    %84 = vst.msk [vmem:[#allocation2 + $0x150] sm:$0x1] %vm62, 0.0
    %85 = vst.msk [vmem:[#allocation2 + $0x160] sm:$0x1] %vm62, 0.0
    %86 = vst.msk [vmem:[#allocation2 + $0x170] sm:$0x1] %vm62, 0.0
    %87 = vst.msk [vmem:[#allocation2 + $0x180] sm:$0x1] %vm62, 0.0
    %88 = vst.msk [vmem:[#allocation2 + $0x190] sm:$0x1] %vm62, 0.0
    %89 = vst.msk [vmem:[#allocation2 + $0x1a0] sm:$0x1] %vm62, 0.0
    %90 = vst.msk [vmem:[#allocation2 + $0x1b0] sm:$0x1] %vm62, 0.0
    %91 = vst.msk [vmem:[#allocation2 + $0x1c0] sm:$0x1] %vm62, 0.0
    %92 = vst.msk [vmem:[#allocation2 + $0x1d0] sm:$0x1] %vm62, 0.0
    %93 = vst.msk [vmem:[#allocation2 + $0x1e0] sm:$0x1] %vm62, 0.0
    %94 = vst.msk [vmem:[#allocation2 + $0x1f0] sm:$0x1] %vm62, 0.0
    %95 = vst.msk [vmem:[#allocation2 + $0x200] sm:$0x1] %vm62, 0.0
    %96 = vst.msk [vmem:[#allocation2 + $0x210] sm:$0x1] %vm62, 0.0
    %97 = vst.msk [vmem:[#allocation2 + $0x220] sm:$0x1] %vm62, 0.0
    %98 = vst.msk [vmem:[#allocation2 + $0x230] sm:$0x1] %vm62, 0.0
    %99 = vst.msk [vmem:[#allocation2 + $0x240] sm:$0x1] %vm62, 0.0
    %100 = vst.msk [vmem:[#allocation2 + $0x250] sm:$0x1] %vm62, 0.0
    %101 = vst.msk [vmem:[#allocation2 + $0x260] sm:$0x1] %vm62, 0.0
    %102 = vst.msk [vmem:[#allocation2 + $0x270] sm:$0x1] %vm62, 0.0
    %103 = vst.msk [vmem:[#allocation2 + $0x280] sm:$0x1] %vm62, 0.0
    %104 = vst.msk [vmem:[#allocation2 + $0x290] sm:$0x1] %vm62, 0.0
    %105 = vst.msk [vmem:[#allocation2 + $0x2a0] sm:$0x1] %vm62, 0.0
    %106 = vst.msk [vmem:[#allocation2 + $0x2b0] sm:$0x1] %vm62, 0.0
    %107 = vst.msk [vmem:[#allocation2 + $0x2c0] sm:$0x1] %vm62, 0.0
    %108 = vst.msk [vmem:[#allocation2 + $0x2d0] sm:$0x1] %vm62, 0.0
    %109 = vst.msk [vmem:[#allocation2 + $0x2e0] sm:$0x1] %vm62, 0.0
    %110 = vst.msk [vmem:[#allocation2 + $0x2f0] sm:$0x1] %vm62, 0.0
    %111 = vst.msk [vmem:[#allocation2 + $0x300] sm:$0x1] %vm62, 0.0
    %112 = vst.msk [vmem:[#allocation2 + $0x310] sm:$0x1] %vm62, 0.0
    %113 = vst.msk [vmem:[#allocation2 + $0x320] sm:$0x1] %vm62, 0.0
    %114 = vst.msk [vmem:[#allocation2 + $0x330] sm:$0x1] %vm62, 0.0
    %115 = vst.msk [vmem:[#allocation2 + $0x340] sm:$0x1] %vm62, 0.0
    %116 = vst.msk [vmem:[#allocation2 + $0x350] sm:$0x1] %vm62, 0.0
    %117 = vst.msk [vmem:[#allocation2 + $0x360] sm:$0x1] %vm62, 0.0
    %118 = vst.msk [vmem:[#allocation2 + $0x370] sm:$0x1] %vm62, 0.0
    %119 = vst.msk [vmem:[#allocation2 + $0x380] sm:$0x1] %vm62, 0.0
    %120 = vst.msk [vmem:[#allocation2 + $0x390] sm:$0x1] %vm62, 0.0
    %121 = vst.msk [vmem:[#allocation2 + $0x3a0] sm:$0x1] %vm62, 0.0
    %122 = vst.msk [vmem:[#allocation2 + $0x3b0] sm:$0x1] %vm62, 0.0
    %123 = vst.msk [vmem:[#allocation2 + $0x3c0] sm:$0x1] %vm62, 0.0
    %124 = vst.msk [vmem:[#allocation2 + $0x3d0] sm:$0x1] %vm62, 0.0
    %125 = vst.msk [vmem:[#allocation2 + $0x3e0] sm:$0x1] %vm62, 0.0
    %126 = vst.msk [vmem:[#allocation2 + $0x3f0] sm:$0x1] %vm62, 0.0
    %127 = vst.msk [vmem:[#allocation2 + $0x400] sm:$0x1] %vm62, 0.0
    %128 = vst.msk [vmem:[#allocation2 + $0x410] sm:$0x1] %vm62, 0.0
    %129 = vst.msk [vmem:[#allocation2 + $0x420] sm:$0x1] %vm62, 0.0
    %130 = vst.msk [vmem:[#allocation2 + $0x430] sm:$0x1] %vm62, 0.0
    %131 = vst.msk [vmem:[#allocation2 + $0x440] sm:$0x1] %vm62, 0.0
    %132 = vst.msk [vmem:[#allocation2 + $0x450] sm:$0x1] %vm62, 0.0
    %133 = vst.msk [vmem:[#allocation2 + $0x460] sm:$0x1] %vm62, 0.0
    %134 = vst.msk [vmem:[#allocation2 + $0x470] sm:$0x1] %vm62, 0.0
    %135 = vst.msk [vmem:[#allocation2 + $0x480] sm:$0x1] %vm62, 0.0
    %136 = vst.msk [vmem:[#allocation2 + $0x490] sm:$0x1] %vm62, 0.0
    %137 = vst.msk [vmem:[#allocation2 + $0x4a0] sm:$0x1] %vm62, 0.0
    %138 = vst.msk [vmem:[#allocation2 + $0x4b0] sm:$0x1] %vm62, 0.0
    %139 = vst.msk [vmem:[#allocation2 + $0x4c0] sm:$0x1] %vm62, 0.0
    %140 = vst.msk [vmem:[#allocation2 + $0x4d0] sm:$0x1] %vm62, 0.0
    %141 = vst.msk [vmem:[#allocation2 + $0x4e0] sm:$0x1] %vm62, 0.0
    %142 = vst.msk [vmem:[#allocation2 + $0x4f0] sm:$0x1] %vm62, 0.0
    %143 = vst.msk [vmem:[#allocation2 + $0x9] sm:$0x1] %vm62, 0.0
    %144 = vst.msk [vmem:[#allocation2 + $0x19] sm:$0x1] %vm62, 0.0
    %145 = vst.msk [vmem:[#allocation2 + $0x29] sm:$0x1] %vm62, 0.0
    %146 = vst.msk [vmem:[#allocation2 + $0x39] sm:$0x1] %vm62, 0.0
    %147 = vst.msk [vmem:[#allocation2 + $0x49] sm:$0x1] %vm62, 0.0
    %148 = vst.msk [vmem:[#allocation2 + $0x59] sm:$0x1] %vm62, 0.0
    %149 = vst.msk [vmem:[#allocation2 + $0x69] sm:$0x1] %vm62, 0.0
    %150 = vst.msk [vmem:[#allocation2 + $0x79] sm:$0x1] %vm62, 0.0
    %151 = vst.msk [vmem:[#allocation2 + $0x89] sm:$0x1] %vm62, 0.0
    %152 = vst.msk [vmem:[#allocation2 + $0x99] sm:$0x1] %vm62, 0.0
    %153 = vst.msk [vmem:[#allocation2 + $0xa9] sm:$0x1] %vm62, 0.0
    %154 = vst.msk [vmem:[#allocation2 + $0xb9] sm:$0x1] %vm62, 0.0
    %155 = vst.msk [vmem:[#allocation2 + $0xc9] sm:$0x1] %vm62, 0.0
    %156 = vst.msk [vmem:[#allocation2 + $0xd9] sm:$0x1] %vm62, 0.0
    %157 = vst.msk [vmem:[#allocation2 + $0xe9] sm:$0x1] %vm62, 0.0
    %158 = vst.msk [vmem:[#allocation2 + $0xf9] sm:$0x1] %vm62, 0.0
    %159 = vst.msk [vmem:[#allocation2 + $0x109] sm:$0x1] %vm62, 0.0
    %160 = vst.msk [vmem:[#allocation2 + $0x119] sm:$0x1] %vm62, 0.0
    %161 = vst.msk [vmem:[#allocation2 + $0x129] sm:$0x1] %vm62, 0.0
    %162 = vst.msk [vmem:[#allocation2 + $0x139] sm:$0x1] %vm62, 0.0
    %163 = vst.msk [vmem:[#allocation2 + $0x149] sm:$0x1] %vm62, 0.0
    %164 = vst.msk [vmem:[#allocation2 + $0x159] sm:$0x1] %vm62, 0.0
    %165 = vst.msk [vmem:[#allocation2 + $0x169] sm:$0x1] %vm62, 0.0
    %166 = vst.msk [vmem:[#allocation2 + $0x179] sm:$0x1] %vm62, 0.0
    %167 = vst.msk [vmem:[#allocation2 + $0x189] sm:$0x1] %vm62, 0.0
    %168 = vst.msk [vmem:[#allocation2 + $0x199] sm:$0x1] %vm62, 0.0
    %169 = vst.msk [vmem:[#allocation2 + $0x1a9] sm:$0x1] %vm62, 0.0
    %170 = vst.msk [vmem:[#allocation2 + $0x1b9] sm:$0x1] %vm62, 0.0
    %171 = vst.msk [vmem:[#allocation2 + $0x1c9] sm:$0x1] %vm62, 0.0
    %172 = vst.msk [vmem:[#allocation2 + $0x1d9] sm:$0x1] %vm62, 0.0
    %173 = vst.msk [vmem:[#allocation2 + $0x1e9] sm:$0x1] %vm62, 0.0
    %174 = vst.msk [vmem:[#allocation2 + $0x1f9] sm:$0x1] %vm62, 0.0
    %175 = vst.msk [vmem:[#allocation2 + $0x209] sm:$0x1] %vm62, 0.0
    %176 = vst.msk [vmem:[#allocation2 + $0x219] sm:$0x1] %vm62, 0.0
    %177 = vst.msk [vmem:[#allocation2 + $0x229] sm:$0x1] %vm62, 0.0
    %178 = vst.msk [vmem:[#allocation2 + $0x239] sm:$0x1] %vm62, 0.0
    %179 = vst.msk [vmem:[#allocation2 + $0x249] sm:$0x1] %vm62, 0.0
    %180 = vst.msk [vmem:[#allocation2 + $0x259] sm:$0x1] %vm62, 0.0
    %181 = vst.msk [vmem:[#allocation2 + $0x269] sm:$0x1] %vm62, 0.0
    %182 = vst.msk [vmem:[#allocation2 + $0x279] sm:$0x1] %vm62, 0.0
    %183 = vst.msk [vmem:[#allocation2 + $0x289] sm:$0x1] %vm62, 0.0
    %184 = vst.msk [vmem:[#allocation2 + $0x299] sm:$0x1] %vm62, 0.0
    %185 = vst.msk [vmem:[#allocation2 + $0x2a9] sm:$0x1] %vm62, 0.0
    %186 = vst.msk [vmem:[#allocation2 + $0x2b9] sm:$0x1] %vm62, 0.0
    %187 = vst.msk [vmem:[#allocation2 + $0x2c9] sm:$0x1] %vm62, 0.0
    %188 = vst.msk [vmem:[#allocation2 + $0x2d9] sm:$0x1] %vm62, 0.0
    %189 = vst.msk [vmem:[#allocation2 + $0x2e9] sm:$0x1] %vm62, 0.0
    %190 = vst.msk [vmem:[#allocation2 + $0x2f9] sm:$0x1] %vm62, 0.0
    %191 = vst.msk [vmem:[#allocation2 + $0x309] sm:$0x1] %vm62, 0.0
    %192 = vst.msk [vmem:[#allocation2 + $0x319] sm:$0x1] %vm62, 0.0
    %193 = vst.msk [vmem:[#allocation2 + $0x329] sm:$0x1] %vm62, 0.0
    %194 = vst.msk [vmem:[#allocation2 + $0x339] sm:$0x1] %vm62, 0.0
    %195 = vst.msk [vmem:[#allocation2 + $0x349] sm:$0x1] %vm62, 0.0
    %196 = vst.msk [vmem:[#allocation2 + $0x359] sm:$0x1] %vm62, 0.0
    %197 = vst.msk [vmem:[#allocation2 + $0x369] sm:$0x1] %vm62, 0.0
    %198 = vst.msk [vmem:[#allocation2 + $0x379] sm:$0x1] %vm62, 0.0
    %199 = vst.msk [vmem:[#allocation2 + $0x389] sm:$0x1] %vm62, 0.0
    %200 = vst.msk [vmem:[#allocation2 + $0x399] sm:$0x1] %vm62, 0.0
    %201 = vst.msk [vmem:[#allocation2 + $0x3a9] sm:$0x1] %vm62, 0.0
    %202 = vst.msk [vmem:[#allocation2 + $0x3b9] sm:$0x1] %vm62, 0.0
    %203 = vst.msk [vmem:[#allocation2 + $0x3c9] sm:$0x1] %vm62, 0.0
    %204 = vst.msk [vmem:[#allocation2 + $0x3d9] sm:$0x1] %vm62, 0.0
    %205 = vst.msk [vmem:[#allocation2 + $0x3e9] sm:$0x1] %vm62, 0.0
    %206 = vst.msk [vmem:[#allocation2 + $0x3f9] sm:$0x1] %vm62, 0.0
    %207 = vst.msk [vmem:[#allocation2 + $0x409] sm:$0x1] %vm62, 0.0
    %208 = vst.msk [vmem:[#allocation2 + $0x419] sm:$0x1] %vm62, 0.0
    %209 = vst.msk [vmem:[#allocation2 + $0x429] sm:$0x1] %vm62, 0.0
    %210 = vst.msk [vmem:[#allocation2 + $0x439] sm:$0x1] %vm62, 0.0
    %211 = vst.msk [vmem:[#allocation2 + $0x449] sm:$0x1] %vm62, 0.0
    %212 = vst.msk [vmem:[#allocation2 + $0x459] sm:$0x1] %vm62, 0.0
    %213 = vst.msk [vmem:[#allocation2 + $0x469] sm:$0x1] %vm62, 0.0
    %214 = vst.msk [vmem:[#allocation2 + $0x479] sm:$0x1] %vm62, 0.0
    %215 = vst.msk [vmem:[#allocation2 + $0x489] sm:$0x1] %vm62, 0.0
    %216 = vst.msk [vmem:[#allocation2 + $0x499] sm:$0x1] %vm62, 0.0
    %217 = vst.msk [vmem:[#allocation2 + $0x4a9] sm:$0x1] %vm62, 0.0
    %218 = vst.msk [vmem:[#allocation2 + $0x4b9] sm:$0x1] %vm62, 0.0
    %219 = vst.msk [vmem:[#allocation2 + $0x4c9] sm:$0x1] %vm62, 0.0
    %220 = vst.msk [vmem:[#allocation2 + $0x4d9] sm:$0x1] %vm62, 0.0
    %221 = vst.msk [vmem:[#allocation2 + $0x4e9] sm:$0x1] %vm62, 0.0
    %222 = vst.msk [vmem:[#allocation2 + $0x4f9] sm:$0x1] %vm62, 0.0
    %vm223 = vcmask 64512
    %224 = vst.msk [vmem:[#allocation3] sm:$0xff] %vm223, 0.0
    %vm225 = vcmask 58368
    %226 = vst.msk [vmem:[#allocation3 + $0x8] sm:$0x3] %vm225, 0.0
    %227 = vst.msk [vmem:[#allocation3 + $0xa0] sm:$0xff] %vm223, 0.0
    %228 = vst.msk [vmem:[#allocation3 + $0xa8] sm:$0x3] %vm225, 0.0
    %229 = vst.msk [vmem:[#allocation3 + $0x140] sm:$0xff] %vm223, 0.0
    %230 = vst.msk [vmem:[#allocation3 + $0x148] sm:$0x3] %vm225, 0.0
    %231 = vst.msk [vmem:[#allocation3 + $0x1e0] sm:$0xff] %vm223, 0.0
    %232 = vst.msk [vmem:[#allocation3 + $0x1e8] sm:$0x3] %vm225, 0.0
    %233 = vst.msk [vmem:[#allocation3 + $0x280] sm:$0xff] %vm223, 0.0
    %234 = vst.msk [vmem:[#allocation3 + $0x288] sm:$0x3] %vm225, 0.0
    %235 = vst.msk [vmem:[#allocation3 + $0x320] sm:$0xff] %vm223, 0.0
    %236 = vst.msk [vmem:[#allocation3 + $0x328] sm:$0x3] %vm225, 0.0
    %237 = vst.msk [vmem:[#allocation3 + $0x3c0] sm:$0xff] %vm223, 0.0
    %238 = vst.msk [vmem:[#allocation3 + $0x3c8] sm:$0x3] %vm225, 0.0
    %239 = vst.msk [vmem:[#allocation3 + $0x460] sm:$0xff] %vm223, 0.0
    %240 = vst.msk [vmem:[#allocation3 + $0x468] sm:$0x3] %vm225, 0.0
    %s241 = scalar_lea.vmem [#allocation3], 144
    %242 = vst.msk [vmem:[%s241] sm:$0xff] %vm223, 0.0
    %243 = vst.msk [vmem:[%s241 + $0x8] sm:$0x3] %vm225, 0.0
    %244 = vst.msk [vmem:[%s241 + $0xa0] sm:$0xff] %vm223, 0.0
    %245 = vst.msk [vmem:[%s241 + $0xa8] sm:$0x3] %vm225, 0.0
    %246 = vst.msk [vmem:[%s241 + $0x140] sm:$0xff] %vm223, 0.0
    %247 = vst.msk [vmem:[%s241 + $0x148] sm:$0x3] %vm225, 0.0
    %248 = vst.msk [vmem:[%s241 + $0x1e0] sm:$0xff] %vm223, 0.0
    %249 = vst.msk [vmem:[%s241 + $0x1e8] sm:$0x3] %vm225, 0.0
    %250 = vst.msk [vmem:[%s241 + $0x280] sm:$0xff] %vm223, 0.0
    %251 = vst.msk [vmem:[%s241 + $0x288] sm:$0x3] %vm225, 0.0
    %252 = vst.msk [vmem:[%s241 + $0x320] sm:$0xff] %vm223, 0.0
    %253 = vst.msk [vmem:[%s241 + $0x328] sm:$0x3] %vm225, 0.0
    %254 = vst.msk [vmem:[%s241 + $0x3c0] sm:$0xff] %vm223, 0.0
    %255 = vst.msk [vmem:[%s241 + $0x3c8] sm:$0x3] %vm225, 0.0
    %256 = vst.msk [vmem:[%s241 + $0x460] sm:$0xff] %vm223, 0.0
    %257 = vst.msk [vmem:[%s241 + $0x468] sm:$0x3] %vm225, 0.0
    %vm258 = vcmask 57344
    %259 = vst.msk [vmem:[#allocation3] sm:$0x1] %vm258, 0.0
    %260 = vst.msk [vmem:[#allocation3 + $0x10] sm:$0x1] %vm258, 0.0
    %261 = vst.msk [vmem:[#allocation3 + $0x20] sm:$0x1] %vm258, 0.0
    %262 = vst.msk [vmem:[#allocation3 + $0x30] sm:$0x1] %vm258, 0.0
    %263 = vst.msk [vmem:[#allocation3 + $0x40] sm:$0x1] %vm258, 0.0
    %264 = vst.msk [vmem:[#allocation3 + $0x50] sm:$0x1] %vm258, 0.0
    %265 = vst.msk [vmem:[#allocation3 + $0x60] sm:$0x1] %vm258, 0.0
    %266 = vst.msk [vmem:[#allocation3 + $0x70] sm:$0x1] %vm258, 0.0
    %267 = vst.msk [vmem:[#allocation3 + $0x80] sm:$0x1] %vm258, 0.0
    %268 = vst.msk [vmem:[#allocation3 + $0x90] sm:$0x1] %vm258, 0.0
    %269 = vst.msk [vmem:[#allocation3 + $0xa0] sm:$0x1] %vm258, 0.0
    %270 = vst.msk [vmem:[#allocation3 + $0xb0] sm:$0x1] %vm258, 0.0
    %271 = vst.msk [vmem:[#allocation3 + $0xc0] sm:$0x1] %vm258, 0.0
    %272 = vst.msk [vmem:[#allocation3 + $0xd0] sm:$0x1] %vm258, 0.0
    %273 = vst.msk [vmem:[#allocation3 + $0xe0] sm:$0x1] %vm258, 0.0
    %274 = vst.msk [vmem:[#allocation3 + $0xf0] sm:$0x1] %vm258, 0.0
    %275 = vst.msk [vmem:[#allocation3 + $0x100] sm:$0x1] %vm258, 0.0
    %276 = vst.msk [vmem:[#allocation3 + $0x110] sm:$0x1] %vm258, 0.0
    %277 = vst.msk [vmem:[#allocation3 + $0x120] sm:$0x1] %vm258, 0.0
    %278 = vst.msk [vmem:[#allocation3 + $0x130] sm:$0x1] %vm258, 0.0
    %279 = vst.msk [vmem:[#allocation3 + $0x140] sm:$0x1] %vm258, 0.0
    %280 = vst.msk [vmem:[#allocation3 + $0x150] sm:$0x1] %vm258, 0.0
    %281 = vst.msk [vmem:[#allocation3 + $0x160] sm:$0x1] %vm258, 0.0
    %282 = vst.msk [vmem:[#allocation3 + $0x170] sm:$0x1] %vm258, 0.0
    %283 = vst.msk [vmem:[#allocation3 + $0x180] sm:$0x1] %vm258, 0.0
    %284 = vst.msk [vmem:[#allocation3 + $0x190] sm:$0x1] %vm258, 0.0
    %285 = vst.msk [vmem:[#allocation3 + $0x1a0] sm:$0x1] %vm258, 0.0
    %286 = vst.msk [vmem:[#allocation3 + $0x1b0] sm:$0x1] %vm258, 0.0
    %287 = vst.msk [vmem:[#allocation3 + $0x1c0] sm:$0x1] %vm258, 0.0
    %288 = vst.msk [vmem:[#allocation3 + $0x1d0] sm:$0x1] %vm258, 0.0
    %289 = vst.msk [vmem:[#allocation3 + $0x1e0] sm:$0x1] %vm258, 0.0
    %290 = vst.msk [vmem:[#allocation3 + $0x1f0] sm:$0x1] %vm258, 0.0
    %291 = vst.msk [vmem:[#allocation3 + $0x200] sm:$0x1] %vm258, 0.0
    %292 = vst.msk [vmem:[#allocation3 + $0x210] sm:$0x1] %vm258, 0.0
    %293 = vst.msk [vmem:[#allocation3 + $0x220] sm:$0x1] %vm258, 0.0
    %294 = vst.msk [vmem:[#allocation3 + $0x230] sm:$0x1] %vm258, 0.0
    %295 = vst.msk [vmem:[#allocation3 + $0x240] sm:$0x1] %vm258, 0.0
    %296 = vst.msk [vmem:[#allocation3 + $0x250] sm:$0x1] %vm258, 0.0
    %297 = vst.msk [vmem:[#allocation3 + $0x260] sm:$0x1] %vm258, 0.0
    %298 = vst.msk [vmem:[#allocation3 + $0x270] sm:$0x1] %vm258, 0.0
    %299 = vst.msk [vmem:[#allocation3 + $0x280] sm:$0x1] %vm258, 0.0
    %300 = vst.msk [vmem:[#allocation3 + $0x290] sm:$0x1] %vm258, 0.0
    %301 = vst.msk [vmem:[#allocation3 + $0x2a0] sm:$0x1] %vm258, 0.0
    %302 = vst.msk [vmem:[#allocation3 + $0x2b0] sm:$0x1] %vm258, 0.0
    %303 = vst.msk [vmem:[#allocation3 + $0x2c0] sm:$0x1] %vm258, 0.0
    %304 = vst.msk [vmem:[#allocation3 + $0x2d0] sm:$0x1] %vm258, 0.0
    %305 = vst.msk [vmem:[#allocation3 + $0x2e0] sm:$0x1] %vm258, 0.0
    %306 = vst.msk [vmem:[#allocation3 + $0x2f0] sm:$0x1] %vm258, 0.0
    %307 = vst.msk [vmem:[#allocation3 + $0x300] sm:$0x1] %vm258, 0.0
    %308 = vst.msk [vmem:[#allocation3 + $0x310] sm:$0x1] %vm258, 0.0
    %309 = vst.msk [vmem:[#allocation3 + $0x320] sm:$0x1] %vm258, 0.0
    %310 = vst.msk [vmem:[#allocation3 + $0x330] sm:$0x1] %vm258, 0.0
    %311 = vst.msk [vmem:[#allocation3 + $0x340] sm:$0x1] %vm258, 0.0
    %312 = vst.msk [vmem:[#allocation3 + $0x350] sm:$0x1] %vm258, 0.0
    %313 = vst.msk [vmem:[#allocation3 + $0x360] sm:$0x1] %vm258, 0.0
    %314 = vst.msk [vmem:[#allocation3 + $0x370] sm:$0x1] %vm258, 0.0
    %315 = vst.msk [vmem:[#allocation3 + $0x380] sm:$0x1] %vm258, 0.0
    %316 = vst.msk [vmem:[#allocation3 + $0x390] sm:$0x1] %vm258, 0.0
    %317 = vst.msk [vmem:[#allocation3 + $0x3a0] sm:$0x1] %vm258, 0.0
    %318 = vst.msk [vmem:[#allocation3 + $0x3b0] sm:$0x1] %vm258, 0.0
    %319 = vst.msk [vmem:[#allocation3 + $0x3c0] sm:$0x1] %vm258, 0.0
    %320 = vst.msk [vmem:[#allocation3 + $0x3d0] sm:$0x1] %vm258, 0.0
    %321 = vst.msk [vmem:[#allocation3 + $0x3e0] sm:$0x1] %vm258, 0.0
    %322 = vst.msk [vmem:[#allocation3 + $0x3f0] sm:$0x1] %vm258, 0.0
    %323 = vst.msk [vmem:[#allocation3 + $0x400] sm:$0x1] %vm258, 0.0
    %324 = vst.msk [vmem:[#allocation3 + $0x410] sm:$0x1] %vm258, 0.0
    %325 = vst.msk [vmem:[#allocation3 + $0x420] sm:$0x1] %vm258, 0.0
    %326 = vst.msk [vmem:[#allocation3 + $0x430] sm:$0x1] %vm258, 0.0
    %327 = vst.msk [vmem:[#allocation3 + $0x440] sm:$0x1] %vm258, 0.0
    %328 = vst.msk [vmem:[#allocation3 + $0x450] sm:$0x1] %vm258, 0.0
    %329 = vst.msk [vmem:[#allocation3 + $0x460] sm:$0x1] %vm258, 0.0
    %330 = vst.msk [vmem:[#allocation3 + $0x470] sm:$0x1] %vm258, 0.0
    %331 = vst.msk [vmem:[#allocation3 + $0x480] sm:$0x1] %vm258, 0.0
    %332 = vst.msk [vmem:[#allocation3 + $0x490] sm:$0x1] %vm258, 0.0
    %333 = vst.msk [vmem:[#allocation3 + $0x4a0] sm:$0x1] %vm258, 0.0
    %334 = vst.msk [vmem:[#allocation3 + $0x4b0] sm:$0x1] %vm258, 0.0
    %335 = vst.msk [vmem:[#allocation3 + $0x4c0] sm:$0x1] %vm258, 0.0
    %336 = vst.msk [vmem:[#allocation3 + $0x4d0] sm:$0x1] %vm258, 0.0
    %337 = vst.msk [vmem:[#allocation3 + $0x4e0] sm:$0x1] %vm258, 0.0
    %338 = vst.msk [vmem:[#allocation3 + $0x4f0] sm:$0x1] %vm258, 0.0
    %339 = vst.msk [vmem:[#allocation3 + $0x9] sm:$0x1] %vm258, 0.0
    %340 = vst.msk [vmem:[#allocation3 + $0x19] sm:$0x1] %vm258, 0.0
    %341 = vst.msk [vmem:[#allocation3 + $0x29] sm:$0x1] %vm258, 0.0
    %342 = vst.msk [vmem:[#allocation3 + $0x39] sm:$0x1] %vm258, 0.0
    %343 = vst.msk [vmem:[#allocation3 + $0x49] sm:$0x1] %vm258, 0.0
    %344 = vst.msk [vmem:[#allocation3 + $0x59] sm:$0x1] %vm258, 0.0
    %345 = vst.msk [vmem:[#allocation3 + $0x69] sm:$0x1] %vm258, 0.0
    %346 = vst.msk [vmem:[#allocation3 + $0x79] sm:$0x1] %vm258, 0.0
    %347 = vst.msk [vmem:[#allocation3 + $0x89] sm:$0x1] %vm258, 0.0
    %348 = vst.msk [vmem:[#allocation3 + $0x99] sm:$0x1] %vm258, 0.0
    %349 = vst.msk [vmem:[#allocation3 + $0xa9] sm:$0x1] %vm258, 0.0
    %350 = vst.msk [vmem:[#allocation3 + $0xb9] sm:$0x1] %vm258, 0.0
    %351 = vst.msk [vmem:[#allocation3 + $0xc9] sm:$0x1] %vm258, 0.0
    %352 = vst.msk [vmem:[#allocation3 + $0xd9] sm:$0x1] %vm258, 0.0
    %353 = vst.msk [vmem:[#allocation3 + $0xe9] sm:$0x1] %vm258, 0.0
    %354 = vst.msk [vmem:[#allocation3 + $0xf9] sm:$0x1] %vm258, 0.0
    %355 = vst.msk [vmem:[#allocation3 + $0x109] sm:$0x1] %vm258, 0.0
    %356 = vst.msk [vmem:[#allocation3 + $0x119] sm:$0x1] %vm258, 0.0
    %357 = vst.msk [vmem:[#allocation3 + $0x129] sm:$0x1] %vm258, 0.0
    %358 = vst.msk [vmem:[#allocation3 + $0x139] sm:$0x1] %vm258, 0.0
    %359 = vst.msk [vmem:[#allocation3 + $0x149] sm:$0x1] %vm258, 0.0
    %360 = vst.msk [vmem:[#allocation3 + $0x159] sm:$0x1] %vm258, 0.0
    %361 = vst.msk [vmem:[#allocation3 + $0x169] sm:$0x1] %vm258, 0.0
    %362 = vst.msk [vmem:[#allocation3 + $0x179] sm:$0x1] %vm258, 0.0
    %363 = vst.msk [vmem:[#allocation3 + $0x189] sm:$0x1] %vm258, 0.0
    %364 = vst.msk [vmem:[#allocation3 + $0x199] sm:$0x1] %vm258, 0.0
    %365 = vst.msk [vmem:[#allocation3 + $0x1a9] sm:$0x1] %vm258, 0.0
    %366 = vst.msk [vmem:[#allocation3 + $0x1b9] sm:$0x1] %vm258, 0.0
    %367 = vst.msk [vmem:[#allocation3 + $0x1c9] sm:$0x1] %vm258, 0.0
    %368 = vst.msk [vmem:[#allocation3 + $0x1d9] sm:$0x1] %vm258, 0.0
    %369 = vst.msk [vmem:[#allocation3 + $0x1e9] sm:$0x1] %vm258, 0.0
    %370 = vst.msk [vmem:[#allocation3 + $0x1f9] sm:$0x1] %vm258, 0.0
    %371 = vst.msk [vmem:[#allocation3 + $0x209] sm:$0x1] %vm258, 0.0
    %372 = vst.msk [vmem:[#allocation3 + $0x219] sm:$0x1] %vm258, 0.0
    %373 = vst.msk [vmem:[#allocation3 + $0x229] sm:$0x1] %vm258, 0.0
    %374 = vst.msk [vmem:[#allocation3 + $0x239] sm:$0x1] %vm258, 0.0
    %375 = vst.msk [vmem:[#allocation3 + $0x249] sm:$0x1] %vm258, 0.0
    %376 = vst.msk [vmem:[#allocation3 + $0x259] sm:$0x1] %vm258, 0.0
    %377 = vst.msk [vmem:[#allocation3 + $0x269] sm:$0x1] %vm258, 0.0
    %378 = vst.msk [vmem:[#allocation3 + $0x279] sm:$0x1] %vm258, 0.0
    %379 = vst.msk [vmem:[#allocation3 + $0x289] sm:$0x1] %vm258, 0.0
    %380 = vst.msk [vmem:[#allocation3 + $0x299] sm:$0x1] %vm258, 0.0
    %381 = vst.msk [vmem:[#allocation3 + $0x2a9] sm:$0x1] %vm258, 0.0
    %382 = vst.msk [vmem:[#allocation3 + $0x2b9] sm:$0x1] %vm258, 0.0
    %383 = vst.msk [vmem:[#allocation3 + $0x2c9] sm:$0x1] %vm258, 0.0
    %384 = vst.msk [vmem:[#allocation3 + $0x2d9] sm:$0x1] %vm258, 0.0
    %385 = vst.msk [vmem:[#allocation3 + $0x2e9] sm:$0x1] %vm258, 0.0
    %386 = vst.msk [vmem:[#allocation3 + $0x2f9] sm:$0x1] %vm258, 0.0
    %387 = vst.msk [vmem:[#allocation3 + $0x309] sm:$0x1] %vm258, 0.0
    %388 = vst.msk [vmem:[#allocation3 + $0x319] sm:$0x1] %vm258, 0.0
    %389 = vst.msk [vmem:[#allocation3 + $0x329] sm:$0x1] %vm258, 0.0
    %390 = vst.msk [vmem:[#allocation3 + $0x339] sm:$0x1] %vm258, 0.0
    %391 = vst.msk [vmem:[#allocation3 + $0x349] sm:$0x1] %vm258, 0.0
    %392 = vst.msk [vmem:[#allocation3 + $0x359] sm:$0x1] %vm258, 0.0
    %393 = vst.msk [vmem:[#allocation3 + $0x369] sm:$0x1] %vm258, 0.0
    %394 = vst.msk [vmem:[#allocation3 + $0x379] sm:$0x1] %vm258, 0.0
    %395 = vst.msk [vmem:[#allocation3 + $0x389] sm:$0x1] %vm258, 0.0
    %396 = vst.msk [vmem:[#allocation3 + $0x399] sm:$0x1] %vm258, 0.0
    %397 = vst.msk [vmem:[#allocation3 + $0x3a9] sm:$0x1] %vm258, 0.0
    %398 = vst.msk [vmem:[#allocation3 + $0x3b9] sm:$0x1] %vm258, 0.0
    %399 = vst.msk [vmem:[#allocation3 + $0x3c9] sm:$0x1] %vm258, 0.0
    %400 = vst.msk [vmem:[#allocation3 + $0x3d9] sm:$0x1] %vm258, 0.0
    %401 = vst.msk [vmem:[#allocation3 + $0x3e9] sm:$0x1] %vm258, 0.0
    %402 = vst.msk [vmem:[#allocation3 + $0x3f9] sm:$0x1] %vm258, 0.0
    %403 = vst.msk [vmem:[#allocation3 + $0x409] sm:$0x1] %vm258, 0.0
    %404 = vst.msk [vmem:[#allocation3 + $0x419] sm:$0x1] %vm258, 0.0
    %405 = vst.msk [vmem:[#allocation3 + $0x429] sm:$0x1] %vm258, 0.0
    %406 = vst.msk [vmem:[#allocation3 + $0x439] sm:$0x1] %vm258, 0.0
    %407 = vst.msk [vmem:[#allocation3 + $0x449] sm:$0x1] %vm258, 0.0
    %408 = vst.msk [vmem:[#allocation3 + $0x459] sm:$0x1] %vm258, 0.0
    %409 = vst.msk [vmem:[#allocation3 + $0x469] sm:$0x1] %vm258, 0.0
    %410 = vst.msk [vmem:[#allocation3 + $0x479] sm:$0x1] %vm258, 0.0
    %411 = vst.msk [vmem:[#allocation3 + $0x489] sm:$0x1] %vm258, 0.0
    %412 = vst.msk [vmem:[#allocation3 + $0x499] sm:$0x1] %vm258, 0.0
    %413 = vst.msk [vmem:[#allocation3 + $0x4a9] sm:$0x1] %vm258, 0.0
    %414 = vst.msk [vmem:[#allocation3 + $0x4b9] sm:$0x1] %vm258, 0.0
    %415 = vst.msk [vmem:[#allocation3 + $0x4c9] sm:$0x1] %vm258, 0.0
    %416 = vst.msk [vmem:[#allocation3 + $0x4d9] sm:$0x1] %vm258, 0.0
    %417 = vst.msk [vmem:[#allocation3 + $0x4e9] sm:$0x1] %vm258, 0.0
    %418 = vst.msk [vmem:[#allocation3 + $0x4f9] sm:$0x1] %vm258, 0.0
    %v419 = vld [vmem:[%s0] sm:$0xff]
    %v420 = vld [vmem:[%s0 + $0x8] sm:$0xff]
    %v421 = vld [vmem:[%s0 + $0x10] sm:$0xff]
    %v422 = vld [vmem:[%s0 + $0x18] sm:$0xff]
    %v423 = vld [vmem:[%s0 + $0x20] sm:$0xff]
    %v424 = vld [vmem:[%s0 + $0x28] sm:$0xff]
    %v425 = vld [vmem:[%s0 + $0x30] sm:$0xff]
    %v426 = vld [vmem:[%s0 + $0x38] sm:$0xff]
    %v427 = vld [vmem:[%s0 + $0x40] sm:$0xff]
    %v428 = vld [vmem:[%s0 + $0x48] sm:$0xff]
    %v429 = vld [vmem:[%s0 + $0x50] sm:$0xff]
    %v430 = vld [vmem:[%s0 + $0x58] sm:$0xff]
    %v431 = vld [vmem:[%s0 + $0x60] sm:$0xff]
    %v432 = vld [vmem:[%s0 + $0x68] sm:$0xff]
    %v433 = vld [vmem:[%s0 + $0x70] sm:$0xff]
    %v434 = vld [vmem:[%s0 + $0x78] sm:$0xff]
    %v435 = vld [vmem:[%s0 + $0x80] sm:$0xff]
    %v436 = vld [vmem:[%s0 + $0x88] sm:$0xff]
    %v437 = vld [vmem:[%s0 + $0x90] sm:$0xff]
    %v438 = vld [vmem:[%s0 + $0x98] sm:$0xff]
    %v439 = vld [vmem:[%s0 + $0xa0] sm:$0xff]
    %v440 = vld [vmem:[%s0 + $0xa8] sm:$0xff]
    %v441 = vld [vmem:[%s0 + $0xb0] sm:$0xff]
    %v442 = vld [vmem:[%s0 + $0xb8] sm:$0xff]
    %v443 = vld [vmem:[%s0 + $0xc0] sm:$0xff]
    %v444 = vld [vmem:[%s0 + $0xc8] sm:$0xff]
    %v445 = vld [vmem:[%s0 + $0xd0] sm:$0xff]
    %v446 = vld [vmem:[%s0 + $0xd8] sm:$0xff]
    %v447 = vld [vmem:[%s0 + $0xe0] sm:$0xff]
    %v448 = vld [vmem:[%s0 + $0xe8] sm:$0xff]
    %v449 = vld [vmem:[%s0 + $0xf0] sm:$0xff]
    %v450 = vld [vmem:[%s0 + $0xf8] sm:$0xff]
    %v451 = vld [vmem:[%s0 + $0x100] sm:$0xff]
    %v452 = vld [vmem:[%s0 + $0x108] sm:$0xff]
    %v453 = vld [vmem:[%s0 + $0x110] sm:$0xff]
    %v454 = vld [vmem:[%s0 + $0x118] sm:$0xff]
    %v455 = vld [vmem:[%s0 + $0x120] sm:$0xff]
    %v456 = vld [vmem:[%s0 + $0x128] sm:$0xff]
    %v457 = vld [vmem:[%s0 + $0x130] sm:$0xff]
    %v458 = vld [vmem:[%s0 + $0x138] sm:$0xff]
    %v459 = vld [vmem:[%s0 + $0x140] sm:$0xff]
    %v460 = vld [vmem:[%s0 + $0x148] sm:$0xff]
    %v461 = vld [vmem:[%s0 + $0x150] sm:$0xff]
    %v462 = vld [vmem:[%s0 + $0x158] sm:$0xff]
    %v463 = vld [vmem:[%s0 + $0x160] sm:$0xff]
    %v464 = vld [vmem:[%s0 + $0x168] sm:$0xff]
    %v465 = vld [vmem:[%s0 + $0x170] sm:$0xff]
    %v466 = vld [vmem:[%s0 + $0x178] sm:$0xff]
    %v467 = vld [vmem:[%s0 + $0x180] sm:$0xff]
    %v468 = vld [vmem:[%s0 + $0x188] sm:$0xff]
    %v469 = vld [vmem:[%s0 + $0x190] sm:$0xff]
    %v470 = vld [vmem:[%s0 + $0x198] sm:$0xff]
    %v471 = vld [vmem:[%s0 + $0x1a0] sm:$0xff]
    %v472 = vld [vmem:[%s0 + $0x1a8] sm:$0xff]
    %v473 = vld [vmem:[%s0 + $0x1b0] sm:$0xff]
    %v474 = vld [vmem:[%s0 + $0x1b8] sm:$0xff]
    %v475 = vld [vmem:[%s0 + $0x1c0] sm:$0xff]
    %v476 = vld [vmem:[%s0 + $0x1c8] sm:$0xff]
    %v477 = vld [vmem:[%s0 + $0x1d0] sm:$0xff]
    %v478 = vld [vmem:[%s0 + $0x1d8] sm:$0xff]
    %v479 = vld [vmem:[%s0 + $0x1e0] sm:$0xff]
    %v480 = vld [vmem:[%s0 + $0x1e8] sm:$0xff]
    %v481 = vld [vmem:[%s0 + $0x1f0] sm:$0xff]
    %v482 = vld [vmem:[%s0 + $0x1f8] sm:$0xff]
    %v483 = vadd.f32 %v419, %v427
    %v484 = vadd.f32 %v420, %v428
    %v485 = vadd.f32 %v421, %v429
    %v486 = vadd.f32 %v422, %v430
    %v487 = vadd.f32 %v423, %v431
    %v488 = vadd.f32 %v424, %v432
    %v489 = vadd.f32 %v425, %v433
    %v490 = vadd.f32 %v426, %v434
    %v491 = vadd.f32 %v451, %v459
    %v492 = vadd.f32 %v452, %v460
    %v493 = vadd.f32 %v453, %v461
    %v494 = vadd.f32 %v454, %v462
    %v495 = vadd.f32 %v455, %v463
    %v496 = vadd.f32 %v456, %v464
    %v497 = vadd.f32 %v457, %v465
    %v498 = vadd.f32 %v458, %v466
    %v499 = vadd.f32 %v483, %v435
    %v500 = vadd.f32 %v484, %v436
    %v501 = vadd.f32 %v485, %v437
    %v502 = vadd.f32 %v486, %v438
    %v503 = vadd.f32 %v487, %v439
    %v504 = vadd.f32 %v488, %v440
    %v505 = vadd.f32 %v489, %v441
    %v506 = vadd.f32 %v490, %v442
    %v507 = vadd.f32 %v491, %v467
    %v508 = vadd.f32 %v492, %v468
    %v509 = vadd.f32 %v493, %v469
    %v510 = vadd.f32 %v494, %v470
    %v511 = vadd.f32 %v495, %v471
    %v512 = vadd.f32 %v496, %v472
    %v513 = vadd.f32 %v497, %v473
    %v514 = vadd.f32 %v498, %v474
    %v515 = vadd.f32 %v499, %v443
    %v516 = vadd.f32 %v500, %v444
    %v517 = vadd.f32 %v501, %v445
    %v518 = vadd.f32 %v502, %v446
    %v519 = vadd.f32 %v503, %v447
    %v520 = vadd.f32 %v504, %v448
    %v521 = vadd.f32 %v505, %v449
    %v522 = vadd.f32 %v506, %v450
    %v523 = vadd.f32 %v507, %v475
    %v524 = vadd.f32 %v508, %v476
    %v525 = vadd.f32 %v509, %v477
    %v526 = vadd.f32 %v510, %v478
    %v527 = vadd.f32 %v511, %v479
    %v528 = vadd.f32 %v512, %v480
    %v529 = vadd.f32 %v513, %v481
    %v530 = vadd.f32 %v514, %v482
    %v531 = vmul.f32 %v515, 0.25
    %v532 = vmul.f32 %v516, 0.25
    %v533 = vmul.f32 %v517, 0.25
    %v534 = vmul.f32 %v518, 0.25
    %v535 = vmul.f32 %v519, 0.25
    %v536 = vmul.f32 %v520, 0.25
    %v537 = vmul.f32 %v521, 0.25
    %v538 = vmul.f32 %v522, 0.25
    %v539 = vmul.f32 %v523, 0.25
    %v540 = vmul.f32 %v524, 0.25
    %v541 = vmul.f32 %v525, 0.25
    %v542 = vmul.f32 %v526, 0.25
    %v543 = vmul.f32 %v527, 0.25
    %v544 = vmul.f32 %v528, 0.25
    %v545 = vmul.f32 %v529, 0.25
    %v546 = vmul.f32 %v530, 0.25
    %v547 = vld [vmem:[%s1] sm:$0xf]
    %v548 = vld [vmem:[%s2] sm:$0x1]
    %v550 = vlaneseq
    %v551 = vshrl.u32 %v550, 7
    %v552 = vsub.s32 0, %v551
    %v553 = vrot.slane %v548, %v552
    %v556 = vsel %vm27, %v531, 0
    %v559 = vsel %vm27, %v532, 0
    %v562 = vsel %vm27, %v533, 0
    %v565 = vsel %vm27, %v534, 0
    %v568 = vsel %vm27, %v535, 0
    %v571 = vsel %vm27, %v536, 0
    %v574 = vsel %vm27, %v537, 0
    %v577 = vsel %vm27, %v538, 0
    %v580 = vsel %vm27, %v539, 0
    %v583 = vsel %vm27, %v540, 0
    %v586 = vsel %vm27, %v541, 0
    %v589 = vsel %vm27, %v542, 0
    %v592 = vsel %vm27, %v543, 0
    %v595 = vsel %vm27, %v544, 0
    %v598 = vsel %vm27, %v545, 0
    %v601 = vsel %vm27, %v546, 0
    %vm603 = vcmask 1043456
    %v605 = vsel %vm603, %v547, 0
    %607 = vmatprep.subr.mxu0 0.0
    %608 = vmatpush1.msra.mxu0 %v605
    %609 = vmatprep.subr.mxu0 0.0
    %610 = vmatpush1.msra.mxu0 0.0
    %611 = vmatprep.subr.mxu0 0.0
    %612 = vmatpush1.msra.mxu0 0.0
    %613 = vmatprep.subr.mxu0 0.0
    %614 = vmatpush1.msra.mxu0 0.0
    %615 = vmatprep.subr.mxu0 0.0
    %616 = vmatpush1.msra.mxu0 0.0
    %617 = vmatprep.subr.mxu0 0.0
    %618 = vmatpush1.msra.mxu0 0.0
    %619 = vmatprep.subr.mxu0 0.0
    %620 = vmatpush1.msra.mxu0 0.0
    %621 = vmatprep.subr.mxu0 0.0
    %622 = vmatpush1.msra.mxu0 0.0
    %623 = vmatprep.subr.mxu0 0.0
    %624 = vmatpush1.msra.mxu0 0.0
    %625 = vmatprep.subr.mxu0 0.0
    %626 = vmatpush1.msra.mxu0 0.0
    %627 = vmatprep.subr.mxu0 0.0
    %628 = vmatpush1.msra.mxu0 0.0
    %629 = vmatprep.subr.mxu0 0.0
    %630 = vmatpush1.msra.mxu0 0.0
    %631 = vmatprep.subr.mxu0 0.0
    %632 = vmatpush1.msra.mxu0 0.0
    %633 = vmatprep.subr.mxu0 0.0
    %634 = vmatpush1.msra.mxu0 0.0
    %635 = vmatprep.subr.mxu0 0.0
    %636 = vmatpush1.msra.mxu0 0.0
    %637 = vmatprep.subr.mxu0 0.0
    %638 = vmatpush1.msra.mxu0 0.0
    %639 = vmatprep.subr.mxu0 0.0
    %640 = vmatpush1.msra.mxu0 0.0
    %641 = vmatprep.subr.mxu0 0.0
    %642 = vmatpush1.msra.mxu0 0.0
    %643 = vmatprep.subr.mxu0 0.0
    %644 = vmatpush1.msra.mxu0 0.0
    %645 = vmatprep.subr.mxu0 0.0
    %646 = vmatpush1.msra.mxu0 0.0
    %647 = vmatprep.subr.mxu0 0.0
    %648 = vmatpush1.msra.mxu0 0.0
    %649 = vmatprep.subr.mxu0 0.0
    %650 = vmatpush1.msra.mxu0 0.0
    %651 = vmatprep.subr.mxu0 0.0
    %652 = vmatpush1.msra.mxu0 0.0
    %653 = vmatprep.subr.mxu0 0.0
    %654 = vmatpush1.msra.mxu0 0.0
    %655 = vmatprep.subr.mxu0 0.0
    %656 = vmatpush1.msra.mxu0 0.0
    %657 = vmatprep.subr.mxu0 0.0
    %658 = vmatpush1.msra.mxu0 0.0
    %659 = vmatprep.subr.mxu0 0.0
    %660 = vmatpush1.msra.mxu0 0.0
    %661 = vmatprep.subr.mxu0 0.0
    %662 = vmatpush1.msra.mxu0 0.0
    %663 = vmatprep.subr.mxu0 0.0
    %664 = vmatpush1.msra.mxu0 0.0
    %665 = vmatprep.subr.mxu0 0.0
    %666 = vmatpush1.msra.mxu0 0.0
    %667 = vmatprep.subr.mxu0 0.0
    %668 = vmatpush1.msra.mxu0 0.0
    %669 = vmatprep.subr.mxu0 0.0
    %670 = vmatpush1.msra.mxu0 0.0
    %671 = vmatprep.mubr.f32.mxu0 0.0
    %672 = vmatmul.mubr.f32.gmra.mrb[0].mxu0 %v556
    %v673 = vpop.f32.mrb[0].mxu0
    %v674 = vadd.f32 %v553, %v673
    %v675 = vpop.f32.mrb[0].mxu0
    %676 = vmatprep.mubr.f32.mxu0 0.0
    %677 = vmatmul.mubr.f32.gmra.mrb[0].mxu0 %v559
    %v678 = vpop.f32.mrb[0].mxu0
    %v679 = vadd.f32 %v553, %v678
    %v680 = vpop.f32.mrb[0].mxu0
    %681 = vmatprep.mubr.f32.mxu0 0.0
    %682 = vmatmul.mubr.f32.gmra.mrb[0].mxu0 %v562
    %v683 = vpop.f32.mrb[0].mxu0
    %v684 = vadd.f32 %v553, %v683
    %v685 = vpop.f32.mrb[0].mxu0
    %686 = vmatprep.mubr.f32.mxu0 0.0
    %687 = vmatmul.mubr.f32.gmra.mrb[0].mxu0 %v565
    %v688 = vpop.f32.mrb[0].mxu0
    %v689 = vadd.f32 %v553, %v688
    %v690 = vpop.f32.mrb[0].mxu0
    %691 = vmatprep.mubr.f32.mxu0 0.0
    %692 = vmatmul.mubr.f32.gmra.mrb[0].mxu0 %v568
    %v693 = vpop.f32.mrb[0].mxu0
    %v694 = vadd.f32 %v553, %v693
    %v695 = vpop.f32.mrb[0].mxu0
    %696 = vmatprep.mubr.f32.mxu0 0.0
    %697 = vmatmul.mubr.f32.gmra.mrb[0].mxu0 %v571
    %v698 = vpop.f32.mrb[0].mxu0
    %v699 = vadd.f32 %v553, %v698
    %v700 = vpop.f32.mrb[0].mxu0
    %701 = vmatprep.mubr.f32.mxu0 0.0
    %702 = vmatmul.mubr.f32.gmra.mrb[0].mxu0 %v574
    %v703 = vpop.f32.mrb[0].mxu0
    %v704 = vadd.f32 %v553, %v703
    %v705 = vpop.f32.mrb[0].mxu0
    %706 = vmatprep.mubr.f32.mxu0 0.0
    %707 = vmatmul.mubr.f32.gmra.mrb[0].mxu0 %v577
    %v708 = vpop.f32.mrb[0].mxu0
    %v709 = vadd.f32 %v553, %v708
    %v710 = vpop.f32.mrb[0].mxu0
    %711 = vmatprep.mubr.f32.mxu0 0.0
    %712 = vmatmul.mubr.f32.gmra.mrb[0].mxu0 %v580
    %v713 = vpop.f32.mrb[0].mxu0
    %v714 = vadd.f32 %v553, %v713
    %v715 = vpop.f32.mrb[0].mxu0
    %716 = vmatprep.mubr.f32.mxu0 0.0
    %717 = vmatmul.mubr.f32.gmra.mrb[0].mxu0 %v583
    %v718 = vpop.f32.mrb[0].mxu0
    %v719 = vadd.f32 %v553, %v718
    %v720 = vpop.f32.mrb[0].mxu0
    %721 = vmatprep.mubr.f32.mxu0 0.0
    %722 = vmatmul.mubr.f32.gmra.mrb[0].mxu0 %v586
    %v723 = vpop.f32.mrb[0].mxu0
    %v724 = vadd.f32 %v553, %v723
    %v725 = vpop.f32.mrb[0].mxu0
    %726 = vmatprep.mubr.f32.mxu0 0.0
    %727 = vmatmul.mubr.f32.gmra.mrb[0].mxu0 %v589
    %v728 = vpop.f32.mrb[0].mxu0
    %v729 = vadd.f32 %v553, %v728
    %v730 = vpop.f32.mrb[0].mxu0
    %731 = vmatprep.mubr.f32.mxu0 0.0
    %732 = vmatmul.mubr.f32.gmra.mrb[0].mxu0 %v592
    %v733 = vpop.f32.mrb[0].mxu0
    %v734 = vadd.f32 %v553, %v733
    %v735 = vpop.f32.mrb[0].mxu0
    %736 = vmatprep.mubr.f32.mxu0 0.0
    %737 = vmatmul.mubr.f32.gmra.mrb[0].mxu0 %v595
    %v738 = vpop.f32.mrb[0].mxu0
    %v739 = vadd.f32 %v553, %v738
    %v740 = vpop.f32.mrb[0].mxu0
    %741 = vmatprep.mubr.f32.mxu0 0.0
    %742 = vmatmul.mubr.f32.gmra.mrb[0].mxu0 %v598
    %v743 = vpop.f32.mrb[0].mxu0
    %v744 = vadd.f32 %v553, %v743
    %v745 = vpop.f32.mrb[0].mxu0
    %746 = vmatprep.mubr.f32.mxu0 0.0
    %747 = vmatmul.mubr.f32.gmra.mrb[0].mxu0 %v601
    %v748 = vpop.f32.mrb[0].mxu0
    %v749 = vadd.f32 %v553, %v748
    %v750 = vpop.f32.mrb[0].mxu0
    %751 = vdwg.mxu0
    %v752 = vmax.f32 %v419, 0.0
    %v753 = vmax.f32 %v420, 0.0
    %v754 = vmax.f32 %v421, 0.0
    %v755 = vmax.f32 %v422, 0.0
    %v756 = vmax.f32 %v423, 0.0
    %v757 = vmax.f32 %v424, 0.0
    %v758 = vmax.f32 %v425, 0.0
    %v759 = vmax.f32 %v426, 0.0
    %v760 = vmax.f32 %v427, 0.0
    %v761 = vmax.f32 %v428, 0.0
    %v762 = vmax.f32 %v429, 0.0
    %v763 = vmax.f32 %v430, 0.0
    %v764 = vmax.f32 %v431, 0.0
    %v765 = vmax.f32 %v432, 0.0
    %v766 = vmax.f32 %v433, 0.0
    %v767 = vmax.f32 %v434, 0.0
    %v768 = vmax.f32 %v435, 0.0
    %v769 = vmax.f32 %v436, 0.0
    %v770 = vmax.f32 %v437, 0.0
    %v771 = vmax.f32 %v438, 0.0
    %v772 = vmax.f32 %v439, 0.0
    %v773 = vmax.f32 %v440, 0.0
    %v774 = vmax.f32 %v441, 0.0
    %v775 = vmax.f32 %v442, 0.0
    %v776 = vmax.f32 %v443, 0.0
    %v777 = vmax.f32 %v444, 0.0
    %v778 = vmax.f32 %v445, 0.0
    %v779 = vmax.f32 %v446, 0.0
    %v780 = vmax.f32 %v447, 0.0
    %v781 = vmax.f32 %v448, 0.0
    %v782 = vmax.f32 %v449, 0.0
    %v783 = vmax.f32 %v450, 0.0
    %v784 = vmax.f32 %v451, 0.0
    %v785 = vmax.f32 %v452, 0.0
    %v786 = vmax.f32 %v453, 0.0
    %v787 = vmax.f32 %v454, 0.0
    %v788 = vmax.f32 %v455, 0.0
    %v789 = vmax.f32 %v456, 0.0
    %v790 = vmax.f32 %v457, 0.0
    %v791 = vmax.f32 %v458, 0.0
    %v792 = vmax.f32 %v459, 0.0
    %v793 = vmax.f32 %v460, 0.0
    %v794 = vmax.f32 %v461, 0.0
    %v795 = vmax.f32 %v462, 0.0
    %v796 = vmax.f32 %v463, 0.0
    %v797 = vmax.f32 %v464, 0.0
    %v798 = vmax.f32 %v465, 0.0
    %v799 = vmax.f32 %v466, 0.0
    %v800 = vmax.f32 %v467, 0.0
    %v801 = vmax.f32 %v468, 0.0
    %v802 = vmax.f32 %v469, 0.0
    %v803 = vmax.f32 %v470, 0.0
    %v804 = vmax.f32 %v471, 0.0
    %v805 = vmax.f32 %v472, 0.0
    %v806 = vmax.f32 %v473, 0.0
    %v807 = vmax.f32 %v474, 0.0
    %v808 = vmax.f32 %v475, 0.0
    %v809 = vmax.f32 %v476, 0.0
    %v810 = vmax.f32 %v477, 0.0
    %v811 = vmax.f32 %v478, 0.0
    %v812 = vmax.f32 %v479, 0.0
    %v813 = vmax.f32 %v480, 0.0
    %v814 = vmax.f32 %v481, 0.0
    %v815 = vmax.f32 %v482, 0.0
    %s816 = scalar_lea.vmem [#allocation2], 16
    %817 = vst.msk [vmem:[%s816 + $0x1] sm:$0xff] %vm27, %v752
    %818 = vst.msk [vmem:[%s816 + $0x11] sm:$0xff] %vm27, %v753
    %819 = vst.msk [vmem:[%s816 + $0x21] sm:$0xff] %vm27, %v754
    %820 = vst.msk [vmem:[%s816 + $0x31] sm:$0xff] %vm27, %v755
    %821 = vst.msk [vmem:[%s816 + $0x41] sm:$0xff] %vm27, %v756
    %822 = vst.msk [vmem:[%s816 + $0x51] sm:$0xff] %vm27, %v757
    %823 = vst.msk [vmem:[%s816 + $0x61] sm:$0xff] %vm27, %v758
    %824 = vst.msk [vmem:[%s816 + $0x71] sm:$0xff] %vm27, %v759
    %825 = vst.msk [vmem:[%s816 + $0xa1] sm:$0xff] %vm27, %v760
    %826 = vst.msk [vmem:[%s816 + $0xb1] sm:$0xff] %vm27, %v761
    %827 = vst.msk [vmem:[%s816 + $0xc1] sm:$0xff] %vm27, %v762
    %828 = vst.msk [vmem:[%s816 + $0xd1] sm:$0xff] %vm27, %v763
    %829 = vst.msk [vmem:[%s816 + $0xe1] sm:$0xff] %vm27, %v764
    %830 = vst.msk [vmem:[%s816 + $0xf1] sm:$0xff] %vm27, %v765
    %831 = vst.msk [vmem:[%s816 + $0x101] sm:$0xff] %vm27, %v766
    %832 = vst.msk [vmem:[%s816 + $0x111] sm:$0xff] %vm27, %v767
    %833 = vst.msk [vmem:[%s816 + $0x141] sm:$0xff] %vm27, %v768
    %834 = vst.msk [vmem:[%s816 + $0x151] sm:$0xff] %vm27, %v769
    %835 = vst.msk [vmem:[%s816 + $0x161] sm:$0xff] %vm27, %v770
    %836 = vst.msk [vmem:[%s816 + $0x171] sm:$0xff] %vm27, %v771
    %837 = vst.msk [vmem:[%s816 + $0x181] sm:$0xff] %vm27, %v772
    %838 = vst.msk [vmem:[%s816 + $0x191] sm:$0xff] %vm27, %v773
    %839 = vst.msk [vmem:[%s816 + $0x1a1] sm:$0xff] %vm27, %v774
    %840 = vst.msk [vmem:[%s816 + $0x1b1] sm:$0xff] %vm27, %v775
    %841 = vst.msk [vmem:[%s816 + $0x1e1] sm:$0xff] %vm27, %v776
    %842 = vst.msk [vmem:[%s816 + $0x1f1] sm:$0xff] %vm27, %v777
    %843 = vst.msk [vmem:[%s816 + $0x201] sm:$0xff] %vm27, %v778
    %844 = vst.msk [vmem:[%s816 + $0x211] sm:$0xff] %vm27, %v779
    %845 = vst.msk [vmem:[%s816 + $0x221] sm:$0xff] %vm27, %v780
    %846 = vst.msk [vmem:[%s816 + $0x231] sm:$0xff] %vm27, %v781
    %847 = vst.msk [vmem:[%s816 + $0x241] sm:$0xff] %vm27, %v782
    %848 = vst.msk [vmem:[%s816 + $0x251] sm:$0xff] %vm27, %v783
    %849 = vst.msk [vmem:[%s816 + $0x281] sm:$0xff] %vm27, %v784
    %850 = vst.msk [vmem:[%s816 + $0x291] sm:$0xff] %vm27, %v785
    %851 = vst.msk [vmem:[%s816 + $0x2a1] sm:$0xff] %vm27, %v786
    %852 = vst.msk [vmem:[%s816 + $0x2b1] sm:$0xff] %vm27, %v787
    %853 = vst.msk [vmem:[%s816 + $0x2c1] sm:$0xff] %vm27, %v788
    %854 = vst.msk [vmem:[%s816 + $0x2d1] sm:$0xff] %vm27, %v789
    %855 = vst.msk [vmem:[%s816 + $0x2e1] sm:$0xff] %vm27, %v790
    %856 = vst.msk [vmem:[%s816 + $0x2f1] sm:$0xff] %vm27, %v791
    %857 = vst.msk [vmem:[%s816 + $0x321] sm:$0xff] %vm27, %v792
    %858 = vst.msk [vmem:[%s816 + $0x331] sm:$0xff] %vm27, %v793
    %859 = vst.msk [vmem:[%s816 + $0x341] sm:$0xff] %vm27, %v794
    %860 = vst.msk [vmem:[%s816 + $0x351] sm:$0xff] %vm27, %v795
    %861 = vst.msk [vmem:[%s816 + $0x361] sm:$0xff] %vm27, %v796
    %862 = vst.msk [vmem:[%s816 + $0x371] sm:$0xff] %vm27, %v797
    %863 = vst.msk [vmem:[%s816 + $0x381] sm:$0xff] %vm27, %v798
    %864 = vst.msk [vmem:[%s816 + $0x391] sm:$0xff] %vm27, %v799
    %865 = vst.msk [vmem:[%s816 + $0x3c1] sm:$0xff] %vm27, %v800
    %866 = vst.msk [vmem:[%s816 + $0x3d1] sm:$0xff] %vm27, %v801
    %867 = vst.msk [vmem:[%s816 + $0x3e1] sm:$0xff] %vm27, %v802
    %868 = vst.msk [vmem:[%s816 + $0x3f1] sm:$0xff] %vm27, %v803
    %869 = vst.msk [vmem:[%s816 + $0x401] sm:$0xff] %vm27, %v804
    %870 = vst.msk [vmem:[%s816 + $0x411] sm:$0xff] %vm27, %v805
    %871 = vst.msk [vmem:[%s816 + $0x421] sm:$0xff] %vm27, %v806
    %872 = vst.msk [vmem:[%s816 + $0x431] sm:$0xff] %vm27, %v807
    %873 = vst.msk [vmem:[%s816 + $0x461] sm:$0xff] %vm27, %v808
    %874 = vst.msk [vmem:[%s816 + $0x471] sm:$0xff] %vm27, %v809
    %875 = vst.msk [vmem:[%s816 + $0x481] sm:$0xff] %vm27, %v810
    %876 = vst.msk [vmem:[%s816 + $0x491] sm:$0xff] %vm27, %v811
    %877 = vst.msk [vmem:[%s816 + $0x4a1] sm:$0xff] %vm27, %v812
    %878 = vst.msk [vmem:[%s816 + $0x4b1] sm:$0xff] %vm27, %v813
    %879 = vst.msk [vmem:[%s816 + $0x4c1] sm:$0xff] %vm27, %v814
    %880 = vst.msk [vmem:[%s816 + $0x4d1] sm:$0xff] %vm27, %v815
    %s881 = scalar_lea.vmem [#allocation2], 480
    %v882 = vld [vmem:[%s881] sm:$0xff]
    %v883 = vld [vmem:[%s881 + $0x10] sm:$0xff]
    %v884 = vld [vmem:[%s881 + $0x20] sm:$0xff]
    %v885 = vld [vmem:[%s881 + $0x30] sm:$0xff]
    %v886 = vld [vmem:[%s881 + $0x40] sm:$0xff]
    %v887 = vld [vmem:[%s881 + $0x50] sm:$0xff]
    %v888 = vld [vmem:[%s881 + $0x60] sm:$0xff]
    %v889 = vld [vmem:[%s881 + $0x70] sm:$0xff]
    %v890 = vld [vmem:[%s881 + $0x280] sm:$0xff]
    %v891 = vld [vmem:[%s881 + $0x290] sm:$0xff]
    %v892 = vld [vmem:[%s881 + $0x2a0] sm:$0xff]
    %v893 = vld [vmem:[%s881 + $0x2b0] sm:$0xff]
    %v894 = vld [vmem:[%s881 + $0x2c0] sm:$0xff]
    %v895 = vld [vmem:[%s881 + $0x2d0] sm:$0xff]
    %v896 = vld [vmem:[%s881 + $0x2e0] sm:$0xff]
    %v897 = vld [vmem:[%s881 + $0x2f0] sm:$0xff]
    %898 = vst.msk [vmem:[#allocation4] sm:$0xff] %vm27, %v882
    %899 = vst.msk [vmem:[#allocation4 + $0x8] sm:$0xff] %vm27, %v883
    %900 = vst.msk [vmem:[#allocation4 + $0x10] sm:$0xff] %vm27, %v884
    %901 = vst.msk [vmem:[#allocation4 + $0x18] sm:$0xff] %vm27, %v885
    %902 = vst.msk [vmem:[#allocation4 + $0x20] sm:$0xff] %vm27, %v886
    %903 = vst.msk [vmem:[#allocation4 + $0x28] sm:$0xff] %vm27, %v887
    %904 = vst.msk [vmem:[#allocation4 + $0x30] sm:$0xff] %vm27, %v888
    %905 = vst.msk [vmem:[#allocation4 + $0x38] sm:$0xff] %vm27, %v889
    %906 = vst.msk [vmem:[#allocation4 + $0x40] sm:$0xff] %vm27, %v890
    %907 = vst.msk [vmem:[#allocation4 + $0x48] sm:$0xff] %vm27, %v891
    %908 = vst.msk [vmem:[#allocation4 + $0x50] sm:$0xff] %vm27, %v892
    %909 = vst.msk [vmem:[#allocation4 + $0x58] sm:$0xff] %vm27, %v893
    %910 = vst.msk [vmem:[#allocation4 + $0x60] sm:$0xff] %vm27, %v894
    %911 = vst.msk [vmem:[#allocation4 + $0x68] sm:$0xff] %vm27, %v895
    %912 = vst.msk [vmem:[#allocation4 + $0x70] sm:$0xff] %vm27, %v896
    %913 = vst.msk [vmem:[#allocation4 + $0x78] sm:$0xff] %vm27, %v897
    %s914 = scalar_lea.vmem [#allocation2], 320
    %v915 = vld [vmem:[%s914 + $0x1] sm:$0xff]
    %v916 = vld [vmem:[%s914 + $0x11] sm:$0xff]
    %v917 = vld [vmem:[%s914 + $0x21] sm:$0xff]
    %v918 = vld [vmem:[%s914 + $0x31] sm:$0xff]
    %v919 = vld [vmem:[%s914 + $0x41] sm:$0xff]
    %v920 = vld [vmem:[%s914 + $0x51] sm:$0xff]
    %v921 = vld [vmem:[%s914 + $0x61] sm:$0xff]
    %v922 = vld [vmem:[%s914 + $0x71] sm:$0xff]
    %v923 = vld [vmem:[%s914 + $0x281] sm:$0xff]
    %v924 = vld [vmem:[%s914 + $0x291] sm:$0xff]
    %v925 = vld [vmem:[%s914 + $0x2a1] sm:$0xff]
    %v926 = vld [vmem:[%s914 + $0x2b1] sm:$0xff]
    %v927 = vld [vmem:[%s914 + $0x2c1] sm:$0xff]
    %v928 = vld [vmem:[%s914 + $0x2d1] sm:$0xff]
    %v929 = vld [vmem:[%s914 + $0x2e1] sm:$0xff]
    %v930 = vld [vmem:[%s914 + $0x2f1] sm:$0xff]
    %947 = vrot.lane.b32.xlu0 %v915, 4
    %v948 = vpop.permute.xlu0 %947
    %949 = vrot.lane.b32.xlu0 %v916, 4
    %v950 = vpop.permute.xlu0 %949
    %951 = vrot.lane.b32.xlu0 %v917, 4
    %v952 = vpop.permute.xlu0 %951
    %953 = vrot.lane.b32.xlu0 %v918, 4
    %v954 = vpop.permute.xlu0 %953
    %955 = vrot.lane.b32.xlu0 %v919, 4
    %v956 = vpop.permute.xlu0 %955
    %957 = vrot.lane.b32.xlu0 %v920, 4
    %v958 = vpop.permute.xlu0 %957
    %959 = vrot.lane.b32.xlu0 %v921, 4
    %v960 = vpop.permute.xlu0 %959
    %961 = vrot.lane.b32.xlu0 %v922, 4
    %v962 = vpop.permute.xlu0 %961
    %963 = vrot.lane.b32.xlu0 %v923, 4
    %v964 = vpop.permute.xlu0 %963
    %965 = vrot.lane.b32.xlu0 %v924, 4
    %v966 = vpop.permute.xlu0 %965
    %967 = vrot.lane.b32.xlu0 %v925, 4
    %v968 = vpop.permute.xlu0 %967
    %969 = vrot.lane.b32.xlu0 %v926, 4
    %v970 = vpop.permute.xlu0 %969
    %971 = vrot.lane.b32.xlu0 %v927, 4
    %v972 = vpop.permute.xlu0 %971
    %973 = vrot.lane.b32.xlu0 %v928, 4
    %v974 = vpop.permute.xlu0 %973
    %975 = vrot.lane.b32.xlu0 %v929, 4
    %v976 = vpop.permute.xlu0 %975
    %977 = vrot.lane.b32.xlu0 %v930, 4
    %v978 = vpop.permute.xlu0 %977
    %vm995 = vcmask 64544
    %996 = vst.msk [vmem:[#allocation4] sm:$0xff] %vm995, %v948
    %997 = vst.msk [vmem:[#allocation4 + $0x8] sm:$0xff] %vm995, %v950
    %998 = vst.msk [vmem:[#allocation4 + $0x10] sm:$0xff] %vm995, %v952
    %999 = vst.msk [vmem:[#allocation4 + $0x18] sm:$0xff] %vm995, %v954
    %1000 = vst.msk [vmem:[#allocation4 + $0x20] sm:$0xff] %vm995, %v956
    %1001 = vst.msk [vmem:[#allocation4 + $0x28] sm:$0xff] %vm995, %v958
    %1002 = vst.msk [vmem:[#allocation4 + $0x30] sm:$0xff] %vm995, %v960
    %1003 = vst.msk [vmem:[#allocation4 + $0x38] sm:$0xff] %vm995, %v962
    %1004 = vst.msk [vmem:[#allocation4 + $0x40] sm:$0xff] %vm995, %v964
    %1005 = vst.msk [vmem:[#allocation4 + $0x48] sm:$0xff] %vm995, %v966
    %1006 = vst.msk [vmem:[#allocation4 + $0x50] sm:$0xff] %vm995, %v968
    %1007 = vst.msk [vmem:[#allocation4 + $0x58] sm:$0xff] %vm995, %v970
    %1008 = vst.msk [vmem:[#allocation4 + $0x60] sm:$0xff] %vm995, %v972
    %1009 = vst.msk [vmem:[#allocation4 + $0x68] sm:$0xff] %vm995, %v974
    %1010 = vst.msk [vmem:[#allocation4 + $0x70] sm:$0xff] %vm995, %v976
    %1011 = vst.msk [vmem:[#allocation4 + $0x78] sm:$0xff] %vm995, %v978
    %v1012 = vld [vmem:[%s881 + $0x1] sm:$0xff]
    %v1013 = vld [vmem:[%s881 + $0x11] sm:$0xff]
    %v1014 = vld [vmem:[%s881 + $0x21] sm:$0xff]
    %v1015 = vld [vmem:[%s881 + $0x31] sm:$0xff]
    %v1016 = vld [vmem:[%s881 + $0x41] sm:$0xff]
    %v1017 = vld [vmem:[%s881 + $0x51] sm:$0xff]
    %v1018 = vld [vmem:[%s881 + $0x61] sm:$0xff]
    %v1019 = vld [vmem:[%s881 + $0x71] sm:$0xff]
    %v1020 = vld [vmem:[%s881 + $0x281] sm:$0xff]
    %v1021 = vld [vmem:[%s881 + $0x291] sm:$0xff]
    %v1022 = vld [vmem:[%s881 + $0x2a1] sm:$0xff]
    %v1023 = vld [vmem:[%s881 + $0x2b1] sm:$0xff]
    %v1024 = vld [vmem:[%s881 + $0x2c1] sm:$0xff]
    %v1025 = vld [vmem:[%s881 + $0x2d1] sm:$0xff]
    %v1026 = vld [vmem:[%s881 + $0x2e1] sm:$0xff]
    %v1027 = vld [vmem:[%s881 + $0x2f1] sm:$0xff]
    %1044 = vrot.lane.b32.xlu0 %v1012, 8
    %v1045 = vpop.permute.xlu0 %1044
    %1046 = vrot.lane.b32.xlu0 %v1013, 8
    %v1047 = vpop.permute.xlu0 %1046
    %1048 = vrot.lane.b32.xlu0 %v1014, 8
    %v1049 = vpop.permute.xlu0 %1048
    %1050 = vrot.lane.b32.xlu0 %v1015, 8
    %v1051 = vpop.permute.xlu0 %1050
    %1052 = vrot.lane.b32.xlu0 %v1016, 8
    %v1053 = vpop.permute.xlu0 %1052
    %1054 = vrot.lane.b32.xlu0 %v1017, 8
    %v1055 = vpop.permute.xlu0 %1054
    %1056 = vrot.lane.b32.xlu0 %v1018, 8
    %v1057 = vpop.permute.xlu0 %1056
    %1058 = vrot.lane.b32.xlu0 %v1019, 8
    %v1059 = vpop.permute.xlu0 %1058
    %1060 = vrot.lane.b32.xlu0 %v1020, 8
    %v1061 = vpop.permute.xlu0 %1060
    %1062 = vrot.lane.b32.xlu0 %v1021, 8
    %v1063 = vpop.permute.xlu0 %1062
    %1064 = vrot.lane.b32.xlu0 %v1022, 8
    %v1065 = vpop.permute.xlu0 %1064
    %1066 = vrot.lane.b32.xlu0 %v1023, 8
    %v1067 = vpop.permute.xlu0 %1066
    %1068 = vrot.lane.b32.xlu0 %v1024, 8
    %v1069 = vpop.permute.xlu0 %1068
    %1070 = vrot.lane.b32.xlu0 %v1025, 8
    %v1071 = vpop.permute.xlu0 %1070
    %1072 = vrot.lane.b32.xlu0 %v1026, 8
    %v1073 = vpop.permute.xlu0 %1072
    %1074 = vrot.lane.b32.xlu0 %v1027, 8
    %v1075 = vpop.permute.xlu0 %1074
    %vm1092 = vcmask 97344
    %1093 = vst.msk [vmem:[#allocation4] sm:$0xff] %vm1092, %v1045
    %1094 = vst.msk [vmem:[#allocation4 + $0x8] sm:$0xff] %vm1092, %v1047
    %1095 = vst.msk [vmem:[#allocation4 + $0x10] sm:$0xff] %vm1092, %v1049
    %1096 = vst.msk [vmem:[#allocation4 + $0x18] sm:$0xff] %vm1092, %v1051
    %1097 = vst.msk [vmem:[#allocation4 + $0x20] sm:$0xff] %vm1092, %v1053
    %1098 = vst.msk [vmem:[#allocation4 + $0x28] sm:$0xff] %vm1092, %v1055
    %1099 = vst.msk [vmem:[#allocation4 + $0x30] sm:$0xff] %vm1092, %v1057
    %1100 = vst.msk [vmem:[#allocation4 + $0x38] sm:$0xff] %vm1092, %v1059
    %1101 = vst.msk [vmem:[#allocation4 + $0x40] sm:$0xff] %vm1092, %v1061
    %1102 = vst.msk [vmem:[#allocation4 + $0x48] sm:$0xff] %vm1092, %v1063
    %1103 = vst.msk [vmem:[#allocation4 + $0x50] sm:$0xff] %vm1092, %v1065
    %1104 = vst.msk [vmem:[#allocation4 + $0x58] sm:$0xff] %vm1092, %v1067
    %1105 = vst.msk [vmem:[#allocation4 + $0x60] sm:$0xff] %vm1092, %v1069
    %1106 = vst.msk [vmem:[#allocation4 + $0x68] sm:$0xff] %vm1092, %v1071
    %1107 = vst.msk [vmem:[#allocation4 + $0x70] sm:$0xff] %vm1092, %v1073
    %1108 = vst.msk [vmem:[#allocation4 + $0x78] sm:$0xff] %vm1092, %v1075
    %s1109 = scalar_lea.vmem [#allocation2], 176
    %v1110 = vld [vmem:[%s1109] sm:$0xff]
    %v1111 = vld [vmem:[%s1109 + $0x10] sm:$0xff]
    %v1112 = vld [vmem:[%s1109 + $0x20] sm:$0xff]
    %v1113 = vld [vmem:[%s1109 + $0x30] sm:$0xff]
    %v1114 = vld [vmem:[%s1109 + $0x40] sm:$0xff]
    %v1115 = vld [vmem:[%s1109 + $0x50] sm:$0xff]
    %v1116 = vld [vmem:[%s1109 + $0x60] sm:$0xff]
    %v1117 = vld [vmem:[%s1109 + $0x70] sm:$0xff]
    %v1118 = vld [vmem:[%s1109 + $0x280] sm:$0xff]
    %v1119 = vld [vmem:[%s1109 + $0x290] sm:$0xff]
    %v1120 = vld [vmem:[%s1109 + $0x2a0] sm:$0xff]
    %v1121 = vld [vmem:[%s1109 + $0x2b0] sm:$0xff]
    %v1122 = vld [vmem:[%s1109 + $0x2c0] sm:$0xff]
    %v1123 = vld [vmem:[%s1109 + $0x2d0] sm:$0xff]
    %v1124 = vld [vmem:[%s1109 + $0x2e0] sm:$0xff]
    %v1125 = vld [vmem:[%s1109 + $0x2f0] sm:$0xff]
    %1142 = vrot.lane.b32.xlu0 %v1110, 12
    %v1143 = vpop.permute.xlu0 %1142
    %1144 = vrot.lane.b32.xlu0 %v1111, 12
    %v1145 = vpop.permute.xlu0 %1144
    %1146 = vrot.lane.b32.xlu0 %v1112, 12
    %v1147 = vpop.permute.xlu0 %1146
    %1148 = vrot.lane.b32.xlu0 %v1113, 12
    %v1149 = vpop.permute.xlu0 %1148
    %1150 = vrot.lane.b32.xlu0 %v1114, 12
    %v1151 = vpop.permute.xlu0 %1150
    %1152 = vrot.lane.b32.xlu0 %v1115, 12
    %v1153 = vpop.permute.xlu0 %1152
    %1154 = vrot.lane.b32.xlu0 %v1116, 12
    %v1155 = vpop.permute.xlu0 %1154
    %1156 = vrot.lane.b32.xlu0 %v1117, 12
    %v1157 = vpop.permute.xlu0 %1156
    %1158 = vrot.lane.b32.xlu0 %v1118, 12
    %v1159 = vpop.permute.xlu0 %1158
    %1160 = vrot.lane.b32.xlu0 %v1119, 12
    %v1161 = vpop.permute.xlu0 %1160
    %1162 = vrot.lane.b32.xlu0 %v1120, 12
    %v1163 = vpop.permute.xlu0 %1162
    %1164 = vrot.lane.b32.xlu0 %v1121, 12
    %v1165 = vpop.permute.xlu0 %1164
    %1166 = vrot.lane.b32.xlu0 %v1122, 12
    %v1167 = vpop.permute.xlu0 %1166
    %1168 = vrot.lane.b32.xlu0 %v1123, 12
    %v1169 = vpop.permute.xlu0 %1168
    %1170 = vrot.lane.b32.xlu0 %v1124, 12
    %v1171 = vpop.permute.xlu0 %1170
    %1172 = vrot.lane.b32.xlu0 %v1125, 12
    %v1173 = vpop.permute.xlu0 %1172
    %vm1190 = vcmask 130144
    %1191 = vst.msk [vmem:[#allocation4] sm:$0xff] %vm1190, %v1143
    %1192 = vst.msk [vmem:[#allocation4 + $0x8] sm:$0xff] %vm1190, %v1145
    %1193 = vst.msk [vmem:[#allocation4 + $0x10] sm:$0xff] %vm1190, %v1147
    %1194 = vst.msk [vmem:[#allocation4 + $0x18] sm:$0xff] %vm1190, %v1149
    %1195 = vst.msk [vmem:[#allocation4 + $0x20] sm:$0xff] %vm1190, %v1151
    %1196 = vst.msk [vmem:[#allocation4 + $0x28] sm:$0xff] %vm1190, %v1153
    %1197 = vst.msk [vmem:[#allocation4 + $0x30] sm:$0xff] %vm1190, %v1155
    %1198 = vst.msk [vmem:[#allocation4 + $0x38] sm:$0xff] %vm1190, %v1157
    %1199 = vst.msk [vmem:[#allocation4 + $0x40] sm:$0xff] %vm1190, %v1159
    %1200 = vst.msk [vmem:[#allocation4 + $0x48] sm:$0xff] %vm1190, %v1161
    %1201 = vst.msk [vmem:[#allocation4 + $0x50] sm:$0xff] %vm1190, %v1163
    %1202 = vst.msk [vmem:[#allocation4 + $0x58] sm:$0xff] %vm1190, %v1165
    %1203 = vst.msk [vmem:[#allocation4 + $0x60] sm:$0xff] %vm1190, %v1167
    %1204 = vst.msk [vmem:[#allocation4 + $0x68] sm:$0xff] %vm1190, %v1169
    %1205 = vst.msk [vmem:[#allocation4 + $0x70] sm:$0xff] %vm1190, %v1171
    %1206 = vst.msk [vmem:[#allocation4 + $0x78] sm:$0xff] %vm1190, %v1173
    %v1207 = vld [vmem:[%s816 + $0x1] sm:$0xff]
    %v1208 = vld [vmem:[%s816 + $0x11] sm:$0xff]
    %v1209 = vld [vmem:[%s816 + $0x21] sm:$0xff]
    %v1210 = vld [vmem:[%s816 + $0x31] sm:$0xff]
    %v1211 = vld [vmem:[%s816 + $0x41] sm:$0xff]
    %v1212 = vld [vmem:[%s816 + $0x51] sm:$0xff]
    %v1213 = vld [vmem:[%s816 + $0x61] sm:$0xff]
    %v1214 = vld [vmem:[%s816 + $0x71] sm:$0xff]
    %v1215 = vld [vmem:[%s816 + $0x281] sm:$0xff]
    %v1216 = vld [vmem:[%s816 + $0x291] sm:$0xff]
    %v1217 = vld [vmem:[%s816 + $0x2a1] sm:$0xff]
    %v1218 = vld [vmem:[%s816 + $0x2b1] sm:$0xff]
    %v1219 = vld [vmem:[%s816 + $0x2c1] sm:$0xff]
    %v1220 = vld [vmem:[%s816 + $0x2d1] sm:$0xff]
    %v1221 = vld [vmem:[%s816 + $0x2e1] sm:$0xff]
    %v1222 = vld [vmem:[%s816 + $0x2f1] sm:$0xff]
    %1239 = vrot.lane.b32.xlu0 %v1207, 16
    %v1240 = vpop.permute.xlu0 %1239
    %1241 = vrot.lane.b32.xlu0 %v1208, 16
    %v1242 = vpop.permute.xlu0 %1241
    %1243 = vrot.lane.b32.xlu0 %v1209, 16
    %v1244 = vpop.permute.xlu0 %1243
    %1245 = vrot.lane.b32.xlu0 %v1210, 16
    %v1246 = vpop.permute.xlu0 %1245
    %1247 = vrot.lane.b32.xlu0 %v1211, 16
    %v1248 = vpop.permute.xlu0 %1247
    %1249 = vrot.lane.b32.xlu0 %v1212, 16
    %v1250 = vpop.permute.xlu0 %1249
    %1251 = vrot.lane.b32.xlu0 %v1213, 16
    %v1252 = vpop.permute.xlu0 %1251
    %1253 = vrot.lane.b32.xlu0 %v1214, 16
    %v1254 = vpop.permute.xlu0 %1253
    %1255 = vrot.lane.b32.xlu0 %v1215, 16
    %v1256 = vpop.permute.xlu0 %1255
    %1257 = vrot.lane.b32.xlu0 %v1216, 16
    %v1258 = vpop.permute.xlu0 %1257
    %1259 = vrot.lane.b32.xlu0 %v1217, 16
    %v1260 = vpop.permute.xlu0 %1259
    %1261 = vrot.lane.b32.xlu0 %v1218, 16
    %v1262 = vpop.permute.xlu0 %1261
    %1263 = vrot.lane.b32.xlu0 %v1219, 16
    %v1264 = vpop.permute.xlu0 %1263
    %1265 = vrot.lane.b32.xlu0 %v1220, 16
    %v1266 = vpop.permute.xlu0 %1265
    %1267 = vrot.lane.b32.xlu0 %v1221, 16
    %v1268 = vpop.permute.xlu0 %1267
    %1269 = vrot.lane.b32.xlu0 %v1222, 16
    %v1270 = vpop.permute.xlu0 %1269
    %vm1287 = vcmask 162944
    %1288 = vst.msk [vmem:[#allocation4] sm:$0xff] %vm1287, %v1240
    %1289 = vst.msk [vmem:[#allocation4 + $0x8] sm:$0xff] %vm1287, %v1242
    %1290 = vst.msk [vmem:[#allocation4 + $0x10] sm:$0xff] %vm1287, %v1244
    %1291 = vst.msk [vmem:[#allocation4 + $0x18] sm:$0xff] %vm1287, %v1246
    %1292 = vst.msk [vmem:[#allocation4 + $0x20] sm:$0xff] %vm1287, %v1248
    %1293 = vst.msk [vmem:[#allocation4 + $0x28] sm:$0xff] %vm1287, %v1250
    %1294 = vst.msk [vmem:[#allocation4 + $0x30] sm:$0xff] %vm1287, %v1252
    %1295 = vst.msk [vmem:[#allocation4 + $0x38] sm:$0xff] %vm1287, %v1254
    %1296 = vst.msk [vmem:[#allocation4 + $0x40] sm:$0xff] %vm1287, %v1256
    %1297 = vst.msk [vmem:[#allocation4 + $0x48] sm:$0xff] %vm1287, %v1258
    %1298 = vst.msk [vmem:[#allocation4 + $0x50] sm:$0xff] %vm1287, %v1260
    %1299 = vst.msk [vmem:[#allocation4 + $0x58] sm:$0xff] %vm1287, %v1262
    %1300 = vst.msk [vmem:[#allocation4 + $0x60] sm:$0xff] %vm1287, %v1264
    %1301 = vst.msk [vmem:[#allocation4 + $0x68] sm:$0xff] %vm1287, %v1266
    %1302 = vst.msk [vmem:[#allocation4 + $0x70] sm:$0xff] %vm1287, %v1268
    %1303 = vst.msk [vmem:[#allocation4 + $0x78] sm:$0xff] %vm1287, %v1270
    %v1304 = vld [vmem:[%s1109 + $0x1] sm:$0xff]
    %v1305 = vld [vmem:[%s1109 + $0x11] sm:$0xff]
    %v1306 = vld [vmem:[%s1109 + $0x21] sm:$0xff]
    %v1307 = vld [vmem:[%s1109 + $0x31] sm:$0xff]
    %v1308 = vld [vmem:[%s1109 + $0x41] sm:$0xff]
    %v1309 = vld [vmem:[%s1109 + $0x51] sm:$0xff]
    %v1310 = vld [vmem:[%s1109 + $0x61] sm:$0xff]
    %v1311 = vld [vmem:[%s1109 + $0x71] sm:$0xff]
    %v1312 = vld [vmem:[%s1109 + $0x281] sm:$0xff]
    %v1313 = vld [vmem:[%s1109 + $0x291] sm:$0xff]
    %v1314 = vld [vmem:[%s1109 + $0x2a1] sm:$0xff]
    %v1315 = vld [vmem:[%s1109 + $0x2b1] sm:$0xff]
    %v1316 = vld [vmem:[%s1109 + $0x2c1] sm:$0xff]
    %v1317 = vld [vmem:[%s1109 + $0x2d1] sm:$0xff]
    %v1318 = vld [vmem:[%s1109 + $0x2e1] sm:$0xff]
    %v1319 = vld [vmem:[%s1109 + $0x2f1] sm:$0xff]
    %1336 = vrot.lane.b32.xlu0 %v1304, 20
    %v1337 = vpop.permute.xlu0 %1336
    %1338 = vrot.lane.b32.xlu0 %v1305, 20
    %v1339 = vpop.permute.xlu0 %1338
    %1340 = vrot.lane.b32.xlu0 %v1306, 20
    %v1341 = vpop.permute.xlu0 %1340
    %1342 = vrot.lane.b32.xlu0 %v1307, 20
    %v1343 = vpop.permute.xlu0 %1342
    %1344 = vrot.lane.b32.xlu0 %v1308, 20
    %v1345 = vpop.permute.xlu0 %1344
    %1346 = vrot.lane.b32.xlu0 %v1309, 20
    %v1347 = vpop.permute.xlu0 %1346
    %1348 = vrot.lane.b32.xlu0 %v1310, 20
    %v1349 = vpop.permute.xlu0 %1348
    %1350 = vrot.lane.b32.xlu0 %v1311, 20
    %v1351 = vpop.permute.xlu0 %1350
    %1352 = vrot.lane.b32.xlu0 %v1312, 20
    %v1353 = vpop.permute.xlu0 %1352
    %1354 = vrot.lane.b32.xlu0 %v1313, 20
    %v1355 = vpop.permute.xlu0 %1354
    %1356 = vrot.lane.b32.xlu0 %v1314, 20
    %v1357 = vpop.permute.xlu0 %1356
    %1358 = vrot.lane.b32.xlu0 %v1315, 20
    %v1359 = vpop.permute.xlu0 %1358
    %1360 = vrot.lane.b32.xlu0 %v1316, 20
    %v1361 = vpop.permute.xlu0 %1360
    %1362 = vrot.lane.b32.xlu0 %v1317, 20
    %v1363 = vpop.permute.xlu0 %1362
    %1364 = vrot.lane.b32.xlu0 %v1318, 20
    %v1365 = vpop.permute.xlu0 %1364
    %1366 = vrot.lane.b32.xlu0 %v1319, 20
    %v1367 = vpop.permute.xlu0 %1366
    %vm1384 = vcmask 195744
    %1385 = vst.msk [vmem:[#allocation4] sm:$0xff] %vm1384, %v1337
    %1386 = vst.msk [vmem:[#allocation4 + $0x8] sm:$0xff] %vm1384, %v1339
    %1387 = vst.msk [vmem:[#allocation4 + $0x10] sm:$0xff] %vm1384, %v1341
    %1388 = vst.msk [vmem:[#allocation4 + $0x18] sm:$0xff] %vm1384, %v1343
    %1389 = vst.msk [vmem:[#allocation4 + $0x20] sm:$0xff] %vm1384, %v1345
    %1390 = vst.msk [vmem:[#allocation4 + $0x28] sm:$0xff] %vm1384, %v1347
    %1391 = vst.msk [vmem:[#allocation4 + $0x30] sm:$0xff] %vm1384, %v1349
    %1392 = vst.msk [vmem:[#allocation4 + $0x38] sm:$0xff] %vm1384, %v1351
    %1393 = vst.msk [vmem:[#allocation4 + $0x40] sm:$0xff] %vm1384, %v1353
    %1394 = vst.msk [vmem:[#allocation4 + $0x48] sm:$0xff] %vm1384, %v1355
    %1395 = vst.msk [vmem:[#allocation4 + $0x50] sm:$0xff] %vm1384, %v1357
    %1396 = vst.msk [vmem:[#allocation4 + $0x58] sm:$0xff] %vm1384, %v1359
    %1397 = vst.msk [vmem:[#allocation4 + $0x60] sm:$0xff] %vm1384, %v1361
    %1398 = vst.msk [vmem:[#allocation4 + $0x68] sm:$0xff] %vm1384, %v1363
    %1399 = vst.msk [vmem:[#allocation4 + $0x70] sm:$0xff] %vm1384, %v1365
    %1400 = vst.msk [vmem:[#allocation4 + $0x78] sm:$0xff] %vm1384, %v1367
    %s1401 = scalar_lea.vmem [#allocation2], 496
    %v1402 = vld [vmem:[%s1401] sm:$0xff]
    %v1403 = vld [vmem:[%s1401 + $0x10] sm:$0xff]
    %v1404 = vld [vmem:[%s1401 + $0x20] sm:$0xff]
    %v1405 = vld [vmem:[%s1401 + $0x30] sm:$0xff]
    %v1406 = vld [vmem:[%s1401 + $0x40] sm:$0xff]
    %v1407 = vld [vmem:[%s1401 + $0x50] sm:$0xff]
    %v1408 = vld [vmem:[%s1401 + $0x60] sm:$0xff]
    %v1409 = vld [vmem:[%s1401 + $0x70] sm:$0xff]
    %v1410 = vld [vmem:[%s1401 + $0x280] sm:$0xff]
    %v1411 = vld [vmem:[%s1401 + $0x290] sm:$0xff]
    %v1412 = vld [vmem:[%s1401 + $0x2a0] sm:$0xff]
    %v1413 = vld [vmem:[%s1401 + $0x2b0] sm:$0xff]
    %v1414 = vld [vmem:[%s1401 + $0x2c0] sm:$0xff]
    %v1415 = vld [vmem:[%s1401 + $0x2d0] sm:$0xff]
    %v1416 = vld [vmem:[%s1401 + $0x2e0] sm:$0xff]
    %v1417 = vld [vmem:[%s1401 + $0x2f0] sm:$0xff]
    %1434 = vrot.lane.b32.xlu0 %v1402, 24
    %v1435 = vpop.permute.xlu0 %1434
    %1436 = vrot.lane.b32.xlu0 %v1403, 24
    %v1437 = vpop.permute.xlu0 %1436
    %1438 = vrot.lane.b32.xlu0 %v1404, 24
    %v1439 = vpop.permute.xlu0 %1438
    %1440 = vrot.lane.b32.xlu0 %v1405, 24
    %v1441 = vpop.permute.xlu0 %1440
    %1442 = vrot.lane.b32.xlu0 %v1406, 24
    %v1443 = vpop.permute.xlu0 %1442
    %1444 = vrot.lane.b32.xlu0 %v1407, 24
    %v1445 = vpop.permute.xlu0 %1444
    %1446 = vrot.lane.b32.xlu0 %v1408, 24
    %v1447 = vpop.permute.xlu0 %1446
    %1448 = vrot.lane.b32.xlu0 %v1409, 24
    %v1449 = vpop.permute.xlu0 %1448
    %1450 = vrot.lane.b32.xlu0 %v1410, 24
    %v1451 = vpop.permute.xlu0 %1450
    %1452 = vrot.lane.b32.xlu0 %v1411, 24
    %v1453 = vpop.permute.xlu0 %1452
    %1454 = vrot.lane.b32.xlu0 %v1412, 24
    %v1455 = vpop.permute.xlu0 %1454
    %1456 = vrot.lane.b32.xlu0 %v1413, 24
    %v1457 = vpop.permute.xlu0 %1456
    %1458 = vrot.lane.b32.xlu0 %v1414, 24
    %v1459 = vpop.permute.xlu0 %1458
    %1460 = vrot.lane.b32.xlu0 %v1415, 24
    %v1461 = vpop.permute.xlu0 %1460
    %1462 = vrot.lane.b32.xlu0 %v1416, 24
    %v1463 = vpop.permute.xlu0 %1462
    %1464 = vrot.lane.b32.xlu0 %v1417, 24
    %v1465 = vpop.permute.xlu0 %1464
    %vm1482 = vcmask 228544
    %1483 = vst.msk [vmem:[#allocation4] sm:$0xff] %vm1482, %v1435
    %1484 = vst.msk [vmem:[#allocation4 + $0x8] sm:$0xff] %vm1482, %v1437
    %1485 = vst.msk [vmem:[#allocation4 + $0x10] sm:$0xff] %vm1482, %v1439
    %1486 = vst.msk [vmem:[#allocation4 + $0x18] sm:$0xff] %vm1482, %v1441
    %1487 = vst.msk [vmem:[#allocation4 + $0x20] sm:$0xff] %vm1482, %v1443
    %1488 = vst.msk [vmem:[#allocation4 + $0x28] sm:$0xff] %vm1482, %v1445
    %1489 = vst.msk [vmem:[#allocation4 + $0x30] sm:$0xff] %vm1482, %v1447
    %1490 = vst.msk [vmem:[#allocation4 + $0x38] sm:$0xff] %vm1482, %v1449
    %1491 = vst.msk [vmem:[#allocation4 + $0x40] sm:$0xff] %vm1482, %v1451
    %1492 = vst.msk [vmem:[#allocation4 + $0x48] sm:$0xff] %vm1482, %v1453
    %1493 = vst.msk [vmem:[#allocation4 + $0x50] sm:$0xff] %vm1482, %v1455
    %1494 = vst.msk [vmem:[#allocation4 + $0x58] sm:$0xff] %vm1482, %v1457
    %1495 = vst.msk [vmem:[#allocation4 + $0x60] sm:$0xff] %vm1482, %v1459
    %1496 = vst.msk [vmem:[#allocation4 + $0x68] sm:$0xff] %vm1482, %v1461
    %1497 = vst.msk [vmem:[#allocation4 + $0x70] sm:$0xff] %vm1482, %v1463
    %1498 = vst.msk [vmem:[#allocation4 + $0x78] sm:$0xff] %vm1482, %v1465
    %s1499 = scalar_lea.vmem [#allocation2], 336
    %v1500 = vld [vmem:[%s1499 + $0x1] sm:$0xff]
    %v1501 = vld [vmem:[%s1499 + $0x11] sm:$0xff]
    %v1502 = vld [vmem:[%s1499 + $0x21] sm:$0xff]
    %v1503 = vld [vmem:[%s1499 + $0x31] sm:$0xff]
    %v1504 = vld [vmem:[%s1499 + $0x41] sm:$0xff]
    %v1505 = vld [vmem:[%s1499 + $0x51] sm:$0xff]
    %v1506 = vld [vmem:[%s1499 + $0x61] sm:$0xff]
    %v1507 = vld [vmem:[%s1499 + $0x71] sm:$0xff]
    %v1508 = vld [vmem:[%s1499 + $0x281] sm:$0xff]
    %v1509 = vld [vmem:[%s1499 + $0x291] sm:$0xff]
    %v1510 = vld [vmem:[%s1499 + $0x2a1] sm:$0xff]
    %v1511 = vld [vmem:[%s1499 + $0x2b1] sm:$0xff]
    %v1512 = vld [vmem:[%s1499 + $0x2c1] sm:$0xff]
    %v1513 = vld [vmem:[%s1499 + $0x2d1] sm:$0xff]
    %v1514 = vld [vmem:[%s1499 + $0x2e1] sm:$0xff]
    %v1515 = vld [vmem:[%s1499 + $0x2f1] sm:$0xff]
    %1532 = vrot.lane.b32.xlu0 %v1500, 28
    %v1533 = vpop.permute.xlu0 %1532
    %1534 = vrot.lane.b32.xlu0 %v1501, 28
    %v1535 = vpop.permute.xlu0 %1534
    %1536 = vrot.lane.b32.xlu0 %v1502, 28
    %v1537 = vpop.permute.xlu0 %1536
    %1538 = vrot.lane.b32.xlu0 %v1503, 28
    %v1539 = vpop.permute.xlu0 %1538
    %1540 = vrot.lane.b32.xlu0 %v1504, 28
    %v1541 = vpop.permute.xlu0 %1540
    %1542 = vrot.lane.b32.xlu0 %v1505, 28
    %v1543 = vpop.permute.xlu0 %1542
    %1544 = vrot.lane.b32.xlu0 %v1506, 28
    %v1545 = vpop.permute.xlu0 %1544
    %1546 = vrot.lane.b32.xlu0 %v1507, 28
    %v1547 = vpop.permute.xlu0 %1546
    %1548 = vrot.lane.b32.xlu0 %v1508, 28
    %v1549 = vpop.permute.xlu0 %1548
    %1550 = vrot.lane.b32.xlu0 %v1509, 28
    %v1551 = vpop.permute.xlu0 %1550
    %1552 = vrot.lane.b32.xlu0 %v1510, 28
    %v1553 = vpop.permute.xlu0 %1552
    %1554 = vrot.lane.b32.xlu0 %v1511, 28
    %v1555 = vpop.permute.xlu0 %1554
    %1556 = vrot.lane.b32.xlu0 %v1512, 28
    %v1557 = vpop.permute.xlu0 %1556
    %1558 = vrot.lane.b32.xlu0 %v1513, 28
    %v1559 = vpop.permute.xlu0 %1558
    %1560 = vrot.lane.b32.xlu0 %v1514, 28
    %v1561 = vpop.permute.xlu0 %1560
    %1562 = vrot.lane.b32.xlu0 %v1515, 28
    %v1563 = vpop.permute.xlu0 %1562
    %vm1580 = vcmask 261344
    %1581 = vst.msk [vmem:[#allocation4] sm:$0xff] %vm1580, %v1533
    %1582 = vst.msk [vmem:[#allocation4 + $0x8] sm:$0xff] %vm1580, %v1535
    %1583 = vst.msk [vmem:[#allocation4 + $0x10] sm:$0xff] %vm1580, %v1537
    %1584 = vst.msk [vmem:[#allocation4 + $0x18] sm:$0xff] %vm1580, %v1539
    %1585 = vst.msk [vmem:[#allocation4 + $0x20] sm:$0xff] %vm1580, %v1541
    %1586 = vst.msk [vmem:[#allocation4 + $0x28] sm:$0xff] %vm1580, %v1543
    %1587 = vst.msk [vmem:[#allocation4 + $0x30] sm:$0xff] %vm1580, %v1545
    %1588 = vst.msk [vmem:[#allocation4 + $0x38] sm:$0xff] %vm1580, %v1547
    %1589 = vst.msk [vmem:[#allocation4 + $0x40] sm:$0xff] %vm1580, %v1549
    %1590 = vst.msk [vmem:[#allocation4 + $0x48] sm:$0xff] %vm1580, %v1551
    %1591 = vst.msk [vmem:[#allocation4 + $0x50] sm:$0xff] %vm1580, %v1553
    %1592 = vst.msk [vmem:[#allocation4 + $0x58] sm:$0xff] %vm1580, %v1555
    %1593 = vst.msk [vmem:[#allocation4 + $0x60] sm:$0xff] %vm1580, %v1557
    %1594 = vst.msk [vmem:[#allocation4 + $0x68] sm:$0xff] %vm1580, %v1559
    %1595 = vst.msk [vmem:[#allocation4 + $0x70] sm:$0xff] %vm1580, %v1561
    %1596 = vst.msk [vmem:[#allocation4 + $0x78] sm:$0xff] %vm1580, %v1563
    %v1597 = vld [vmem:[%s1401 + $0x1] sm:$0xff]
    %v1598 = vld [vmem:[%s1401 + $0x11] sm:$0xff]
    %v1599 = vld [vmem:[%s1401 + $0x21] sm:$0xff]
    %v1600 = vld [vmem:[%s1401 + $0x31] sm:$0xff]
    %v1601 = vld [vmem:[%s1401 + $0x41] sm:$0xff]
    %v1602 = vld [vmem:[%s1401 + $0x51] sm:$0xff]
    %v1603 = vld [vmem:[%s1401 + $0x61] sm:$0xff]
    %v1604 = vld [vmem:[%s1401 + $0x71] sm:$0xff]
    %v1605 = vld [vmem:[%s1401 + $0x281] sm:$0xff]
    %v1606 = vld [vmem:[%s1401 + $0x291] sm:$0xff]
    %v1607 = vld [vmem:[%s1401 + $0x2a1] sm:$0xff]
    %v1608 = vld [vmem:[%s1401 + $0x2b1] sm:$0xff]
    %v1609 = vld [vmem:[%s1401 + $0x2c1] sm:$0xff]
    %v1610 = vld [vmem:[%s1401 + $0x2d1] sm:$0xff]
    %v1611 = vld [vmem:[%s1401 + $0x2e1] sm:$0xff]
    %v1612 = vld [vmem:[%s1401 + $0x2f1] sm:$0xff]
    %1629 = vrot.lane.b32.xlu0 %v1597, 32
    %v1630 = vpop.permute.xlu0 %1629
    %1631 = vrot.lane.b32.xlu0 %v1598, 32
    %v1632 = vpop.permute.xlu0 %1631
    %1633 = vrot.lane.b32.xlu0 %v1599, 32
    %v1634 = vpop.permute.xlu0 %1633
    %1635 = vrot.lane.b32.xlu0 %v1600, 32
    %v1636 = vpop.permute.xlu0 %1635
    %1637 = vrot.lane.b32.xlu0 %v1601, 32
    %v1638 = vpop.permute.xlu0 %1637
    %1639 = vrot.lane.b32.xlu0 %v1602, 32
    %v1640 = vpop.permute.xlu0 %1639
    %1641 = vrot.lane.b32.xlu0 %v1603, 32
    %v1642 = vpop.permute.xlu0 %1641
    %1643 = vrot.lane.b32.xlu0 %v1604, 32
    %v1644 = vpop.permute.xlu0 %1643
    %1645 = vrot.lane.b32.xlu0 %v1605, 32
    %v1646 = vpop.permute.xlu0 %1645
    %1647 = vrot.lane.b32.xlu0 %v1606, 32
    %v1648 = vpop.permute.xlu0 %1647
    %1649 = vrot.lane.b32.xlu0 %v1607, 32
    %v1650 = vpop.permute.xlu0 %1649
    %1651 = vrot.lane.b32.xlu0 %v1608, 32
    %v1652 = vpop.permute.xlu0 %1651
    %1653 = vrot.lane.b32.xlu0 %v1609, 32
    %v1654 = vpop.permute.xlu0 %1653
    %1655 = vrot.lane.b32.xlu0 %v1610, 32
    %v1656 = vpop.permute.xlu0 %1655
    %1657 = vrot.lane.b32.xlu0 %v1611, 32
    %v1658 = vpop.permute.xlu0 %1657
    %1659 = vrot.lane.b32.xlu0 %v1612, 32
    %v1660 = vpop.permute.xlu0 %1659
    %vm1677 = vcmask 294144
    %1678 = vst.msk [vmem:[#allocation4] sm:$0xff] %vm1677, %v1630
    %1679 = vst.msk [vmem:[#allocation4 + $0x8] sm:$0xff] %vm1677, %v1632
    %1680 = vst.msk [vmem:[#allocation4 + $0x10] sm:$0xff] %vm1677, %v1634
    %1681 = vst.msk [vmem:[#allocation4 + $0x18] sm:$0xff] %vm1677, %v1636
    %1682 = vst.msk [vmem:[#allocation4 + $0x20] sm:$0xff] %vm1677, %v1638
    %1683 = vst.msk [vmem:[#allocation4 + $0x28] sm:$0xff] %vm1677, %v1640
    %1684 = vst.msk [vmem:[#allocation4 + $0x30] sm:$0xff] %vm1677, %v1642
    %1685 = vst.msk [vmem:[#allocation4 + $0x38] sm:$0xff] %vm1677, %v1644
    %1686 = vst.msk [vmem:[#allocation4 + $0x40] sm:$0xff] %vm1677, %v1646
    %1687 = vst.msk [vmem:[#allocation4 + $0x48] sm:$0xff] %vm1677, %v1648
    %1688 = vst.msk [vmem:[#allocation4 + $0x50] sm:$0xff] %vm1677, %v1650
    %1689 = vst.msk [vmem:[#allocation4 + $0x58] sm:$0xff] %vm1677, %v1652
    %1690 = vst.msk [vmem:[#allocation4 + $0x60] sm:$0xff] %vm1677, %v1654
    %1691 = vst.msk [vmem:[#allocation4 + $0x68] sm:$0xff] %vm1677, %v1656
    %1692 = vst.msk [vmem:[#allocation4 + $0x70] sm:$0xff] %vm1677, %v1658
    %1693 = vst.msk [vmem:[#allocation4 + $0x78] sm:$0xff] %vm1677, %v1660
    %1694 = vst.msk [vmem:[#allocation4 + $0x80] sm:$0xff] %vm27, %v915
    %1695 = vst.msk [vmem:[#allocation4 + $0x88] sm:$0xff] %vm27, %v916
    %1696 = vst.msk [vmem:[#allocation4 + $0x90] sm:$0xff] %vm27, %v917
    %1697 = vst.msk [vmem:[#allocation4 + $0x98] sm:$0xff] %vm27, %v918
    %1698 = vst.msk [vmem:[#allocation4 + $0xa0] sm:$0xff] %vm27, %v919
    %1699 = vst.msk [vmem:[#allocation4 + $0xa8] sm:$0xff] %vm27, %v920
    %1700 = vst.msk [vmem:[#allocation4 + $0xb0] sm:$0xff] %vm27, %v921
    %1701 = vst.msk [vmem:[#allocation4 + $0xb8] sm:$0xff] %vm27, %v922
    %1702 = vst.msk [vmem:[#allocation4 + $0xc0] sm:$0xff] %vm27, %v923
    %1703 = vst.msk [vmem:[#allocation4 + $0xc8] sm:$0xff] %vm27, %v924
    %1704 = vst.msk [vmem:[#allocation4 + $0xd0] sm:$0xff] %vm27, %v925
    %1705 = vst.msk [vmem:[#allocation4 + $0xd8] sm:$0xff] %vm27, %v926
    %1706 = vst.msk [vmem:[#allocation4 + $0xe0] sm:$0xff] %vm27, %v927
    %1707 = vst.msk [vmem:[#allocation4 + $0xe8] sm:$0xff] %vm27, %v928
    %1708 = vst.msk [vmem:[#allocation4 + $0xf0] sm:$0xff] %vm27, %v929
    %1709 = vst.msk [vmem:[#allocation4 + $0xf8] sm:$0xff] %vm27, %v930
    %1710 = vrot.lane.b32.xlu0 %v1012, 4
    %v1711 = vpop.permute.xlu0 %1710
    %1712 = vrot.lane.b32.xlu0 %v1013, 4
    %v1713 = vpop.permute.xlu0 %1712
    %1714 = vrot.lane.b32.xlu0 %v1014, 4
    %v1715 = vpop.permute.xlu0 %1714
    %1716 = vrot.lane.b32.xlu0 %v1015, 4
    %v1717 = vpop.permute.xlu0 %1716
    %1718 = vrot.lane.b32.xlu0 %v1016, 4
    %v1719 = vpop.permute.xlu0 %1718
    %1720 = vrot.lane.b32.xlu0 %v1017, 4
    %v1721 = vpop.permute.xlu0 %1720
    %1722 = vrot.lane.b32.xlu0 %v1018, 4
    %v1723 = vpop.permute.xlu0 %1722
    %1724 = vrot.lane.b32.xlu0 %v1019, 4
    %v1725 = vpop.permute.xlu0 %1724
    %1726 = vrot.lane.b32.xlu0 %v1020, 4
    %v1727 = vpop.permute.xlu0 %1726
    %1728 = vrot.lane.b32.xlu0 %v1021, 4
    %v1729 = vpop.permute.xlu0 %1728
    %1730 = vrot.lane.b32.xlu0 %v1022, 4
    %v1731 = vpop.permute.xlu0 %1730
    %1732 = vrot.lane.b32.xlu0 %v1023, 4
    %v1733 = vpop.permute.xlu0 %1732
    %1734 = vrot.lane.b32.xlu0 %v1024, 4
    %v1735 = vpop.permute.xlu0 %1734
    %1736 = vrot.lane.b32.xlu0 %v1025, 4
    %v1737 = vpop.permute.xlu0 %1736
    %1738 = vrot.lane.b32.xlu0 %v1026, 4
    %v1739 = vpop.permute.xlu0 %1738
    %1740 = vrot.lane.b32.xlu0 %v1027, 4
    %v1741 = vpop.permute.xlu0 %1740
    %1758 = vst.msk [vmem:[#allocation4 + $0x80] sm:$0xff] %vm995, %v1711
    %1759 = vst.msk [vmem:[#allocation4 + $0x88] sm:$0xff] %vm995, %v1713
    %1760 = vst.msk [vmem:[#allocation4 + $0x90] sm:$0xff] %vm995, %v1715
    %1761 = vst.msk [vmem:[#allocation4 + $0x98] sm:$0xff] %vm995, %v1717
    %1762 = vst.msk [vmem:[#allocation4 + $0xa0] sm:$0xff] %vm995, %v1719
    %1763 = vst.msk [vmem:[#allocation4 + $0xa8] sm:$0xff] %vm995, %v1721
    %1764 = vst.msk [vmem:[#allocation4 + $0xb0] sm:$0xff] %vm995, %v1723
    %1765 = vst.msk [vmem:[#allocation4 + $0xb8] sm:$0xff] %vm995, %v1725
    %1766 = vst.msk [vmem:[#allocation4 + $0xc0] sm:$0xff] %vm995, %v1727
    %1767 = vst.msk [vmem:[#allocation4 + $0xc8] sm:$0xff] %vm995, %v1729
    %1768 = vst.msk [vmem:[#allocation4 + $0xd0] sm:$0xff] %vm995, %v1731
    %1769 = vst.msk [vmem:[#allocation4 + $0xd8] sm:$0xff] %vm995, %v1733
    %1770 = vst.msk [vmem:[#allocation4 + $0xe0] sm:$0xff] %vm995, %v1735
    %1771 = vst.msk [vmem:[#allocation4 + $0xe8] sm:$0xff] %vm995, %v1737
    %1772 = vst.msk [vmem:[#allocation4 + $0xf0] sm:$0xff] %vm995, %v1739
    %1773 = vst.msk [vmem:[#allocation4 + $0xf8] sm:$0xff] %vm995, %v1741
    %v1774 = vld [vmem:[%s914 + $0x2] sm:$0xff]
    %v1775 = vld [vmem:[%s914 + $0x12] sm:$0xff]
    %v1776 = vld [vmem:[%s914 + $0x22] sm:$0xff]
    %v1777 = vld [vmem:[%s914 + $0x32] sm:$0xff]
    %v1778 = vld [vmem:[%s914 + $0x42] sm:$0xff]
    %v1779 = vld [vmem:[%s914 + $0x52] sm:$0xff]
    %v1780 = vld [vmem:[%s914 + $0x62] sm:$0xff]
    %v1781 = vld [vmem:[%s914 + $0x72] sm:$0xff]
    %v1782 = vld [vmem:[%s914 + $0x282] sm:$0xff]
    %v1783 = vld [vmem:[%s914 + $0x292] sm:$0xff]
    %v1784 = vld [vmem:[%s914 + $0x2a2] sm:$0xff]
    %v1785 = vld [vmem:[%s914 + $0x2b2] sm:$0xff]
    %v1786 = vld [vmem:[%s914 + $0x2c2] sm:$0xff]
    %v1787 = vld [vmem:[%s914 + $0x2d2] sm:$0xff]
    %v1788 = vld [vmem:[%s914 + $0x2e2] sm:$0xff]
    %v1789 = vld [vmem:[%s914 + $0x2f2] sm:$0xff]
    %1806 = vrot.lane.b32.xlu0 %v1774, 8
    %v1807 = vpop.permute.xlu0 %1806
    %1808 = vrot.lane.b32.xlu0 %v1775, 8
    %v1809 = vpop.permute.xlu0 %1808
    %1810 = vrot.lane.b32.xlu0 %v1776, 8
    %v1811 = vpop.permute.xlu0 %1810
    %1812 = vrot.lane.b32.xlu0 %v1777, 8
    %v1813 = vpop.permute.xlu0 %1812
    %1814 = vrot.lane.b32.xlu0 %v1778, 8
    %v1815 = vpop.permute.xlu0 %1814
    %1816 = vrot.lane.b32.xlu0 %v1779, 8
    %v1817 = vpop.permute.xlu0 %1816
    %1818 = vrot.lane.b32.xlu0 %v1780, 8
    %v1819 = vpop.permute.xlu0 %1818
    %1820 = vrot.lane.b32.xlu0 %v1781, 8
    %v1821 = vpop.permute.xlu0 %1820
    %1822 = vrot.lane.b32.xlu0 %v1782, 8
    %v1823 = vpop.permute.xlu0 %1822
    %1824 = vrot.lane.b32.xlu0 %v1783, 8
    %v1825 = vpop.permute.xlu0 %1824
    %1826 = vrot.lane.b32.xlu0 %v1784, 8
    %v1827 = vpop.permute.xlu0 %1826
    %1828 = vrot.lane.b32.xlu0 %v1785, 8
    %v1829 = vpop.permute.xlu0 %1828
    %1830 = vrot.lane.b32.xlu0 %v1786, 8
    %v1831 = vpop.permute.xlu0 %1830
    %1832 = vrot.lane.b32.xlu0 %v1787, 8
    %v1833 = vpop.permute.xlu0 %1832
    %1834 = vrot.lane.b32.xlu0 %v1788, 8
    %v1835 = vpop.permute.xlu0 %1834
    %1836 = vrot.lane.b32.xlu0 %v1789, 8
    %v1837 = vpop.permute.xlu0 %1836
    %1854 = vst.msk [vmem:[#allocation4 + $0x80] sm:$0xff] %vm1092, %v1807
    %1855 = vst.msk [vmem:[#allocation4 + $0x88] sm:$0xff] %vm1092, %v1809
    %1856 = vst.msk [vmem:[#allocation4 + $0x90] sm:$0xff] %vm1092, %v1811
    %1857 = vst.msk [vmem:[#allocation4 + $0x98] sm:$0xff] %vm1092, %v1813
    %1858 = vst.msk [vmem:[#allocation4 + $0xa0] sm:$0xff] %vm1092, %v1815
    %1859 = vst.msk [vmem:[#allocation4 + $0xa8] sm:$0xff] %vm1092, %v1817
    %1860 = vst.msk [vmem:[#allocation4 + $0xb0] sm:$0xff] %vm1092, %v1819
    %1861 = vst.msk [vmem:[#allocation4 + $0xb8] sm:$0xff] %vm1092, %v1821
    %1862 = vst.msk [vmem:[#allocation4 + $0xc0] sm:$0xff] %vm1092, %v1823
    %1863 = vst.msk [vmem:[#allocation4 + $0xc8] sm:$0xff] %vm1092, %v1825
    %1864 = vst.msk [vmem:[#allocation4 + $0xd0] sm:$0xff] %vm1092, %v1827
    %1865 = vst.msk [vmem:[#allocation4 + $0xd8] sm:$0xff] %vm1092, %v1829
    %1866 = vst.msk [vmem:[#allocation4 + $0xe0] sm:$0xff] %vm1092, %v1831
    %1867 = vst.msk [vmem:[#allocation4 + $0xe8] sm:$0xff] %vm1092, %v1833
    %1868 = vst.msk [vmem:[#allocation4 + $0xf0] sm:$0xff] %vm1092, %v1835
    %1869 = vst.msk [vmem:[#allocation4 + $0xf8] sm:$0xff] %vm1092, %v1837
    %1870 = vrot.lane.b32.xlu0 %v1207, 12
    %v1871 = vpop.permute.xlu0 %1870
    %1872 = vrot.lane.b32.xlu0 %v1208, 12
    %v1873 = vpop.permute.xlu0 %1872
    %1874 = vrot.lane.b32.xlu0 %v1209, 12
    %v1875 = vpop.permute.xlu0 %1874
    %1876 = vrot.lane.b32.xlu0 %v1210, 12
    %v1877 = vpop.permute.xlu0 %1876
    %1878 = vrot.lane.b32.xlu0 %v1211, 12
    %v1879 = vpop.permute.xlu0 %1878
    %1880 = vrot.lane.b32.xlu0 %v1212, 12
    %v1881 = vpop.permute.xlu0 %1880
    %1882 = vrot.lane.b32.xlu0 %v1213, 12
    %v1883 = vpop.permute.xlu0 %1882
    %1884 = vrot.lane.b32.xlu0 %v1214, 12
    %v1885 = vpop.permute.xlu0 %1884
    %1886 = vrot.lane.b32.xlu0 %v1215, 12
    %v1887 = vpop.permute.xlu0 %1886
    %1888 = vrot.lane.b32.xlu0 %v1216, 12
    %v1889 = vpop.permute.xlu0 %1888
    %1890 = vrot.lane.b32.xlu0 %v1217, 12
    %v1891 = vpop.permute.xlu0 %1890
    %1892 = vrot.lane.b32.xlu0 %v1218, 12
    %v1893 = vpop.permute.xlu0 %1892
    %1894 = vrot.lane.b32.xlu0 %v1219, 12
    %v1895 = vpop.permute.xlu0 %1894
    %1896 = vrot.lane.b32.xlu0 %v1220, 12
    %v1897 = vpop.permute.xlu0 %1896
    %1898 = vrot.lane.b32.xlu0 %v1221, 12
    %v1899 = vpop.permute.xlu0 %1898
    %1900 = vrot.lane.b32.xlu0 %v1222, 12
    %v1901 = vpop.permute.xlu0 %1900
    %1918 = vst.msk [vmem:[#allocation4 + $0x80] sm:$0xff] %vm1190, %v1871
    %1919 = vst.msk [vmem:[#allocation4 + $0x88] sm:$0xff] %vm1190, %v1873
    %1920 = vst.msk [vmem:[#allocation4 + $0x90] sm:$0xff] %vm1190, %v1875
    %1921 = vst.msk [vmem:[#allocation4 + $0x98] sm:$0xff] %vm1190, %v1877
    %1922 = vst.msk [vmem:[#allocation4 + $0xa0] sm:$0xff] %vm1190, %v1879
    %1923 = vst.msk [vmem:[#allocation4 + $0xa8] sm:$0xff] %vm1190, %v1881
    %1924 = vst.msk [vmem:[#allocation4 + $0xb0] sm:$0xff] %vm1190, %v1883
    %1925 = vst.msk [vmem:[#allocation4 + $0xb8] sm:$0xff] %vm1190, %v1885
    %1926 = vst.msk [vmem:[#allocation4 + $0xc0] sm:$0xff] %vm1190, %v1887
    %1927 = vst.msk [vmem:[#allocation4 + $0xc8] sm:$0xff] %vm1190, %v1889
    %1928 = vst.msk [vmem:[#allocation4 + $0xd0] sm:$0xff] %vm1190, %v1891
    %1929 = vst.msk [vmem:[#allocation4 + $0xd8] sm:$0xff] %vm1190, %v1893
    %1930 = vst.msk [vmem:[#allocation4 + $0xe0] sm:$0xff] %vm1190, %v1895
    %1931 = vst.msk [vmem:[#allocation4 + $0xe8] sm:$0xff] %vm1190, %v1897
    %1932 = vst.msk [vmem:[#allocation4 + $0xf0] sm:$0xff] %vm1190, %v1899
    %1933 = vst.msk [vmem:[#allocation4 + $0xf8] sm:$0xff] %vm1190, %v1901
    %1934 = vrot.lane.b32.xlu0 %v1304, 16
    %v1935 = vpop.permute.xlu0 %1934
    %1936 = vrot.lane.b32.xlu0 %v1305, 16
    %v1937 = vpop.permute.xlu0 %1936
    %1938 = vrot.lane.b32.xlu0 %v1306, 16
    %v1939 = vpop.permute.xlu0 %1938
    %1940 = vrot.lane.b32.xlu0 %v1307, 16
    %v1941 = vpop.permute.xlu0 %1940
    %1942 = vrot.lane.b32.xlu0 %v1308, 16
    %v1943 = vpop.permute.xlu0 %1942
    %1944 = vrot.lane.b32.xlu0 %v1309, 16
    %v1945 = vpop.permute.xlu0 %1944
    %1946 = vrot.lane.b32.xlu0 %v1310, 16
    %v1947 = vpop.permute.xlu0 %1946
    %1948 = vrot.lane.b32.xlu0 %v1311, 16
    %v1949 = vpop.permute.xlu0 %1948
    %1950 = vrot.lane.b32.xlu0 %v1312, 16
    %v1951 = vpop.permute.xlu0 %1950
    %1952 = vrot.lane.b32.xlu0 %v1313, 16
    %v1953 = vpop.permute.xlu0 %1952
    %1954 = vrot.lane.b32.xlu0 %v1314, 16
    %v1955 = vpop.permute.xlu0 %1954
    %1956 = vrot.lane.b32.xlu0 %v1315, 16
    %v1957 = vpop.permute.xlu0 %1956
    %1958 = vrot.lane.b32.xlu0 %v1316, 16
    %v1959 = vpop.permute.xlu0 %1958
    %1960 = vrot.lane.b32.xlu0 %v1317, 16
    %v1961 = vpop.permute.xlu0 %1960
    %1962 = vrot.lane.b32.xlu0 %v1318, 16
    %v1963 = vpop.permute.xlu0 %1962
    %1964 = vrot.lane.b32.xlu0 %v1319, 16
    %v1965 = vpop.permute.xlu0 %1964
    %1982 = vst.msk [vmem:[#allocation4 + $0x80] sm:$0xff] %vm1287, %v1935
    %1983 = vst.msk [vmem:[#allocation4 + $0x88] sm:$0xff] %vm1287, %v1937
    %1984 = vst.msk [vmem:[#allocation4 + $0x90] sm:$0xff] %vm1287, %v1939
    %1985 = vst.msk [vmem:[#allocation4 + $0x98] sm:$0xff] %vm1287, %v1941
    %1986 = vst.msk [vmem:[#allocation4 + $0xa0] sm:$0xff] %vm1287, %v1943
    %1987 = vst.msk [vmem:[#allocation4 + $0xa8] sm:$0xff] %vm1287, %v1945
    %1988 = vst.msk [vmem:[#allocation4 + $0xb0] sm:$0xff] %vm1287, %v1947
    %1989 = vst.msk [vmem:[#allocation4 + $0xb8] sm:$0xff] %vm1287, %v1949
    %1990 = vst.msk [vmem:[#allocation4 + $0xc0] sm:$0xff] %vm1287, %v1951
    %1991 = vst.msk [vmem:[#allocation4 + $0xc8] sm:$0xff] %vm1287, %v1953
    %1992 = vst.msk [vmem:[#allocation4 + $0xd0] sm:$0xff] %vm1287, %v1955
    %1993 = vst.msk [vmem:[#allocation4 + $0xd8] sm:$0xff] %vm1287, %v1957
    %1994 = vst.msk [vmem:[#allocation4 + $0xe0] sm:$0xff] %vm1287, %v1959
    %1995 = vst.msk [vmem:[#allocation4 + $0xe8] sm:$0xff] %vm1287, %v1961
    %1996 = vst.msk [vmem:[#allocation4 + $0xf0] sm:$0xff] %vm1287, %v1963
    %1997 = vst.msk [vmem:[#allocation4 + $0xf8] sm:$0xff] %vm1287, %v1965
    %v1998 = vld [vmem:[%s816 + $0x2] sm:$0xff]
    %v1999 = vld [vmem:[%s816 + $0x12] sm:$0xff]
    %v2000 = vld [vmem:[%s816 + $0x22] sm:$0xff]
    %v2001 = vld [vmem:[%s816 + $0x32] sm:$0xff]
    %v2002 = vld [vmem:[%s816 + $0x42] sm:$0xff]
    %v2003 = vld [vmem:[%s816 + $0x52] sm:$0xff]
    %v2004 = vld [vmem:[%s816 + $0x62] sm:$0xff]
    %v2005 = vld [vmem:[%s816 + $0x72] sm:$0xff]
    %v2006 = vld [vmem:[%s816 + $0x282] sm:$0xff]
    %v2007 = vld [vmem:[%s816 + $0x292] sm:$0xff]
    %v2008 = vld [vmem:[%s816 + $0x2a2] sm:$0xff]
    %v2009 = vld [vmem:[%s816 + $0x2b2] sm:$0xff]
    %v2010 = vld [vmem:[%s816 + $0x2c2] sm:$0xff]
    %v2011 = vld [vmem:[%s816 + $0x2d2] sm:$0xff]
    %v2012 = vld [vmem:[%s816 + $0x2e2] sm:$0xff]
    %v2013 = vld [vmem:[%s816 + $0x2f2] sm:$0xff]
    %2030 = vrot.lane.b32.xlu0 %v1998, 20
    %v2031 = vpop.permute.xlu0 %2030
    %2032 = vrot.lane.b32.xlu0 %v1999, 20
    %v2033 = vpop.permute.xlu0 %2032
    %2034 = vrot.lane.b32.xlu0 %v2000, 20
    %v2035 = vpop.permute.xlu0 %2034
    %2036 = vrot.lane.b32.xlu0 %v2001, 20
    %v2037 = vpop.permute.xlu0 %2036
    %2038 = vrot.lane.b32.xlu0 %v2002, 20
    %v2039 = vpop.permute.xlu0 %2038
    %2040 = vrot.lane.b32.xlu0 %v2003, 20
    %v2041 = vpop.permute.xlu0 %2040
    %2042 = vrot.lane.b32.xlu0 %v2004, 20
    %v2043 = vpop.permute.xlu0 %2042
    %2044 = vrot.lane.b32.xlu0 %v2005, 20
    %v2045 = vpop.permute.xlu0 %2044
    %2046 = vrot.lane.b32.xlu0 %v2006, 20
    %v2047 = vpop.permute.xlu0 %2046
    %2048 = vrot.lane.b32.xlu0 %v2007, 20
    %v2049 = vpop.permute.xlu0 %2048
    %2050 = vrot.lane.b32.xlu0 %v2008, 20
    %v2051 = vpop.permute.xlu0 %2050
    %2052 = vrot.lane.b32.xlu0 %v2009, 20
    %v2053 = vpop.permute.xlu0 %2052
    %2054 = vrot.lane.b32.xlu0 %v2010, 20
    %v2055 = vpop.permute.xlu0 %2054
    %2056 = vrot.lane.b32.xlu0 %v2011, 20
    %v2057 = vpop.permute.xlu0 %2056
    %2058 = vrot.lane.b32.xlu0 %v2012, 20
    %v2059 = vpop.permute.xlu0 %2058
    %2060 = vrot.lane.b32.xlu0 %v2013, 20
    %v2061 = vpop.permute.xlu0 %2060
    %2078 = vst.msk [vmem:[#allocation4 + $0x80] sm:$0xff] %vm1384, %v2031
    %2079 = vst.msk [vmem:[#allocation4 + $0x88] sm:$0xff] %vm1384, %v2033
    %2080 = vst.msk [vmem:[#allocation4 + $0x90] sm:$0xff] %vm1384, %v2035
    %2081 = vst.msk [vmem:[#allocation4 + $0x98] sm:$0xff] %vm1384, %v2037
    %2082 = vst.msk [vmem:[#allocation4 + $0xa0] sm:$0xff] %vm1384, %v2039
    %2083 = vst.msk [vmem:[#allocation4 + $0xa8] sm:$0xff] %vm1384, %v2041
    %2084 = vst.msk [vmem:[#allocation4 + $0xb0] sm:$0xff] %vm1384, %v2043
    %2085 = vst.msk [vmem:[#allocation4 + $0xb8] sm:$0xff] %vm1384, %v2045
    %2086 = vst.msk [vmem:[#allocation4 + $0xc0] sm:$0xff] %vm1384, %v2047
    %2087 = vst.msk [vmem:[#allocation4 + $0xc8] sm:$0xff] %vm1384, %v2049
    %2088 = vst.msk [vmem:[#allocation4 + $0xd0] sm:$0xff] %vm1384, %v2051
    %2089 = vst.msk [vmem:[#allocation4 + $0xd8] sm:$0xff] %vm1384, %v2053
    %2090 = vst.msk [vmem:[#allocation4 + $0xe0] sm:$0xff] %vm1384, %v2055
    %2091 = vst.msk [vmem:[#allocation4 + $0xe8] sm:$0xff] %vm1384, %v2057
    %2092 = vst.msk [vmem:[#allocation4 + $0xf0] sm:$0xff] %vm1384, %v2059
    %2093 = vst.msk [vmem:[#allocation4 + $0xf8] sm:$0xff] %vm1384, %v2061
    %2094 = vrot.lane.b32.xlu0 %v1500, 24
    %v2095 = vpop.permute.xlu0 %2094
    %2096 = vrot.lane.b32.xlu0 %v1501, 24
    %v2097 = vpop.permute.xlu0 %2096
    %2098 = vrot.lane.b32.xlu0 %v1502, 24
    %v2099 = vpop.permute.xlu0 %2098
    %2100 = vrot.lane.b32.xlu0 %v1503, 24
    %v2101 = vpop.permute.xlu0 %2100
    %2102 = vrot.lane.b32.xlu0 %v1504, 24
    %v2103 = vpop.permute.xlu0 %2102
    %2104 = vrot.lane.b32.xlu0 %v1505, 24
    %v2105 = vpop.permute.xlu0 %2104
    %2106 = vrot.lane.b32.xlu0 %v1506, 24
    %v2107 = vpop.permute.xlu0 %2106
    %2108 = vrot.lane.b32.xlu0 %v1507, 24
    %v2109 = vpop.permute.xlu0 %2108
    %2110 = vrot.lane.b32.xlu0 %v1508, 24
    %v2111 = vpop.permute.xlu0 %2110
    %2112 = vrot.lane.b32.xlu0 %v1509, 24
    %v2113 = vpop.permute.xlu0 %2112
    %2114 = vrot.lane.b32.xlu0 %v1510, 24
    %v2115 = vpop.permute.xlu0 %2114
    %2116 = vrot.lane.b32.xlu0 %v1511, 24
    %v2117 = vpop.permute.xlu0 %2116
    %2118 = vrot.lane.b32.xlu0 %v1512, 24
    %v2119 = vpop.permute.xlu0 %2118
    %2120 = vrot.lane.b32.xlu0 %v1513, 24
    %v2121 = vpop.permute.xlu0 %2120
    %2122 = vrot.lane.b32.xlu0 %v1514, 24
    %v2123 = vpop.permute.xlu0 %2122
    %2124 = vrot.lane.b32.xlu0 %v1515, 24
    %v2125 = vpop.permute.xlu0 %2124
    %2142 = vst.msk [vmem:[#allocation4 + $0x80] sm:$0xff] %vm1482, %v2095
    %2143 = vst.msk [vmem:[#allocation4 + $0x88] sm:$0xff] %vm1482, %v2097
    %2144 = vst.msk [vmem:[#allocation4 + $0x90] sm:$0xff] %vm1482, %v2099
    %2145 = vst.msk [vmem:[#allocation4 + $0x98] sm:$0xff] %vm1482, %v2101
    %2146 = vst.msk [vmem:[#allocation4 + $0xa0] sm:$0xff] %vm1482, %v2103
    %2147 = vst.msk [vmem:[#allocation4 + $0xa8] sm:$0xff] %vm1482, %v2105
    %2148 = vst.msk [vmem:[#allocation4 + $0xb0] sm:$0xff] %vm1482, %v2107
    %2149 = vst.msk [vmem:[#allocation4 + $0xb8] sm:$0xff] %vm1482, %v2109
    %2150 = vst.msk [vmem:[#allocation4 + $0xc0] sm:$0xff] %vm1482, %v2111
    %2151 = vst.msk [vmem:[#allocation4 + $0xc8] sm:$0xff] %vm1482, %v2113
    %2152 = vst.msk [vmem:[#allocation4 + $0xd0] sm:$0xff] %vm1482, %v2115
    %2153 = vst.msk [vmem:[#allocation4 + $0xd8] sm:$0xff] %vm1482, %v2117
    %2154 = vst.msk [vmem:[#allocation4 + $0xe0] sm:$0xff] %vm1482, %v2119
    %2155 = vst.msk [vmem:[#allocation4 + $0xe8] sm:$0xff] %vm1482, %v2121
    %2156 = vst.msk [vmem:[#allocation4 + $0xf0] sm:$0xff] %vm1482, %v2123
    %2157 = vst.msk [vmem:[#allocation4 + $0xf8] sm:$0xff] %vm1482, %v2125
    %2158 = vrot.lane.b32.xlu0 %v1597, 28
    %v2159 = vpop.permute.xlu0 %2158
    %2160 = vrot.lane.b32.xlu0 %v1598, 28
    %v2161 = vpop.permute.xlu0 %2160
    %2162 = vrot.lane.b32.xlu0 %v1599, 28
    %v2163 = vpop.permute.xlu0 %2162
    %2164 = vrot.lane.b32.xlu0 %v1600, 28
    %v2165 = vpop.permute.xlu0 %2164
    %2166 = vrot.lane.b32.xlu0 %v1601, 28
    %v2167 = vpop.permute.xlu0 %2166
    %2168 = vrot.lane.b32.xlu0 %v1602, 28
    %v2169 = vpop.permute.xlu0 %2168
    %2170 = vrot.lane.b32.xlu0 %v1603, 28
    %v2171 = vpop.permute.xlu0 %2170
    %2172 = vrot.lane.b32.xlu0 %v1604, 28
    %v2173 = vpop.permute.xlu0 %2172
    %2174 = vrot.lane.b32.xlu0 %v1605, 28
    %v2175 = vpop.permute.xlu0 %2174
    %2176 = vrot.lane.b32.xlu0 %v1606, 28
    %v2177 = vpop.permute.xlu0 %2176
    %2178 = vrot.lane.b32.xlu0 %v1607, 28
    %v2179 = vpop.permute.xlu0 %2178
    %2180 = vrot.lane.b32.xlu0 %v1608, 28
    %v2181 = vpop.permute.xlu0 %2180
    %2182 = vrot.lane.b32.xlu0 %v1609, 28
    %v2183 = vpop.permute.xlu0 %2182
    %2184 = vrot.lane.b32.xlu0 %v1610, 28
    %v2185 = vpop.permute.xlu0 %2184
    %2186 = vrot.lane.b32.xlu0 %v1611, 28
    %v2187 = vpop.permute.xlu0 %2186
    %2188 = vrot.lane.b32.xlu0 %v1612, 28
    %v2189 = vpop.permute.xlu0 %2188
    %2206 = vst.msk [vmem:[#allocation4 + $0x80] sm:$0xff] %vm1580, %v2159
    %2207 = vst.msk [vmem:[#allocation4 + $0x88] sm:$0xff] %vm1580, %v2161
    %2208 = vst.msk [vmem:[#allocation4 + $0x90] sm:$0xff] %vm1580, %v2163
    %2209 = vst.msk [vmem:[#allocation4 + $0x98] sm:$0xff] %vm1580, %v2165
    %2210 = vst.msk [vmem:[#allocation4 + $0xa0] sm:$0xff] %vm1580, %v2167
    %2211 = vst.msk [vmem:[#allocation4 + $0xa8] sm:$0xff] %vm1580, %v2169
    %2212 = vst.msk [vmem:[#allocation4 + $0xb0] sm:$0xff] %vm1580, %v2171
    %2213 = vst.msk [vmem:[#allocation4 + $0xb8] sm:$0xff] %vm1580, %v2173
    %2214 = vst.msk [vmem:[#allocation4 + $0xc0] sm:$0xff] %vm1580, %v2175
    %2215 = vst.msk [vmem:[#allocation4 + $0xc8] sm:$0xff] %vm1580, %v2177
    %2216 = vst.msk [vmem:[#allocation4 + $0xd0] sm:$0xff] %vm1580, %v2179
    %2217 = vst.msk [vmem:[#allocation4 + $0xd8] sm:$0xff] %vm1580, %v2181
    %2218 = vst.msk [vmem:[#allocation4 + $0xe0] sm:$0xff] %vm1580, %v2183
    %2219 = vst.msk [vmem:[#allocation4 + $0xe8] sm:$0xff] %vm1580, %v2185
    %2220 = vst.msk [vmem:[#allocation4 + $0xf0] sm:$0xff] %vm1580, %v2187
    %2221 = vst.msk [vmem:[#allocation4 + $0xf8] sm:$0xff] %vm1580, %v2189
    %v2222 = vld [vmem:[%s1499 + $0x2] sm:$0xff]
    %v2223 = vld [vmem:[%s1499 + $0x12] sm:$0xff]
    %v2224 = vld [vmem:[%s1499 + $0x22] sm:$0xff]
    %v2225 = vld [vmem:[%s1499 + $0x32] sm:$0xff]
    %v2226 = vld [vmem:[%s1499 + $0x42] sm:$0xff]
    %v2227 = vld [vmem:[%s1499 + $0x52] sm:$0xff]
    %v2228 = vld [vmem:[%s1499 + $0x62] sm:$0xff]
    %v2229 = vld [vmem:[%s1499 + $0x72] sm:$0xff]
    %v2230 = vld [vmem:[%s1499 + $0x282] sm:$0xff]
    %v2231 = vld [vmem:[%s1499 + $0x292] sm:$0xff]
    %v2232 = vld [vmem:[%s1499 + $0x2a2] sm:$0xff]
    %v2233 = vld [vmem:[%s1499 + $0x2b2] sm:$0xff]
    %v2234 = vld [vmem:[%s1499 + $0x2c2] sm:$0xff]
    %v2235 = vld [vmem:[%s1499 + $0x2d2] sm:$0xff]
    %v2236 = vld [vmem:[%s1499 + $0x2e2] sm:$0xff]
    %v2237 = vld [vmem:[%s1499 + $0x2f2] sm:$0xff]
    %2254 = vrot.lane.b32.xlu0 %v2222, 32
    %v2255 = vpop.permute.xlu0 %2254
    %2256 = vrot.lane.b32.xlu0 %v2223, 32
    %v2257 = vpop.permute.xlu0 %2256
    %2258 = vrot.lane.b32.xlu0 %v2224, 32
    %v2259 = vpop.permute.xlu0 %2258
    %2260 = vrot.lane.b32.xlu0 %v2225, 32
    %v2261 = vpop.permute.xlu0 %2260
    %2262 = vrot.lane.b32.xlu0 %v2226, 32
    %v2263 = vpop.permute.xlu0 %2262
    %2264 = vrot.lane.b32.xlu0 %v2227, 32
    %v2265 = vpop.permute.xlu0 %2264
    %2266 = vrot.lane.b32.xlu0 %v2228, 32
    %v2267 = vpop.permute.xlu0 %2266
    %2268 = vrot.lane.b32.xlu0 %v2229, 32
    %v2269 = vpop.permute.xlu0 %2268
    %2270 = vrot.lane.b32.xlu0 %v2230, 32
    %v2271 = vpop.permute.xlu0 %2270
    %2272 = vrot.lane.b32.xlu0 %v2231, 32
    %v2273 = vpop.permute.xlu0 %2272
    %2274 = vrot.lane.b32.xlu0 %v2232, 32
    %v2275 = vpop.permute.xlu0 %2274
    %2276 = vrot.lane.b32.xlu0 %v2233, 32
    %v2277 = vpop.permute.xlu0 %2276
    %2278 = vrot.lane.b32.xlu0 %v2234, 32
    %v2279 = vpop.permute.xlu0 %2278
    %2280 = vrot.lane.b32.xlu0 %v2235, 32
    %v2281 = vpop.permute.xlu0 %2280
    %2282 = vrot.lane.b32.xlu0 %v2236, 32
    %v2283 = vpop.permute.xlu0 %2282
    %2284 = vrot.lane.b32.xlu0 %v2237, 32
    %v2285 = vpop.permute.xlu0 %2284
    %2302 = vst.msk [vmem:[#allocation4 + $0x80] sm:$0xff] %vm1677, %v2255
    %2303 = vst.msk [vmem:[#allocation4 + $0x88] sm:$0xff] %vm1677, %v2257
    %2304 = vst.msk [vmem:[#allocation4 + $0x90] sm:$0xff] %vm1677, %v2259
    %2305 = vst.msk [vmem:[#allocation4 + $0x98] sm:$0xff] %vm1677, %v2261
    %2306 = vst.msk [vmem:[#allocation4 + $0xa0] sm:$0xff] %vm1677, %v2263
    %2307 = vst.msk [vmem:[#allocation4 + $0xa8] sm:$0xff] %vm1677, %v2265
    %2308 = vst.msk [vmem:[#allocation4 + $0xb0] sm:$0xff] %vm1677, %v2267
    %2309 = vst.msk [vmem:[#allocation4 + $0xb8] sm:$0xff] %vm1677, %v2269
    %2310 = vst.msk [vmem:[#allocation4 + $0xc0] sm:$0xff] %vm1677, %v2271
    %2311 = vst.msk [vmem:[#allocation4 + $0xc8] sm:$0xff] %vm1677, %v2273
    %2312 = vst.msk [vmem:[#allocation4 + $0xd0] sm:$0xff] %vm1677, %v2275
    %2313 = vst.msk [vmem:[#allocation4 + $0xd8] sm:$0xff] %vm1677, %v2277
    %2314 = vst.msk [vmem:[#allocation4 + $0xe0] sm:$0xff] %vm1677, %v2279
    %2315 = vst.msk [vmem:[#allocation4 + $0xe8] sm:$0xff] %vm1677, %v2281
    %2316 = vst.msk [vmem:[#allocation4 + $0xf0] sm:$0xff] %vm1677, %v2283
    %2317 = vst.msk [vmem:[#allocation4 + $0xf8] sm:$0xff] %vm1677, %v2285
    %2318 = vst.msk [vmem:[#allocation4 + $0x100] sm:$0xff] %vm27, %v1110
    %2319 = vst.msk [vmem:[#allocation4 + $0x108] sm:$0xff] %vm27, %v1111
    %2320 = vst.msk [vmem:[#allocation4 + $0x110] sm:$0xff] %vm27, %v1112
    %2321 = vst.msk [vmem:[#allocation4 + $0x118] sm:$0xff] %vm27, %v1113
    %2322 = vst.msk [vmem:[#allocation4 + $0x120] sm:$0xff] %vm27, %v1114
    %2323 = vst.msk [vmem:[#allocation4 + $0x128] sm:$0xff] %vm27, %v1115
    %2324 = vst.msk [vmem:[#allocation4 + $0x130] sm:$0xff] %vm27, %v1116
    %2325 = vst.msk [vmem:[#allocation4 + $0x138] sm:$0xff] %vm27, %v1117
    %2326 = vst.msk [vmem:[#allocation4 + $0x140] sm:$0xff] %vm27, %v1118
    %2327 = vst.msk [vmem:[#allocation4 + $0x148] sm:$0xff] %vm27, %v1119
    %2328 = vst.msk [vmem:[#allocation4 + $0x150] sm:$0xff] %vm27, %v1120
    %2329 = vst.msk [vmem:[#allocation4 + $0x158] sm:$0xff] %vm27, %v1121
    %2330 = vst.msk [vmem:[#allocation4 + $0x160] sm:$0xff] %vm27, %v1122
    %2331 = vst.msk [vmem:[#allocation4 + $0x168] sm:$0xff] %vm27, %v1123
    %2332 = vst.msk [vmem:[#allocation4 + $0x170] sm:$0xff] %vm27, %v1124
    %2333 = vst.msk [vmem:[#allocation4 + $0x178] sm:$0xff] %vm27, %v1125
    %2334 = vrot.lane.b32.xlu0 %v1207, 4
    %v2335 = vpop.permute.xlu0 %2334
    %2336 = vrot.lane.b32.xlu0 %v1208, 4
    %v2337 = vpop.permute.xlu0 %2336
    %2338 = vrot.lane.b32.xlu0 %v1209, 4
    %v2339 = vpop.permute.xlu0 %2338
    %2340 = vrot.lane.b32.xlu0 %v1210, 4
    %v2341 = vpop.permute.xlu0 %2340
    %2342 = vrot.lane.b32.xlu0 %v1211, 4
    %v2343 = vpop.permute.xlu0 %2342
    %2344 = vrot.lane.b32.xlu0 %v1212, 4
    %v2345 = vpop.permute.xlu0 %2344
    %2346 = vrot.lane.b32.xlu0 %v1213, 4
    %v2347 = vpop.permute.xlu0 %2346
    %2348 = vrot.lane.b32.xlu0 %v1214, 4
    %v2349 = vpop.permute.xlu0 %2348
    %2350 = vrot.lane.b32.xlu0 %v1215, 4
    %v2351 = vpop.permute.xlu0 %2350
    %2352 = vrot.lane.b32.xlu0 %v1216, 4
    %v2353 = vpop.permute.xlu0 %2352
    %2354 = vrot.lane.b32.xlu0 %v1217, 4
    %v2355 = vpop.permute.xlu0 %2354
    %2356 = vrot.lane.b32.xlu0 %v1218, 4
    %v2357 = vpop.permute.xlu0 %2356
    %2358 = vrot.lane.b32.xlu0 %v1219, 4
    %v2359 = vpop.permute.xlu0 %2358
    %2360 = vrot.lane.b32.xlu0 %v1220, 4
    %v2361 = vpop.permute.xlu0 %2360
    %2362 = vrot.lane.b32.xlu0 %v1221, 4
    %v2363 = vpop.permute.xlu0 %2362
    %2364 = vrot.lane.b32.xlu0 %v1222, 4
    %v2365 = vpop.permute.xlu0 %2364
    %2382 = vst.msk [vmem:[#allocation4 + $0x100] sm:$0xff] %vm995, %v2335
    %2383 = vst.msk [vmem:[#allocation4 + $0x108] sm:$0xff] %vm995, %v2337
    %2384 = vst.msk [vmem:[#allocation4 + $0x110] sm:$0xff] %vm995, %v2339
    %2385 = vst.msk [vmem:[#allocation4 + $0x118] sm:$0xff] %vm995, %v2341
    %2386 = vst.msk [vmem:[#allocation4 + $0x120] sm:$0xff] %vm995, %v2343
    %2387 = vst.msk [vmem:[#allocation4 + $0x128] sm:$0xff] %vm995, %v2345
    %2388 = vst.msk [vmem:[#allocation4 + $0x130] sm:$0xff] %vm995, %v2347
    %2389 = vst.msk [vmem:[#allocation4 + $0x138] sm:$0xff] %vm995, %v2349
    %2390 = vst.msk [vmem:[#allocation4 + $0x140] sm:$0xff] %vm995, %v2351
    %2391 = vst.msk [vmem:[#allocation4 + $0x148] sm:$0xff] %vm995, %v2353
    %2392 = vst.msk [vmem:[#allocation4 + $0x150] sm:$0xff] %vm995, %v2355
    %2393 = vst.msk [vmem:[#allocation4 + $0x158] sm:$0xff] %vm995, %v2357
    %2394 = vst.msk [vmem:[#allocation4 + $0x160] sm:$0xff] %vm995, %v2359
    %2395 = vst.msk [vmem:[#allocation4 + $0x168] sm:$0xff] %vm995, %v2361
    %2396 = vst.msk [vmem:[#allocation4 + $0x170] sm:$0xff] %vm995, %v2363
    %2397 = vst.msk [vmem:[#allocation4 + $0x178] sm:$0xff] %vm995, %v2365
    %2398 = vrot.lane.b32.xlu0 %v1304, 8
    %v2399 = vpop.permute.xlu0 %2398
    %2400 = vrot.lane.b32.xlu0 %v1305, 8
    %v2401 = vpop.permute.xlu0 %2400
    %2402 = vrot.lane.b32.xlu0 %v1306, 8
    %v2403 = vpop.permute.xlu0 %2402
    %2404 = vrot.lane.b32.xlu0 %v1307, 8
    %v2405 = vpop.permute.xlu0 %2404
    %2406 = vrot.lane.b32.xlu0 %v1308, 8
    %v2407 = vpop.permute.xlu0 %2406
    %2408 = vrot.lane.b32.xlu0 %v1309, 8
    %v2409 = vpop.permute.xlu0 %2408
    %2410 = vrot.lane.b32.xlu0 %v1310, 8
    %v2411 = vpop.permute.xlu0 %2410
    %2412 = vrot.lane.b32.xlu0 %v1311, 8
    %v2413 = vpop.permute.xlu0 %2412
    %2414 = vrot.lane.b32.xlu0 %v1312, 8
    %v2415 = vpop.permute.xlu0 %2414
    %2416 = vrot.lane.b32.xlu0 %v1313, 8
    %v2417 = vpop.permute.xlu0 %2416
    %2418 = vrot.lane.b32.xlu0 %v1314, 8
    %v2419 = vpop.permute.xlu0 %2418
    %2420 = vrot.lane.b32.xlu0 %v1315, 8
    %v2421 = vpop.permute.xlu0 %2420
    %2422 = vrot.lane.b32.xlu0 %v1316, 8
    %v2423 = vpop.permute.xlu0 %2422
    %2424 = vrot.lane.b32.xlu0 %v1317, 8
    %v2425 = vpop.permute.xlu0 %2424
    %2426 = vrot.lane.b32.xlu0 %v1318, 8
    %v2427 = vpop.permute.xlu0 %2426
    %2428 = vrot.lane.b32.xlu0 %v1319, 8
    %v2429 = vpop.permute.xlu0 %2428
    %2446 = vst.msk [vmem:[#allocation4 + $0x100] sm:$0xff] %vm1092, %v2399
    %2447 = vst.msk [vmem:[#allocation4 + $0x108] sm:$0xff] %vm1092, %v2401
    %2448 = vst.msk [vmem:[#allocation4 + $0x110] sm:$0xff] %vm1092, %v2403
    %2449 = vst.msk [vmem:[#allocation4 + $0x118] sm:$0xff] %vm1092, %v2405
    %2450 = vst.msk [vmem:[#allocation4 + $0x120] sm:$0xff] %vm1092, %v2407
    %2451 = vst.msk [vmem:[#allocation4 + $0x128] sm:$0xff] %vm1092, %v2409
    %2452 = vst.msk [vmem:[#allocation4 + $0x130] sm:$0xff] %vm1092, %v2411
    %2453 = vst.msk [vmem:[#allocation4 + $0x138] sm:$0xff] %vm1092, %v2413
    %2454 = vst.msk [vmem:[#allocation4 + $0x140] sm:$0xff] %vm1092, %v2415
    %2455 = vst.msk [vmem:[#allocation4 + $0x148] sm:$0xff] %vm1092, %v2417
    %2456 = vst.msk [vmem:[#allocation4 + $0x150] sm:$0xff] %vm1092, %v2419
    %2457 = vst.msk [vmem:[#allocation4 + $0x158] sm:$0xff] %vm1092, %v2421
    %2458 = vst.msk [vmem:[#allocation4 + $0x160] sm:$0xff] %vm1092, %v2423
    %2459 = vst.msk [vmem:[#allocation4 + $0x168] sm:$0xff] %vm1092, %v2425
    %2460 = vst.msk [vmem:[#allocation4 + $0x170] sm:$0xff] %vm1092, %v2427
    %2461 = vst.msk [vmem:[#allocation4 + $0x178] sm:$0xff] %vm1092, %v2429
    %2462 = vrot.lane.b32.xlu0 %v1402, 12
    %v2463 = vpop.permute.xlu0 %2462
    %2464 = vrot.lane.b32.xlu0 %v1403, 12
    %v2465 = vpop.permute.xlu0 %2464
    %2466 = vrot.lane.b32.xlu0 %v1404, 12
    %v2467 = vpop.permute.xlu0 %2466
    %2468 = vrot.lane.b32.xlu0 %v1405, 12
    %v2469 = vpop.permute.xlu0 %2468
    %2470 = vrot.lane.b32.xlu0 %v1406, 12
    %v2471 = vpop.permute.xlu0 %2470
    %2472 = vrot.lane.b32.xlu0 %v1407, 12
    %v2473 = vpop.permute.xlu0 %2472
    %2474 = vrot.lane.b32.xlu0 %v1408, 12
    %v2475 = vpop.permute.xlu0 %2474
    %2476 = vrot.lane.b32.xlu0 %v1409, 12
    %v2477 = vpop.permute.xlu0 %2476
    %2478 = vrot.lane.b32.xlu0 %v1410, 12
    %v2479 = vpop.permute.xlu0 %2478
    %2480 = vrot.lane.b32.xlu0 %v1411, 12
    %v2481 = vpop.permute.xlu0 %2480
    %2482 = vrot.lane.b32.xlu0 %v1412, 12
    %v2483 = vpop.permute.xlu0 %2482
    %2484 = vrot.lane.b32.xlu0 %v1413, 12
    %v2485 = vpop.permute.xlu0 %2484
    %2486 = vrot.lane.b32.xlu0 %v1414, 12
    %v2487 = vpop.permute.xlu0 %2486
    %2488 = vrot.lane.b32.xlu0 %v1415, 12
    %v2489 = vpop.permute.xlu0 %2488
    %2490 = vrot.lane.b32.xlu0 %v1416, 12
    %v2491 = vpop.permute.xlu0 %2490
    %2492 = vrot.lane.b32.xlu0 %v1417, 12
    %v2493 = vpop.permute.xlu0 %2492
    %2510 = vst.msk [vmem:[#allocation4 + $0x100] sm:$0xff] %vm1190, %v2463
    %2511 = vst.msk [vmem:[#allocation4 + $0x108] sm:$0xff] %vm1190, %v2465
    %2512 = vst.msk [vmem:[#allocation4 + $0x110] sm:$0xff] %vm1190, %v2467
    %2513 = vst.msk [vmem:[#allocation4 + $0x118] sm:$0xff] %vm1190, %v2469
    %2514 = vst.msk [vmem:[#allocation4 + $0x120] sm:$0xff] %vm1190, %v2471
    %2515 = vst.msk [vmem:[#allocation4 + $0x128] sm:$0xff] %vm1190, %v2473
    %2516 = vst.msk [vmem:[#allocation4 + $0x130] sm:$0xff] %vm1190, %v2475
    %2517 = vst.msk [vmem:[#allocation4 + $0x138] sm:$0xff] %vm1190, %v2477
    %2518 = vst.msk [vmem:[#allocation4 + $0x140] sm:$0xff] %vm1190, %v2479
    %2519 = vst.msk [vmem:[#allocation4 + $0x148] sm:$0xff] %vm1190, %v2481
    %2520 = vst.msk [vmem:[#allocation4 + $0x150] sm:$0xff] %vm1190, %v2483
    %2521 = vst.msk [vmem:[#allocation4 + $0x158] sm:$0xff] %vm1190, %v2485
    %2522 = vst.msk [vmem:[#allocation4 + $0x160] sm:$0xff] %vm1190, %v2487
    %2523 = vst.msk [vmem:[#allocation4 + $0x168] sm:$0xff] %vm1190, %v2489
    %2524 = vst.msk [vmem:[#allocation4 + $0x170] sm:$0xff] %vm1190, %v2491
    %2525 = vst.msk [vmem:[#allocation4 + $0x178] sm:$0xff] %vm1190, %v2493
    %2526 = vrot.lane.b32.xlu0 %v1500, 16
    %v2527 = vpop.permute.xlu0 %2526
    %2528 = vrot.lane.b32.xlu0 %v1501, 16
    %v2529 = vpop.permute.xlu0 %2528
    %2530 = vrot.lane.b32.xlu0 %v1502, 16
    %v2531 = vpop.permute.xlu0 %2530
    %2532 = vrot.lane.b32.xlu0 %v1503, 16
    %v2533 = vpop.permute.xlu0 %2532
    %2534 = vrot.lane.b32.xlu0 %v1504, 16
    %v2535 = vpop.permute.xlu0 %2534
    %2536 = vrot.lane.b32.xlu0 %v1505, 16
    %v2537 = vpop.permute.xlu0 %2536
    %2538 = vrot.lane.b32.xlu0 %v1506, 16
    %v2539 = vpop.permute.xlu0 %2538
    %2540 = vrot.lane.b32.xlu0 %v1507, 16
    %v2541 = vpop.permute.xlu0 %2540
    %2542 = vrot.lane.b32.xlu0 %v1508, 16
    %v2543 = vpop.permute.xlu0 %2542
    %2544 = vrot.lane.b32.xlu0 %v1509, 16
    %v2545 = vpop.permute.xlu0 %2544
    %2546 = vrot.lane.b32.xlu0 %v1510, 16
    %v2547 = vpop.permute.xlu0 %2546
    %2548 = vrot.lane.b32.xlu0 %v1511, 16
    %v2549 = vpop.permute.xlu0 %2548
    %2550 = vrot.lane.b32.xlu0 %v1512, 16
    %v2551 = vpop.permute.xlu0 %2550
    %2552 = vrot.lane.b32.xlu0 %v1513, 16
    %v2553 = vpop.permute.xlu0 %2552
    %2554 = vrot.lane.b32.xlu0 %v1514, 16
    %v2555 = vpop.permute.xlu0 %2554
    %2556 = vrot.lane.b32.xlu0 %v1515, 16
    %v2557 = vpop.permute.xlu0 %2556
    %2574 = vst.msk [vmem:[#allocation4 + $0x100] sm:$0xff] %vm1287, %v2527
    %2575 = vst.msk [vmem:[#allocation4 + $0x108] sm:$0xff] %vm1287, %v2529
    %2576 = vst.msk [vmem:[#allocation4 + $0x110] sm:$0xff] %vm1287, %v2531
    %2577 = vst.msk [vmem:[#allocation4 + $0x118] sm:$0xff] %vm1287, %v2533
    %2578 = vst.msk [vmem:[#allocation4 + $0x120] sm:$0xff] %vm1287, %v2535
    %2579 = vst.msk [vmem:[#allocation4 + $0x128] sm:$0xff] %vm1287, %v2537
    %2580 = vst.msk [vmem:[#allocation4 + $0x130] sm:$0xff] %vm1287, %v2539
    %2581 = vst.msk [vmem:[#allocation4 + $0x138] sm:$0xff] %vm1287, %v2541
    %2582 = vst.msk [vmem:[#allocation4 + $0x140] sm:$0xff] %vm1287, %v2543
    %2583 = vst.msk [vmem:[#allocation4 + $0x148] sm:$0xff] %vm1287, %v2545
    %2584 = vst.msk [vmem:[#allocation4 + $0x150] sm:$0xff] %vm1287, %v2547
    %2585 = vst.msk [vmem:[#allocation4 + $0x158] sm:$0xff] %vm1287, %v2549
    %2586 = vst.msk [vmem:[#allocation4 + $0x160] sm:$0xff] %vm1287, %v2551
    %2587 = vst.msk [vmem:[#allocation4 + $0x168] sm:$0xff] %vm1287, %v2553
    %2588 = vst.msk [vmem:[#allocation4 + $0x170] sm:$0xff] %vm1287, %v2555
    %2589 = vst.msk [vmem:[#allocation4 + $0x178] sm:$0xff] %vm1287, %v2557
    %2590 = vrot.lane.b32.xlu0 %v1597, 20
    %v2591 = vpop.permute.xlu0 %2590
    %2592 = vrot.lane.b32.xlu0 %v1598, 20
    %v2593 = vpop.permute.xlu0 %2592
    %2594 = vrot.lane.b32.xlu0 %v1599, 20
    %v2595 = vpop.permute.xlu0 %2594
    %2596 = vrot.lane.b32.xlu0 %v1600, 20
    %v2597 = vpop.permute.xlu0 %2596
    %2598 = vrot.lane.b32.xlu0 %v1601, 20
    %v2599 = vpop.permute.xlu0 %2598
    %2600 = vrot.lane.b32.xlu0 %v1602, 20
    %v2601 = vpop.permute.xlu0 %2600
    %2602 = vrot.lane.b32.xlu0 %v1603, 20
    %v2603 = vpop.permute.xlu0 %2602
    %2604 = vrot.lane.b32.xlu0 %v1604, 20
    %v2605 = vpop.permute.xlu0 %2604
    %2606 = vrot.lane.b32.xlu0 %v1605, 20
    %v2607 = vpop.permute.xlu0 %2606
    %2608 = vrot.lane.b32.xlu0 %v1606, 20
    %v2609 = vpop.permute.xlu0 %2608
    %2610 = vrot.lane.b32.xlu0 %v1607, 20
    %v2611 = vpop.permute.xlu0 %2610
    %2612 = vrot.lane.b32.xlu0 %v1608, 20
    %v2613 = vpop.permute.xlu0 %2612
    %2614 = vrot.lane.b32.xlu0 %v1609, 20
    %v2615 = vpop.permute.xlu0 %2614
    %2616 = vrot.lane.b32.xlu0 %v1610, 20
    %v2617 = vpop.permute.xlu0 %2616
    %2618 = vrot.lane.b32.xlu0 %v1611, 20
    %v2619 = vpop.permute.xlu0 %2618
    %2620 = vrot.lane.b32.xlu0 %v1612, 20
    %v2621 = vpop.permute.xlu0 %2620
    %2638 = vst.msk [vmem:[#allocation4 + $0x100] sm:$0xff] %vm1384, %v2591
    %2639 = vst.msk [vmem:[#allocation4 + $0x108] sm:$0xff] %vm1384, %v2593
    %2640 = vst.msk [vmem:[#allocation4 + $0x110] sm:$0xff] %vm1384, %v2595
    %2641 = vst.msk [vmem:[#allocation4 + $0x118] sm:$0xff] %vm1384, %v2597
    %2642 = vst.msk [vmem:[#allocation4 + $0x120] sm:$0xff] %vm1384, %v2599
    %2643 = vst.msk [vmem:[#allocation4 + $0x128] sm:$0xff] %vm1384, %v2601
    %2644 = vst.msk [vmem:[#allocation4 + $0x130] sm:$0xff] %vm1384, %v2603
    %2645 = vst.msk [vmem:[#allocation4 + $0x138] sm:$0xff] %vm1384, %v2605
    %2646 = vst.msk [vmem:[#allocation4 + $0x140] sm:$0xff] %vm1384, %v2607
    %2647 = vst.msk [vmem:[#allocation4 + $0x148] sm:$0xff] %vm1384, %v2609
    %2648 = vst.msk [vmem:[#allocation4 + $0x150] sm:$0xff] %vm1384, %v2611
    %2649 = vst.msk [vmem:[#allocation4 + $0x158] sm:$0xff] %vm1384, %v2613
    %2650 = vst.msk [vmem:[#allocation4 + $0x160] sm:$0xff] %vm1384, %v2615
    %2651 = vst.msk [vmem:[#allocation4 + $0x168] sm:$0xff] %vm1384, %v2617
    %2652 = vst.msk [vmem:[#allocation4 + $0x170] sm:$0xff] %vm1384, %v2619
    %2653 = vst.msk [vmem:[#allocation4 + $0x178] sm:$0xff] %vm1384, %v2621
    %s2654 = scalar_lea.vmem [#allocation2], 192
    %v2655 = vld [vmem:[%s2654] sm:$0xff]
    %v2656 = vld [vmem:[%s2654 + $0x10] sm:$0xff]
    %v2657 = vld [vmem:[%s2654 + $0x20] sm:$0xff]
    %v2658 = vld [vmem:[%s2654 + $0x30] sm:$0xff]
    %v2659 = vld [vmem:[%s2654 + $0x40] sm:$0xff]
    %v2660 = vld [vmem:[%s2654 + $0x50] sm:$0xff]
    %v2661 = vld [vmem:[%s2654 + $0x60] sm:$0xff]
    %v2662 = vld [vmem:[%s2654 + $0x70] sm:$0xff]
    %v2663 = vld [vmem:[%s2654 + $0x280] sm:$0xff]
    %v2664 = vld [vmem:[%s2654 + $0x290] sm:$0xff]
    %v2665 = vld [vmem:[%s2654 + $0x2a0] sm:$0xff]
    %v2666 = vld [vmem:[%s2654 + $0x2b0] sm:$0xff]
    %v2667 = vld [vmem:[%s2654 + $0x2c0] sm:$0xff]
    %v2668 = vld [vmem:[%s2654 + $0x2d0] sm:$0xff]
    %v2669 = vld [vmem:[%s2654 + $0x2e0] sm:$0xff]
    %v2670 = vld [vmem:[%s2654 + $0x2f0] sm:$0xff]
    %2687 = vrot.lane.b32.xlu0 %v2655, 24
    %v2688 = vpop.permute.xlu0 %2687
    %2689 = vrot.lane.b32.xlu0 %v2656, 24
    %v2690 = vpop.permute.xlu0 %2689
    %2691 = vrot.lane.b32.xlu0 %v2657, 24
    %v2692 = vpop.permute.xlu0 %2691
    %2693 = vrot.lane.b32.xlu0 %v2658, 24
    %v2694 = vpop.permute.xlu0 %2693
    %2695 = vrot.lane.b32.xlu0 %v2659, 24
    %v2696 = vpop.permute.xlu0 %2695
    %2697 = vrot.lane.b32.xlu0 %v2660, 24
    %v2698 = vpop.permute.xlu0 %2697
    %2699 = vrot.lane.b32.xlu0 %v2661, 24
    %v2700 = vpop.permute.xlu0 %2699
    %2701 = vrot.lane.b32.xlu0 %v2662, 24
    %v2702 = vpop.permute.xlu0 %2701
    %2703 = vrot.lane.b32.xlu0 %v2663, 24
    %v2704 = vpop.permute.xlu0 %2703
    %2705 = vrot.lane.b32.xlu0 %v2664, 24
    %v2706 = vpop.permute.xlu0 %2705
    %2707 = vrot.lane.b32.xlu0 %v2665, 24
    %v2708 = vpop.permute.xlu0 %2707
    %2709 = vrot.lane.b32.xlu0 %v2666, 24
    %v2710 = vpop.permute.xlu0 %2709
    %2711 = vrot.lane.b32.xlu0 %v2667, 24
    %v2712 = vpop.permute.xlu0 %2711
    %2713 = vrot.lane.b32.xlu0 %v2668, 24
    %v2714 = vpop.permute.xlu0 %2713
    %2715 = vrot.lane.b32.xlu0 %v2669, 24
    %v2716 = vpop.permute.xlu0 %2715
    %2717 = vrot.lane.b32.xlu0 %v2670, 24
    %v2718 = vpop.permute.xlu0 %2717
    %2735 = vst.msk [vmem:[#allocation4 + $0x100] sm:$0xff] %vm1482, %v2688
    %2736 = vst.msk [vmem:[#allocation4 + $0x108] sm:$0xff] %vm1482, %v2690
    %2737 = vst.msk [vmem:[#allocation4 + $0x110] sm:$0xff] %vm1482, %v2692
    %2738 = vst.msk [vmem:[#allocation4 + $0x118] sm:$0xff] %vm1482, %v2694
    %2739 = vst.msk [vmem:[#allocation4 + $0x120] sm:$0xff] %vm1482, %v2696
    %2740 = vst.msk [vmem:[#allocation4 + $0x128] sm:$0xff] %vm1482, %v2698
    %2741 = vst.msk [vmem:[#allocation4 + $0x130] sm:$0xff] %vm1482, %v2700
    %2742 = vst.msk [vmem:[#allocation4 + $0x138] sm:$0xff] %vm1482, %v2702
    %2743 = vst.msk [vmem:[#allocation4 + $0x140] sm:$0xff] %vm1482, %v2704
    %2744 = vst.msk [vmem:[#allocation4 + $0x148] sm:$0xff] %vm1482, %v2706
    %2745 = vst.msk [vmem:[#allocation4 + $0x150] sm:$0xff] %vm1482, %v2708
    %2746 = vst.msk [vmem:[#allocation4 + $0x158] sm:$0xff] %vm1482, %v2710
    %2747 = vst.msk [vmem:[#allocation4 + $0x160] sm:$0xff] %vm1482, %v2712
    %2748 = vst.msk [vmem:[#allocation4 + $0x168] sm:$0xff] %vm1482, %v2714
    %2749 = vst.msk [vmem:[#allocation4 + $0x170] sm:$0xff] %vm1482, %v2716
    %2750 = vst.msk [vmem:[#allocation4 + $0x178] sm:$0xff] %vm1482, %v2718
    %s2751 = scalar_lea.vmem [#allocation2], 32
    %v2752 = vld [vmem:[%s2751 + $0x1] sm:$0xff]
    %v2753 = vld [vmem:[%s2751 + $0x11] sm:$0xff]
    %v2754 = vld [vmem:[%s2751 + $0x21] sm:$0xff]
    %v2755 = vld [vmem:[%s2751 + $0x31] sm:$0xff]
    %v2756 = vld [vmem:[%s2751 + $0x41] sm:$0xff]
    %v2757 = vld [vmem:[%s2751 + $0x51] sm:$0xff]
    %v2758 = vld [vmem:[%s2751 + $0x61] sm:$0xff]
    %v2759 = vld [vmem:[%s2751 + $0x71] sm:$0xff]
    %v2760 = vld [vmem:[%s2751 + $0x281] sm:$0xff]
    %v2761 = vld [vmem:[%s2751 + $0x291] sm:$0xff]
    %v2762 = vld [vmem:[%s2751 + $0x2a1] sm:$0xff]
    %v2763 = vld [vmem:[%s2751 + $0x2b1] sm:$0xff]
    %v2764 = vld [vmem:[%s2751 + $0x2c1] sm:$0xff]
    %v2765 = vld [vmem:[%s2751 + $0x2d1] sm:$0xff]
    %v2766 = vld [vmem:[%s2751 + $0x2e1] sm:$0xff]
    %v2767 = vld [vmem:[%s2751 + $0x2f1] sm:$0xff]
    %2784 = vrot.lane.b32.xlu0 %v2752, 28
    %v2785 = vpop.permute.xlu0 %2784
    %2786 = vrot.lane.b32.xlu0 %v2753, 28
    %v2787 = vpop.permute.xlu0 %2786
    %2788 = vrot.lane.b32.xlu0 %v2754, 28
    %v2789 = vpop.permute.xlu0 %2788
    %2790 = vrot.lane.b32.xlu0 %v2755, 28
    %v2791 = vpop.permute.xlu0 %2790
    %2792 = vrot.lane.b32.xlu0 %v2756, 28
    %v2793 = vpop.permute.xlu0 %2792
    %2794 = vrot.lane.b32.xlu0 %v2757, 28
    %v2795 = vpop.permute.xlu0 %2794
    %2796 = vrot.lane.b32.xlu0 %v2758, 28
    %v2797 = vpop.permute.xlu0 %2796
    %2798 = vrot.lane.b32.xlu0 %v2759, 28
    %v2799 = vpop.permute.xlu0 %2798
    %2800 = vrot.lane.b32.xlu0 %v2760, 28
    %v2801 = vpop.permute.xlu0 %2800
    %2802 = vrot.lane.b32.xlu0 %v2761, 28
    %v2803 = vpop.permute.xlu0 %2802
    %2804 = vrot.lane.b32.xlu0 %v2762, 28
    %v2805 = vpop.permute.xlu0 %2804
    %2806 = vrot.lane.b32.xlu0 %v2763, 28
    %v2807 = vpop.permute.xlu0 %2806
    %2808 = vrot.lane.b32.xlu0 %v2764, 28
    %v2809 = vpop.permute.xlu0 %2808
    %2810 = vrot.lane.b32.xlu0 %v2765, 28
    %v2811 = vpop.permute.xlu0 %2810
    %2812 = vrot.lane.b32.xlu0 %v2766, 28
    %v2813 = vpop.permute.xlu0 %2812
    %2814 = vrot.lane.b32.xlu0 %v2767, 28
    %v2815 = vpop.permute.xlu0 %2814
    %2832 = vst.msk [vmem:[#allocation4 + $0x100] sm:$0xff] %vm1580, %v2785
    %2833 = vst.msk [vmem:[#allocation4 + $0x108] sm:$0xff] %vm1580, %v2787
    %2834 = vst.msk [vmem:[#allocation4 + $0x110] sm:$0xff] %vm1580, %v2789
    %2835 = vst.msk [vmem:[#allocation4 + $0x118] sm:$0xff] %vm1580, %v2791
    %2836 = vst.msk [vmem:[#allocation4 + $0x120] sm:$0xff] %vm1580, %v2793
    %2837 = vst.msk [vmem:[#allocation4 + $0x128] sm:$0xff] %vm1580, %v2795
    %2838 = vst.msk [vmem:[#allocation4 + $0x130] sm:$0xff] %vm1580, %v2797
    %2839 = vst.msk [vmem:[#allocation4 + $0x138] sm:$0xff] %vm1580, %v2799
    %2840 = vst.msk [vmem:[#allocation4 + $0x140] sm:$0xff] %vm1580, %v2801
    %2841 = vst.msk [vmem:[#allocation4 + $0x148] sm:$0xff] %vm1580, %v2803
    %2842 = vst.msk [vmem:[#allocation4 + $0x150] sm:$0xff] %vm1580, %v2805
    %2843 = vst.msk [vmem:[#allocation4 + $0x158] sm:$0xff] %vm1580, %v2807
    %2844 = vst.msk [vmem:[#allocation4 + $0x160] sm:$0xff] %vm1580, %v2809
    %2845 = vst.msk [vmem:[#allocation4 + $0x168] sm:$0xff] %vm1580, %v2811
    %2846 = vst.msk [vmem:[#allocation4 + $0x170] sm:$0xff] %vm1580, %v2813
    %2847 = vst.msk [vmem:[#allocation4 + $0x178] sm:$0xff] %vm1580, %v2815
    %v2848 = vld [vmem:[%s2654 + $0x1] sm:$0xff]
    %v2849 = vld [vmem:[%s2654 + $0x11] sm:$0xff]
    %v2850 = vld [vmem:[%s2654 + $0x21] sm:$0xff]
    %v2851 = vld [vmem:[%s2654 + $0x31] sm:$0xff]
    %v2852 = vld [vmem:[%s2654 + $0x41] sm:$0xff]
    %v2853 = vld [vmem:[%s2654 + $0x51] sm:$0xff]
    %v2854 = vld [vmem:[%s2654 + $0x61] sm:$0xff]
    %v2855 = vld [vmem:[%s2654 + $0x71] sm:$0xff]
    %v2856 = vld [vmem:[%s2654 + $0x281] sm:$0xff]
    %v2857 = vld [vmem:[%s2654 + $0x291] sm:$0xff]
    %v2858 = vld [vmem:[%s2654 + $0x2a1] sm:$0xff]
    %v2859 = vld [vmem:[%s2654 + $0x2b1] sm:$0xff]
    %v2860 = vld [vmem:[%s2654 + $0x2c1] sm:$0xff]
    %v2861 = vld [vmem:[%s2654 + $0x2d1] sm:$0xff]
    %v2862 = vld [vmem:[%s2654 + $0x2e1] sm:$0xff]
    %v2863 = vld [vmem:[%s2654 + $0x2f1] sm:$0xff]
    %2880 = vrot.lane.b32.xlu0 %v2848, 32
    %v2881 = vpop.permute.xlu0 %2880
    %2882 = vrot.lane.b32.xlu0 %v2849, 32
    %v2883 = vpop.permute.xlu0 %2882
    %2884 = vrot.lane.b32.xlu0 %v2850, 32
    %v2885 = vpop.permute.xlu0 %2884
    %2886 = vrot.lane.b32.xlu0 %v2851, 32
    %v2887 = vpop.permute.xlu0 %2886
    %2888 = vrot.lane.b32.xlu0 %v2852, 32
    %v2889 = vpop.permute.xlu0 %2888
    %2890 = vrot.lane.b32.xlu0 %v2853, 32
    %v2891 = vpop.permute.xlu0 %2890
    %2892 = vrot.lane.b32.xlu0 %v2854, 32
    %v2893 = vpop.permute.xlu0 %2892
    %2894 = vrot.lane.b32.xlu0 %v2855, 32
    %v2895 = vpop.permute.xlu0 %2894
    %2896 = vrot.lane.b32.xlu0 %v2856, 32
    %v2897 = vpop.permute.xlu0 %2896
    %2898 = vrot.lane.b32.xlu0 %v2857, 32
    %v2899 = vpop.permute.xlu0 %2898
    %2900 = vrot.lane.b32.xlu0 %v2858, 32
    %v2901 = vpop.permute.xlu0 %2900
    %2902 = vrot.lane.b32.xlu0 %v2859, 32
    %v2903 = vpop.permute.xlu0 %2902
    %2904 = vrot.lane.b32.xlu0 %v2860, 32
    %v2905 = vpop.permute.xlu0 %2904
    %2906 = vrot.lane.b32.xlu0 %v2861, 32
    %v2907 = vpop.permute.xlu0 %2906
    %2908 = vrot.lane.b32.xlu0 %v2862, 32
    %v2909 = vpop.permute.xlu0 %2908
    %2910 = vrot.lane.b32.xlu0 %v2863, 32
    %v2911 = vpop.permute.xlu0 %2910
    %2928 = vst.msk [vmem:[#allocation4 + $0x100] sm:$0xff] %vm1677, %v2881
    %2929 = vst.msk [vmem:[#allocation4 + $0x108] sm:$0xff] %vm1677, %v2883
    %2930 = vst.msk [vmem:[#allocation4 + $0x110] sm:$0xff] %vm1677, %v2885
    %2931 = vst.msk [vmem:[#allocation4 + $0x118] sm:$0xff] %vm1677, %v2887
    %2932 = vst.msk [vmem:[#allocation4 + $0x120] sm:$0xff] %vm1677, %v2889
    %2933 = vst.msk [vmem:[#allocation4 + $0x128] sm:$0xff] %vm1677, %v2891
    %2934 = vst.msk [vmem:[#allocation4 + $0x130] sm:$0xff] %vm1677, %v2893
    %2935 = vst.msk [vmem:[#allocation4 + $0x138] sm:$0xff] %vm1677, %v2895
    %2936 = vst.msk [vmem:[#allocation4 + $0x140] sm:$0xff] %vm1677, %v2897
    %2937 = vst.msk [vmem:[#allocation4 + $0x148] sm:$0xff] %vm1677, %v2899
    %2938 = vst.msk [vmem:[#allocation4 + $0x150] sm:$0xff] %vm1677, %v2901
    %2939 = vst.msk [vmem:[#allocation4 + $0x158] sm:$0xff] %vm1677, %v2903
    %2940 = vst.msk [vmem:[#allocation4 + $0x160] sm:$0xff] %vm1677, %v2905
    %2941 = vst.msk [vmem:[#allocation4 + $0x168] sm:$0xff] %vm1677, %v2907
    %2942 = vst.msk [vmem:[#allocation4 + $0x170] sm:$0xff] %vm1677, %v2909
    %2943 = vst.msk [vmem:[#allocation4 + $0x178] sm:$0xff] %vm1677, %v2911
    %2944 = vst.msk [vmem:[#allocation4 + $0x180] sm:$0xff] %vm27, %v1207
    %2945 = vst.msk [vmem:[#allocation4 + $0x188] sm:$0xff] %vm27, %v1208
    %2946 = vst.msk [vmem:[#allocation4 + $0x190] sm:$0xff] %vm27, %v1209
    %2947 = vst.msk [vmem:[#allocation4 + $0x198] sm:$0xff] %vm27, %v1210
    %2948 = vst.msk [vmem:[#allocation4 + $0x1a0] sm:$0xff] %vm27, %v1211
    %2949 = vst.msk [vmem:[#allocation4 + $0x1a8] sm:$0xff] %vm27, %v1212
    %2950 = vst.msk [vmem:[#allocation4 + $0x1b0] sm:$0xff] %vm27, %v1213
    %2951 = vst.msk [vmem:[#allocation4 + $0x1b8] sm:$0xff] %vm27, %v1214
    %2952 = vst.msk [vmem:[#allocation4 + $0x1c0] sm:$0xff] %vm27, %v1215
    %2953 = vst.msk [vmem:[#allocation4 + $0x1c8] sm:$0xff] %vm27, %v1216
    %2954 = vst.msk [vmem:[#allocation4 + $0x1d0] sm:$0xff] %vm27, %v1217
    %2955 = vst.msk [vmem:[#allocation4 + $0x1d8] sm:$0xff] %vm27, %v1218
    %2956 = vst.msk [vmem:[#allocation4 + $0x1e0] sm:$0xff] %vm27, %v1219
    %2957 = vst.msk [vmem:[#allocation4 + $0x1e8] sm:$0xff] %vm27, %v1220
    %2958 = vst.msk [vmem:[#allocation4 + $0x1f0] sm:$0xff] %vm27, %v1221
    %2959 = vst.msk [vmem:[#allocation4 + $0x1f8] sm:$0xff] %vm27, %v1222
    %2960 = vrot.lane.b32.xlu0 %v1304, 4
    %v2961 = vpop.permute.xlu0 %2960
    %2962 = vrot.lane.b32.xlu0 %v1305, 4
    %v2963 = vpop.permute.xlu0 %2962
    %2964 = vrot.lane.b32.xlu0 %v1306, 4
    %v2965 = vpop.permute.xlu0 %2964
    %2966 = vrot.lane.b32.xlu0 %v1307, 4
    %v2967 = vpop.permute.xlu0 %2966
    %2968 = vrot.lane.b32.xlu0 %v1308, 4
    %v2969 = vpop.permute.xlu0 %2968
    %2970 = vrot.lane.b32.xlu0 %v1309, 4
    %v2971 = vpop.permute.xlu0 %2970
    %2972 = vrot.lane.b32.xlu0 %v1310, 4
    %v2973 = vpop.permute.xlu0 %2972
    %2974 = vrot.lane.b32.xlu0 %v1311, 4
    %v2975 = vpop.permute.xlu0 %2974
    %2976 = vrot.lane.b32.xlu0 %v1312, 4
    %v2977 = vpop.permute.xlu0 %2976
    %2978 = vrot.lane.b32.xlu0 %v1313, 4
    %v2979 = vpop.permute.xlu0 %2978
    %2980 = vrot.lane.b32.xlu0 %v1314, 4
    %v2981 = vpop.permute.xlu0 %2980
    %2982 = vrot.lane.b32.xlu0 %v1315, 4
    %v2983 = vpop.permute.xlu0 %2982
    %2984 = vrot.lane.b32.xlu0 %v1316, 4
    %v2985 = vpop.permute.xlu0 %2984
    %2986 = vrot.lane.b32.xlu0 %v1317, 4
    %v2987 = vpop.permute.xlu0 %2986
    %2988 = vrot.lane.b32.xlu0 %v1318, 4
    %v2989 = vpop.permute.xlu0 %2988
    %2990 = vrot.lane.b32.xlu0 %v1319, 4
    %v2991 = vpop.permute.xlu0 %2990
    %3008 = vst.msk [vmem:[#allocation4 + $0x180] sm:$0xff] %vm995, %v2961
    %3009 = vst.msk [vmem:[#allocation4 + $0x188] sm:$0xff] %vm995, %v2963
    %3010 = vst.msk [vmem:[#allocation4 + $0x190] sm:$0xff] %vm995, %v2965
    %3011 = vst.msk [vmem:[#allocation4 + $0x198] sm:$0xff] %vm995, %v2967
    %3012 = vst.msk [vmem:[#allocation4 + $0x1a0] sm:$0xff] %vm995, %v2969
    %3013 = vst.msk [vmem:[#allocation4 + $0x1a8] sm:$0xff] %vm995, %v2971
    %3014 = vst.msk [vmem:[#allocation4 + $0x1b0] sm:$0xff] %vm995, %v2973
    %3015 = vst.msk [vmem:[#allocation4 + $0x1b8] sm:$0xff] %vm995, %v2975
    %3016 = vst.msk [vmem:[#allocation4 + $0x1c0] sm:$0xff] %vm995, %v2977
    %3017 = vst.msk [vmem:[#allocation4 + $0x1c8] sm:$0xff] %vm995, %v2979
    %3018 = vst.msk [vmem:[#allocation4 + $0x1d0] sm:$0xff] %vm995, %v2981
    %3019 = vst.msk [vmem:[#allocation4 + $0x1d8] sm:$0xff] %vm995, %v2983
    %3020 = vst.msk [vmem:[#allocation4 + $0x1e0] sm:$0xff] %vm995, %v2985
    %3021 = vst.msk [vmem:[#allocation4 + $0x1e8] sm:$0xff] %vm995, %v2987
    %3022 = vst.msk [vmem:[#allocation4 + $0x1f0] sm:$0xff] %vm995, %v2989
    %3023 = vst.msk [vmem:[#allocation4 + $0x1f8] sm:$0xff] %vm995, %v2991
    %3024 = vrot.lane.b32.xlu0 %v1998, 8
    %v3025 = vpop.permute.xlu0 %3024
    %3026 = vrot.lane.b32.xlu0 %v1999, 8
    %v3027 = vpop.permute.xlu0 %3026
    %3028 = vrot.lane.b32.xlu0 %v2000, 8
    %v3029 = vpop.permute.xlu0 %3028
    %3030 = vrot.lane.b32.xlu0 %v2001, 8
    %v3031 = vpop.permute.xlu0 %3030
    %3032 = vrot.lane.b32.xlu0 %v2002, 8
    %v3033 = vpop.permute.xlu0 %3032
    %3034 = vrot.lane.b32.xlu0 %v2003, 8
    %v3035 = vpop.permute.xlu0 %3034
    %3036 = vrot.lane.b32.xlu0 %v2004, 8
    %v3037 = vpop.permute.xlu0 %3036
    %3038 = vrot.lane.b32.xlu0 %v2005, 8
    %v3039 = vpop.permute.xlu0 %3038
    %3040 = vrot.lane.b32.xlu0 %v2006, 8
    %v3041 = vpop.permute.xlu0 %3040
    %3042 = vrot.lane.b32.xlu0 %v2007, 8
    %v3043 = vpop.permute.xlu0 %3042
    %3044 = vrot.lane.b32.xlu0 %v2008, 8
    %v3045 = vpop.permute.xlu0 %3044
    %3046 = vrot.lane.b32.xlu0 %v2009, 8
    %v3047 = vpop.permute.xlu0 %3046
    %3048 = vrot.lane.b32.xlu0 %v2010, 8
    %v3049 = vpop.permute.xlu0 %3048
    %3050 = vrot.lane.b32.xlu0 %v2011, 8
    %v3051 = vpop.permute.xlu0 %3050
    %3052 = vrot.lane.b32.xlu0 %v2012, 8
    %v3053 = vpop.permute.xlu0 %3052
    %3054 = vrot.lane.b32.xlu0 %v2013, 8
    %v3055 = vpop.permute.xlu0 %3054
    %3072 = vst.msk [vmem:[#allocation4 + $0x180] sm:$0xff] %vm1092, %v3025
    %3073 = vst.msk [vmem:[#allocation4 + $0x188] sm:$0xff] %vm1092, %v3027
    %3074 = vst.msk [vmem:[#allocation4 + $0x190] sm:$0xff] %vm1092, %v3029
    %3075 = vst.msk [vmem:[#allocation4 + $0x198] sm:$0xff] %vm1092, %v3031
    %3076 = vst.msk [vmem:[#allocation4 + $0x1a0] sm:$0xff] %vm1092, %v3033
    %3077 = vst.msk [vmem:[#allocation4 + $0x1a8] sm:$0xff] %vm1092, %v3035
    %3078 = vst.msk [vmem:[#allocation4 + $0x1b0] sm:$0xff] %vm1092, %v3037
    %3079 = vst.msk [vmem:[#allocation4 + $0x1b8] sm:$0xff] %vm1092, %v3039
    %3080 = vst.msk [vmem:[#allocation4 + $0x1c0] sm:$0xff] %vm1092, %v3041
    %3081 = vst.msk [vmem:[#allocation4 + $0x1c8] sm:$0xff] %vm1092, %v3043
    %3082 = vst.msk [vmem:[#allocation4 + $0x1d0] sm:$0xff] %vm1092, %v3045
    %3083 = vst.msk [vmem:[#allocation4 + $0x1d8] sm:$0xff] %vm1092, %v3047
    %3084 = vst.msk [vmem:[#allocation4 + $0x1e0] sm:$0xff] %vm1092, %v3049
    %3085 = vst.msk [vmem:[#allocation4 + $0x1e8] sm:$0xff] %vm1092, %v3051
    %3086 = vst.msk [vmem:[#allocation4 + $0x1f0] sm:$0xff] %vm1092, %v3053
    %3087 = vst.msk [vmem:[#allocation4 + $0x1f8] sm:$0xff] %vm1092, %v3055
    %3088 = vrot.lane.b32.xlu0 %v1500, 12
    %v3089 = vpop.permute.xlu0 %3088
    %3090 = vrot.lane.b32.xlu0 %v1501, 12
    %v3091 = vpop.permute.xlu0 %3090
    %3092 = vrot.lane.b32.xlu0 %v1502, 12
    %v3093 = vpop.permute.xlu0 %3092
    %3094 = vrot.lane.b32.xlu0 %v1503, 12
    %v3095 = vpop.permute.xlu0 %3094
    %3096 = vrot.lane.b32.xlu0 %v1504, 12
    %v3097 = vpop.permute.xlu0 %3096
    %3098 = vrot.lane.b32.xlu0 %v1505, 12
    %v3099 = vpop.permute.xlu0 %3098
    %3100 = vrot.lane.b32.xlu0 %v1506, 12
    %v3101 = vpop.permute.xlu0 %3100
    %3102 = vrot.lane.b32.xlu0 %v1507, 12
    %v3103 = vpop.permute.xlu0 %3102
    %3104 = vrot.lane.b32.xlu0 %v1508, 12
    %v3105 = vpop.permute.xlu0 %3104
    %3106 = vrot.lane.b32.xlu0 %v1509, 12
    %v3107 = vpop.permute.xlu0 %3106
    %3108 = vrot.lane.b32.xlu0 %v1510, 12
    %v3109 = vpop.permute.xlu0 %3108
    %3110 = vrot.lane.b32.xlu0 %v1511, 12
    %v3111 = vpop.permute.xlu0 %3110
    %3112 = vrot.lane.b32.xlu0 %v1512, 12
    %v3113 = vpop.permute.xlu0 %3112
    %3114 = vrot.lane.b32.xlu0 %v1513, 12
    %v3115 = vpop.permute.xlu0 %3114
    %3116 = vrot.lane.b32.xlu0 %v1514, 12
    %v3117 = vpop.permute.xlu0 %3116
    %3118 = vrot.lane.b32.xlu0 %v1515, 12
    %v3119 = vpop.permute.xlu0 %3118
    %3136 = vst.msk [vmem:[#allocation4 + $0x180] sm:$0xff] %vm1190, %v3089
    %3137 = vst.msk [vmem:[#allocation4 + $0x188] sm:$0xff] %vm1190, %v3091
    %3138 = vst.msk [vmem:[#allocation4 + $0x190] sm:$0xff] %vm1190, %v3093
    %3139 = vst.msk [vmem:[#allocation4 + $0x198] sm:$0xff] %vm1190, %v3095
    %3140 = vst.msk [vmem:[#allocation4 + $0x1a0] sm:$0xff] %vm1190, %v3097
    %3141 = vst.msk [vmem:[#allocation4 + $0x1a8] sm:$0xff] %vm1190, %v3099
    %3142 = vst.msk [vmem:[#allocation4 + $0x1b0] sm:$0xff] %vm1190, %v3101
    %3143 = vst.msk [vmem:[#allocation4 + $0x1b8] sm:$0xff] %vm1190, %v3103
    %3144 = vst.msk [vmem:[#allocation4 + $0x1c0] sm:$0xff] %vm1190, %v3105
    %3145 = vst.msk [vmem:[#allocation4 + $0x1c8] sm:$0xff] %vm1190, %v3107
    %3146 = vst.msk [vmem:[#allocation4 + $0x1d0] sm:$0xff] %vm1190, %v3109
    %3147 = vst.msk [vmem:[#allocation4 + $0x1d8] sm:$0xff] %vm1190, %v3111
    %3148 = vst.msk [vmem:[#allocation4 + $0x1e0] sm:$0xff] %vm1190, %v3113
    %3149 = vst.msk [vmem:[#allocation4 + $0x1e8] sm:$0xff] %vm1190, %v3115
    %3150 = vst.msk [vmem:[#allocation4 + $0x1f0] sm:$0xff] %vm1190, %v3117
    %3151 = vst.msk [vmem:[#allocation4 + $0x1f8] sm:$0xff] %vm1190, %v3119
    %3152 = vrot.lane.b32.xlu0 %v1597, 16
    %v3153 = vpop.permute.xlu0 %3152
    %3154 = vrot.lane.b32.xlu0 %v1598, 16
    %v3155 = vpop.permute.xlu0 %3154
    %3156 = vrot.lane.b32.xlu0 %v1599, 16
    %v3157 = vpop.permute.xlu0 %3156
    %3158 = vrot.lane.b32.xlu0 %v1600, 16
    %v3159 = vpop.permute.xlu0 %3158
    %3160 = vrot.lane.b32.xlu0 %v1601, 16
    %v3161 = vpop.permute.xlu0 %3160
    %3162 = vrot.lane.b32.xlu0 %v1602, 16
    %v3163 = vpop.permute.xlu0 %3162
    %3164 = vrot.lane.b32.xlu0 %v1603, 16
    %v3165 = vpop.permute.xlu0 %3164
    %3166 = vrot.lane.b32.xlu0 %v1604, 16
    %v3167 = vpop.permute.xlu0 %3166
    %3168 = vrot.lane.b32.xlu0 %v1605, 16
    %v3169 = vpop.permute.xlu0 %3168
    %3170 = vrot.lane.b32.xlu0 %v1606, 16
    %v3171 = vpop.permute.xlu0 %3170
    %3172 = vrot.lane.b32.xlu0 %v1607, 16
    %v3173 = vpop.permute.xlu0 %3172
    %3174 = vrot.lane.b32.xlu0 %v1608, 16
    %v3175 = vpop.permute.xlu0 %3174
    %3176 = vrot.lane.b32.xlu0 %v1609, 16
    %v3177 = vpop.permute.xlu0 %3176
    %3178 = vrot.lane.b32.xlu0 %v1610, 16
    %v3179 = vpop.permute.xlu0 %3178
    %3180 = vrot.lane.b32.xlu0 %v1611, 16
    %v3181 = vpop.permute.xlu0 %3180
    %3182 = vrot.lane.b32.xlu0 %v1612, 16
    %v3183 = vpop.permute.xlu0 %3182
    %3200 = vst.msk [vmem:[#allocation4 + $0x180] sm:$0xff] %vm1287, %v3153
    %3201 = vst.msk [vmem:[#allocation4 + $0x188] sm:$0xff] %vm1287, %v3155
    %3202 = vst.msk [vmem:[#allocation4 + $0x190] sm:$0xff] %vm1287, %v3157
    %3203 = vst.msk [vmem:[#allocation4 + $0x198] sm:$0xff] %vm1287, %v3159
    %3204 = vst.msk [vmem:[#allocation4 + $0x1a0] sm:$0xff] %vm1287, %v3161
    %3205 = vst.msk [vmem:[#allocation4 + $0x1a8] sm:$0xff] %vm1287, %v3163
    %3206 = vst.msk [vmem:[#allocation4 + $0x1b0] sm:$0xff] %vm1287, %v3165
    %3207 = vst.msk [vmem:[#allocation4 + $0x1b8] sm:$0xff] %vm1287, %v3167
    %3208 = vst.msk [vmem:[#allocation4 + $0x1c0] sm:$0xff] %vm1287, %v3169
    %3209 = vst.msk [vmem:[#allocation4 + $0x1c8] sm:$0xff] %vm1287, %v3171
    %3210 = vst.msk [vmem:[#allocation4 + $0x1d0] sm:$0xff] %vm1287, %v3173
    %3211 = vst.msk [vmem:[#allocation4 + $0x1d8] sm:$0xff] %vm1287, %v3175
    %3212 = vst.msk [vmem:[#allocation4 + $0x1e0] sm:$0xff] %vm1287, %v3177
    %3213 = vst.msk [vmem:[#allocation4 + $0x1e8] sm:$0xff] %vm1287, %v3179
    %3214 = vst.msk [vmem:[#allocation4 + $0x1f0] sm:$0xff] %vm1287, %v3181
    %3215 = vst.msk [vmem:[#allocation4 + $0x1f8] sm:$0xff] %vm1287, %v3183
    %3216 = vrot.lane.b32.xlu0 %v2222, 20
    %v3217 = vpop.permute.xlu0 %3216
    %3218 = vrot.lane.b32.xlu0 %v2223, 20
    %v3219 = vpop.permute.xlu0 %3218
    %3220 = vrot.lane.b32.xlu0 %v2224, 20
    %v3221 = vpop.permute.xlu0 %3220
    %3222 = vrot.lane.b32.xlu0 %v2225, 20
    %v3223 = vpop.permute.xlu0 %3222
    %3224 = vrot.lane.b32.xlu0 %v2226, 20
    %v3225 = vpop.permute.xlu0 %3224
    %3226 = vrot.lane.b32.xlu0 %v2227, 20
    %v3227 = vpop.permute.xlu0 %3226
    %3228 = vrot.lane.b32.xlu0 %v2228, 20
    %v3229 = vpop.permute.xlu0 %3228
    %3230 = vrot.lane.b32.xlu0 %v2229, 20
    %v3231 = vpop.permute.xlu0 %3230
    %3232 = vrot.lane.b32.xlu0 %v2230, 20
    %v3233 = vpop.permute.xlu0 %3232
    %3234 = vrot.lane.b32.xlu0 %v2231, 20
    %v3235 = vpop.permute.xlu0 %3234
    %3236 = vrot.lane.b32.xlu0 %v2232, 20
    %v3237 = vpop.permute.xlu0 %3236
    %3238 = vrot.lane.b32.xlu0 %v2233, 20
    %v3239 = vpop.permute.xlu0 %3238
    %3240 = vrot.lane.b32.xlu0 %v2234, 20
    %v3241 = vpop.permute.xlu0 %3240
    %3242 = vrot.lane.b32.xlu0 %v2235, 20
    %v3243 = vpop.permute.xlu0 %3242
    %3244 = vrot.lane.b32.xlu0 %v2236, 20
    %v3245 = vpop.permute.xlu0 %3244
    %3246 = vrot.lane.b32.xlu0 %v2237, 20
    %v3247 = vpop.permute.xlu0 %3246
    %3264 = vst.msk [vmem:[#allocation4 + $0x180] sm:$0xff] %vm1384, %v3217
    %3265 = vst.msk [vmem:[#allocation4 + $0x188] sm:$0xff] %vm1384, %v3219
    %3266 = vst.msk [vmem:[#allocation4 + $0x190] sm:$0xff] %vm1384, %v3221
    %3267 = vst.msk [vmem:[#allocation4 + $0x198] sm:$0xff] %vm1384, %v3223
    %3268 = vst.msk [vmem:[#allocation4 + $0x1a0] sm:$0xff] %vm1384, %v3225
    %3269 = vst.msk [vmem:[#allocation4 + $0x1a8] sm:$0xff] %vm1384, %v3227
    %3270 = vst.msk [vmem:[#allocation4 + $0x1b0] sm:$0xff] %vm1384, %v3229
    %3271 = vst.msk [vmem:[#allocation4 + $0x1b8] sm:$0xff] %vm1384, %v3231
    %3272 = vst.msk [vmem:[#allocation4 + $0x1c0] sm:$0xff] %vm1384, %v3233
    %3273 = vst.msk [vmem:[#allocation4 + $0x1c8] sm:$0xff] %vm1384, %v3235
    %3274 = vst.msk [vmem:[#allocation4 + $0x1d0] sm:$0xff] %vm1384, %v3237
    %3275 = vst.msk [vmem:[#allocation4 + $0x1d8] sm:$0xff] %vm1384, %v3239
    %3276 = vst.msk [vmem:[#allocation4 + $0x1e0] sm:$0xff] %vm1384, %v3241
    %3277 = vst.msk [vmem:[#allocation4 + $0x1e8] sm:$0xff] %vm1384, %v3243
    %3278 = vst.msk [vmem:[#allocation4 + $0x1f0] sm:$0xff] %vm1384, %v3245
    %3279 = vst.msk [vmem:[#allocation4 + $0x1f8] sm:$0xff] %vm1384, %v3247
    %3280 = vrot.lane.b32.xlu0 %v2752, 24
    %v3281 = vpop.permute.xlu0 %3280
    %3282 = vrot.lane.b32.xlu0 %v2753, 24
    %v3283 = vpop.permute.xlu0 %3282
    %3284 = vrot.lane.b32.xlu0 %v2754, 24
    %v3285 = vpop.permute.xlu0 %3284
    %3286 = vrot.lane.b32.xlu0 %v2755, 24
    %v3287 = vpop.permute.xlu0 %3286
    %3288 = vrot.lane.b32.xlu0 %v2756, 24
    %v3289 = vpop.permute.xlu0 %3288
    %3290 = vrot.lane.b32.xlu0 %v2757, 24
    %v3291 = vpop.permute.xlu0 %3290
    %3292 = vrot.lane.b32.xlu0 %v2758, 24
    %v3293 = vpop.permute.xlu0 %3292
    %3294 = vrot.lane.b32.xlu0 %v2759, 24
    %v3295 = vpop.permute.xlu0 %3294
    %3296 = vrot.lane.b32.xlu0 %v2760, 24
    %v3297 = vpop.permute.xlu0 %3296
    %3298 = vrot.lane.b32.xlu0 %v2761, 24
    %v3299 = vpop.permute.xlu0 %3298
    %3300 = vrot.lane.b32.xlu0 %v2762, 24
    %v3301 = vpop.permute.xlu0 %3300
    %3302 = vrot.lane.b32.xlu0 %v2763, 24
    %v3303 = vpop.permute.xlu0 %3302
    %3304 = vrot.lane.b32.xlu0 %v2764, 24
    %v3305 = vpop.permute.xlu0 %3304
    %3306 = vrot.lane.b32.xlu0 %v2765, 24
    %v3307 = vpop.permute.xlu0 %3306
    %3308 = vrot.lane.b32.xlu0 %v2766, 24
    %v3309 = vpop.permute.xlu0 %3308
    %3310 = vrot.lane.b32.xlu0 %v2767, 24
    %v3311 = vpop.permute.xlu0 %3310
    %3328 = vst.msk [vmem:[#allocation4 + $0x180] sm:$0xff] %vm1482, %v3281
    %3329 = vst.msk [vmem:[#allocation4 + $0x188] sm:$0xff] %vm1482, %v3283
    %3330 = vst.msk [vmem:[#allocation4 + $0x190] sm:$0xff] %vm1482, %v3285
    %3331 = vst.msk [vmem:[#allocation4 + $0x198] sm:$0xff] %vm1482, %v3287
    %3332 = vst.msk [vmem:[#allocation4 + $0x1a0] sm:$0xff] %vm1482, %v3289
    %3333 = vst.msk [vmem:[#allocation4 + $0x1a8] sm:$0xff] %vm1482, %v3291
    %3334 = vst.msk [vmem:[#allocation4 + $0x1b0] sm:$0xff] %vm1482, %v3293
    %3335 = vst.msk [vmem:[#allocation4 + $0x1b8] sm:$0xff] %vm1482, %v3295
    %3336 = vst.msk [vmem:[#allocation4 + $0x1c0] sm:$0xff] %vm1482, %v3297
    %3337 = vst.msk [vmem:[#allocation4 + $0x1c8] sm:$0xff] %vm1482, %v3299
    %3338 = vst.msk [vmem:[#allocation4 + $0x1d0] sm:$0xff] %vm1482, %v3301
    %3339 = vst.msk [vmem:[#allocation4 + $0x1d8] sm:$0xff] %vm1482, %v3303
    %3340 = vst.msk [vmem:[#allocation4 + $0x1e0] sm:$0xff] %vm1482, %v3305
    %3341 = vst.msk [vmem:[#allocation4 + $0x1e8] sm:$0xff] %vm1482, %v3307
    %3342 = vst.msk [vmem:[#allocation4 + $0x1f0] sm:$0xff] %vm1482, %v3309
    %3343 = vst.msk [vmem:[#allocation4 + $0x1f8] sm:$0xff] %vm1482, %v3311
    %3344 = vrot.lane.b32.xlu0 %v2848, 28
    %v3345 = vpop.permute.xlu0 %3344
    %3346 = vrot.lane.b32.xlu0 %v2849, 28
    %v3347 = vpop.permute.xlu0 %3346
    %3348 = vrot.lane.b32.xlu0 %v2850, 28
    %v3349 = vpop.permute.xlu0 %3348
    %3350 = vrot.lane.b32.xlu0 %v2851, 28
    %v3351 = vpop.permute.xlu0 %3350
    %3352 = vrot.lane.b32.xlu0 %v2852, 28
    %v3353 = vpop.permute.xlu0 %3352
    %3354 = vrot.lane.b32.xlu0 %v2853, 28
    %v3355 = vpop.permute.xlu0 %3354
    %3356 = vrot.lane.b32.xlu0 %v2854, 28
    %v3357 = vpop.permute.xlu0 %3356
    %3358 = vrot.lane.b32.xlu0 %v2855, 28
    %v3359 = vpop.permute.xlu0 %3358
    %3360 = vrot.lane.b32.xlu0 %v2856, 28
    %v3361 = vpop.permute.xlu0 %3360
    %3362 = vrot.lane.b32.xlu0 %v2857, 28
    %v3363 = vpop.permute.xlu0 %3362
    %3364 = vrot.lane.b32.xlu0 %v2858, 28
    %v3365 = vpop.permute.xlu0 %3364
    %3366 = vrot.lane.b32.xlu0 %v2859, 28
    %v3367 = vpop.permute.xlu0 %3366
    %3368 = vrot.lane.b32.xlu0 %v2860, 28
    %v3369 = vpop.permute.xlu0 %3368
    %3370 = vrot.lane.b32.xlu0 %v2861, 28
    %v3371 = vpop.permute.xlu0 %3370
    %3372 = vrot.lane.b32.xlu0 %v2862, 28
    %v3373 = vpop.permute.xlu0 %3372
    %3374 = vrot.lane.b32.xlu0 %v2863, 28
    %v3375 = vpop.permute.xlu0 %3374
    %3392 = vst.msk [vmem:[#allocation4 + $0x180] sm:$0xff] %vm1580, %v3345
    %3393 = vst.msk [vmem:[#allocation4 + $0x188] sm:$0xff] %vm1580, %v3347
    %3394 = vst.msk [vmem:[#allocation4 + $0x190] sm:$0xff] %vm1580, %v3349
    %3395 = vst.msk [vmem:[#allocation4 + $0x198] sm:$0xff] %vm1580, %v3351
    %3396 = vst.msk [vmem:[#allocation4 + $0x1a0] sm:$0xff] %vm1580, %v3353
    %3397 = vst.msk [vmem:[#allocation4 + $0x1a8] sm:$0xff] %vm1580, %v3355
    %3398 = vst.msk [vmem:[#allocation4 + $0x1b0] sm:$0xff] %vm1580, %v3357
    %3399 = vst.msk [vmem:[#allocation4 + $0x1b8] sm:$0xff] %vm1580, %v3359
    %3400 = vst.msk [vmem:[#allocation4 + $0x1c0] sm:$0xff] %vm1580, %v3361
    %3401 = vst.msk [vmem:[#allocation4 + $0x1c8] sm:$0xff] %vm1580, %v3363
    %3402 = vst.msk [vmem:[#allocation4 + $0x1d0] sm:$0xff] %vm1580, %v3365
    %3403 = vst.msk [vmem:[#allocation4 + $0x1d8] sm:$0xff] %vm1580, %v3367
    %3404 = vst.msk [vmem:[#allocation4 + $0x1e0] sm:$0xff] %vm1580, %v3369
    %3405 = vst.msk [vmem:[#allocation4 + $0x1e8] sm:$0xff] %vm1580, %v3371
    %3406 = vst.msk [vmem:[#allocation4 + $0x1f0] sm:$0xff] %vm1580, %v3373
    %3407 = vst.msk [vmem:[#allocation4 + $0x1f8] sm:$0xff] %vm1580, %v3375
    %v3408 = vld [vmem:[%s2751 + $0x2] sm:$0xff]
    %v3409 = vld [vmem:[%s2751 + $0x12] sm:$0xff]
    %v3410 = vld [vmem:[%s2751 + $0x22] sm:$0xff]
    %v3411 = vld [vmem:[%s2751 + $0x32] sm:$0xff]
    %v3412 = vld [vmem:[%s2751 + $0x42] sm:$0xff]
    %v3413 = vld [vmem:[%s2751 + $0x52] sm:$0xff]
    %v3414 = vld [vmem:[%s2751 + $0x62] sm:$0xff]
    %v3415 = vld [vmem:[%s2751 + $0x72] sm:$0xff]
    %v3416 = vld [vmem:[%s2751 + $0x282] sm:$0xff]
    %v3417 = vld [vmem:[%s2751 + $0x292] sm:$0xff]
    %v3418 = vld [vmem:[%s2751 + $0x2a2] sm:$0xff]
    %v3419 = vld [vmem:[%s2751 + $0x2b2] sm:$0xff]
    %v3420 = vld [vmem:[%s2751 + $0x2c2] sm:$0xff]
    %v3421 = vld [vmem:[%s2751 + $0x2d2] sm:$0xff]
    %v3422 = vld [vmem:[%s2751 + $0x2e2] sm:$0xff]
    %v3423 = vld [vmem:[%s2751 + $0x2f2] sm:$0xff]
    %3440 = vrot.lane.b32.xlu0 %v3408, 32
    %v3441 = vpop.permute.xlu0 %3440
    %3442 = vrot.lane.b32.xlu0 %v3409, 32
    %v3443 = vpop.permute.xlu0 %3442
    %3444 = vrot.lane.b32.xlu0 %v3410, 32
    %v3445 = vpop.permute.xlu0 %3444
    %3446 = vrot.lane.b32.xlu0 %v3411, 32
    %v3447 = vpop.permute.xlu0 %3446
    %3448 = vrot.lane.b32.xlu0 %v3412, 32
    %v3449 = vpop.permute.xlu0 %3448
    %3450 = vrot.lane.b32.xlu0 %v3413, 32
    %v3451 = vpop.permute.xlu0 %3450
    %3452 = vrot.lane.b32.xlu0 %v3414, 32
    %v3453 = vpop.permute.xlu0 %3452
    %3454 = vrot.lane.b32.xlu0 %v3415, 32
    %v3455 = vpop.permute.xlu0 %3454
    %3456 = vrot.lane.b32.xlu0 %v3416, 32
    %v3457 = vpop.permute.xlu0 %3456
    %3458 = vrot.lane.b32.xlu0 %v3417, 32
    %v3459 = vpop.permute.xlu0 %3458
    %3460 = vrot.lane.b32.xlu0 %v3418, 32
    %v3461 = vpop.permute.xlu0 %3460
    %3462 = vrot.lane.b32.xlu0 %v3419, 32
    %v3463 = vpop.permute.xlu0 %3462
    %3464 = vrot.lane.b32.xlu0 %v3420, 32
    %v3465 = vpop.permute.xlu0 %3464
    %3466 = vrot.lane.b32.xlu0 %v3421, 32
    %v3467 = vpop.permute.xlu0 %3466
    %3468 = vrot.lane.b32.xlu0 %v3422, 32
    %v3469 = vpop.permute.xlu0 %3468
    %3470 = vrot.lane.b32.xlu0 %v3423, 32
    %v3471 = vpop.permute.xlu0 %3470
    %3488 = vst.msk [vmem:[#allocation4 + $0x180] sm:$0xff] %vm1677, %v3441
    %3489 = vst.msk [vmem:[#allocation4 + $0x188] sm:$0xff] %vm1677, %v3443
    %3490 = vst.msk [vmem:[#allocation4 + $0x190] sm:$0xff] %vm1677, %v3445
    %3491 = vst.msk [vmem:[#allocation4 + $0x198] sm:$0xff] %vm1677, %v3447
    %3492 = vst.msk [vmem:[#allocation4 + $0x1a0] sm:$0xff] %vm1677, %v3449
    %3493 = vst.msk [vmem:[#allocation4 + $0x1a8] sm:$0xff] %vm1677, %v3451
    %3494 = vst.msk [vmem:[#allocation4 + $0x1b0] sm:$0xff] %vm1677, %v3453
    %3495 = vst.msk [vmem:[#allocation4 + $0x1b8] sm:$0xff] %vm1677, %v3455
    %3496 = vst.msk [vmem:[#allocation4 + $0x1c0] sm:$0xff] %vm1677, %v3457
    %3497 = vst.msk [vmem:[#allocation4 + $0x1c8] sm:$0xff] %vm1677, %v3459
    %3498 = vst.msk [vmem:[#allocation4 + $0x1d0] sm:$0xff] %vm1677, %v3461
    %3499 = vst.msk [vmem:[#allocation4 + $0x1d8] sm:$0xff] %vm1677, %v3463
    %3500 = vst.msk [vmem:[#allocation4 + $0x1e0] sm:$0xff] %vm1677, %v3465
    %3501 = vst.msk [vmem:[#allocation4 + $0x1e8] sm:$0xff] %vm1677, %v3467
    %3502 = vst.msk [vmem:[#allocation4 + $0x1f0] sm:$0xff] %vm1677, %v3469
    %3503 = vst.msk [vmem:[#allocation4 + $0x1f8] sm:$0xff] %vm1677, %v3471
    %v3504 = vld [vmem:[#allocation4] sm:$0xff]
    %v3505 = vld [vmem:[#allocation4 + $0x8] sm:$0xff]
    %v3506 = vld [vmem:[#allocation4 + $0x10] sm:$0xff]
    %v3507 = vld [vmem:[#allocation4 + $0x18] sm:$0xff]
    %v3508 = vld [vmem:[#allocation4 + $0x20] sm:$0xff]
    %v3509 = vld [vmem:[#allocation4 + $0x28] sm:$0xff]
    %v3510 = vld [vmem:[#allocation4 + $0x30] sm:$0xff]
    %v3511 = vld [vmem:[#allocation4 + $0x38] sm:$0xff]
    %v3512 = vld [vmem:[#allocation4 + $0x40] sm:$0xff]
    %v3513 = vld [vmem:[#allocation4 + $0x48] sm:$0xff]
    %v3514 = vld [vmem:[#allocation4 + $0x50] sm:$0xff]
    %v3515 = vld [vmem:[#allocation4 + $0x58] sm:$0xff]
    %v3516 = vld [vmem:[#allocation4 + $0x60] sm:$0xff]
    %v3517 = vld [vmem:[#allocation4 + $0x68] sm:$0xff]
    %v3518 = vld [vmem:[#allocation4 + $0x70] sm:$0xff]
    %v3519 = vld [vmem:[#allocation4 + $0x78] sm:$0xff]
    %v3520 = vld [vmem:[#allocation4 + $0x80] sm:$0xff]
    %v3521 = vld [vmem:[#allocation4 + $0x88] sm:$0xff]
    %v3522 = vld [vmem:[#allocation4 + $0x90] sm:$0xff]
    %v3523 = vld [vmem:[#allocation4 + $0x98] sm:$0xff]
    %v3524 = vld [vmem:[#allocation4 + $0xa0] sm:$0xff]
    %v3525 = vld [vmem:[#allocation4 + $0xa8] sm:$0xff]
    %v3526 = vld [vmem:[#allocation4 + $0xb0] sm:$0xff]
    %v3527 = vld [vmem:[#allocation4 + $0xb8] sm:$0xff]
    %v3528 = vld [vmem:[#allocation4 + $0xc0] sm:$0xff]
    %v3529 = vld [vmem:[#allocation4 + $0xc8] sm:$0xff]
    %v3530 = vld [vmem:[#allocation4 + $0xd0] sm:$0xff]
    %v3531 = vld [vmem:[#allocation4 + $0xd8] sm:$0xff]
    %v3532 = vld [vmem:[#allocation4 + $0xe0] sm:$0xff]
    %v3533 = vld [vmem:[#allocation4 + $0xe8] sm:$0xff]
    %v3534 = vld [vmem:[#allocation4 + $0xf0] sm:$0xff]
    %v3535 = vld [vmem:[#allocation4 + $0xf8] sm:$0xff]
    %v3536 = vld [vmem:[#allocation4 + $0x100] sm:$0xff]
    %v3537 = vld [vmem:[#allocation4 + $0x108] sm:$0xff]
    %v3538 = vld [vmem:[#allocation4 + $0x110] sm:$0xff]
    %v3539 = vld [vmem:[#allocation4 + $0x118] sm:$0xff]
    %v3540 = vld [vmem:[#allocation4 + $0x120] sm:$0xff]
    %v3541 = vld [vmem:[#allocation4 + $0x128] sm:$0xff]
    %v3542 = vld [vmem:[#allocation4 + $0x130] sm:$0xff]
    %v3543 = vld [vmem:[#allocation4 + $0x138] sm:$0xff]
    %v3544 = vld [vmem:[#allocation4 + $0x140] sm:$0xff]
    %v3545 = vld [vmem:[#allocation4 + $0x148] sm:$0xff]
    %v3546 = vld [vmem:[#allocation4 + $0x150] sm:$0xff]
    %v3547 = vld [vmem:[#allocation4 + $0x158] sm:$0xff]
    %v3548 = vld [vmem:[#allocation4 + $0x160] sm:$0xff]
    %v3549 = vld [vmem:[#allocation4 + $0x168] sm:$0xff]
    %v3550 = vld [vmem:[#allocation4 + $0x170] sm:$0xff]
    %v3551 = vld [vmem:[#allocation4 + $0x178] sm:$0xff]
    %v3552 = vld [vmem:[#allocation4 + $0x180] sm:$0xff]
    %v3553 = vld [vmem:[#allocation4 + $0x188] sm:$0xff]
    %v3554 = vld [vmem:[#allocation4 + $0x190] sm:$0xff]
    %v3555 = vld [vmem:[#allocation4 + $0x198] sm:$0xff]
    %v3556 = vld [vmem:[#allocation4 + $0x1a0] sm:$0xff]
    %v3557 = vld [vmem:[#allocation4 + $0x1a8] sm:$0xff]
    %v3558 = vld [vmem:[#allocation4 + $0x1b0] sm:$0xff]
    %v3559 = vld [vmem:[#allocation4 + $0x1b8] sm:$0xff]
    %v3560 = vld [vmem:[#allocation4 + $0x1c0] sm:$0xff]
    %v3561 = vld [vmem:[#allocation4 + $0x1c8] sm:$0xff]
    %v3562 = vld [vmem:[#allocation4 + $0x1d0] sm:$0xff]
    %v3563 = vld [vmem:[#allocation4 + $0x1d8] sm:$0xff]
    %v3564 = vld [vmem:[#allocation4 + $0x1e0] sm:$0xff]
    %v3565 = vld [vmem:[#allocation4 + $0x1e8] sm:$0xff]
    %v3566 = vld [vmem:[#allocation4 + $0x1f0] sm:$0xff]
    %v3567 = vld [vmem:[#allocation4 + $0x1f8] sm:$0xff]
    %v3568 = vld [vmem:[%s3] sm:$0xff]
    %v3569 = vld [vmem:[%s3 + $0x8] sm:$0xff]
    %v3570 = vld [vmem:[%s3 + $0x10] sm:$0xff]
    %v3571 = vld [vmem:[%s3 + $0x18] sm:$0xff]
    %v3572 = vld [vmem:[%s3 + $0x20] sm:$0xf]
    %v3573 = vld [vmem:[%s4] sm:$0x1]
    %v3575 = vlaneseq
    %v3576 = vshrl.u32 %v3575, 7
    %v3577 = vsub.s32 0, %v3576
    %v3578 = vrot.slane %v3573, %v3577
    %vm3580 = vcmask 293888
    %v3582 = vsel %vm3580, %v3504, 0
    %v3585 = vsel %vm3580, %v3505, 0
    %v3588 = vsel %vm3580, %v3506, 0
    %v3591 = vsel %vm3580, %v3507, 0
    %v3594 = vsel %vm3580, %v3508, 0
    %v3597 = vsel %vm3580, %v3509, 0
    %v3600 = vsel %vm3580, %v3510, 0
    %v3603 = vsel %vm3580, %v3511, 0
    %v3606 = vsel %vm3580, %v3512, 0
    %v3609 = vsel %vm3580, %v3513, 0
    %v3612 = vsel %vm3580, %v3514, 0
    %v3615 = vsel %vm3580, %v3515, 0
    %v3618 = vsel %vm3580, %v3516, 0
    %v3621 = vsel %vm3580, %v3517, 0
    %v3624 = vsel %vm3580, %v3518, 0
    %v3627 = vsel %vm3580, %v3519, 0
    %v3630 = vsel %vm3580, %v3520, 0
    %v3633 = vsel %vm3580, %v3521, 0
    %v3636 = vsel %vm3580, %v3522, 0
    %v3639 = vsel %vm3580, %v3523, 0
    %v3642 = vsel %vm3580, %v3524, 0
    %v3645 = vsel %vm3580, %v3525, 0
    %v3648 = vsel %vm3580, %v3526, 0
    %v3651 = vsel %vm3580, %v3527, 0
    %v3654 = vsel %vm3580, %v3528, 0
    %v3657 = vsel %vm3580, %v3529, 0
    %v3660 = vsel %vm3580, %v3530, 0
    %v3663 = vsel %vm3580, %v3531, 0
    %v3666 = vsel %vm3580, %v3532, 0
    %v3669 = vsel %vm3580, %v3533, 0
    %v3672 = vsel %vm3580, %v3534, 0
    %v3675 = vsel %vm3580, %v3535, 0
    %v3678 = vsel %vm3580, %v3536, 0
    %v3681 = vsel %vm3580, %v3537, 0
    %v3684 = vsel %vm3580, %v3538, 0
    %v3687 = vsel %vm3580, %v3539, 0
    %v3690 = vsel %vm3580, %v3540, 0
    %v3693 = vsel %vm3580, %v3541, 0
    %v3696 = vsel %vm3580, %v3542, 0
    %v3699 = vsel %vm3580, %v3543, 0
    %v3702 = vsel %vm3580, %v3544, 0
    %v3705 = vsel %vm3580, %v3545, 0
    %v3708 = vsel %vm3580, %v3546, 0
    %v3711 = vsel %vm3580, %v3547, 0
    %v3714 = vsel %vm3580, %v3548, 0
    %v3717 = vsel %vm3580, %v3549, 0
    %v3720 = vsel %vm3580, %v3550, 0
    %v3723 = vsel %vm3580, %v3551, 0
    %v3726 = vsel %vm3580, %v3552, 0
    %v3729 = vsel %vm3580, %v3553, 0
    %v3732 = vsel %vm3580, %v3554, 0
    %v3735 = vsel %vm3580, %v3555, 0
    %v3738 = vsel %vm3580, %v3556, 0
    %v3741 = vsel %vm3580, %v3557, 0
    %v3744 = vsel %vm3580, %v3558, 0
    %v3747 = vsel %vm3580, %v3559, 0
    %v3750 = vsel %vm3580, %v3560, 0
    %v3753 = vsel %vm3580, %v3561, 0
    %v3756 = vsel %vm3580, %v3562, 0
    %v3759 = vsel %vm3580, %v3563, 0
    %v3762 = vsel %vm3580, %v3564, 0
    %v3765 = vsel %vm3580, %v3565, 0
    %v3768 = vsel %vm3580, %v3566, 0
    %v3771 = vsel %vm3580, %v3567, 0
    %v3774 = vsel %vm603, %v3572, 0
    %3776 = vmatprep.subr.mxu0 0.0
    %3777 = vmatpush1.msra.mxu0 %v3568
    %3778 = vmatprep.subr.mxu0 0.0
    %3779 = vmatpush1.msra.mxu0 %v3569
    %3780 = vmatprep.subr.mxu0 0.0
    %3781 = vmatpush1.msra.mxu0 %v3570
    %3782 = vmatprep.subr.mxu0 0.0
    %3783 = vmatpush1.msra.mxu0 %v3571
    %3784 = vmatprep.subr.mxu0 0.0
    %3785 = vmatpush1.msra.mxu0 %v3774
    %3786 = vmatprep.subr.mxu0 0.0
    %3787 = vmatpush1.msra.mxu0 0.0
    %3788 = vmatprep.subr.mxu0 0.0
    %3789 = vmatpush1.msra.mxu0 0.0
    %3790 = vmatprep.subr.mxu0 0.0
    %3791 = vmatpush1.msra.mxu0 0.0
    %3792 = vmatprep.subr.mxu0 0.0
    %3793 = vmatpush1.msra.mxu0 0.0
    %3794 = vmatprep.subr.mxu0 0.0
    %3795 = vmatpush1.msra.mxu0 0.0
    %3796 = vmatprep.subr.mxu0 0.0
    %3797 = vmatpush1.msra.mxu0 0.0
    %3798 = vmatprep.subr.mxu0 0.0
    %3799 = vmatpush1.msra.mxu0 0.0
    %3800 = vmatprep.subr.mxu0 0.0
    %3801 = vmatpush1.msra.mxu0 0.0
    %3802 = vmatprep.subr.mxu0 0.0
    %3803 = vmatpush1.msra.mxu0 0.0
    %3804 = vmatprep.subr.mxu0 0.0
    %3805 = vmatpush1.msra.mxu0 0.0
    %3806 = vmatprep.subr.mxu0 0.0
    %3807 = vmatpush1.msra.mxu0 0.0
    %3808 = vmatprep.subr.mxu0 0.0
    %3809 = vmatpush1.msra.mxu0 0.0
    %3810 = vmatprep.subr.mxu0 0.0
    %3811 = vmatpush1.msra.mxu0 0.0
    %3812 = vmatprep.subr.mxu0 0.0
    %3813 = vmatpush1.msra.mxu0 0.0
    %3814 = vmatprep.subr.mxu0 0.0
    %3815 = vmatpush1.msra.mxu0 0.0
    %3816 = vmatprep.subr.mxu0 0.0
    %3817 = vmatpush1.msra.mxu0 0.0
    %3818 = vmatprep.subr.mxu0 0.0
    %3819 = vmatpush1.msra.mxu0 0.0
    %3820 = vmatprep.subr.mxu0 0.0
    %3821 = vmatpush1.msra.mxu0 0.0
    %3822 = vmatprep.subr.mxu0 0.0
    %3823 = vmatpush1.msra.mxu0 0.0
    %3824 = vmatprep.subr.mxu0 0.0
    %3825 = vmatpush1.msra.mxu0 0.0
    %3826 = vmatprep.subr.mxu0 0.0
    %3827 = vmatpush1.msra.mxu0 0.0
    %3828 = vmatprep.subr.mxu0 0.0
    %3829 = vmatpush1.msra.mxu0 0.0
    %3830 = vmatprep.subr.mxu0 0.0
    %3831 = vmatpush1.msra.mxu0 0.0
    %3832 = vmatprep.subr.mxu0 0.0
    %3833 = vmatpush1.msra.mxu0 0.0
    %3834 = vmatprep.subr.mxu0 0.0
    %3835 = vmatpush1.msra.mxu0 0.0
    %3836 = vmatprep.subr.mxu0 0.0
    %3837 = vmatpush1.msra.mxu0 0.0
    %3838 = vmatprep.subr.mxu0 0.0
    %3839 = vmatpush1.msra.mxu0 0.0
    %3840 = vmatprep.mubr.f32.mxu0 0.0
    %3841 = vmatmul.mubr.f32.gmra.mrb[0].mxu0 %v3582
    %v3842 = vpop.f32.mrb[0].mxu0
    %v3843 = vadd.f32 %v3578, %v3842
    %v3844 = vpop.f32.mrb[0].mxu0
    %3845 = vmatprep.mubr.f32.mxu0 0.0
    %3846 = vmatmul.mubr.f32.gmra.mrb[0].mxu0 %v3585
    %v3847 = vpop.f32.mrb[0].mxu0
    %v3848 = vadd.f32 %v3578, %v3847
    %v3849 = vpop.f32.mrb[0].mxu0
    %3850 = vmatprep.mubr.f32.mxu0 0.0
    %3851 = vmatmul.mubr.f32.gmra.mrb[0].mxu0 %v3588
    %v3852 = vpop.f32.mrb[0].mxu0
    %v3853 = vadd.f32 %v3578, %v3852
    %v3854 = vpop.f32.mrb[0].mxu0
    %3855 = vmatprep.mubr.f32.mxu0 0.0
    %3856 = vmatmul.mubr.f32.gmra.mrb[0].mxu0 %v3591
    %v3857 = vpop.f32.mrb[0].mxu0
    %v3858 = vadd.f32 %v3578, %v3857
    %v3859 = vpop.f32.mrb[0].mxu0
    %3860 = vmatprep.mubr.f32.mxu0 0.0
    %3861 = vmatmul.mubr.f32.gmra.mrb[0].mxu0 %v3594
    %v3862 = vpop.f32.mrb[0].mxu0
    %v3863 = vadd.f32 %v3578, %v3862
    %v3864 = vpop.f32.mrb[0].mxu0
    %3865 = vmatprep.mubr.f32.mxu0 0.0
    %3866 = vmatmul.mubr.f32.gmra.mrb[0].mxu0 %v3597
    %v3867 = vpop.f32.mrb[0].mxu0
    %v3868 = vadd.f32 %v3578, %v3867
    %v3869 = vpop.f32.mrb[0].mxu0
    %3870 = vmatprep.mubr.f32.mxu0 0.0
    %3871 = vmatmul.mubr.f32.gmra.mrb[0].mxu0 %v3600
    %v3872 = vpop.f32.mrb[0].mxu0
    %v3873 = vadd.f32 %v3578, %v3872
    %v3874 = vpop.f32.mrb[0].mxu0
    %3875 = vmatprep.mubr.f32.mxu0 0.0
    %3876 = vmatmul.mubr.f32.gmra.mrb[0].mxu0 %v3603
    %v3877 = vpop.f32.mrb[0].mxu0
    %v3878 = vadd.f32 %v3578, %v3877
    %v3879 = vpop.f32.mrb[0].mxu0
    %3880 = vmatprep.mubr.f32.mxu0 0.0
    %3881 = vmatmul.mubr.f32.gmra.mrb[0].mxu0 %v3606
    %v3882 = vpop.f32.mrb[0].mxu0
    %v3883 = vadd.f32 %v3578, %v3882
    %v3884 = vpop.f32.mrb[0].mxu0
    %3885 = vmatprep.mubr.f32.mxu0 0.0
    %3886 = vmatmul.mubr.f32.gmra.mrb[0].mxu0 %v3609
    %v3887 = vpop.f32.mrb[0].mxu0
    %v3888 = vadd.f32 %v3578, %v3887
    %v3889 = vpop.f32.mrb[0].mxu0
    %3890 = vmatprep.mubr.f32.mxu0 0.0
    %3891 = vmatmul.mubr.f32.gmra.mrb[0].mxu0 %v3612
    %v3892 = vpop.f32.mrb[0].mxu0
    %v3893 = vadd.f32 %v3578, %v3892
    %v3894 = vpop.f32.mrb[0].mxu0
    %3895 = vmatprep.mubr.f32.mxu0 0.0
    %3896 = vmatmul.mubr.f32.gmra.mrb[0].mxu0 %v3615
    %v3897 = vpop.f32.mrb[0].mxu0
    %v3898 = vadd.f32 %v3578, %v3897
    %v3899 = vpop.f32.mrb[0].mxu0
    %3900 = vmatprep.mubr.f32.mxu0 0.0
    %3901 = vmatmul.mubr.f32.gmra.mrb[0].mxu0 %v3618
    %v3902 = vpop.f32.mrb[0].mxu0
    %v3903 = vadd.f32 %v3578, %v3902
    %v3904 = vpop.f32.mrb[0].mxu0
    %3905 = vmatprep.mubr.f32.mxu0 0.0
    %3906 = vmatmul.mubr.f32.gmra.mrb[0].mxu0 %v3621
    %v3907 = vpop.f32.mrb[0].mxu0
    %v3908 = vadd.f32 %v3578, %v3907
    %v3909 = vpop.f32.mrb[0].mxu0
    %3910 = vmatprep.mubr.f32.mxu0 0.0
    %3911 = vmatmul.mubr.f32.gmra.mrb[0].mxu0 %v3624
    %v3912 = vpop.f32.mrb[0].mxu0
    %v3913 = vadd.f32 %v3578, %v3912
    %v3914 = vpop.f32.mrb[0].mxu0
    %3915 = vmatprep.mubr.f32.mxu0 0.0
    %3916 = vmatmul.mubr.f32.gmra.mrb[0].mxu0 %v3627
    %v3917 = vpop.f32.mrb[0].mxu0
    %v3918 = vadd.f32 %v3578, %v3917
    %v3919 = vpop.f32.mrb[0].mxu0
    %3920 = vmatprep.mubr.f32.mxu0 0.0
    %3921 = vmatmul.mubr.f32.gmra.mrb[0].mxu0 %v3630
    %v3922 = vpop.f32.mrb[0].mxu0
    %v3923 = vadd.f32 %v3578, %v3922
    %v3924 = vpop.f32.mrb[0].mxu0
    %3925 = vmatprep.mubr.f32.mxu0 0.0
    %3926 = vmatmul.mubr.f32.gmra.mrb[0].mxu0 %v3633
    %v3927 = vpop.f32.mrb[0].mxu0
    %v3928 = vadd.f32 %v3578, %v3927
    %v3929 = vpop.f32.mrb[0].mxu0
    %3930 = vmatprep.mubr.f32.mxu0 0.0
    %3931 = vmatmul.mubr.f32.gmra.mrb[0].mxu0 %v3636
    %v3932 = vpop.f32.mrb[0].mxu0
    %v3933 = vadd.f32 %v3578, %v3932
    %v3934 = vpop.f32.mrb[0].mxu0
    %3935 = vmatprep.mubr.f32.mxu0 0.0
    %3936 = vmatmul.mubr.f32.gmra.mrb[0].mxu0 %v3639
    %v3937 = vpop.f32.mrb[0].mxu0
    %v3938 = vadd.f32 %v3578, %v3937
    %v3939 = vpop.f32.mrb[0].mxu0
    %3940 = vmatprep.mubr.f32.mxu0 0.0
    %3941 = vmatmul.mubr.f32.gmra.mrb[0].mxu0 %v3642
    %v3942 = vpop.f32.mrb[0].mxu0
    %v3943 = vadd.f32 %v3578, %v3942
    %v3944 = vpop.f32.mrb[0].mxu0
    %3945 = vmatprep.mubr.f32.mxu0 0.0
    %3946 = vmatmul.mubr.f32.gmra.mrb[0].mxu0 %v3645
    %v3947 = vpop.f32.mrb[0].mxu0
    %v3948 = vadd.f32 %v3578, %v3947
    %v3949 = vpop.f32.mrb[0].mxu0
    %3950 = vmatprep.mubr.f32.mxu0 0.0
    %3951 = vmatmul.mubr.f32.gmra.mrb[0].mxu0 %v3648
    %v3952 = vpop.f32.mrb[0].mxu0
    %v3953 = vadd.f32 %v3578, %v3952
    %v3954 = vpop.f32.mrb[0].mxu0
    %3955 = vmatprep.mubr.f32.mxu0 0.0
    %3956 = vmatmul.mubr.f32.gmra.mrb[0].mxu0 %v3651
    %v3957 = vpop.f32.mrb[0].mxu0
    %v3958 = vadd.f32 %v3578, %v3957
    %v3959 = vpop.f32.mrb[0].mxu0
    %3960 = vmatprep.mubr.f32.mxu0 0.0
    %3961 = vmatmul.mubr.f32.gmra.mrb[0].mxu0 %v3654
    %v3962 = vpop.f32.mrb[0].mxu0
    %v3963 = vadd.f32 %v3578, %v3962
    %v3964 = vpop.f32.mrb[0].mxu0
    %3965 = vmatprep.mubr.f32.mxu0 0.0
    %3966 = vmatmul.mubr.f32.gmra.mrb[0].mxu0 %v3657
    %v3967 = vpop.f32.mrb[0].mxu0
    %v3968 = vadd.f32 %v3578, %v3967
    %v3969 = vpop.f32.mrb[0].mxu0
    %3970 = vmatprep.mubr.f32.mxu0 0.0
    %3971 = vmatmul.mubr.f32.gmra.mrb[0].mxu0 %v3660
    %v3972 = vpop.f32.mrb[0].mxu0
    %v3973 = vadd.f32 %v3578, %v3972
    %v3974 = vpop.f32.mrb[0].mxu0
    %3975 = vmatprep.mubr.f32.mxu0 0.0
    %3976 = vmatmul.mubr.f32.gmra.mrb[0].mxu0 %v3663
    %v3977 = vpop.f32.mrb[0].mxu0
    %v3978 = vadd.f32 %v3578, %v3977
    %v3979 = vpop.f32.mrb[0].mxu0
    %3980 = vmatprep.mubr.f32.mxu0 0.0
    %3981 = vmatmul.mubr.f32.gmra.mrb[0].mxu0 %v3666
    %v3982 = vpop.f32.mrb[0].mxu0
    %v3983 = vadd.f32 %v3578, %v3982
    %v3984 = vpop.f32.mrb[0].mxu0
    %3985 = vmatprep.mubr.f32.mxu0 0.0
    %3986 = vmatmul.mubr.f32.gmra.mrb[0].mxu0 %v3669
    %v3987 = vpop.f32.mrb[0].mxu0
    %v3988 = vadd.f32 %v3578, %v3987
    %v3989 = vpop.f32.mrb[0].mxu0
    %3990 = vmatprep.mubr.f32.mxu0 0.0
    %3991 = vmatmul.mubr.f32.gmra.mrb[0].mxu0 %v3672
    %v3992 = vpop.f32.mrb[0].mxu0
    %v3993 = vadd.f32 %v3578, %v3992
    %v3994 = vpop.f32.mrb[0].mxu0
    %3995 = vmatprep.mubr.f32.mxu0 0.0
    %3996 = vmatmul.mubr.f32.gmra.mrb[0].mxu0 %v3675
    %v3997 = vpop.f32.mrb[0].mxu0
    %v3998 = vadd.f32 %v3578, %v3997
    %v3999 = vpop.f32.mrb[0].mxu0
    %4000 = vmatprep.mubr.f32.mxu0 0.0
    %4001 = vmatmul.mubr.f32.gmra.mrb[0].mxu0 %v3678
    %v4002 = vpop.f32.mrb[0].mxu0
    %v4003 = vadd.f32 %v3578, %v4002
    %v4004 = vpop.f32.mrb[0].mxu0
    %4005 = vmatprep.mubr.f32.mxu0 0.0
    %4006 = vmatmul.mubr.f32.gmra.mrb[0].mxu0 %v3681
    %v4007 = vpop.f32.mrb[0].mxu0
    %v4008 = vadd.f32 %v3578, %v4007
    %v4009 = vpop.f32.mrb[0].mxu0
    %4010 = vmatprep.mubr.f32.mxu0 0.0
    %4011 = vmatmul.mubr.f32.gmra.mrb[0].mxu0 %v3684
    %v4012 = vpop.f32.mrb[0].mxu0
    %v4013 = vadd.f32 %v3578, %v4012
    %v4014 = vpop.f32.mrb[0].mxu0
    %4015 = vmatprep.mubr.f32.mxu0 0.0
    %4016 = vmatmul.mubr.f32.gmra.mrb[0].mxu0 %v3687
    %v4017 = vpop.f32.mrb[0].mxu0
    %v4018 = vadd.f32 %v3578, %v4017
    %v4019 = vpop.f32.mrb[0].mxu0
    %4020 = vmatprep.mubr.f32.mxu0 0.0
    %4021 = vmatmul.mubr.f32.gmra.mrb[0].mxu0 %v3690
    %v4022 = vpop.f32.mrb[0].mxu0
    %v4023 = vadd.f32 %v3578, %v4022
    %v4024 = vpop.f32.mrb[0].mxu0
    %4025 = vmatprep.mubr.f32.mxu0 0.0
    %4026 = vmatmul.mubr.f32.gmra.mrb[0].mxu0 %v3693
    %v4027 = vpop.f32.mrb[0].mxu0
    %v4028 = vadd.f32 %v3578, %v4027
    %v4029 = vpop.f32.mrb[0].mxu0
    %4030 = vmatprep.mubr.f32.mxu0 0.0
    %4031 = vmatmul.mubr.f32.gmra.mrb[0].mxu0 %v3696
    %v4032 = vpop.f32.mrb[0].mxu0
    %v4033 = vadd.f32 %v3578, %v4032
    %v4034 = vpop.f32.mrb[0].mxu0
    %4035 = vmatprep.mubr.f32.mxu0 0.0
    %4036 = vmatmul.mubr.f32.gmra.mrb[0].mxu0 %v3699
    %v4037 = vpop.f32.mrb[0].mxu0
    %v4038 = vadd.f32 %v3578, %v4037
    %v4039 = vpop.f32.mrb[0].mxu0
    %4040 = vmatprep.mubr.f32.mxu0 0.0
    %4041 = vmatmul.mubr.f32.gmra.mrb[0].mxu0 %v3702
    %v4042 = vpop.f32.mrb[0].mxu0
    %v4043 = vadd.f32 %v3578, %v4042
    %v4044 = vpop.f32.mrb[0].mxu0
    %4045 = vmatprep.mubr.f32.mxu0 0.0
    %4046 = vmatmul.mubr.f32.gmra.mrb[0].mxu0 %v3705
    %v4047 = vpop.f32.mrb[0].mxu0
    %v4048 = vadd.f32 %v3578, %v4047
    %v4049 = vpop.f32.mrb[0].mxu0
    %4050 = vmatprep.mubr.f32.mxu0 0.0
    %4051 = vmatmul.mubr.f32.gmra.mrb[0].mxu0 %v3708
    %v4052 = vpop.f32.mrb[0].mxu0
    %v4053 = vadd.f32 %v3578, %v4052
    %v4054 = vpop.f32.mrb[0].mxu0
    %4055 = vmatprep.mubr.f32.mxu0 0.0
    %4056 = vmatmul.mubr.f32.gmra.mrb[0].mxu0 %v3711
    %v4057 = vpop.f32.mrb[0].mxu0
    %v4058 = vadd.f32 %v3578, %v4057
    %v4059 = vpop.f32.mrb[0].mxu0
    %4060 = vmatprep.mubr.f32.mxu0 0.0
    %4061 = vmatmul.mubr.f32.gmra.mrb[0].mxu0 %v3714
    %v4062 = vpop.f32.mrb[0].mxu0
    %v4063 = vadd.f32 %v3578, %v4062
    %v4064 = vpop.f32.mrb[0].mxu0
    %4065 = vmatprep.mubr.f32.mxu0 0.0
    %4066 = vmatmul.mubr.f32.gmra.mrb[0].mxu0 %v3717
    %v4067 = vpop.f32.mrb[0].mxu0
    %v4068 = vadd.f32 %v3578, %v4067
    %v4069 = vpop.f32.mrb[0].mxu0
    %4070 = vmatprep.mubr.f32.mxu0 0.0
    %4071 = vmatmul.mubr.f32.gmra.mrb[0].mxu0 %v3720
    %v4072 = vpop.f32.mrb[0].mxu0
    %v4073 = vadd.f32 %v3578, %v4072
    %v4074 = vpop.f32.mrb[0].mxu0
    %4075 = vmatprep.mubr.f32.mxu0 0.0
    %4076 = vmatmul.mubr.f32.gmra.mrb[0].mxu0 %v3723
    %v4077 = vpop.f32.mrb[0].mxu0
    %v4078 = vadd.f32 %v3578, %v4077
    %v4079 = vpop.f32.mrb[0].mxu0
    %4080 = vmatprep.mubr.f32.mxu0 0.0
    %4081 = vmatmul.mubr.f32.gmra.mrb[0].mxu0 %v3726
    %v4082 = vpop.f32.mrb[0].mxu0
    %v4083 = vadd.f32 %v3578, %v4082
    %v4084 = vpop.f32.mrb[0].mxu0
    %4085 = vmatprep.mubr.f32.mxu0 0.0
    %4086 = vmatmul.mubr.f32.gmra.mrb[0].mxu0 %v3729
    %v4087 = vpop.f32.mrb[0].mxu0
    %v4088 = vadd.f32 %v3578, %v4087
    %v4089 = vpop.f32.mrb[0].mxu0
    %4090 = vmatprep.mubr.f32.mxu0 0.0
    %4091 = vmatmul.mubr.f32.gmra.mrb[0].mxu0 %v3732
    %v4092 = vpop.f32.mrb[0].mxu0
    %v4093 = vadd.f32 %v3578, %v4092
    %v4094 = vpop.f32.mrb[0].mxu0
    %4095 = vmatprep.mubr.f32.mxu0 0.0
    %4096 = vmatmul.mubr.f32.gmra.mrb[0].mxu0 %v3735
    %v4097 = vpop.f32.mrb[0].mxu0
    %v4098 = vadd.f32 %v3578, %v4097
    %v4099 = vpop.f32.mrb[0].mxu0
    %4100 = vmatprep.mubr.f32.mxu0 0.0
    %4101 = vmatmul.mubr.f32.gmra.mrb[0].mxu0 %v3738
    %v4102 = vpop.f32.mrb[0].mxu0
    %v4103 = vadd.f32 %v3578, %v4102
    %v4104 = vpop.f32.mrb[0].mxu0
    %4105 = vmatprep.mubr.f32.mxu0 0.0
    %4106 = vmatmul.mubr.f32.gmra.mrb[0].mxu0 %v3741
    %v4107 = vpop.f32.mrb[0].mxu0
    %v4108 = vadd.f32 %v3578, %v4107
    %v4109 = vpop.f32.mrb[0].mxu0
    %4110 = vmatprep.mubr.f32.mxu0 0.0
    %4111 = vmatmul.mubr.f32.gmra.mrb[0].mxu0 %v3744
    %v4112 = vpop.f32.mrb[0].mxu0
    %v4113 = vadd.f32 %v3578, %v4112
    %v4114 = vpop.f32.mrb[0].mxu0
    %4115 = vmatprep.mubr.f32.mxu0 0.0
    %4116 = vmatmul.mubr.f32.gmra.mrb[0].mxu0 %v3747
    %v4117 = vpop.f32.mrb[0].mxu0
    %v4118 = vadd.f32 %v3578, %v4117
    %v4119 = vpop.f32.mrb[0].mxu0
    %4120 = vmatprep.mubr.f32.mxu0 0.0
    %4121 = vmatmul.mubr.f32.gmra.mrb[0].mxu0 %v3750
    %v4122 = vpop.f32.mrb[0].mxu0
    %v4123 = vadd.f32 %v3578, %v4122
    %v4124 = vpop.f32.mrb[0].mxu0
    %4125 = vmatprep.mubr.f32.mxu0 0.0
    %4126 = vmatmul.mubr.f32.gmra.mrb[0].mxu0 %v3753
    %v4127 = vpop.f32.mrb[0].mxu0
    %v4128 = vadd.f32 %v3578, %v4127
    %v4129 = vpop.f32.mrb[0].mxu0
    %4130 = vmatprep.mubr.f32.mxu0 0.0
    %4131 = vmatmul.mubr.f32.gmra.mrb[0].mxu0 %v3756
    %v4132 = vpop.f32.mrb[0].mxu0
    %v4133 = vadd.f32 %v3578, %v4132
    %v4134 = vpop.f32.mrb[0].mxu0
    %4135 = vmatprep.mubr.f32.mxu0 0.0
    %4136 = vmatmul.mubr.f32.gmra.mrb[0].mxu0 %v3759
    %v4137 = vpop.f32.mrb[0].mxu0
    %v4138 = vadd.f32 %v3578, %v4137
    %v4139 = vpop.f32.mrb[0].mxu0
    %4140 = vmatprep.mubr.f32.mxu0 0.0
    %4141 = vmatmul.mubr.f32.gmra.mrb[0].mxu0 %v3762
    %v4142 = vpop.f32.mrb[0].mxu0
    %v4143 = vadd.f32 %v3578, %v4142
    %v4144 = vpop.f32.mrb[0].mxu0
    %4145 = vmatprep.mubr.f32.mxu0 0.0
    %4146 = vmatmul.mubr.f32.gmra.mrb[0].mxu0 %v3765
    %v4147 = vpop.f32.mrb[0].mxu0
    %v4148 = vadd.f32 %v3578, %v4147
    %v4149 = vpop.f32.mrb[0].mxu0
    %4150 = vmatprep.mubr.f32.mxu0 0.0
    %4151 = vmatmul.mubr.f32.gmra.mrb[0].mxu0 %v3768
    %v4152 = vpop.f32.mrb[0].mxu0
    %v4153 = vadd.f32 %v3578, %v4152
    %v4154 = vpop.f32.mrb[0].mxu0
    %4155 = vmatprep.mubr.f32.mxu0 0.0
    %4156 = vmatmul.mubr.f32.gmra.mrb[0].mxu0 %v3771
    %v4157 = vpop.f32.mrb[0].mxu0
    %v4158 = vadd.f32 %v3578, %v4157
    %v4159 = vpop.f32.mrb[0].mxu0
    %4160 = vdwg.mxu0
    %v4161 = vmax.f32 %v3843, 0.0
    %v4162 = vmax.f32 %v3848, 0.0
    %v4163 = vmax.f32 %v3853, 0.0
    %v4164 = vmax.f32 %v3858, 0.0
    %v4165 = vmax.f32 %v3863, 0.0
    %v4166 = vmax.f32 %v3868, 0.0
    %v4167 = vmax.f32 %v3873, 0.0
    %v4168 = vmax.f32 %v3878, 0.0
    %v4169 = vmax.f32 %v3883, 0.0
    %v4170 = vmax.f32 %v3888, 0.0
    %v4171 = vmax.f32 %v3893, 0.0
    %v4172 = vmax.f32 %v3898, 0.0
    %v4173 = vmax.f32 %v3903, 0.0
    %v4174 = vmax.f32 %v3908, 0.0
    %v4175 = vmax.f32 %v3913, 0.0
    %v4176 = vmax.f32 %v3918, 0.0
    %v4177 = vmax.f32 %v3923, 0.0
    %v4178 = vmax.f32 %v3928, 0.0
    %v4179 = vmax.f32 %v3933, 0.0
    %v4180 = vmax.f32 %v3938, 0.0
    %v4181 = vmax.f32 %v3943, 0.0
    %v4182 = vmax.f32 %v3948, 0.0
    %v4183 = vmax.f32 %v3953, 0.0
    %v4184 = vmax.f32 %v3958, 0.0
    %v4185 = vmax.f32 %v3963, 0.0
    %v4186 = vmax.f32 %v3968, 0.0
    %v4187 = vmax.f32 %v3973, 0.0
    %v4188 = vmax.f32 %v3978, 0.0
    %v4189 = vmax.f32 %v3983, 0.0
    %v4190 = vmax.f32 %v3988, 0.0
    %v4191 = vmax.f32 %v3993, 0.0
    %v4192 = vmax.f32 %v3998, 0.0
    %v4193 = vmax.f32 %v4003, 0.0
    %v4194 = vmax.f32 %v4008, 0.0
    %v4195 = vmax.f32 %v4013, 0.0
    %v4196 = vmax.f32 %v4018, 0.0
    %v4197 = vmax.f32 %v4023, 0.0
    %v4198 = vmax.f32 %v4028, 0.0
    %v4199 = vmax.f32 %v4033, 0.0
    %v4200 = vmax.f32 %v4038, 0.0
    %v4201 = vmax.f32 %v4043, 0.0
    %v4202 = vmax.f32 %v4048, 0.0
    %v4203 = vmax.f32 %v4053, 0.0
    %v4204 = vmax.f32 %v4058, 0.0
    %v4205 = vmax.f32 %v4063, 0.0
    %v4206 = vmax.f32 %v4068, 0.0
    %v4207 = vmax.f32 %v4073, 0.0
    %v4208 = vmax.f32 %v4078, 0.0
    %v4209 = vmax.f32 %v4083, 0.0
    %v4210 = vmax.f32 %v4088, 0.0
    %v4211 = vmax.f32 %v4093, 0.0
    %v4212 = vmax.f32 %v4098, 0.0
    %v4213 = vmax.f32 %v4103, 0.0
    %v4214 = vmax.f32 %v4108, 0.0
    %v4215 = vmax.f32 %v4113, 0.0
    %v4216 = vmax.f32 %v4118, 0.0
    %v4217 = vmax.f32 %v4123, 0.0
    %v4218 = vmax.f32 %v4128, 0.0
    %v4219 = vmax.f32 %v4133, 0.0
    %v4220 = vmax.f32 %v4138, 0.0
    %v4221 = vmax.f32 %v4143, 0.0
    %v4222 = vmax.f32 %v4148, 0.0
    %v4223 = vmax.f32 %v4153, 0.0
    %v4224 = vmax.f32 %v4158, 0.0
    %s4225 = scalar_lea.vmem [#allocation3], 16
    %4226 = vst.msk [vmem:[%s4225 + $0x1] sm:$0xff] %vm223, %v4161
    %4227 = vst.msk [vmem:[%s4225 + $0x11] sm:$0xff] %vm223, %v4162
    %4228 = vst.msk [vmem:[%s4225 + $0x21] sm:$0xff] %vm223, %v4163
    %4229 = vst.msk [vmem:[%s4225 + $0x31] sm:$0xff] %vm223, %v4164
    %4230 = vst.msk [vmem:[%s4225 + $0x41] sm:$0xff] %vm223, %v4165
    %4231 = vst.msk [vmem:[%s4225 + $0x51] sm:$0xff] %vm223, %v4166
    %4232 = vst.msk [vmem:[%s4225 + $0x61] sm:$0xff] %vm223, %v4167
    %4233 = vst.msk [vmem:[%s4225 + $0x71] sm:$0xff] %vm223, %v4168
    %4234 = vst.msk [vmem:[%s4225 + $0xa1] sm:$0xff] %vm223, %v4169
    %4235 = vst.msk [vmem:[%s4225 + $0xb1] sm:$0xff] %vm223, %v4170
    %4236 = vst.msk [vmem:[%s4225 + $0xc1] sm:$0xff] %vm223, %v4171
    %4237 = vst.msk [vmem:[%s4225 + $0xd1] sm:$0xff] %vm223, %v4172
    %4238 = vst.msk [vmem:[%s4225 + $0xe1] sm:$0xff] %vm223, %v4173
    %4239 = vst.msk [vmem:[%s4225 + $0xf1] sm:$0xff] %vm223, %v4174
    %4240 = vst.msk [vmem:[%s4225 + $0x101] sm:$0xff] %vm223, %v4175
    %4241 = vst.msk [vmem:[%s4225 + $0x111] sm:$0xff] %vm223, %v4176
    %4242 = vst.msk [vmem:[%s4225 + $0x141] sm:$0xff] %vm223, %v4177
    %4243 = vst.msk [vmem:[%s4225 + $0x151] sm:$0xff] %vm223, %v4178
    %4244 = vst.msk [vmem:[%s4225 + $0x161] sm:$0xff] %vm223, %v4179
    %4245 = vst.msk [vmem:[%s4225 + $0x171] sm:$0xff] %vm223, %v4180
    %4246 = vst.msk [vmem:[%s4225 + $0x181] sm:$0xff] %vm223, %v4181
    %4247 = vst.msk [vmem:[%s4225 + $0x191] sm:$0xff] %vm223, %v4182
    %4248 = vst.msk [vmem:[%s4225 + $0x1a1] sm:$0xff] %vm223, %v4183
    %4249 = vst.msk [vmem:[%s4225 + $0x1b1] sm:$0xff] %vm223, %v4184
    %4250 = vst.msk [vmem:[%s4225 + $0x1e1] sm:$0xff] %vm223, %v4185
    %4251 = vst.msk [vmem:[%s4225 + $0x1f1] sm:$0xff] %vm223, %v4186
    %4252 = vst.msk [vmem:[%s4225 + $0x201] sm:$0xff] %vm223, %v4187
    %4253 = vst.msk [vmem:[%s4225 + $0x211] sm:$0xff] %vm223, %v4188
    %4254 = vst.msk [vmem:[%s4225 + $0x221] sm:$0xff] %vm223, %v4189
    %4255 = vst.msk [vmem:[%s4225 + $0x231] sm:$0xff] %vm223, %v4190
    %4256 = vst.msk [vmem:[%s4225 + $0x241] sm:$0xff] %vm223, %v4191
    %4257 = vst.msk [vmem:[%s4225 + $0x251] sm:$0xff] %vm223, %v4192
    %4258 = vst.msk [vmem:[%s4225 + $0x281] sm:$0xff] %vm223, %v4193
    %4259 = vst.msk [vmem:[%s4225 + $0x291] sm:$0xff] %vm223, %v4194
    %4260 = vst.msk [vmem:[%s4225 + $0x2a1] sm:$0xff] %vm223, %v4195
    %4261 = vst.msk [vmem:[%s4225 + $0x2b1] sm:$0xff] %vm223, %v4196
    %4262 = vst.msk [vmem:[%s4225 + $0x2c1] sm:$0xff] %vm223, %v4197
    %4263 = vst.msk [vmem:[%s4225 + $0x2d1] sm:$0xff] %vm223, %v4198
    %4264 = vst.msk [vmem:[%s4225 + $0x2e1] sm:$0xff] %vm223, %v4199
    %4265 = vst.msk [vmem:[%s4225 + $0x2f1] sm:$0xff] %vm223, %v4200
    %4266 = vst.msk [vmem:[%s4225 + $0x321] sm:$0xff] %vm223, %v4201
    %4267 = vst.msk [vmem:[%s4225 + $0x331] sm:$0xff] %vm223, %v4202
    %4268 = vst.msk [vmem:[%s4225 + $0x341] sm:$0xff] %vm223, %v4203
    %4269 = vst.msk [vmem:[%s4225 + $0x351] sm:$0xff] %vm223, %v4204
    %4270 = vst.msk [vmem:[%s4225 + $0x361] sm:$0xff] %vm223, %v4205
    %4271 = vst.msk [vmem:[%s4225 + $0x371] sm:$0xff] %vm223, %v4206
    %4272 = vst.msk [vmem:[%s4225 + $0x381] sm:$0xff] %vm223, %v4207
    %4273 = vst.msk [vmem:[%s4225 + $0x391] sm:$0xff] %vm223, %v4208
    %4274 = vst.msk [vmem:[%s4225 + $0x3c1] sm:$0xff] %vm223, %v4209
    %4275 = vst.msk [vmem:[%s4225 + $0x3d1] sm:$0xff] %vm223, %v4210
    %4276 = vst.msk [vmem:[%s4225 + $0x3e1] sm:$0xff] %vm223, %v4211
    %4277 = vst.msk [vmem:[%s4225 + $0x3f1] sm:$0xff] %vm223, %v4212
    %4278 = vst.msk [vmem:[%s4225 + $0x401] sm:$0xff] %vm223, %v4213
    %4279 = vst.msk [vmem:[%s4225 + $0x411] sm:$0xff] %vm223, %v4214
    %4280 = vst.msk [vmem:[%s4225 + $0x421] sm:$0xff] %vm223, %v4215
    %4281 = vst.msk [vmem:[%s4225 + $0x431] sm:$0xff] %vm223, %v4216
    %4282 = vst.msk [vmem:[%s4225 + $0x461] sm:$0xff] %vm223, %v4217
    %4283 = vst.msk [vmem:[%s4225 + $0x471] sm:$0xff] %vm223, %v4218
    %4284 = vst.msk [vmem:[%s4225 + $0x481] sm:$0xff] %vm223, %v4219
    %4285 = vst.msk [vmem:[%s4225 + $0x491] sm:$0xff] %vm223, %v4220
    %4286 = vst.msk [vmem:[%s4225 + $0x4a1] sm:$0xff] %vm223, %v4221
    %4287 = vst.msk [vmem:[%s4225 + $0x4b1] sm:$0xff] %vm223, %v4222
    %4288 = vst.msk [vmem:[%s4225 + $0x4c1] sm:$0xff] %vm223, %v4223
    %4289 = vst.msk [vmem:[%s4225 + $0x4d1] sm:$0xff] %vm223, %v4224
    %s4290 = scalar_lea.vmem [#allocation3], 960
    %v4291 = vld [vmem:[%s4290] sm:$0xff]
    %v4292 = vld [vmem:[%s4290 + $0x10] sm:$0xff]
    %v4293 = vld [vmem:[%s4290 + $0x20] sm:$0xff]
    %v4294 = vld [vmem:[%s4290 + $0x30] sm:$0xff]
    %v4295 = vld [vmem:[%s4290 + $0x40] sm:$0xff]
    %v4296 = vld [vmem:[%s4290 + $0x50] sm:$0xff]
    %v4297 = vld [vmem:[%s4290 + $0x60] sm:$0xff]
    %v4298 = vld [vmem:[%s4290 + $0x70] sm:$0xff]
    %v4299 = vld [vmem:[%s4290 + $0xa0] sm:$0xff]
    %v4300 = vld [vmem:[%s4290 + $0xb0] sm:$0xff]
    %v4301 = vld [vmem:[%s4290 + $0xc0] sm:$0xff]
    %v4302 = vld [vmem:[%s4290 + $0xd0] sm:$0xff]
    %v4303 = vld [vmem:[%s4290 + $0xe0] sm:$0xff]
    %v4304 = vld [vmem:[%s4290 + $0xf0] sm:$0xff]
    %v4305 = vld [vmem:[%s4290 + $0x100] sm:$0xff]
    %v4306 = vld [vmem:[%s4290 + $0x110] sm:$0xff]
    %4307 = vst.msk [vmem:[#allocation5] sm:$0xff] %vm223, %v4291
    %4308 = vst.msk [vmem:[#allocation5 + $0x8] sm:$0xff] %vm223, %v4292
    %4309 = vst.msk [vmem:[#allocation5 + $0x10] sm:$0xff] %vm223, %v4293
    %4310 = vst.msk [vmem:[#allocation5 + $0x18] sm:$0xff] %vm223, %v4294
    %4311 = vst.msk [vmem:[#allocation5 + $0x20] sm:$0xff] %vm223, %v4295
    %4312 = vst.msk [vmem:[#allocation5 + $0x28] sm:$0xff] %vm223, %v4296
    %4313 = vst.msk [vmem:[#allocation5 + $0x30] sm:$0xff] %vm223, %v4297
    %4314 = vst.msk [vmem:[#allocation5 + $0x38] sm:$0xff] %vm223, %v4298
    %4315 = vst.msk [vmem:[#allocation5 + $0x40] sm:$0xff] %vm223, %v4299
    %4316 = vst.msk [vmem:[#allocation5 + $0x48] sm:$0xff] %vm223, %v4300
    %4317 = vst.msk [vmem:[#allocation5 + $0x50] sm:$0xff] %vm223, %v4301
    %4318 = vst.msk [vmem:[#allocation5 + $0x58] sm:$0xff] %vm223, %v4302
    %4319 = vst.msk [vmem:[#allocation5 + $0x60] sm:$0xff] %vm223, %v4303
    %4320 = vst.msk [vmem:[#allocation5 + $0x68] sm:$0xff] %vm223, %v4304
    %4321 = vst.msk [vmem:[#allocation5 + $0x70] sm:$0xff] %vm223, %v4305
    %4322 = vst.msk [vmem:[#allocation5 + $0x78] sm:$0xff] %vm223, %v4306
    %s4323 = scalar_lea.vmem [#allocation3], 640
    %v4324 = vld [vmem:[%s4323 + $0x1] sm:$0xff]
    %v4325 = vld [vmem:[%s4323 + $0x11] sm:$0xff]
    %v4326 = vld [vmem:[%s4323 + $0x21] sm:$0xff]
    %v4327 = vld [vmem:[%s4323 + $0x31] sm:$0xff]
    %v4328 = vld [vmem:[%s4323 + $0x41] sm:$0xff]
    %v4329 = vld [vmem:[%s4323 + $0x51] sm:$0xff]
    %v4330 = vld [vmem:[%s4323 + $0x61] sm:$0xff]
    %v4331 = vld [vmem:[%s4323 + $0x71] sm:$0xff]
    %v4332 = vld [vmem:[%s4323 + $0xa1] sm:$0xff]
    %v4333 = vld [vmem:[%s4323 + $0xb1] sm:$0xff]
    %v4334 = vld [vmem:[%s4323 + $0xc1] sm:$0xff]
    %v4335 = vld [vmem:[%s4323 + $0xd1] sm:$0xff]
    %v4336 = vld [vmem:[%s4323 + $0xe1] sm:$0xff]
    %v4337 = vld [vmem:[%s4323 + $0xf1] sm:$0xff]
    %v4338 = vld [vmem:[%s4323 + $0x101] sm:$0xff]
    %v4339 = vld [vmem:[%s4323 + $0x111] sm:$0xff]
    %4356 = vrot.lane.b32.xlu0 %v4324, 8
    %v4357 = vpop.permute.xlu0 %4356
    %4358 = vrot.lane.b32.xlu0 %v4325, 8
    %v4359 = vpop.permute.xlu0 %4358
    %4360 = vrot.lane.b32.xlu0 %v4326, 8
    %v4361 = vpop.permute.xlu0 %4360
    %4362 = vrot.lane.b32.xlu0 %v4327, 8
    %v4363 = vpop.permute.xlu0 %4362
    %4364 = vrot.lane.b32.xlu0 %v4328, 8
    %v4365 = vpop.permute.xlu0 %4364
    %4366 = vrot.lane.b32.xlu0 %v4329, 8
    %v4367 = vpop.permute.xlu0 %4366
    %4368 = vrot.lane.b32.xlu0 %v4330, 8
    %v4369 = vpop.permute.xlu0 %4368
    %4370 = vrot.lane.b32.xlu0 %v4331, 8
    %v4371 = vpop.permute.xlu0 %4370
    %4372 = vrot.lane.b32.xlu0 %v4332, 8
    %v4373 = vpop.permute.xlu0 %4372
    %4374 = vrot.lane.b32.xlu0 %v4333, 8
    %v4375 = vpop.permute.xlu0 %4374
    %4376 = vrot.lane.b32.xlu0 %v4334, 8
    %v4377 = vpop.permute.xlu0 %4376
    %4378 = vrot.lane.b32.xlu0 %v4335, 8
    %v4379 = vpop.permute.xlu0 %4378
    %4380 = vrot.lane.b32.xlu0 %v4336, 8
    %v4381 = vpop.permute.xlu0 %4380
    %4382 = vrot.lane.b32.xlu0 %v4337, 8
    %v4383 = vpop.permute.xlu0 %4382
    %4384 = vrot.lane.b32.xlu0 %v4338, 8
    %v4385 = vpop.permute.xlu0 %4384
    %4386 = vrot.lane.b32.xlu0 %v4339, 8
    %v4387 = vpop.permute.xlu0 %4386
    %vm4404 = vcmask 130112
    %4405 = vst.msk [vmem:[#allocation5] sm:$0xff] %vm4404, %v4357
    %4406 = vst.msk [vmem:[#allocation5 + $0x8] sm:$0xff] %vm4404, %v4359
    %4407 = vst.msk [vmem:[#allocation5 + $0x10] sm:$0xff] %vm4404, %v4361
    %4408 = vst.msk [vmem:[#allocation5 + $0x18] sm:$0xff] %vm4404, %v4363
    %4409 = vst.msk [vmem:[#allocation5 + $0x20] sm:$0xff] %vm4404, %v4365
    %4410 = vst.msk [vmem:[#allocation5 + $0x28] sm:$0xff] %vm4404, %v4367
    %4411 = vst.msk [vmem:[#allocation5 + $0x30] sm:$0xff] %vm4404, %v4369
    %4412 = vst.msk [vmem:[#allocation5 + $0x38] sm:$0xff] %vm4404, %v4371
    %4413 = vst.msk [vmem:[#allocation5 + $0x40] sm:$0xff] %vm4404, %v4373
    %4414 = vst.msk [vmem:[#allocation5 + $0x48] sm:$0xff] %vm4404, %v4375
    %4415 = vst.msk [vmem:[#allocation5 + $0x50] sm:$0xff] %vm4404, %v4377
    %4416 = vst.msk [vmem:[#allocation5 + $0x58] sm:$0xff] %vm4404, %v4379
    %4417 = vst.msk [vmem:[#allocation5 + $0x60] sm:$0xff] %vm4404, %v4381
    %4418 = vst.msk [vmem:[#allocation5 + $0x68] sm:$0xff] %vm4404, %v4383
    %4419 = vst.msk [vmem:[#allocation5 + $0x70] sm:$0xff] %vm4404, %v4385
    %4420 = vst.msk [vmem:[#allocation5 + $0x78] sm:$0xff] %vm4404, %v4387
    %v4421 = vld [vmem:[%s4290 + $0x1] sm:$0xff]
    %v4422 = vld [vmem:[%s4290 + $0x11] sm:$0xff]
    %v4423 = vld [vmem:[%s4290 + $0x21] sm:$0xff]
    %v4424 = vld [vmem:[%s4290 + $0x31] sm:$0xff]
    %v4425 = vld [vmem:[%s4290 + $0x41] sm:$0xff]
    %v4426 = vld [vmem:[%s4290 + $0x51] sm:$0xff]
    %v4427 = vld [vmem:[%s4290 + $0x61] sm:$0xff]
    %v4428 = vld [vmem:[%s4290 + $0x71] sm:$0xff]
    %v4429 = vld [vmem:[%s4290 + $0xa1] sm:$0xff]
    %v4430 = vld [vmem:[%s4290 + $0xb1] sm:$0xff]
    %v4431 = vld [vmem:[%s4290 + $0xc1] sm:$0xff]
    %v4432 = vld [vmem:[%s4290 + $0xd1] sm:$0xff]
    %v4433 = vld [vmem:[%s4290 + $0xe1] sm:$0xff]
    %v4434 = vld [vmem:[%s4290 + $0xf1] sm:$0xff]
    %v4435 = vld [vmem:[%s4290 + $0x101] sm:$0xff]
    %v4436 = vld [vmem:[%s4290 + $0x111] sm:$0xff]
    %4453 = vrot.lane.b32.xlu0 %v4421, 16
    %v4454 = vpop.permute.xlu0 %4453
    %4455 = vrot.lane.b32.xlu0 %v4422, 16
    %v4456 = vpop.permute.xlu0 %4455
    %4457 = vrot.lane.b32.xlu0 %v4423, 16
    %v4458 = vpop.permute.xlu0 %4457
    %4459 = vrot.lane.b32.xlu0 %v4424, 16
    %v4460 = vpop.permute.xlu0 %4459
    %4461 = vrot.lane.b32.xlu0 %v4425, 16
    %v4462 = vpop.permute.xlu0 %4461
    %4463 = vrot.lane.b32.xlu0 %v4426, 16
    %v4464 = vpop.permute.xlu0 %4463
    %4465 = vrot.lane.b32.xlu0 %v4427, 16
    %v4466 = vpop.permute.xlu0 %4465
    %4467 = vrot.lane.b32.xlu0 %v4428, 16
    %v4468 = vpop.permute.xlu0 %4467
    %4469 = vrot.lane.b32.xlu0 %v4429, 16
    %v4470 = vpop.permute.xlu0 %4469
    %4471 = vrot.lane.b32.xlu0 %v4430, 16
    %v4472 = vpop.permute.xlu0 %4471
    %4473 = vrot.lane.b32.xlu0 %v4431, 16
    %v4474 = vpop.permute.xlu0 %4473
    %4475 = vrot.lane.b32.xlu0 %v4432, 16
    %v4476 = vpop.permute.xlu0 %4475
    %4477 = vrot.lane.b32.xlu0 %v4433, 16
    %v4478 = vpop.permute.xlu0 %4477
    %4479 = vrot.lane.b32.xlu0 %v4434, 16
    %v4480 = vpop.permute.xlu0 %4479
    %4481 = vrot.lane.b32.xlu0 %v4435, 16
    %v4482 = vpop.permute.xlu0 %4481
    %4483 = vrot.lane.b32.xlu0 %v4436, 16
    %v4484 = vpop.permute.xlu0 %4483
    %vm4501 = vcmask 195712
    %4502 = vst.msk [vmem:[#allocation5] sm:$0xff] %vm4501, %v4454
    %4503 = vst.msk [vmem:[#allocation5 + $0x8] sm:$0xff] %vm4501, %v4456
    %4504 = vst.msk [vmem:[#allocation5 + $0x10] sm:$0xff] %vm4501, %v4458
    %4505 = vst.msk [vmem:[#allocation5 + $0x18] sm:$0xff] %vm4501, %v4460
    %4506 = vst.msk [vmem:[#allocation5 + $0x20] sm:$0xff] %vm4501, %v4462
    %4507 = vst.msk [vmem:[#allocation5 + $0x28] sm:$0xff] %vm4501, %v4464
    %4508 = vst.msk [vmem:[#allocation5 + $0x30] sm:$0xff] %vm4501, %v4466
    %4509 = vst.msk [vmem:[#allocation5 + $0x38] sm:$0xff] %vm4501, %v4468
    %4510 = vst.msk [vmem:[#allocation5 + $0x40] sm:$0xff] %vm4501, %v4470
    %4511 = vst.msk [vmem:[#allocation5 + $0x48] sm:$0xff] %vm4501, %v4472
    %4512 = vst.msk [vmem:[#allocation5 + $0x50] sm:$0xff] %vm4501, %v4474
    %4513 = vst.msk [vmem:[#allocation5 + $0x58] sm:$0xff] %vm4501, %v4476
    %4514 = vst.msk [vmem:[#allocation5 + $0x60] sm:$0xff] %vm4501, %v4478
    %4515 = vst.msk [vmem:[#allocation5 + $0x68] sm:$0xff] %vm4501, %v4480
    %4516 = vst.msk [vmem:[#allocation5 + $0x70] sm:$0xff] %vm4501, %v4482
    %4517 = vst.msk [vmem:[#allocation5 + $0x78] sm:$0xff] %vm4501, %v4484
    %v4518 = vld [vmem:[%s4323 + $0x2] sm:$0xff]
    %v4519 = vld [vmem:[%s4323 + $0x12] sm:$0xff]
    %v4520 = vld [vmem:[%s4323 + $0x22] sm:$0xff]
    %v4521 = vld [vmem:[%s4323 + $0x32] sm:$0xff]
    %v4522 = vld [vmem:[%s4323 + $0x42] sm:$0xff]
    %v4523 = vld [vmem:[%s4323 + $0x52] sm:$0xff]
    %v4524 = vld [vmem:[%s4323 + $0x62] sm:$0xff]
    %v4525 = vld [vmem:[%s4323 + $0x72] sm:$0xff]
    %v4526 = vld [vmem:[%s4323 + $0xa2] sm:$0xff]
    %v4527 = vld [vmem:[%s4323 + $0xb2] sm:$0xff]
    %v4528 = vld [vmem:[%s4323 + $0xc2] sm:$0xff]
    %v4529 = vld [vmem:[%s4323 + $0xd2] sm:$0xff]
    %v4530 = vld [vmem:[%s4323 + $0xe2] sm:$0xff]
    %v4531 = vld [vmem:[%s4323 + $0xf2] sm:$0xff]
    %v4532 = vld [vmem:[%s4323 + $0x102] sm:$0xff]
    %v4533 = vld [vmem:[%s4323 + $0x112] sm:$0xff]
    %4550 = vrot.lane.b32.xlu0 %v4518, 24
    %v4551 = vpop.permute.xlu0 %4550
    %4552 = vrot.lane.b32.xlu0 %v4519, 24
    %v4553 = vpop.permute.xlu0 %4552
    %4554 = vrot.lane.b32.xlu0 %v4520, 24
    %v4555 = vpop.permute.xlu0 %4554
    %4556 = vrot.lane.b32.xlu0 %v4521, 24
    %v4557 = vpop.permute.xlu0 %4556
    %4558 = vrot.lane.b32.xlu0 %v4522, 24
    %v4559 = vpop.permute.xlu0 %4558
    %4560 = vrot.lane.b32.xlu0 %v4523, 24
    %v4561 = vpop.permute.xlu0 %4560
    %4562 = vrot.lane.b32.xlu0 %v4524, 24
    %v4563 = vpop.permute.xlu0 %4562
    %4564 = vrot.lane.b32.xlu0 %v4525, 24
    %v4565 = vpop.permute.xlu0 %4564
    %4566 = vrot.lane.b32.xlu0 %v4526, 24
    %v4567 = vpop.permute.xlu0 %4566
    %4568 = vrot.lane.b32.xlu0 %v4527, 24
    %v4569 = vpop.permute.xlu0 %4568
    %4570 = vrot.lane.b32.xlu0 %v4528, 24
    %v4571 = vpop.permute.xlu0 %4570
    %4572 = vrot.lane.b32.xlu0 %v4529, 24
    %v4573 = vpop.permute.xlu0 %4572
    %4574 = vrot.lane.b32.xlu0 %v4530, 24
    %v4575 = vpop.permute.xlu0 %4574
    %4576 = vrot.lane.b32.xlu0 %v4531, 24
    %v4577 = vpop.permute.xlu0 %4576
    %4578 = vrot.lane.b32.xlu0 %v4532, 24
    %v4579 = vpop.permute.xlu0 %4578
    %4580 = vrot.lane.b32.xlu0 %v4533, 24
    %v4581 = vpop.permute.xlu0 %4580
    %vm4598 = vcmask 261312
    %4599 = vst.msk [vmem:[#allocation5] sm:$0xff] %vm4598, %v4551
    %4600 = vst.msk [vmem:[#allocation5 + $0x8] sm:$0xff] %vm4598, %v4553
    %4601 = vst.msk [vmem:[#allocation5 + $0x10] sm:$0xff] %vm4598, %v4555
    %4602 = vst.msk [vmem:[#allocation5 + $0x18] sm:$0xff] %vm4598, %v4557
    %4603 = vst.msk [vmem:[#allocation5 + $0x20] sm:$0xff] %vm4598, %v4559
    %4604 = vst.msk [vmem:[#allocation5 + $0x28] sm:$0xff] %vm4598, %v4561
    %4605 = vst.msk [vmem:[#allocation5 + $0x30] sm:$0xff] %vm4598, %v4563
    %4606 = vst.msk [vmem:[#allocation5 + $0x38] sm:$0xff] %vm4598, %v4565
    %4607 = vst.msk [vmem:[#allocation5 + $0x40] sm:$0xff] %vm4598, %v4567
    %4608 = vst.msk [vmem:[#allocation5 + $0x48] sm:$0xff] %vm4598, %v4569
    %4609 = vst.msk [vmem:[#allocation5 + $0x50] sm:$0xff] %vm4598, %v4571
    %4610 = vst.msk [vmem:[#allocation5 + $0x58] sm:$0xff] %vm4598, %v4573
    %4611 = vst.msk [vmem:[#allocation5 + $0x60] sm:$0xff] %vm4598, %v4575
    %4612 = vst.msk [vmem:[#allocation5 + $0x68] sm:$0xff] %vm4598, %v4577
    %4613 = vst.msk [vmem:[#allocation5 + $0x70] sm:$0xff] %vm4598, %v4579
    %4614 = vst.msk [vmem:[#allocation5 + $0x78] sm:$0xff] %vm4598, %v4581
    %s4615 = scalar_lea.vmem [#allocation3], 336
    %v4616 = vld [vmem:[%s4615] sm:$0xff]
    %v4617 = vld [vmem:[%s4615 + $0x10] sm:$0xff]
    %v4618 = vld [vmem:[%s4615 + $0x20] sm:$0xff]
    %v4619 = vld [vmem:[%s4615 + $0x30] sm:$0xff]
    %v4620 = vld [vmem:[%s4615 + $0x40] sm:$0xff]
    %v4621 = vld [vmem:[%s4615 + $0x50] sm:$0xff]
    %v4622 = vld [vmem:[%s4615 + $0x60] sm:$0xff]
    %v4623 = vld [vmem:[%s4615 + $0x70] sm:$0xff]
    %v4624 = vld [vmem:[%s4615 + $0xa0] sm:$0xff]
    %v4625 = vld [vmem:[%s4615 + $0xb0] sm:$0xff]
    %v4626 = vld [vmem:[%s4615 + $0xc0] sm:$0xff]
    %v4627 = vld [vmem:[%s4615 + $0xd0] sm:$0xff]
    %v4628 = vld [vmem:[%s4615 + $0xe0] sm:$0xff]
    %v4629 = vld [vmem:[%s4615 + $0xf0] sm:$0xff]
    %v4630 = vld [vmem:[%s4615 + $0x100] sm:$0xff]
    %v4631 = vld [vmem:[%s4615 + $0x110] sm:$0xff]
    %4648 = vrot.lane.b32.xlu0 %v4616, 32
    %v4649 = vpop.permute.xlu0 %4648
    %4650 = vrot.lane.b32.xlu0 %v4617, 32
    %v4651 = vpop.permute.xlu0 %4650
    %4652 = vrot.lane.b32.xlu0 %v4618, 32
    %v4653 = vpop.permute.xlu0 %4652
    %4654 = vrot.lane.b32.xlu0 %v4619, 32
    %v4655 = vpop.permute.xlu0 %4654
    %4656 = vrot.lane.b32.xlu0 %v4620, 32
    %v4657 = vpop.permute.xlu0 %4656
    %4658 = vrot.lane.b32.xlu0 %v4621, 32
    %v4659 = vpop.permute.xlu0 %4658
    %4660 = vrot.lane.b32.xlu0 %v4622, 32
    %v4661 = vpop.permute.xlu0 %4660
    %4662 = vrot.lane.b32.xlu0 %v4623, 32
    %v4663 = vpop.permute.xlu0 %4662
    %4664 = vrot.lane.b32.xlu0 %v4624, 32
    %v4665 = vpop.permute.xlu0 %4664
    %4666 = vrot.lane.b32.xlu0 %v4625, 32
    %v4667 = vpop.permute.xlu0 %4666
    %4668 = vrot.lane.b32.xlu0 %v4626, 32
    %v4669 = vpop.permute.xlu0 %4668
    %4670 = vrot.lane.b32.xlu0 %v4627, 32
    %v4671 = vpop.permute.xlu0 %4670
    %4672 = vrot.lane.b32.xlu0 %v4628, 32
    %v4673 = vpop.permute.xlu0 %4672
    %4674 = vrot.lane.b32.xlu0 %v4629, 32
    %v4675 = vpop.permute.xlu0 %4674
    %4676 = vrot.lane.b32.xlu0 %v4630, 32
    %v4677 = vpop.permute.xlu0 %4676
    %4678 = vrot.lane.b32.xlu0 %v4631, 32
    %v4679 = vpop.permute.xlu0 %4678
    %vm4696 = vcmask 326912
    %4697 = vst.msk [vmem:[#allocation5] sm:$0xff] %vm4696, %v4649
    %4698 = vst.msk [vmem:[#allocation5 + $0x8] sm:$0xff] %vm4696, %v4651
    %4699 = vst.msk [vmem:[#allocation5 + $0x10] sm:$0xff] %vm4696, %v4653
    %4700 = vst.msk [vmem:[#allocation5 + $0x18] sm:$0xff] %vm4696, %v4655
    %4701 = vst.msk [vmem:[#allocation5 + $0x20] sm:$0xff] %vm4696, %v4657
    %4702 = vst.msk [vmem:[#allocation5 + $0x28] sm:$0xff] %vm4696, %v4659
    %4703 = vst.msk [vmem:[#allocation5 + $0x30] sm:$0xff] %vm4696, %v4661
    %4704 = vst.msk [vmem:[#allocation5 + $0x38] sm:$0xff] %vm4696, %v4663
    %4705 = vst.msk [vmem:[#allocation5 + $0x40] sm:$0xff] %vm4696, %v4665
    %4706 = vst.msk [vmem:[#allocation5 + $0x48] sm:$0xff] %vm4696, %v4667
    %4707 = vst.msk [vmem:[#allocation5 + $0x50] sm:$0xff] %vm4696, %v4669
    %4708 = vst.msk [vmem:[#allocation5 + $0x58] sm:$0xff] %vm4696, %v4671
    %4709 = vst.msk [vmem:[#allocation5 + $0x60] sm:$0xff] %vm4696, %v4673
    %4710 = vst.msk [vmem:[#allocation5 + $0x68] sm:$0xff] %vm4696, %v4675
    %4711 = vst.msk [vmem:[#allocation5 + $0x70] sm:$0xff] %vm4696, %v4677
    %4712 = vst.msk [vmem:[#allocation5 + $0x78] sm:$0xff] %vm4696, %v4679
    %v4713 = vld [vmem:[%s4225 + $0x1] sm:$0xff]
    %v4714 = vld [vmem:[%s4225 + $0x11] sm:$0xff]
    %v4715 = vld [vmem:[%s4225 + $0x21] sm:$0xff]
    %v4716 = vld [vmem:[%s4225 + $0x31] sm:$0xff]
    %v4717 = vld [vmem:[%s4225 + $0x41] sm:$0xff]
    %v4718 = vld [vmem:[%s4225 + $0x51] sm:$0xff]
    %v4719 = vld [vmem:[%s4225 + $0x61] sm:$0xff]
    %v4720 = vld [vmem:[%s4225 + $0x71] sm:$0xff]
    %v4721 = vld [vmem:[%s4225 + $0xa1] sm:$0xff]
    %v4722 = vld [vmem:[%s4225 + $0xb1] sm:$0xff]
    %v4723 = vld [vmem:[%s4225 + $0xc1] sm:$0xff]
    %v4724 = vld [vmem:[%s4225 + $0xd1] sm:$0xff]
    %v4725 = vld [vmem:[%s4225 + $0xe1] sm:$0xff]
    %v4726 = vld [vmem:[%s4225 + $0xf1] sm:$0xff]
    %v4727 = vld [vmem:[%s4225 + $0x101] sm:$0xff]
    %v4728 = vld [vmem:[%s4225 + $0x111] sm:$0xff]
    %4745 = vrot.lane.b32.xlu0 %v4713, 40
    %v4746 = vpop.permute.xlu0 %4745
    %4747 = vrot.lane.b32.xlu0 %v4714, 40
    %v4748 = vpop.permute.xlu0 %4747
    %4749 = vrot.lane.b32.xlu0 %v4715, 40
    %v4750 = vpop.permute.xlu0 %4749
    %4751 = vrot.lane.b32.xlu0 %v4716, 40
    %v4752 = vpop.permute.xlu0 %4751
    %4753 = vrot.lane.b32.xlu0 %v4717, 40
    %v4754 = vpop.permute.xlu0 %4753
    %4755 = vrot.lane.b32.xlu0 %v4718, 40
    %v4756 = vpop.permute.xlu0 %4755
    %4757 = vrot.lane.b32.xlu0 %v4719, 40
    %v4758 = vpop.permute.xlu0 %4757
    %4759 = vrot.lane.b32.xlu0 %v4720, 40
    %v4760 = vpop.permute.xlu0 %4759
    %4761 = vrot.lane.b32.xlu0 %v4721, 40
    %v4762 = vpop.permute.xlu0 %4761
    %4763 = vrot.lane.b32.xlu0 %v4722, 40
    %v4764 = vpop.permute.xlu0 %4763
    %4765 = vrot.lane.b32.xlu0 %v4723, 40
    %v4766 = vpop.permute.xlu0 %4765
    %4767 = vrot.lane.b32.xlu0 %v4724, 40
    %v4768 = vpop.permute.xlu0 %4767
    %4769 = vrot.lane.b32.xlu0 %v4725, 40
    %v4770 = vpop.permute.xlu0 %4769
    %4771 = vrot.lane.b32.xlu0 %v4726, 40
    %v4772 = vpop.permute.xlu0 %4771
    %4773 = vrot.lane.b32.xlu0 %v4727, 40
    %v4774 = vpop.permute.xlu0 %4773
    %4775 = vrot.lane.b32.xlu0 %v4728, 40
    %v4776 = vpop.permute.xlu0 %4775
    %vm4793 = vcmask 392512
    %4794 = vst.msk [vmem:[#allocation5] sm:$0xff] %vm4793, %v4746
    %4795 = vst.msk [vmem:[#allocation5 + $0x8] sm:$0xff] %vm4793, %v4748
    %4796 = vst.msk [vmem:[#allocation5 + $0x10] sm:$0xff] %vm4793, %v4750
    %4797 = vst.msk [vmem:[#allocation5 + $0x18] sm:$0xff] %vm4793, %v4752
    %4798 = vst.msk [vmem:[#allocation5 + $0x20] sm:$0xff] %vm4793, %v4754
    %4799 = vst.msk [vmem:[#allocation5 + $0x28] sm:$0xff] %vm4793, %v4756
    %4800 = vst.msk [vmem:[#allocation5 + $0x30] sm:$0xff] %vm4793, %v4758
    %4801 = vst.msk [vmem:[#allocation5 + $0x38] sm:$0xff] %vm4793, %v4760
    %4802 = vst.msk [vmem:[#allocation5 + $0x40] sm:$0xff] %vm4793, %v4762
    %4803 = vst.msk [vmem:[#allocation5 + $0x48] sm:$0xff] %vm4793, %v4764
    %4804 = vst.msk [vmem:[#allocation5 + $0x50] sm:$0xff] %vm4793, %v4766
    %4805 = vst.msk [vmem:[#allocation5 + $0x58] sm:$0xff] %vm4793, %v4768
    %4806 = vst.msk [vmem:[#allocation5 + $0x60] sm:$0xff] %vm4793, %v4770
    %4807 = vst.msk [vmem:[#allocation5 + $0x68] sm:$0xff] %vm4793, %v4772
    %4808 = vst.msk [vmem:[#allocation5 + $0x70] sm:$0xff] %vm4793, %v4774
    %4809 = vst.msk [vmem:[#allocation5 + $0x78] sm:$0xff] %vm4793, %v4776
    %v4810 = vld [vmem:[%s4615 + $0x1] sm:$0xff]
    %v4811 = vld [vmem:[%s4615 + $0x11] sm:$0xff]
    %v4812 = vld [vmem:[%s4615 + $0x21] sm:$0xff]
    %v4813 = vld [vmem:[%s4615 + $0x31] sm:$0xff]
    %v4814 = vld [vmem:[%s4615 + $0x41] sm:$0xff]
    %v4815 = vld [vmem:[%s4615 + $0x51] sm:$0xff]
    %v4816 = vld [vmem:[%s4615 + $0x61] sm:$0xff]
    %v4817 = vld [vmem:[%s4615 + $0x71] sm:$0xff]
    %v4818 = vld [vmem:[%s4615 + $0xa1] sm:$0xff]
    %v4819 = vld [vmem:[%s4615 + $0xb1] sm:$0xff]
    %v4820 = vld [vmem:[%s4615 + $0xc1] sm:$0xff]
    %v4821 = vld [vmem:[%s4615 + $0xd1] sm:$0xff]
    %v4822 = vld [vmem:[%s4615 + $0xe1] sm:$0xff]
    %v4823 = vld [vmem:[%s4615 + $0xf1] sm:$0xff]
    %v4824 = vld [vmem:[%s4615 + $0x101] sm:$0xff]
    %v4825 = vld [vmem:[%s4615 + $0x111] sm:$0xff]
    %4842 = vrot.lane.b32.xlu0 %v4810, 48
    %v4843 = vpop.permute.xlu0 %4842
    %4844 = vrot.lane.b32.xlu0 %v4811, 48
    %v4845 = vpop.permute.xlu0 %4844
    %4846 = vrot.lane.b32.xlu0 %v4812, 48
    %v4847 = vpop.permute.xlu0 %4846
    %4848 = vrot.lane.b32.xlu0 %v4813, 48
    %v4849 = vpop.permute.xlu0 %4848
    %4850 = vrot.lane.b32.xlu0 %v4814, 48
    %v4851 = vpop.permute.xlu0 %4850
    %4852 = vrot.lane.b32.xlu0 %v4815, 48
    %v4853 = vpop.permute.xlu0 %4852
    %4854 = vrot.lane.b32.xlu0 %v4816, 48
    %v4855 = vpop.permute.xlu0 %4854
    %4856 = vrot.lane.b32.xlu0 %v4817, 48
    %v4857 = vpop.permute.xlu0 %4856
    %4858 = vrot.lane.b32.xlu0 %v4818, 48
    %v4859 = vpop.permute.xlu0 %4858
    %4860 = vrot.lane.b32.xlu0 %v4819, 48
    %v4861 = vpop.permute.xlu0 %4860
    %4862 = vrot.lane.b32.xlu0 %v4820, 48
    %v4863 = vpop.permute.xlu0 %4862
    %4864 = vrot.lane.b32.xlu0 %v4821, 48
    %v4865 = vpop.permute.xlu0 %4864
    %4866 = vrot.lane.b32.xlu0 %v4822, 48
    %v4867 = vpop.permute.xlu0 %4866
    %4868 = vrot.lane.b32.xlu0 %v4823, 48
    %v4869 = vpop.permute.xlu0 %4868
    %4870 = vrot.lane.b32.xlu0 %v4824, 48
    %v4871 = vpop.permute.xlu0 %4870
    %4872 = vrot.lane.b32.xlu0 %v4825, 48
    %v4873 = vpop.permute.xlu0 %4872
    %vm4890 = vcmask 458112
    %4891 = vst.msk [vmem:[#allocation5] sm:$0xff] %vm4890, %v4843
    %4892 = vst.msk [vmem:[#allocation5 + $0x8] sm:$0xff] %vm4890, %v4845
    %4893 = vst.msk [vmem:[#allocation5 + $0x10] sm:$0xff] %vm4890, %v4847
    %4894 = vst.msk [vmem:[#allocation5 + $0x18] sm:$0xff] %vm4890, %v4849
    %4895 = vst.msk [vmem:[#allocation5 + $0x20] sm:$0xff] %vm4890, %v4851
    %4896 = vst.msk [vmem:[#allocation5 + $0x28] sm:$0xff] %vm4890, %v4853
    %4897 = vst.msk [vmem:[#allocation5 + $0x30] sm:$0xff] %vm4890, %v4855
    %4898 = vst.msk [vmem:[#allocation5 + $0x38] sm:$0xff] %vm4890, %v4857
    %4899 = vst.msk [vmem:[#allocation5 + $0x40] sm:$0xff] %vm4890, %v4859
    %4900 = vst.msk [vmem:[#allocation5 + $0x48] sm:$0xff] %vm4890, %v4861
    %4901 = vst.msk [vmem:[#allocation5 + $0x50] sm:$0xff] %vm4890, %v4863
    %4902 = vst.msk [vmem:[#allocation5 + $0x58] sm:$0xff] %vm4890, %v4865
    %4903 = vst.msk [vmem:[#allocation5 + $0x60] sm:$0xff] %vm4890, %v4867
    %4904 = vst.msk [vmem:[#allocation5 + $0x68] sm:$0xff] %vm4890, %v4869
    %4905 = vst.msk [vmem:[#allocation5 + $0x70] sm:$0xff] %vm4890, %v4871
    %4906 = vst.msk [vmem:[#allocation5 + $0x78] sm:$0xff] %vm4890, %v4873
    %v4907 = vld [vmem:[%s4225 + $0x2] sm:$0xff]
    %v4908 = vld [vmem:[%s4225 + $0x12] sm:$0xff]
    %v4909 = vld [vmem:[%s4225 + $0x22] sm:$0xff]
    %v4910 = vld [vmem:[%s4225 + $0x32] sm:$0xff]
    %v4911 = vld [vmem:[%s4225 + $0x42] sm:$0xff]
    %v4912 = vld [vmem:[%s4225 + $0x52] sm:$0xff]
    %v4913 = vld [vmem:[%s4225 + $0x62] sm:$0xff]
    %v4914 = vld [vmem:[%s4225 + $0x72] sm:$0xff]
    %v4915 = vld [vmem:[%s4225 + $0xa2] sm:$0xff]
    %v4916 = vld [vmem:[%s4225 + $0xb2] sm:$0xff]
    %v4917 = vld [vmem:[%s4225 + $0xc2] sm:$0xff]
    %v4918 = vld [vmem:[%s4225 + $0xd2] sm:$0xff]
    %v4919 = vld [vmem:[%s4225 + $0xe2] sm:$0xff]
    %v4920 = vld [vmem:[%s4225 + $0xf2] sm:$0xff]
    %v4921 = vld [vmem:[%s4225 + $0x102] sm:$0xff]
    %v4922 = vld [vmem:[%s4225 + $0x112] sm:$0xff]
    %4939 = vrot.lane.b32.xlu0 %v4907, 56
    %v4940 = vpop.permute.xlu0 %4939
    %4941 = vrot.lane.b32.xlu0 %v4908, 56
    %v4942 = vpop.permute.xlu0 %4941
    %4943 = vrot.lane.b32.xlu0 %v4909, 56
    %v4944 = vpop.permute.xlu0 %4943
    %4945 = vrot.lane.b32.xlu0 %v4910, 56
    %v4946 = vpop.permute.xlu0 %4945
    %4947 = vrot.lane.b32.xlu0 %v4911, 56
    %v4948 = vpop.permute.xlu0 %4947
    %4949 = vrot.lane.b32.xlu0 %v4912, 56
    %v4950 = vpop.permute.xlu0 %4949
    %4951 = vrot.lane.b32.xlu0 %v4913, 56
    %v4952 = vpop.permute.xlu0 %4951
    %4953 = vrot.lane.b32.xlu0 %v4914, 56
    %v4954 = vpop.permute.xlu0 %4953
    %4955 = vrot.lane.b32.xlu0 %v4915, 56
    %v4956 = vpop.permute.xlu0 %4955
    %4957 = vrot.lane.b32.xlu0 %v4916, 56
    %v4958 = vpop.permute.xlu0 %4957
    %4959 = vrot.lane.b32.xlu0 %v4917, 56
    %v4960 = vpop.permute.xlu0 %4959
    %4961 = vrot.lane.b32.xlu0 %v4918, 56
    %v4962 = vpop.permute.xlu0 %4961
    %4963 = vrot.lane.b32.xlu0 %v4919, 56
    %v4964 = vpop.permute.xlu0 %4963
    %4965 = vrot.lane.b32.xlu0 %v4920, 56
    %v4966 = vpop.permute.xlu0 %4965
    %4967 = vrot.lane.b32.xlu0 %v4921, 56
    %v4968 = vpop.permute.xlu0 %4967
    %4969 = vrot.lane.b32.xlu0 %v4922, 56
    %v4970 = vpop.permute.xlu0 %4969
    %vm4987 = vcmask 523712
    %4988 = vst.msk [vmem:[#allocation5] sm:$0xff] %vm4987, %v4940
    %4989 = vst.msk [vmem:[#allocation5 + $0x8] sm:$0xff] %vm4987, %v4942
    %4990 = vst.msk [vmem:[#allocation5 + $0x10] sm:$0xff] %vm4987, %v4944
    %4991 = vst.msk [vmem:[#allocation5 + $0x18] sm:$0xff] %vm4987, %v4946
    %4992 = vst.msk [vmem:[#allocation5 + $0x20] sm:$0xff] %vm4987, %v4948
    %4993 = vst.msk [vmem:[#allocation5 + $0x28] sm:$0xff] %vm4987, %v4950
    %4994 = vst.msk [vmem:[#allocation5 + $0x30] sm:$0xff] %vm4987, %v4952
    %4995 = vst.msk [vmem:[#allocation5 + $0x38] sm:$0xff] %vm4987, %v4954
    %4996 = vst.msk [vmem:[#allocation5 + $0x40] sm:$0xff] %vm4987, %v4956
    %4997 = vst.msk [vmem:[#allocation5 + $0x48] sm:$0xff] %vm4987, %v4958
    %4998 = vst.msk [vmem:[#allocation5 + $0x50] sm:$0xff] %vm4987, %v4960
    %4999 = vst.msk [vmem:[#allocation5 + $0x58] sm:$0xff] %vm4987, %v4962
    %5000 = vst.msk [vmem:[#allocation5 + $0x60] sm:$0xff] %vm4987, %v4964
    %5001 = vst.msk [vmem:[#allocation5 + $0x68] sm:$0xff] %vm4987, %v4966
    %5002 = vst.msk [vmem:[#allocation5 + $0x70] sm:$0xff] %vm4987, %v4968
    %5003 = vst.msk [vmem:[#allocation5 + $0x78] sm:$0xff] %vm4987, %v4970
    %s5004 = scalar_lea.vmem [#allocation3], 976
    %v5005 = vld [vmem:[%s5004] sm:$0xff]
    %v5006 = vld [vmem:[%s5004 + $0x10] sm:$0xff]
    %v5007 = vld [vmem:[%s5004 + $0x20] sm:$0xff]
    %v5008 = vld [vmem:[%s5004 + $0x30] sm:$0xff]
    %v5009 = vld [vmem:[%s5004 + $0x40] sm:$0xff]
    %v5010 = vld [vmem:[%s5004 + $0x50] sm:$0xff]
    %v5011 = vld [vmem:[%s5004 + $0x60] sm:$0xff]
    %v5012 = vld [vmem:[%s5004 + $0x70] sm:$0xff]
    %v5013 = vld [vmem:[%s5004 + $0xa0] sm:$0xff]
    %v5014 = vld [vmem:[%s5004 + $0xb0] sm:$0xff]
    %v5015 = vld [vmem:[%s5004 + $0xc0] sm:$0xff]
    %v5016 = vld [vmem:[%s5004 + $0xd0] sm:$0xff]
    %v5017 = vld [vmem:[%s5004 + $0xe0] sm:$0xff]
    %v5018 = vld [vmem:[%s5004 + $0xf0] sm:$0xff]
    %v5019 = vld [vmem:[%s5004 + $0x100] sm:$0xff]
    %v5020 = vld [vmem:[%s5004 + $0x110] sm:$0xff]
    %5037 = vrot.lane.b32.xlu0 %v5005, 64
    %v5038 = vpop.permute.xlu0 %5037
    %5039 = vrot.lane.b32.xlu0 %v5006, 64
    %v5040 = vpop.permute.xlu0 %5039
    %5041 = vrot.lane.b32.xlu0 %v5007, 64
    %v5042 = vpop.permute.xlu0 %5041
    %5043 = vrot.lane.b32.xlu0 %v5008, 64
    %v5044 = vpop.permute.xlu0 %5043
    %5045 = vrot.lane.b32.xlu0 %v5009, 64
    %v5046 = vpop.permute.xlu0 %5045
    %5047 = vrot.lane.b32.xlu0 %v5010, 64
    %v5048 = vpop.permute.xlu0 %5047
    %5049 = vrot.lane.b32.xlu0 %v5011, 64
    %v5050 = vpop.permute.xlu0 %5049
    %5051 = vrot.lane.b32.xlu0 %v5012, 64
    %v5052 = vpop.permute.xlu0 %5051
    %5053 = vrot.lane.b32.xlu0 %v5013, 64
    %v5054 = vpop.permute.xlu0 %5053
    %5055 = vrot.lane.b32.xlu0 %v5014, 64
    %v5056 = vpop.permute.xlu0 %5055
    %5057 = vrot.lane.b32.xlu0 %v5015, 64
    %v5058 = vpop.permute.xlu0 %5057
    %5059 = vrot.lane.b32.xlu0 %v5016, 64
    %v5060 = vpop.permute.xlu0 %5059
    %5061 = vrot.lane.b32.xlu0 %v5017, 64
    %v5062 = vpop.permute.xlu0 %5061
    %5063 = vrot.lane.b32.xlu0 %v5018, 64
    %v5064 = vpop.permute.xlu0 %5063
    %5065 = vrot.lane.b32.xlu0 %v5019, 64
    %v5066 = vpop.permute.xlu0 %5065
    %5067 = vrot.lane.b32.xlu0 %v5020, 64
    %v5068 = vpop.permute.xlu0 %5067
    %vm5085 = vcmask 589312
    %5086 = vst.msk [vmem:[#allocation5] sm:$0xff] %vm5085, %v5038
    %5087 = vst.msk [vmem:[#allocation5 + $0x8] sm:$0xff] %vm5085, %v5040
    %5088 = vst.msk [vmem:[#allocation5 + $0x10] sm:$0xff] %vm5085, %v5042
    %5089 = vst.msk [vmem:[#allocation5 + $0x18] sm:$0xff] %vm5085, %v5044
    %5090 = vst.msk [vmem:[#allocation5 + $0x20] sm:$0xff] %vm5085, %v5046
    %5091 = vst.msk [vmem:[#allocation5 + $0x28] sm:$0xff] %vm5085, %v5048
    %5092 = vst.msk [vmem:[#allocation5 + $0x30] sm:$0xff] %vm5085, %v5050
    %5093 = vst.msk [vmem:[#allocation5 + $0x38] sm:$0xff] %vm5085, %v5052
    %5094 = vst.msk [vmem:[#allocation5 + $0x40] sm:$0xff] %vm5085, %v5054
    %5095 = vst.msk [vmem:[#allocation5 + $0x48] sm:$0xff] %vm5085, %v5056
    %5096 = vst.msk [vmem:[#allocation5 + $0x50] sm:$0xff] %vm5085, %v5058
    %5097 = vst.msk [vmem:[#allocation5 + $0x58] sm:$0xff] %vm5085, %v5060
    %5098 = vst.msk [vmem:[#allocation5 + $0x60] sm:$0xff] %vm5085, %v5062
    %5099 = vst.msk [vmem:[#allocation5 + $0x68] sm:$0xff] %vm5085, %v5064
    %5100 = vst.msk [vmem:[#allocation5 + $0x70] sm:$0xff] %vm5085, %v5066
    %5101 = vst.msk [vmem:[#allocation5 + $0x78] sm:$0xff] %vm5085, %v5068
    %s5102 = scalar_lea.vmem [#allocation3], 656
    %v5103 = vld [vmem:[%s5102 + $0x1] sm:$0xff]
    %v5104 = vld [vmem:[%s5102 + $0x11] sm:$0xff]
    %v5105 = vld [vmem:[%s5102 + $0x21] sm:$0xff]
    %v5106 = vld [vmem:[%s5102 + $0x31] sm:$0xff]
    %v5107 = vld [vmem:[%s5102 + $0x41] sm:$0xff]
    %v5108 = vld [vmem:[%s5102 + $0x51] sm:$0xff]
    %v5109 = vld [vmem:[%s5102 + $0x61] sm:$0xff]
    %v5110 = vld [vmem:[%s5102 + $0x71] sm:$0xff]
    %v5111 = vld [vmem:[%s5102 + $0xa1] sm:$0xff]
    %v5112 = vld [vmem:[%s5102 + $0xb1] sm:$0xff]
    %v5113 = vld [vmem:[%s5102 + $0xc1] sm:$0xff]
    %v5114 = vld [vmem:[%s5102 + $0xd1] sm:$0xff]
    %v5115 = vld [vmem:[%s5102 + $0xe1] sm:$0xff]
    %v5116 = vld [vmem:[%s5102 + $0xf1] sm:$0xff]
    %v5117 = vld [vmem:[%s5102 + $0x101] sm:$0xff]
    %v5118 = vld [vmem:[%s5102 + $0x111] sm:$0xff]
    %5135 = vrot.lane.b32.xlu0 %v5103, 72
    %v5136 = vpop.permute.xlu0 %5135
    %5137 = vrot.lane.b32.xlu0 %v5104, 72
    %v5138 = vpop.permute.xlu0 %5137
    %5139 = vrot.lane.b32.xlu0 %v5105, 72
    %v5140 = vpop.permute.xlu0 %5139
    %5141 = vrot.lane.b32.xlu0 %v5106, 72
    %v5142 = vpop.permute.xlu0 %5141
    %5143 = vrot.lane.b32.xlu0 %v5107, 72
    %v5144 = vpop.permute.xlu0 %5143
    %5145 = vrot.lane.b32.xlu0 %v5108, 72
    %v5146 = vpop.permute.xlu0 %5145
    %5147 = vrot.lane.b32.xlu0 %v5109, 72
    %v5148 = vpop.permute.xlu0 %5147
    %5149 = vrot.lane.b32.xlu0 %v5110, 72
    %v5150 = vpop.permute.xlu0 %5149
    %5151 = vrot.lane.b32.xlu0 %v5111, 72
    %v5152 = vpop.permute.xlu0 %5151
    %5153 = vrot.lane.b32.xlu0 %v5112, 72
    %v5154 = vpop.permute.xlu0 %5153
    %5155 = vrot.lane.b32.xlu0 %v5113, 72
    %v5156 = vpop.permute.xlu0 %5155
    %5157 = vrot.lane.b32.xlu0 %v5114, 72
    %v5158 = vpop.permute.xlu0 %5157
    %5159 = vrot.lane.b32.xlu0 %v5115, 72
    %v5160 = vpop.permute.xlu0 %5159
    %5161 = vrot.lane.b32.xlu0 %v5116, 72
    %v5162 = vpop.permute.xlu0 %5161
    %5163 = vrot.lane.b32.xlu0 %v5117, 72
    %v5164 = vpop.permute.xlu0 %5163
    %5165 = vrot.lane.b32.xlu0 %v5118, 72
    %v5166 = vpop.permute.xlu0 %5165
    %vm5183 = vcmask 654912
    %5184 = vst.msk [vmem:[#allocation5] sm:$0xff] %vm5183, %v5136
    %5185 = vst.msk [vmem:[#allocation5 + $0x8] sm:$0xff] %vm5183, %v5138
    %5186 = vst.msk [vmem:[#allocation5 + $0x10] sm:$0xff] %vm5183, %v5140
    %5187 = vst.msk [vmem:[#allocation5 + $0x18] sm:$0xff] %vm5183, %v5142
    %5188 = vst.msk [vmem:[#allocation5 + $0x20] sm:$0xff] %vm5183, %v5144
    %5189 = vst.msk [vmem:[#allocation5 + $0x28] sm:$0xff] %vm5183, %v5146
    %5190 = vst.msk [vmem:[#allocation5 + $0x30] sm:$0xff] %vm5183, %v5148
    %5191 = vst.msk [vmem:[#allocation5 + $0x38] sm:$0xff] %vm5183, %v5150
    %5192 = vst.msk [vmem:[#allocation5 + $0x40] sm:$0xff] %vm5183, %v5152
    %5193 = vst.msk [vmem:[#allocation5 + $0x48] sm:$0xff] %vm5183, %v5154
    %5194 = vst.msk [vmem:[#allocation5 + $0x50] sm:$0xff] %vm5183, %v5156
    %5195 = vst.msk [vmem:[#allocation5 + $0x58] sm:$0xff] %vm5183, %v5158
    %5196 = vst.msk [vmem:[#allocation5 + $0x60] sm:$0xff] %vm5183, %v5160
    %5197 = vst.msk [vmem:[#allocation5 + $0x68] sm:$0xff] %vm5183, %v5162
    %5198 = vst.msk [vmem:[#allocation5 + $0x70] sm:$0xff] %vm5183, %v5164
    %5199 = vst.msk [vmem:[#allocation5 + $0x78] sm:$0xff] %vm5183, %v5166
    %v5200 = vld [vmem:[%s5004 + $0x1] sm:$0xff]
    %v5201 = vld [vmem:[%s5004 + $0x11] sm:$0xff]
    %v5202 = vld [vmem:[%s5004 + $0x21] sm:$0xff]
    %v5203 = vld [vmem:[%s5004 + $0x31] sm:$0xff]
    %v5204 = vld [vmem:[%s5004 + $0x41] sm:$0xff]
    %v5205 = vld [vmem:[%s5004 + $0x51] sm:$0xff]
    %v5206 = vld [vmem:[%s5004 + $0x61] sm:$0xff]
    %v5207 = vld [vmem:[%s5004 + $0x71] sm:$0xff]
    %v5208 = vld [vmem:[%s5004 + $0xa1] sm:$0xff]
    %v5209 = vld [vmem:[%s5004 + $0xb1] sm:$0xff]
    %v5210 = vld [vmem:[%s5004 + $0xc1] sm:$0xff]
    %v5211 = vld [vmem:[%s5004 + $0xd1] sm:$0xff]
    %v5212 = vld [vmem:[%s5004 + $0xe1] sm:$0xff]
    %v5213 = vld [vmem:[%s5004 + $0xf1] sm:$0xff]
    %v5214 = vld [vmem:[%s5004 + $0x101] sm:$0xff]
    %v5215 = vld [vmem:[%s5004 + $0x111] sm:$0xff]
    %5232 = vrot.lane.b32.xlu0 %v5200, 80
    %v5233 = vpop.permute.xlu0 %5232
    %5234 = vrot.lane.b32.xlu0 %v5201, 80
    %v5235 = vpop.permute.xlu0 %5234
    %5236 = vrot.lane.b32.xlu0 %v5202, 80
    %v5237 = vpop.permute.xlu0 %5236
    %5238 = vrot.lane.b32.xlu0 %v5203, 80
    %v5239 = vpop.permute.xlu0 %5238
    %5240 = vrot.lane.b32.xlu0 %v5204, 80
    %v5241 = vpop.permute.xlu0 %5240
    %5242 = vrot.lane.b32.xlu0 %v5205, 80
    %v5243 = vpop.permute.xlu0 %5242
    %5244 = vrot.lane.b32.xlu0 %v5206, 80
    %v5245 = vpop.permute.xlu0 %5244
    %5246 = vrot.lane.b32.xlu0 %v5207, 80
    %v5247 = vpop.permute.xlu0 %5246
    %5248 = vrot.lane.b32.xlu0 %v5208, 80
    %v5249 = vpop.permute.xlu0 %5248
    %5250 = vrot.lane.b32.xlu0 %v5209, 80
    %v5251 = vpop.permute.xlu0 %5250
    %5252 = vrot.lane.b32.xlu0 %v5210, 80
    %v5253 = vpop.permute.xlu0 %5252
    %5254 = vrot.lane.b32.xlu0 %v5211, 80
    %v5255 = vpop.permute.xlu0 %5254
    %5256 = vrot.lane.b32.xlu0 %v5212, 80
    %v5257 = vpop.permute.xlu0 %5256
    %5258 = vrot.lane.b32.xlu0 %v5213, 80
    %v5259 = vpop.permute.xlu0 %5258
    %5260 = vrot.lane.b32.xlu0 %v5214, 80
    %v5261 = vpop.permute.xlu0 %5260
    %5262 = vrot.lane.b32.xlu0 %v5215, 80
    %v5263 = vpop.permute.xlu0 %5262
    %vm5280 = vcmask 720512
    %5281 = vst.msk [vmem:[#allocation5] sm:$0xff] %vm5280, %v5233
    %5282 = vst.msk [vmem:[#allocation5 + $0x8] sm:$0xff] %vm5280, %v5235
    %5283 = vst.msk [vmem:[#allocation5 + $0x10] sm:$0xff] %vm5280, %v5237
    %5284 = vst.msk [vmem:[#allocation5 + $0x18] sm:$0xff] %vm5280, %v5239
    %5285 = vst.msk [vmem:[#allocation5 + $0x20] sm:$0xff] %vm5280, %v5241
    %5286 = vst.msk [vmem:[#allocation5 + $0x28] sm:$0xff] %vm5280, %v5243
    %5287 = vst.msk [vmem:[#allocation5 + $0x30] sm:$0xff] %vm5280, %v5245
    %5288 = vst.msk [vmem:[#allocation5 + $0x38] sm:$0xff] %vm5280, %v5247
    %5289 = vst.msk [vmem:[#allocation5 + $0x40] sm:$0xff] %vm5280, %v5249
    %5290 = vst.msk [vmem:[#allocation5 + $0x48] sm:$0xff] %vm5280, %v5251
    %5291 = vst.msk [vmem:[#allocation5 + $0x50] sm:$0xff] %vm5280, %v5253
    %5292 = vst.msk [vmem:[#allocation5 + $0x58] sm:$0xff] %vm5280, %v5255
    %5293 = vst.msk [vmem:[#allocation5 + $0x60] sm:$0xff] %vm5280, %v5257
    %5294 = vst.msk [vmem:[#allocation5 + $0x68] sm:$0xff] %vm5280, %v5259
    %5295 = vst.msk [vmem:[#allocation5 + $0x70] sm:$0xff] %vm5280, %v5261
    %5296 = vst.msk [vmem:[#allocation5 + $0x78] sm:$0xff] %vm5280, %v5263
    %v5297 = vld [vmem:[%s5102 + $0x2] sm:$0xff]
    %v5298 = vld [vmem:[%s5102 + $0x12] sm:$0xff]
    %v5299 = vld [vmem:[%s5102 + $0x22] sm:$0xff]
    %v5300 = vld [vmem:[%s5102 + $0x32] sm:$0xff]
    %v5301 = vld [vmem:[%s5102 + $0x42] sm:$0xff]
    %v5302 = vld [vmem:[%s5102 + $0x52] sm:$0xff]
    %v5303 = vld [vmem:[%s5102 + $0x62] sm:$0xff]
    %v5304 = vld [vmem:[%s5102 + $0x72] sm:$0xff]
    %v5305 = vld [vmem:[%s5102 + $0xa2] sm:$0xff]
    %v5306 = vld [vmem:[%s5102 + $0xb2] sm:$0xff]
    %v5307 = vld [vmem:[%s5102 + $0xc2] sm:$0xff]
    %v5308 = vld [vmem:[%s5102 + $0xd2] sm:$0xff]
    %v5309 = vld [vmem:[%s5102 + $0xe2] sm:$0xff]
    %v5310 = vld [vmem:[%s5102 + $0xf2] sm:$0xff]
    %v5311 = vld [vmem:[%s5102 + $0x102] sm:$0xff]
    %v5312 = vld [vmem:[%s5102 + $0x112] sm:$0xff]
    %5329 = vrot.lane.b32.xlu0 %v5297, 88
    %v5330 = vpop.permute.xlu0 %5329
    %5331 = vrot.lane.b32.xlu0 %v5298, 88
    %v5332 = vpop.permute.xlu0 %5331
    %5333 = vrot.lane.b32.xlu0 %v5299, 88
    %v5334 = vpop.permute.xlu0 %5333
    %5335 = vrot.lane.b32.xlu0 %v5300, 88
    %v5336 = vpop.permute.xlu0 %5335
    %5337 = vrot.lane.b32.xlu0 %v5301, 88
    %v5338 = vpop.permute.xlu0 %5337
    %5339 = vrot.lane.b32.xlu0 %v5302, 88
    %v5340 = vpop.permute.xlu0 %5339
    %5341 = vrot.lane.b32.xlu0 %v5303, 88
    %v5342 = vpop.permute.xlu0 %5341
    %5343 = vrot.lane.b32.xlu0 %v5304, 88
    %v5344 = vpop.permute.xlu0 %5343
    %5345 = vrot.lane.b32.xlu0 %v5305, 88
    %v5346 = vpop.permute.xlu0 %5345
    %5347 = vrot.lane.b32.xlu0 %v5306, 88
    %v5348 = vpop.permute.xlu0 %5347
    %5349 = vrot.lane.b32.xlu0 %v5307, 88
    %v5350 = vpop.permute.xlu0 %5349
    %5351 = vrot.lane.b32.xlu0 %v5308, 88
    %v5352 = vpop.permute.xlu0 %5351
    %5353 = vrot.lane.b32.xlu0 %v5309, 88
    %v5354 = vpop.permute.xlu0 %5353
    %5355 = vrot.lane.b32.xlu0 %v5310, 88
    %v5356 = vpop.permute.xlu0 %5355
    %5357 = vrot.lane.b32.xlu0 %v5311, 88
    %v5358 = vpop.permute.xlu0 %5357
    %5359 = vrot.lane.b32.xlu0 %v5312, 88
    %v5360 = vpop.permute.xlu0 %5359
    %vm5377 = vcmask 786112
    %5378 = vst.msk [vmem:[#allocation5] sm:$0xff] %vm5377, %v5330
    %5379 = vst.msk [vmem:[#allocation5 + $0x8] sm:$0xff] %vm5377, %v5332
    %5380 = vst.msk [vmem:[#allocation5 + $0x10] sm:$0xff] %vm5377, %v5334
    %5381 = vst.msk [vmem:[#allocation5 + $0x18] sm:$0xff] %vm5377, %v5336
    %5382 = vst.msk [vmem:[#allocation5 + $0x20] sm:$0xff] %vm5377, %v5338
    %5383 = vst.msk [vmem:[#allocation5 + $0x28] sm:$0xff] %vm5377, %v5340
    %5384 = vst.msk [vmem:[#allocation5 + $0x30] sm:$0xff] %vm5377, %v5342
    %5385 = vst.msk [vmem:[#allocation5 + $0x38] sm:$0xff] %vm5377, %v5344
    %5386 = vst.msk [vmem:[#allocation5 + $0x40] sm:$0xff] %vm5377, %v5346
    %5387 = vst.msk [vmem:[#allocation5 + $0x48] sm:$0xff] %vm5377, %v5348
    %5388 = vst.msk [vmem:[#allocation5 + $0x50] sm:$0xff] %vm5377, %v5350
    %5389 = vst.msk [vmem:[#allocation5 + $0x58] sm:$0xff] %vm5377, %v5352
    %5390 = vst.msk [vmem:[#allocation5 + $0x60] sm:$0xff] %vm5377, %v5354
    %5391 = vst.msk [vmem:[#allocation5 + $0x68] sm:$0xff] %vm5377, %v5356
    %5392 = vst.msk [vmem:[#allocation5 + $0x70] sm:$0xff] %vm5377, %v5358
    %5393 = vst.msk [vmem:[#allocation5 + $0x78] sm:$0xff] %vm5377, %v5360
    %s5394 = scalar_lea.vmem [#allocation3], 352
    %v5395 = vld [vmem:[%s5394] sm:$0xff]
    %v5396 = vld [vmem:[%s5394 + $0x10] sm:$0xff]
    %v5397 = vld [vmem:[%s5394 + $0x20] sm:$0xff]
    %v5398 = vld [vmem:[%s5394 + $0x30] sm:$0xff]
    %v5399 = vld [vmem:[%s5394 + $0x40] sm:$0xff]
    %v5400 = vld [vmem:[%s5394 + $0x50] sm:$0xff]
    %v5401 = vld [vmem:[%s5394 + $0x60] sm:$0xff]
    %v5402 = vld [vmem:[%s5394 + $0x70] sm:$0xff]
    %v5403 = vld [vmem:[%s5394 + $0xa0] sm:$0xff]
    %v5404 = vld [vmem:[%s5394 + $0xb0] sm:$0xff]
    %v5405 = vld [vmem:[%s5394 + $0xc0] sm:$0xff]
    %v5406 = vld [vmem:[%s5394 + $0xd0] sm:$0xff]
    %v5407 = vld [vmem:[%s5394 + $0xe0] sm:$0xff]
    %v5408 = vld [vmem:[%s5394 + $0xf0] sm:$0xff]
    %v5409 = vld [vmem:[%s5394 + $0x100] sm:$0xff]
    %v5410 = vld [vmem:[%s5394 + $0x110] sm:$0xff]
    %5427 = vrot.lane.b32.xlu0 %v5395, 96
    %v5428 = vpop.permute.xlu0 %5427
    %5429 = vrot.lane.b32.xlu0 %v5396, 96
    %v5430 = vpop.permute.xlu0 %5429
    %5431 = vrot.lane.b32.xlu0 %v5397, 96
    %v5432 = vpop.permute.xlu0 %5431
    %5433 = vrot.lane.b32.xlu0 %v5398, 96
    %v5434 = vpop.permute.xlu0 %5433
    %5435 = vrot.lane.b32.xlu0 %v5399, 96
    %v5436 = vpop.permute.xlu0 %5435
    %5437 = vrot.lane.b32.xlu0 %v5400, 96
    %v5438 = vpop.permute.xlu0 %5437
    %5439 = vrot.lane.b32.xlu0 %v5401, 96
    %v5440 = vpop.permute.xlu0 %5439
    %5441 = vrot.lane.b32.xlu0 %v5402, 96
    %v5442 = vpop.permute.xlu0 %5441
    %5443 = vrot.lane.b32.xlu0 %v5403, 96
    %v5444 = vpop.permute.xlu0 %5443
    %5445 = vrot.lane.b32.xlu0 %v5404, 96
    %v5446 = vpop.permute.xlu0 %5445
    %5447 = vrot.lane.b32.xlu0 %v5405, 96
    %v5448 = vpop.permute.xlu0 %5447
    %5449 = vrot.lane.b32.xlu0 %v5406, 96
    %v5450 = vpop.permute.xlu0 %5449
    %5451 = vrot.lane.b32.xlu0 %v5407, 96
    %v5452 = vpop.permute.xlu0 %5451
    %5453 = vrot.lane.b32.xlu0 %v5408, 96
    %v5454 = vpop.permute.xlu0 %5453
    %5455 = vrot.lane.b32.xlu0 %v5409, 96
    %v5456 = vpop.permute.xlu0 %5455
    %5457 = vrot.lane.b32.xlu0 %v5410, 96
    %v5458 = vpop.permute.xlu0 %5457
    %vm5475 = vcmask 851712
    %5476 = vst.msk [vmem:[#allocation5] sm:$0xff] %vm5475, %v5428
    %5477 = vst.msk [vmem:[#allocation5 + $0x8] sm:$0xff] %vm5475, %v5430
    %5478 = vst.msk [vmem:[#allocation5 + $0x10] sm:$0xff] %vm5475, %v5432
    %5479 = vst.msk [vmem:[#allocation5 + $0x18] sm:$0xff] %vm5475, %v5434
    %5480 = vst.msk [vmem:[#allocation5 + $0x20] sm:$0xff] %vm5475, %v5436
    %5481 = vst.msk [vmem:[#allocation5 + $0x28] sm:$0xff] %vm5475, %v5438
    %5482 = vst.msk [vmem:[#allocation5 + $0x30] sm:$0xff] %vm5475, %v5440
    %5483 = vst.msk [vmem:[#allocation5 + $0x38] sm:$0xff] %vm5475, %v5442
    %5484 = vst.msk [vmem:[#allocation5 + $0x40] sm:$0xff] %vm5475, %v5444
    %5485 = vst.msk [vmem:[#allocation5 + $0x48] sm:$0xff] %vm5475, %v5446
    %5486 = vst.msk [vmem:[#allocation5 + $0x50] sm:$0xff] %vm5475, %v5448
    %5487 = vst.msk [vmem:[#allocation5 + $0x58] sm:$0xff] %vm5475, %v5450
    %5488 = vst.msk [vmem:[#allocation5 + $0x60] sm:$0xff] %vm5475, %v5452
    %5489 = vst.msk [vmem:[#allocation5 + $0x68] sm:$0xff] %vm5475, %v5454
    %5490 = vst.msk [vmem:[#allocation5 + $0x70] sm:$0xff] %vm5475, %v5456
    %5491 = vst.msk [vmem:[#allocation5 + $0x78] sm:$0xff] %vm5475, %v5458
    %s5492 = scalar_lea.vmem [#allocation3], 32
    %v5493 = vld [vmem:[%s5492 + $0x1] sm:$0xff]
    %v5494 = vld [vmem:[%s5492 + $0x11] sm:$0xff]
    %v5495 = vld [vmem:[%s5492 + $0x21] sm:$0xff]
    %v5496 = vld [vmem:[%s5492 + $0x31] sm:$0xff]
    %v5497 = vld [vmem:[%s5492 + $0x41] sm:$0xff]
    %v5498 = vld [vmem:[%s5492 + $0x51] sm:$0xff]
    %v5499 = vld [vmem:[%s5492 + $0x61] sm:$0xff]
    %v5500 = vld [vmem:[%s5492 + $0x71] sm:$0xff]
    %v5501 = vld [vmem:[%s5492 + $0xa1] sm:$0xff]
    %v5502 = vld [vmem:[%s5492 + $0xb1] sm:$0xff]
    %v5503 = vld [vmem:[%s5492 + $0xc1] sm:$0xff]
    %v5504 = vld [vmem:[%s5492 + $0xd1] sm:$0xff]
    %v5505 = vld [vmem:[%s5492 + $0xe1] sm:$0xff]
    %v5506 = vld [vmem:[%s5492 + $0xf1] sm:$0xff]
    %v5507 = vld [vmem:[%s5492 + $0x101] sm:$0xff]
    %v5508 = vld [vmem:[%s5492 + $0x111] sm:$0xff]
    %5525 = vrot.lane.b32.xlu0 %v5493, 104
    %v5526 = vpop.permute.xlu0 %5525
    %5527 = vrot.lane.b32.xlu0 %v5494, 104
    %v5528 = vpop.permute.xlu0 %5527
    %5529 = vrot.lane.b32.xlu0 %v5495, 104
    %v5530 = vpop.permute.xlu0 %5529
    %5531 = vrot.lane.b32.xlu0 %v5496, 104
    %v5532 = vpop.permute.xlu0 %5531
    %5533 = vrot.lane.b32.xlu0 %v5497, 104
    %v5534 = vpop.permute.xlu0 %5533
    %5535 = vrot.lane.b32.xlu0 %v5498, 104
    %v5536 = vpop.permute.xlu0 %5535
    %5537 = vrot.lane.b32.xlu0 %v5499, 104
    %v5538 = vpop.permute.xlu0 %5537
    %5539 = vrot.lane.b32.xlu0 %v5500, 104
    %v5540 = vpop.permute.xlu0 %5539
    %5541 = vrot.lane.b32.xlu0 %v5501, 104
    %v5542 = vpop.permute.xlu0 %5541
    %5543 = vrot.lane.b32.xlu0 %v5502, 104
    %v5544 = vpop.permute.xlu0 %5543
    %5545 = vrot.lane.b32.xlu0 %v5503, 104
    %v5546 = vpop.permute.xlu0 %5545
    %5547 = vrot.lane.b32.xlu0 %v5504, 104
    %v5548 = vpop.permute.xlu0 %5547
    %5549 = vrot.lane.b32.xlu0 %v5505, 104
    %v5550 = vpop.permute.xlu0 %5549
    %5551 = vrot.lane.b32.xlu0 %v5506, 104
    %v5552 = vpop.permute.xlu0 %5551
    %5553 = vrot.lane.b32.xlu0 %v5507, 104
    %v5554 = vpop.permute.xlu0 %5553
    %5555 = vrot.lane.b32.xlu0 %v5508, 104
    %v5556 = vpop.permute.xlu0 %5555
    %vm5573 = vcmask 917312
    %5574 = vst.msk [vmem:[#allocation5] sm:$0xff] %vm5573, %v5526
    %5575 = vst.msk [vmem:[#allocation5 + $0x8] sm:$0xff] %vm5573, %v5528
    %5576 = vst.msk [vmem:[#allocation5 + $0x10] sm:$0xff] %vm5573, %v5530
    %5577 = vst.msk [vmem:[#allocation5 + $0x18] sm:$0xff] %vm5573, %v5532
    %5578 = vst.msk [vmem:[#allocation5 + $0x20] sm:$0xff] %vm5573, %v5534
    %5579 = vst.msk [vmem:[#allocation5 + $0x28] sm:$0xff] %vm5573, %v5536
    %5580 = vst.msk [vmem:[#allocation5 + $0x30] sm:$0xff] %vm5573, %v5538
    %5581 = vst.msk [vmem:[#allocation5 + $0x38] sm:$0xff] %vm5573, %v5540
    %5582 = vst.msk [vmem:[#allocation5 + $0x40] sm:$0xff] %vm5573, %v5542
    %5583 = vst.msk [vmem:[#allocation5 + $0x48] sm:$0xff] %vm5573, %v5544
    %5584 = vst.msk [vmem:[#allocation5 + $0x50] sm:$0xff] %vm5573, %v5546
    %5585 = vst.msk [vmem:[#allocation5 + $0x58] sm:$0xff] %vm5573, %v5548
    %5586 = vst.msk [vmem:[#allocation5 + $0x60] sm:$0xff] %vm5573, %v5550
    %5587 = vst.msk [vmem:[#allocation5 + $0x68] sm:$0xff] %vm5573, %v5552
    %5588 = vst.msk [vmem:[#allocation5 + $0x70] sm:$0xff] %vm5573, %v5554
    %5589 = vst.msk [vmem:[#allocation5 + $0x78] sm:$0xff] %vm5573, %v5556
    %v5590 = vld [vmem:[%s5394 + $0x1] sm:$0xff]
    %v5591 = vld [vmem:[%s5394 + $0x11] sm:$0xff]
    %v5592 = vld [vmem:[%s5394 + $0x21] sm:$0xff]
    %v5593 = vld [vmem:[%s5394 + $0x31] sm:$0xff]
    %v5594 = vld [vmem:[%s5394 + $0x41] sm:$0xff]
    %v5595 = vld [vmem:[%s5394 + $0x51] sm:$0xff]
    %v5596 = vld [vmem:[%s5394 + $0x61] sm:$0xff]
    %v5597 = vld [vmem:[%s5394 + $0x71] sm:$0xff]
    %v5598 = vld [vmem:[%s5394 + $0xa1] sm:$0xff]
    %v5599 = vld [vmem:[%s5394 + $0xb1] sm:$0xff]
    %v5600 = vld [vmem:[%s5394 + $0xc1] sm:$0xff]
    %v5601 = vld [vmem:[%s5394 + $0xd1] sm:$0xff]
    %v5602 = vld [vmem:[%s5394 + $0xe1] sm:$0xff]
    %v5603 = vld [vmem:[%s5394 + $0xf1] sm:$0xff]
    %v5604 = vld [vmem:[%s5394 + $0x101] sm:$0xff]
    %v5605 = vld [vmem:[%s5394 + $0x111] sm:$0xff]
    %5622 = vrot.lane.b32.xlu0 %v5590, 112
    %v5623 = vpop.permute.xlu0 %5622
    %5624 = vrot.lane.b32.xlu0 %v5591, 112
    %v5625 = vpop.permute.xlu0 %5624
    %5626 = vrot.lane.b32.xlu0 %v5592, 112
    %v5627 = vpop.permute.xlu0 %5626
    %5628 = vrot.lane.b32.xlu0 %v5593, 112
    %v5629 = vpop.permute.xlu0 %5628
    %5630 = vrot.lane.b32.xlu0 %v5594, 112
    %v5631 = vpop.permute.xlu0 %5630
    %5632 = vrot.lane.b32.xlu0 %v5595, 112
    %v5633 = vpop.permute.xlu0 %5632
    %5634 = vrot.lane.b32.xlu0 %v5596, 112
    %v5635 = vpop.permute.xlu0 %5634
    %5636 = vrot.lane.b32.xlu0 %v5597, 112
    %v5637 = vpop.permute.xlu0 %5636
    %5638 = vrot.lane.b32.xlu0 %v5598, 112
    %v5639 = vpop.permute.xlu0 %5638
    %5640 = vrot.lane.b32.xlu0 %v5599, 112
    %v5641 = vpop.permute.xlu0 %5640
    %5642 = vrot.lane.b32.xlu0 %v5600, 112
    %v5643 = vpop.permute.xlu0 %5642
    %5644 = vrot.lane.b32.xlu0 %v5601, 112
    %v5645 = vpop.permute.xlu0 %5644
    %5646 = vrot.lane.b32.xlu0 %v5602, 112
    %v5647 = vpop.permute.xlu0 %5646
    %5648 = vrot.lane.b32.xlu0 %v5603, 112
    %v5649 = vpop.permute.xlu0 %5648
    %5650 = vrot.lane.b32.xlu0 %v5604, 112
    %v5651 = vpop.permute.xlu0 %5650
    %5652 = vrot.lane.b32.xlu0 %v5605, 112
    %v5653 = vpop.permute.xlu0 %5652
    %vm5670 = vcmask 982912
    %5671 = vst.msk [vmem:[#allocation5] sm:$0xff] %vm5670, %v5623
    %5672 = vst.msk [vmem:[#allocation5 + $0x8] sm:$0xff] %vm5670, %v5625
    %5673 = vst.msk [vmem:[#allocation5 + $0x10] sm:$0xff] %vm5670, %v5627
    %5674 = vst.msk [vmem:[#allocation5 + $0x18] sm:$0xff] %vm5670, %v5629
    %5675 = vst.msk [vmem:[#allocation5 + $0x20] sm:$0xff] %vm5670, %v5631
    %5676 = vst.msk [vmem:[#allocation5 + $0x28] sm:$0xff] %vm5670, %v5633
    %5677 = vst.msk [vmem:[#allocation5 + $0x30] sm:$0xff] %vm5670, %v5635
    %5678 = vst.msk [vmem:[#allocation5 + $0x38] sm:$0xff] %vm5670, %v5637
    %5679 = vst.msk [vmem:[#allocation5 + $0x40] sm:$0xff] %vm5670, %v5639
    %5680 = vst.msk [vmem:[#allocation5 + $0x48] sm:$0xff] %vm5670, %v5641
    %5681 = vst.msk [vmem:[#allocation5 + $0x50] sm:$0xff] %vm5670, %v5643
    %5682 = vst.msk [vmem:[#allocation5 + $0x58] sm:$0xff] %vm5670, %v5645
    %5683 = vst.msk [vmem:[#allocation5 + $0x60] sm:$0xff] %vm5670, %v5647
    %5684 = vst.msk [vmem:[#allocation5 + $0x68] sm:$0xff] %vm5670, %v5649
    %5685 = vst.msk [vmem:[#allocation5 + $0x70] sm:$0xff] %vm5670, %v5651
    %5686 = vst.msk [vmem:[#allocation5 + $0x78] sm:$0xff] %vm5670, %v5653
    %v5687 = vld [vmem:[%s5492 + $0x2] sm:$0xff]
    %v5688 = vld [vmem:[%s5492 + $0x12] sm:$0xff]
    %v5689 = vld [vmem:[%s5492 + $0x22] sm:$0xff]
    %v5690 = vld [vmem:[%s5492 + $0x32] sm:$0xff]
    %v5691 = vld [vmem:[%s5492 + $0x42] sm:$0xff]
    %v5692 = vld [vmem:[%s5492 + $0x52] sm:$0xff]
    %v5693 = vld [vmem:[%s5492 + $0x62] sm:$0xff]
    %v5694 = vld [vmem:[%s5492 + $0x72] sm:$0xff]
    %v5695 = vld [vmem:[%s5492 + $0xa2] sm:$0xff]
    %v5696 = vld [vmem:[%s5492 + $0xb2] sm:$0xff]
    %v5697 = vld [vmem:[%s5492 + $0xc2] sm:$0xff]
    %v5698 = vld [vmem:[%s5492 + $0xd2] sm:$0xff]
    %v5699 = vld [vmem:[%s5492 + $0xe2] sm:$0xff]
    %v5700 = vld [vmem:[%s5492 + $0xf2] sm:$0xff]
    %v5701 = vld [vmem:[%s5492 + $0x102] sm:$0xff]
    %v5702 = vld [vmem:[%s5492 + $0x112] sm:$0xff]
    %5719 = vrot.lane.b32.xlu0 %v5687, 120
    %v5720 = vpop.permute.xlu0 %5719
    %5721 = vrot.lane.b32.xlu0 %v5688, 120
    %v5722 = vpop.permute.xlu0 %5721
    %5723 = vrot.lane.b32.xlu0 %v5689, 120
    %v5724 = vpop.permute.xlu0 %5723
    %5725 = vrot.lane.b32.xlu0 %v5690, 120
    %v5726 = vpop.permute.xlu0 %5725
    %5727 = vrot.lane.b32.xlu0 %v5691, 120
    %v5728 = vpop.permute.xlu0 %5727
    %5729 = vrot.lane.b32.xlu0 %v5692, 120
    %v5730 = vpop.permute.xlu0 %5729
    %5731 = vrot.lane.b32.xlu0 %v5693, 120
    %v5732 = vpop.permute.xlu0 %5731
    %5733 = vrot.lane.b32.xlu0 %v5694, 120
    %v5734 = vpop.permute.xlu0 %5733
    %5735 = vrot.lane.b32.xlu0 %v5695, 120
    %v5736 = vpop.permute.xlu0 %5735
    %5737 = vrot.lane.b32.xlu0 %v5696, 120
    %v5738 = vpop.permute.xlu0 %5737
    %5739 = vrot.lane.b32.xlu0 %v5697, 120
    %v5740 = vpop.permute.xlu0 %5739
    %5741 = vrot.lane.b32.xlu0 %v5698, 120
    %v5742 = vpop.permute.xlu0 %5741
    %5743 = vrot.lane.b32.xlu0 %v5699, 120
    %v5744 = vpop.permute.xlu0 %5743
    %5745 = vrot.lane.b32.xlu0 %v5700, 120
    %v5746 = vpop.permute.xlu0 %5745
    %5747 = vrot.lane.b32.xlu0 %v5701, 120
    %v5748 = vpop.permute.xlu0 %5747
    %5749 = vrot.lane.b32.xlu0 %v5702, 120
    %v5750 = vpop.permute.xlu0 %5749
    %vm5767 = vcmask 1048512
    %5768 = vst.msk [vmem:[#allocation5] sm:$0xff] %vm5767, %v5720
    %5769 = vst.msk [vmem:[#allocation5 + $0x8] sm:$0xff] %vm5767, %v5722
    %5770 = vst.msk [vmem:[#allocation5 + $0x10] sm:$0xff] %vm5767, %v5724
    %5771 = vst.msk [vmem:[#allocation5 + $0x18] sm:$0xff] %vm5767, %v5726
    %5772 = vst.msk [vmem:[#allocation5 + $0x20] sm:$0xff] %vm5767, %v5728
    %5773 = vst.msk [vmem:[#allocation5 + $0x28] sm:$0xff] %vm5767, %v5730
    %5774 = vst.msk [vmem:[#allocation5 + $0x30] sm:$0xff] %vm5767, %v5732
    %5775 = vst.msk [vmem:[#allocation5 + $0x38] sm:$0xff] %vm5767, %v5734
    %5776 = vst.msk [vmem:[#allocation5 + $0x40] sm:$0xff] %vm5767, %v5736
    %5777 = vst.msk [vmem:[#allocation5 + $0x48] sm:$0xff] %vm5767, %v5738
    %5778 = vst.msk [vmem:[#allocation5 + $0x50] sm:$0xff] %vm5767, %v5740
    %5779 = vst.msk [vmem:[#allocation5 + $0x58] sm:$0xff] %vm5767, %v5742
    %5780 = vst.msk [vmem:[#allocation5 + $0x60] sm:$0xff] %vm5767, %v5744
    %5781 = vst.msk [vmem:[#allocation5 + $0x68] sm:$0xff] %vm5767, %v5746
    %5782 = vst.msk [vmem:[#allocation5 + $0x70] sm:$0xff] %vm5767, %v5748
    %5783 = vst.msk [vmem:[#allocation5 + $0x78] sm:$0xff] %vm5767, %v5750
    %v5784 = vld [vmem:[#allocation5] sm:$0xff]
    %v5785 = vld [vmem:[#allocation5 + $0x8] sm:$0xff]
    %v5786 = vld [vmem:[#allocation5 + $0x10] sm:$0xff]
    %v5787 = vld [vmem:[#allocation5 + $0x18] sm:$0xff]
    %v5788 = vld [vmem:[#allocation5 + $0x20] sm:$0xff]
    %v5789 = vld [vmem:[#allocation5 + $0x28] sm:$0xff]
    %v5790 = vld [vmem:[#allocation5 + $0x30] sm:$0xff]
    %v5791 = vld [vmem:[#allocation5 + $0x38] sm:$0xff]
    %v5792 = vld [vmem:[#allocation5 + $0x40] sm:$0xff]
    %v5793 = vld [vmem:[#allocation5 + $0x48] sm:$0xff]
    %v5794 = vld [vmem:[#allocation5 + $0x50] sm:$0xff]
    %v5795 = vld [vmem:[#allocation5 + $0x58] sm:$0xff]
    %v5796 = vld [vmem:[#allocation5 + $0x60] sm:$0xff]
    %v5797 = vld [vmem:[#allocation5 + $0x68] sm:$0xff]
    %v5798 = vld [vmem:[#allocation5 + $0x70] sm:$0xff]
    %v5799 = vld [vmem:[#allocation5 + $0x78] sm:$0xff]
    %v5800 = vld [vmem:[%s5] sm:$0xff]
    %v5801 = vld [vmem:[%s5 + $0x8] sm:$0xff]
    %v5802 = vld [vmem:[%s5 + $0x10] sm:$0xff]
    %v5803 = vld [vmem:[%s5 + $0x18] sm:$0xff]
    %v5804 = vld [vmem:[%s5 + $0x20] sm:$0xff]
    %v5805 = vld [vmem:[%s5 + $0x28] sm:$0xff]
    %v5806 = vld [vmem:[%s5 + $0x30] sm:$0xff]
    %v5807 = vld [vmem:[%s5 + $0x38] sm:$0xff]
    %v5808 = vld [vmem:[%s5 + $0x40] sm:$0xff]
    %v5809 = vld [vmem:[%s5 + $0x48] sm:$0xff]
    %v5810 = vld [vmem:[%s5 + $0x50] sm:$0xff]
    %v5811 = vld [vmem:[%s5 + $0x58] sm:$0xff]
    %v5812 = vld [vmem:[%s5 + $0x60] sm:$0xff]
    %v5813 = vld [vmem:[%s5 + $0x68] sm:$0xff]
    %v5814 = vld [vmem:[%s5 + $0x70] sm:$0xff]
    %v5815 = vld [vmem:[%s5 + $0x78] sm:$0xff]
    %v5816 = vld [vmem:[%s6] sm:$0x1]
    %v5818 = vlaneseq
    %v5819 = vshrl.u32 %v5818, 7
    %v5820 = vsub.s32 0, %v5819
    %v5821 = vrot.slane %v5816, %v5820
    %5823 = vmatprep.subr.mxu0 0.0
    %5824 = vmatpush1.msra.mxu0 %v5800
    %5825 = vmatprep.subr.mxu0 0.0
    %5826 = vmatpush1.msra.mxu0 %v5801
    %5827 = vmatprep.subr.mxu0 0.0
    %5828 = vmatpush1.msra.mxu0 %v5802
    %5829 = vmatprep.subr.mxu0 0.0
    %5830 = vmatpush1.msra.mxu0 %v5803
    %5831 = vmatprep.subr.mxu0 0.0
    %5832 = vmatpush1.msra.mxu0 %v5804
    %5833 = vmatprep.subr.mxu0 0.0
    %5834 = vmatpush1.msra.mxu0 %v5805
    %5835 = vmatprep.subr.mxu0 0.0
    %5836 = vmatpush1.msra.mxu0 %v5806
    %5837 = vmatprep.subr.mxu0 0.0
    %5838 = vmatpush1.msra.mxu0 %v5807
    %5839 = vmatprep.subr.mxu0 0.0
    %5840 = vmatpush1.msra.mxu0 %v5808
    %5841 = vmatprep.subr.mxu0 0.0
    %5842 = vmatpush1.msra.mxu0 %v5809
    %5843 = vmatprep.subr.mxu0 0.0
    %5844 = vmatpush1.msra.mxu0 %v5810
    %5845 = vmatprep.subr.mxu0 0.0
    %5846 = vmatpush1.msra.mxu0 %v5811
    %5847 = vmatprep.subr.mxu0 0.0
    %5848 = vmatpush1.msra.mxu0 %v5812
    %5849 = vmatprep.subr.mxu0 0.0
    %5850 = vmatpush1.msra.mxu0 %v5813
    %5851 = vmatprep.subr.mxu0 0.0
    %5852 = vmatpush1.msra.mxu0 %v5814
    %5853 = vmatprep.subr.mxu0 0.0
    %5854 = vmatpush1.msra.mxu0 %v5815
    %5855 = vmatprep.subr.mxu0 0.0
    %5856 = vmatpush1.msra.mxu0 0.0
    %5857 = vmatprep.subr.mxu0 0.0
    %5858 = vmatpush1.msra.mxu0 0.0
    %5859 = vmatprep.subr.mxu0 0.0
    %5860 = vmatpush1.msra.mxu0 0.0
    %5861 = vmatprep.subr.mxu0 0.0
    %5862 = vmatpush1.msra.mxu0 0.0
    %5863 = vmatprep.subr.mxu0 0.0
    %5864 = vmatpush1.msra.mxu0 0.0
    %5865 = vmatprep.subr.mxu0 0.0
    %5866 = vmatpush1.msra.mxu0 0.0
    %5867 = vmatprep.subr.mxu0 0.0
    %5868 = vmatpush1.msra.mxu0 0.0
    %5869 = vmatprep.subr.mxu0 0.0
    %5870 = vmatpush1.msra.mxu0 0.0
    %5871 = vmatprep.subr.mxu0 0.0
    %5872 = vmatpush1.msra.mxu0 0.0
    %5873 = vmatprep.subr.mxu0 0.0
    %5874 = vmatpush1.msra.mxu0 0.0
    %5875 = vmatprep.subr.mxu0 0.0
    %5876 = vmatpush1.msra.mxu0 0.0
    %5877 = vmatprep.subr.mxu0 0.0
    %5878 = vmatpush1.msra.mxu0 0.0
    %5879 = vmatprep.subr.mxu0 0.0
    %5880 = vmatpush1.msra.mxu0 0.0
    %5881 = vmatprep.subr.mxu0 0.0
    %5882 = vmatpush1.msra.mxu0 0.0
    %5883 = vmatprep.subr.mxu0 0.0
    %5884 = vmatpush1.msra.mxu0 0.0
    %5885 = vmatprep.subr.mxu0 0.0
    %5886 = vmatpush1.msra.mxu0 0.0
    %5887 = vmatprep.mubr.f32.mxu0 0.0
    %5888 = vmatmul.mubr.f32.gmra.mrb[0].mxu0 %v5784
    %v5889 = vpop.f32.mrb[0].mxu0
    %v5890 = vadd.f32 %v5821, %v5889
    %v5891 = vpop.f32.mrb[0].mxu0
    %5892 = vmatprep.mubr.f32.mxu0 0.0
    %5893 = vmatmul.mubr.f32.gmra.mrb[0].mxu0 %v5785
    %v5894 = vpop.f32.mrb[0].mxu0
    %v5895 = vadd.f32 %v5821, %v5894
    %v5896 = vpop.f32.mrb[0].mxu0
    %5897 = vmatprep.mubr.f32.mxu0 0.0
    %5898 = vmatmul.mubr.f32.gmra.mrb[0].mxu0 %v5786
    %v5899 = vpop.f32.mrb[0].mxu0
    %v5900 = vadd.f32 %v5821, %v5899
    %v5901 = vpop.f32.mrb[0].mxu0
    %5902 = vmatprep.mubr.f32.mxu0 0.0
    %5903 = vmatmul.mubr.f32.gmra.mrb[0].mxu0 %v5787
    %v5904 = vpop.f32.mrb[0].mxu0
    %v5905 = vadd.f32 %v5821, %v5904
    %v5906 = vpop.f32.mrb[0].mxu0
    %5907 = vmatprep.mubr.f32.mxu0 0.0
    %5908 = vmatmul.mubr.f32.gmra.mrb[0].mxu0 %v5788
    %v5909 = vpop.f32.mrb[0].mxu0
    %v5910 = vadd.f32 %v5821, %v5909
    %v5911 = vpop.f32.mrb[0].mxu0
    %5912 = vmatprep.mubr.f32.mxu0 0.0
    %5913 = vmatmul.mubr.f32.gmra.mrb[0].mxu0 %v5789
    %v5914 = vpop.f32.mrb[0].mxu0
    %v5915 = vadd.f32 %v5821, %v5914
    %v5916 = vpop.f32.mrb[0].mxu0
    %5917 = vmatprep.mubr.f32.mxu0 0.0
    %5918 = vmatmul.mubr.f32.gmra.mrb[0].mxu0 %v5790
    %v5919 = vpop.f32.mrb[0].mxu0
    %v5920 = vadd.f32 %v5821, %v5919
    %v5921 = vpop.f32.mrb[0].mxu0
    %5922 = vmatprep.mubr.f32.mxu0 0.0
    %5923 = vmatmul.mubr.f32.gmra.mrb[0].mxu0 %v5791
    %v5924 = vpop.f32.mrb[0].mxu0
    %v5925 = vadd.f32 %v5821, %v5924
    %v5926 = vpop.f32.mrb[0].mxu0
    %5927 = vmatprep.mubr.f32.mxu0 0.0
    %5928 = vmatmul.mubr.f32.gmra.mrb[0].mxu0 %v5792
    %v5929 = vpop.f32.mrb[0].mxu0
    %v5930 = vadd.f32 %v5821, %v5929
    %v5931 = vpop.f32.mrb[0].mxu0
    %5932 = vmatprep.mubr.f32.mxu0 0.0
    %5933 = vmatmul.mubr.f32.gmra.mrb[0].mxu0 %v5793
    %v5934 = vpop.f32.mrb[0].mxu0
    %v5935 = vadd.f32 %v5821, %v5934
    %v5936 = vpop.f32.mrb[0].mxu0
    %5937 = vmatprep.mubr.f32.mxu0 0.0
    %5938 = vmatmul.mubr.f32.gmra.mrb[0].mxu0 %v5794
    %v5939 = vpop.f32.mrb[0].mxu0
    %v5940 = vadd.f32 %v5821, %v5939
    %v5941 = vpop.f32.mrb[0].mxu0
    %5942 = vmatprep.mubr.f32.mxu0 0.0
    %5943 = vmatmul.mubr.f32.gmra.mrb[0].mxu0 %v5795
    %v5944 = vpop.f32.mrb[0].mxu0
    %v5945 = vadd.f32 %v5821, %v5944
    %v5946 = vpop.f32.mrb[0].mxu0
    %5947 = vmatprep.mubr.f32.mxu0 0.0
    %5948 = vmatmul.mubr.f32.gmra.mrb[0].mxu0 %v5796
    %v5949 = vpop.f32.mrb[0].mxu0
    %v5950 = vadd.f32 %v5821, %v5949
    %v5951 = vpop.f32.mrb[0].mxu0
    %5952 = vmatprep.mubr.f32.mxu0 0.0
    %5953 = vmatmul.mubr.f32.gmra.mrb[0].mxu0 %v5797
    %v5954 = vpop.f32.mrb[0].mxu0
    %v5955 = vadd.f32 %v5821, %v5954
    %v5956 = vpop.f32.mrb[0].mxu0
    %5957 = vmatprep.mubr.f32.mxu0 0.0
    %5958 = vmatmul.mubr.f32.gmra.mrb[0].mxu0 %v5798
    %v5959 = vpop.f32.mrb[0].mxu0
    %v5960 = vadd.f32 %v5821, %v5959
    %v5961 = vpop.f32.mrb[0].mxu0
    %5962 = vmatprep.mubr.f32.mxu0 0.0
    %5963 = vmatmul.mubr.f32.gmra.mrb[0].mxu0 %v5799
    %v5964 = vpop.f32.mrb[0].mxu0
    %v5965 = vadd.f32 %v5821, %v5964
    %v5966 = vpop.f32.mrb[0].mxu0
    %5967 = vdwg.mxu0
    %v5968 = vadd.f32 %v5890, %v674
    %v5969 = vadd.f32 %v5895, %v679
    %v5970 = vadd.f32 %v5900, %v684
    %v5971 = vadd.f32 %v5905, %v689
    %v5972 = vadd.f32 %v5910, %v694
    %v5973 = vadd.f32 %v5915, %v699
    %v5974 = vadd.f32 %v5920, %v704
    %v5975 = vadd.f32 %v5925, %v709
    %v5976 = vadd.f32 %v5930, %v714
    %v5977 = vadd.f32 %v5935, %v719
    %v5978 = vadd.f32 %v5940, %v724
    %v5979 = vadd.f32 %v5945, %v729
    %v5980 = vadd.f32 %v5950, %v734
    %v5981 = vadd.f32 %v5955, %v739
    %v5982 = vadd.f32 %v5960, %v744
    %v5983 = vadd.f32 %v5965, %v749
    %5984 = vst.msk [vmem:[#allocation6] sm:$0xff] %vm223, %v5968
    %5985 = vst.msk [vmem:[#allocation6 + $0x8] sm:$0xff] %vm223, %v5969
    %5986 = vst.msk [vmem:[#allocation6 + $0x10] sm:$0xff] %vm223, %v5970
    %5987 = vst.msk [vmem:[#allocation6 + $0x18] sm:$0xff] %vm223, %v5971
    %5988 = vst.msk [vmem:[#allocation6 + $0x20] sm:$0xff] %vm223, %v5972
    %5989 = vst.msk [vmem:[#allocation6 + $0x28] sm:$0xff] %vm223, %v5973
    %5990 = vst.msk [vmem:[#allocation6 + $0x30] sm:$0xff] %vm223, %v5974
    %5991 = vst.msk [vmem:[#allocation6 + $0x38] sm:$0xff] %vm223, %v5975
    %5992 = vst.msk [vmem:[#allocation6 + $0x40] sm:$0xff] %vm223, %v5976
    %5993 = vst.msk [vmem:[#allocation6 + $0x48] sm:$0xff] %vm223, %v5977
    %5994 = vst.msk [vmem:[#allocation6 + $0x50] sm:$0xff] %vm223, %v5978
    %5995 = vst.msk [vmem:[#allocation6 + $0x58] sm:$0xff] %vm223, %v5979
    %5996 = vst.msk [vmem:[#allocation6 + $0x60] sm:$0xff] %vm223, %v5980
    %5997 = vst.msk [vmem:[#allocation6 + $0x68] sm:$0xff] %vm223, %v5981
    %5998 = vst.msk [vmem:[#allocation6 + $0x70] sm:$0xff] %vm223, %v5982
    %5999 = vst.msk [vmem:[#allocation6 + $0x78] sm:$0xff] %vm223, %v5983
    // Predicated region
    $region30: #{tpu_custom_call.1} parent=1 // pred_check
      _
    $region31: #{tpu_custom_call.1} parent=1 // pred_check_branch
      %6001 = sbr.rel (0) target = $region33
    $region32: #{tpu_custom_call.1} parent=1 // pred_region
      %s6003 = ssub.s32 2048, 2048
      %6004 = vsyncadd [#allocation7], %s6003
      %s6005 = sshll.u32 [#allocation6], 4
      %s6006 = int_to_ptr.vmem [resolvable:$true] %s6005
      %6011 = dma.vmem_to_hbm [thread:$0]  %s6006, 2048, %s7, [#allocation7], 128, 128, 8
    $region33: #{tpu_custom_call.1} parent=1 // pred_fallthru
      _
    // Predicated region
    $region34: #{tpu_custom_call.1} parent=1 // pred_check
      _
    $region35: #{tpu_custom_call.1} parent=1 // pred_check_branch
      %6013 = sbr.rel (0) target = $region37
    $region36: #{tpu_custom_call.1} parent=1 // pred_region
      %6014 = dma.done [#allocation7], 2048
    $region37: #{tpu_custom_call.1} parent=1 // pred_fallthru
      _
    %6015 = vsyncpa [#allocation7], 1

</llo_original>
